<compile_context>
chip_gen: v7x
topology: tpu7x:2x2x1
jax: 0.10.0
libtpu: 0.0.40
codegen_flags: <defaults>
</compile_context>

<pallas_src>
import jax
import jax.numpy as jnp
from jax.experimental import pallas as pl
from jax.experimental.pallas import tpu as pltpu

_COL_OFF = 8  # interior columns of the slab start at a sublane-tile boundary


# --------------------------------------------------------------------------
# Fused RDB kernel: one grid step == one batch element.
# Slab layout (VMEM scratch, f32):
#   shape (H+2, _COL_OFF + W + 1, Ctot)
#   rows    [1 : H+1]           = interior, rows 0 / H+1      = zero halo
#   cols    [8 : 8+W]           = interior, cols 7 / 8+W      = zero halo
#   chans   [0:64]=x  [64:96]=x1  [96:128]=x2  [128:160]=x3  [160:192]=x4
# --------------------------------------------------------------------------
def _rdb_fused_kernel(
    x_ref,
    w1_ref, sc1_ref, sh1_ref,
    w2_ref, sc2_ref, sh2_ref,
    w3_ref, sc3_ref, sh3_ref,
    w4_ref, sc4_ref, sh4_ref,
    wf_ref, scf_ref, shf_ref,
    a2w1_ref, a2b1_ref, a2w2_ref, a2b2_ref,
    a3w1_ref, a3b1_ref, a3w2_ref, a3b2_ref,
    a4w1_ref, a4b1_ref, a4w2_ref, a4b2_ref,
    a5w1_ref, a5b1_ref, a5w2_ref, a5b2_ref,
    o_ref,
    slab_ref,
):
    H, W, C0 = x_ref.shape
    Ctot = slab_ref.shape[-1]
    co = _COL_OFF

    # Zero the slab (only the halo ring really needs it; interior is always
    # overwritten before being read; a full VMEM clear is ~free at this size).
    slab_ref[...] = jnp.zeros(slab_ref.shape, slab_ref.dtype)
    slab_ref[1:H + 1, co:co + W, 0:C0] = x_ref[...].astype(jnp.float32)

    def se_attention(full, aw1_ref, ab1_ref, aw2_ref, ab2_ref):
        """SEBlock: sigmoid(W2 relu(W1 mean_hw(cat) + b1) + b2) -> (1, cin)."""
        cin = full.shape[-1]
        pooled = jnp.mean(full[1:H + 1, co:co + W, :].reshape(H * W, cin),
                          axis=0, keepdims=True)                     # (1, cin)
        h = jnp.dot(pooled, aw1_ref[...], preferred_element_type=jnp.float32)
        h = jnp.maximum(h + ab1_ref[...], 0.0)
        a = jnp.dot(h, aw2_ref[...], preferred_element_type=jnp.float32)
        return jax.nn.sigmoid(a + ab2_ref[...])                      # (1, cin)

    def conv3x3_bn_relu(full, w_ref, sc_ref, sh_ref):
        """3x3 conv (pad=1) as 9 shifted bf16 MXU matmuls + folded BN + ReLU."""
        cin = full.shape[-1]
        cout = w_ref.shape[-1]
        w = w_ref[...]                                    # (9, cin, cout) bf16
        acc = jnp.zeros((H * W, cout), jnp.float32)
        # TODO(synk): an im2col (K=9*cin) single matmul would cut the 9
        # shifted-slice relayouts and fill the MXU better at larger H*W.
        for dy in range(3):
            for dx in range(3):
                patch = full[dy:dy + H, co - 1 + dx:co - 1 + dx + W, :]
                patch = patch.reshape(H * W, cin).astype(jnp.bfloat16)
                acc = acc + jnp.dot(patch, w[dy * 3 + dx],
                                    preferred_element_type=jnp.float32)
        return jnp.maximum(acc * sc_ref[...] + sh_ref[...], 0.0)  # (H*W, cout)

    # ---- stage 1: conv on x only (no SE) ---------------------------------
    full = slab_ref[:, :, 0:C0]
    x1 = conv3x3_bn_relu(full, w1_ref, sc1_ref, sh1_ref)
    ic = x1.shape[-1]
    slab_ref[1:H + 1, co:co + W, C0:C0 + ic] = x1.reshape(H, W, ic)

    # ---- stages 2..4: cat_k * SE(cat_k) -> conv -> append to the slab ----
    stages = (
        (w2_ref, sc2_ref, sh2_ref, a2w1_ref, a2b1_ref, a2w2_ref, a2b2_ref),
        (w3_ref, sc3_ref, sh3_ref, a3w1_ref, a3b1_ref, a3w2_ref, a3b2_ref),
        (w4_ref, sc4_ref, sh4_ref, a4w1_ref, a4b1_ref, a4w2_ref, a4b2_ref),
    )
    for wr, scr, shr, aw1, ab1, aw2, ab2 in stages:
        cin = wr.shape[1]               # == slab channel offset for new x_k
        cout = wr.shape[-1]
        full = slab_ref[:, :, 0:cin]
        att = se_attention(full, aw1, ab1, aw2, ab2)                 # (1, cin)
        xk = conv3x3_bn_relu(full * att.reshape(1, 1, cin), wr, scr, shr)
        slab_ref[1:H + 1, co:co + W, cin:cin + cout] = xk.reshape(H, W, cout)

    # ---- fusion: cat5 * SE(cat5) -> 1x1 conv -> BN -> ReLU -> + x --------
    full = slab_ref[...]
    att5 = se_attention(full, a5w1_ref, a5b1_ref, a5w2_ref, a5b2_ref)
    cat5 = full[1:H + 1, co:co + W, :].reshape(H * W, Ctot)
    z = jnp.dot((cat5 * att5).astype(jnp.bfloat16), wf_ref[...],
                preferred_element_type=jnp.float32)
    y = jnp.maximum(z * scf_ref[...] + shf_ref[...], 0.0)           # (H*W, C0)
    out = y + cat5[:, 0:C0]                                         # + residual x
    o_ref[...] = out.reshape(H, W, C0).astype(o_ref.dtype)
    # TODO(synk): label/KL-loss branch (has_GCB path) not implemented — only
    # reachable when label is provided and has_GCB=True.


# --------------------------------------------------------------------------
# Parameters (deterministic, synthetic).  Conv/fusion weights stored in bf16
# (MXU operands); BN folded into f32 scale/shift; SE weights in f32.
# --------------------------------------------------------------------------
def _fold_bn(conv_bias, gamma, beta, mean, var, eps=1e-5):
    scale = gamma / jnp.sqrt(var + eps)
    shift = beta + scale * (conv_bias - mean)
    return scale, shift


def make_params(key, channel=64, inter_channel=32):
    keys = iter(jax.random.split(key, 64))

    def nrm(shape, s=0.05):
        return jax.random.normal(next(keys), shape, jnp.float32) * s

    params = {}
    for k in range(1, 5):
        cin = channel + inter_channel * (k - 1)
        cout = inter_channel
        w = nrm((3, 3, cin, cout))                                   # HWIO
        bias, gamma, beta = nrm((cout,)), 1.0 + nrm((cout,)), nrm((cout,))
        mean, var = nrm((cout,)), 1.0 + jnp.abs(nrm((cout,)))
        scale, shift = _fold_bn(bias, gamma, beta, mean, var)
        params[f"block{k}"] = dict(
            w9=w.reshape(9, cin, cout).astype(jnp.bfloat16),
            scale=scale.reshape(1, cout),
            shift=shift.reshape(1, cout))
    cin, cout = channel + inter_channel * 4, channel
    w = nrm((cin, cout))
    bias, gamma, beta = nrm((cout,)), 1.0 + nrm((cout,)), nrm((cout,))
    mean, var = nrm((cout,)), 1.0 + jnp.abs(nrm((cout,)))
    scale, shift = _fold_bn(bias, gamma, beta, mean, var)
    params["fusion"] = dict(w=w.astype(jnp.bfloat16),
                            scale=scale.reshape(1, cout),
                            shift=shift.reshape(1, cout))
    for k in range(2, 6):
        c = channel + inter_channel * (k - 1)
        cmid = c // 2
        params[f"se{k}"] = dict(w1=nrm((c, cmid)), b1=nrm((1, cmid)),
                                w2=nrm((cmid, c)), b2=nrm((1, c)))
    return params


# --------------------------------------------------------------------------
# Wrapper: NCHW in / NCHW out, one fused pallas_call over the batch grid.
# --------------------------------------------------------------------------
@jax.jit
def rdb_forward(x_nchw, params):
    x = jnp.transpose(x_nchw, (0, 2, 3, 1))                # NCHW -> NHWC
    B, H, W, C0 = x.shape
    IC = params["block1"]["w9"].shape[-1]
    Ctot = C0 + 4 * IC

    flat_inputs = [x]
    in_specs = [pl.BlockSpec((None, H, W, C0), lambda b: (b, 0, 0, 0))]

    def add_full(arr):
        flat_inputs.append(arr)
        in_specs.append(
            pl.BlockSpec(arr.shape, lambda b, _n=arr.ndim: (0,) * _n))

    for k in range(1, 5):
        p = params[f"block{k}"]
        add_full(p["w9"]); add_full(p["scale"]); add_full(p["shift"])
    pf = params["fusion"]
    add_full(pf["w"]); add_full(pf["scale"]); add_full(pf["shift"])
    for k in range(2, 6):
        p = params[f"se{k}"]
        add_full(p["w1"]); add_full(p["b1"]); add_full(p["w2"]); add_full(p["b2"])

    hw = H * W
    conv_flops = sum(2 * hw * 9 * (C0 + IC * (k - 1)) * IC for k in range(1, 5))
    fusion_flops = 2 * hw * Ctot * C0
    se_flops = sum(4 * c * (c // 2) for c in (C0 + IC * k for k in range(1, 5)))
    flops = B * (conv_flops + fusion_flops + se_flops)
    transcendentals = B * sum(C0 + IC * k for k in range(1, 5))     # sigmoids
    bytes_accessed = int(
        x.size * x.dtype.itemsize + B * hw * C0 * x.dtype.itemsize
        + sum(int(a.size) * a.dtype.itemsize for a in flat_inputs[1:]))

    out_nhwc = pl.pallas_call(
        _rdb_fused_kernel,
        out_shape=jax.ShapeDtypeStruct((B, H, W, C0), x.dtype),
        grid=(B,),
        in_specs=in_specs,
        out_specs=pl.BlockSpec((None, H, W, C0), lambda b: (b, 0, 0, 0)),
        scratch_shapes=[
            pltpu.VMEM((H + 2, _COL_OFF + W + 1, Ctot), jnp.float32)],
        compiler_params=pltpu.CompilerParams(
            dimension_semantics=("parallel",)),
        cost_estimate=pl.CostEstimate(
            flops=int(flops), transcendentals=int(transcendentals),
            bytes_accessed=bytes_accessed),
    )(*flat_inputs)
    # TODO(synk): for large H/W add a spatial row-tile grid axis with a 1-row
    # halo and set vmem_limit_bytes (v7x has only 64 MiB VMEM); at small sizes
    # the whole block fits in VMEM in a single step per batch.
    return jnp.transpose(out_nhwc, (0, 3, 1, 2))           # NHWC -> NCHW


# --------------------------------------------------------------------------
# Pure-JAX reference (same folded-BN eval-mode semantics) for validation.
# --------------------------------------------------------------------------
def rdb_reference(x_nchw, params):
    x = jnp.transpose(x_nchw, (0, 2, 3, 1)).astype(jnp.float32)

    def conv3(h, p):
        cin = h.shape[-1]
        w = p["w9"].astype(jnp.float32).reshape(3, 3, cin, -1)
        y = jax.lax.conv_general_dilated(
            h, w, window_strides=(1, 1), padding="SAME",
            dimension_numbers=("NHWC", "HWIO", "NHWC"))
        return jnp.maximum(y * p["scale"][0] + p["shift"][0], 0.0)

    def se(h, p):
        m = jnp.mean(h, axis=(1, 2))
        a = jnp.maximum(m @ p["w1"] + p["b1"], 0.0)
        a = jax.nn.sigmoid(a @ p["w2"] + p["b2"])
        return h * a[:, None, None, :]

    x1 = conv3(x, params["block1"])
    c2 = jnp.concatenate([x, x1], -1)
    x2 = conv3(se(c2, params["se2"]), params["block2"])
    c3 = jnp.concatenate([x, x1, x2], -1)
    x3 = conv3(se(c3, params["se3"]), params["block3"])
    c4 = jnp.concatenate([x, x1, x2, x3], -1)
    x4 = conv3(se(c4, params["se4"]), params["block4"])
    c5 = jnp.concatenate([x, x1, x2, x3, x4], -1)
    h = se(c5, params["se5"])
    z = jnp.einsum("bhwc,cd->bhwd", h, params["fusion"]["w"].astype(jnp.float32))
    y = jnp.maximum(z * params["fusion"]["scale"][0]
                    + params["fusion"]["shift"][0], 0.0)
    return jnp.transpose(y + x, (0, 3, 1, 2))


if __name__ == "__main__":
    key = jax.random.PRNGKey(0)
    k_x, k_p = jax.random.split(key)

    B, C, H, W = 2, 64, 8, 8                     # channel=64 (module default)
    x = jax.random.normal(k_x, (B, C, H, W), jnp.float32)
    params = make_params(k_p, channel=64, inter_channel=32)

    out = jax.block_until_ready(rdb_forward(x, params))
    assert out.shape == (B, C, H, W), out.shape
    assert bool(jnp.all(jnp.isfinite(out)))

    ref = jax.block_until_ready(rdb_reference(x, params))
    err = float(jnp.max(jnp.abs(out - ref)))
    assert err < 0.25, f"max abs diff vs reference too large: {err}"

    print("KERNEL_OK")
</pallas_src>

<mosaic_0001>
module attributes {stable_mosaic.version = 11 : i64} {
  func.func @_rdb_fused_kernel(%arg0: i32, %arg1: memref<1x8x8x64xf32, #tpu.memory_space<vmem>>, %arg2: memref<9x64x32xbf16, #tpu.memory_space<vmem>>, %arg3: memref<1x32xf32, #tpu.memory_space<vmem>>, %arg4: memref<1x32xf32, #tpu.memory_space<vmem>>, %arg5: memref<9x96x32xbf16, #tpu.memory_space<vmem>>, %arg6: memref<1x32xf32, #tpu.memory_space<vmem>>, %arg7: memref<1x32xf32, #tpu.memory_space<vmem>>, %arg8: memref<9x128x32xbf16, #tpu.memory_space<vmem>>, %arg9: memref<1x32xf32, #tpu.memory_space<vmem>>, %arg10: memref<1x32xf32, #tpu.memory_space<vmem>>, %arg11: memref<9x160x32xbf16, #tpu.memory_space<vmem>>, %arg12: memref<1x32xf32, #tpu.memory_space<vmem>>, %arg13: memref<1x32xf32, #tpu.memory_space<vmem>>, %arg14: memref<192x64xbf16, #tpu.memory_space<vmem>>, %arg15: memref<1x64xf32, #tpu.memory_space<vmem>>, %arg16: memref<1x64xf32, #tpu.memory_space<vmem>>, %arg17: memref<96x48xf32, #tpu.memory_space<vmem>>, %arg18: memref<1x48xf32, #tpu.memory_space<vmem>>, %arg19: memref<48x96xf32, #tpu.memory_space<vmem>>, %arg20: memref<1x96xf32, #tpu.memory_space<vmem>>, %arg21: memref<128x64xf32, #tpu.memory_space<vmem>>, %arg22: memref<1x64xf32, #tpu.memory_space<vmem>>, %arg23: memref<64x128xf32, #tpu.memory_space<vmem>>, %arg24: memref<1x128xf32, #tpu.memory_space<vmem>>, %arg25: memref<160x80xf32, #tpu.memory_space<vmem>>, %arg26: memref<1x80xf32, #tpu.memory_space<vmem>>, %arg27: memref<80x160xf32, #tpu.memory_space<vmem>>, %arg28: memref<1x160xf32, #tpu.memory_space<vmem>>, %arg29: memref<192x96xf32, #tpu.memory_space<vmem>>, %arg30: memref<1x96xf32, #tpu.memory_space<vmem>>, %arg31: memref<96x192xf32, #tpu.memory_space<vmem>>, %arg32: memref<1x192xf32, #tpu.memory_space<vmem>>, %arg33: memref<1x8x8x64xf32, #tpu.memory_space<vmem>>, %arg34: memref<10x17x192xf32, #tpu.memory_space<vmem>>) attributes {dimension_semantics = [#tpu.dimension_semantics<parallel>], iteration_bounds = array<i64: 2>, scalar_prefetch = 0 : i64, scratch_operands = 1 : i64, tpu.core_type = #tpu.core_type<tc>, window_params = [{transform_indices = @transform_0, window_bounds = array<i64: 1, 8, 8, 64>}, {pipeline_mode = #tpu.pipeline_mode<synchronous>, transform_indices = @transform_1, window_bounds = array<i64: 9, 64, 32>}, {pipeline_mode = #tpu.pipeline_mode<synchronous>, transform_indices = @transform_2, window_bounds = array<i64: 1, 32>}, {pipeline_mode = #tpu.pipeline_mode<synchronous>, transform_indices = @transform_3, window_bounds = array<i64: 1, 32>}, {pipeline_mode = #tpu.pipeline_mode<synchronous>, transform_indices = @transform_4, window_bounds = array<i64: 9, 96, 32>}, {pipeline_mode = #tpu.pipeline_mode<synchronous>, transform_indices = @transform_5, window_bounds = array<i64: 1, 32>}, {pipeline_mode = #tpu.pipeline_mode<synchronous>, transform_indices = @transform_6, window_bounds = array<i64: 1, 32>}, {pipeline_mode = #tpu.pipeline_mode<synchronous>, transform_indices = @transform_7, window_bounds = array<i64: 9, 128, 32>}, {pipeline_mode = #tpu.pipeline_mode<synchronous>, transform_indices = @transform_8, window_bounds = array<i64: 1, 32>}, {pipeline_mode = #tpu.pipeline_mode<synchronous>, transform_indices = @transform_9, window_bounds = array<i64: 1, 32>}, {pipeline_mode = #tpu.pipeline_mode<synchronous>, transform_indices = @transform_10, window_bounds = array<i64: 9, 160, 32>}, {pipeline_mode = #tpu.pipeline_mode<synchronous>, transform_indices = @transform_11, window_bounds = array<i64: 1, 32>}, {pipeline_mode = #tpu.pipeline_mode<synchronous>, transform_indices = @transform_12, window_bounds = array<i64: 1, 32>}, {pipeline_mode = #tpu.pipeline_mode<synchronous>, transform_indices = @transform_13, window_bounds = array<i64: 192, 64>}, {pipeline_mode = #tpu.pipeline_mode<synchronous>, transform_indices = @transform_14, window_bounds = array<i64: 1, 64>}, {pipeline_mode = #tpu.pipeline_mode<synchronous>, transform_indices = @transform_15, window_bounds = array<i64: 1, 64>}, {pipeline_mode = #tpu.pipeline_mode<synchronous>, transform_indices = @transform_16, window_bounds = array<i64: 96, 48>}, {pipeline_mode = #tpu.pipeline_mode<synchronous>, transform_indices = @transform_17, window_bounds = array<i64: 1, 48>}, {pipeline_mode = #tpu.pipeline_mode<synchronous>, transform_indices = @transform_18, window_bounds = array<i64: 48, 96>}, {pipeline_mode = #tpu.pipeline_mode<synchronous>, transform_indices = @transform_19, window_bounds = array<i64: 1, 96>}, {pipeline_mode = #tpu.pipeline_mode<synchronous>, transform_indices = @transform_20, window_bounds = array<i64: 128, 64>}, {pipeline_mode = #tpu.pipeline_mode<synchronous>, transform_indices = @transform_21, window_bounds = array<i64: 1, 64>}, {pipeline_mode = #tpu.pipeline_mode<synchronous>, transform_indices = @transform_22, window_bounds = array<i64: 64, 128>}, {pipeline_mode = #tpu.pipeline_mode<synchronous>, transform_indices = @transform_23, window_bounds = array<i64: 1, 128>}, {pipeline_mode = #tpu.pipeline_mode<synchronous>, transform_indices = @transform_24, window_bounds = array<i64: 160, 80>}, {pipeline_mode = #tpu.pipeline_mode<synchronous>, transform_indices = @transform_25, window_bounds = array<i64: 1, 80>}, {pipeline_mode = #tpu.pipeline_mode<synchronous>, transform_indices = @transform_26, window_bounds = array<i64: 80, 160>}, {pipeline_mode = #tpu.pipeline_mode<synchronous>, transform_indices = @transform_27, window_bounds = array<i64: 1, 160>}, {pipeline_mode = #tpu.pipeline_mode<synchronous>, transform_indices = @transform_28, window_bounds = array<i64: 192, 96>}, {pipeline_mode = #tpu.pipeline_mode<synchronous>, transform_indices = @transform_29, window_bounds = array<i64: 1, 96>}, {pipeline_mode = #tpu.pipeline_mode<synchronous>, transform_indices = @transform_30, window_bounds = array<i64: 96, 192>}, {pipeline_mode = #tpu.pipeline_mode<synchronous>, transform_indices = @transform_31, window_bounds = array<i64: 1, 192>}, {transform_indices = @transform_32, window_bounds = array<i64: 1, 8, 8, 64>}]} {
    %cst = arith.constant 0.000000e+00 : f32
    %0 = vector.broadcast %cst : f32 to vector<10x17x192xf32>
    %c0 = arith.constant 0 : index
    %c0_0 = arith.constant 0 : index
    %c0_1 = arith.constant 0 : index
    %1 = vector.load %arg34[%c0, %c0_0, %c0_1] : memref<10x17x192xf32, #tpu.memory_space<vmem>>, vector<10x17x192xf32>
    tpu.vector_store %arg34[%c0, %c0_0, %c0_1], %0 {strides = array<i32>} : memref<10x17x192xf32, #tpu.memory_space<vmem>>, vector<10x17x192xf32>,
    %c0_2 = arith.constant 0 : index
    %c0_3 = arith.constant 0 : index
    %c0_4 = arith.constant 0 : index
    %c0_5 = arith.constant 0 : index
    %2 = vector.load %arg1[%c0_2, %c0_3, %c0_4, %c0_5] : memref<1x8x8x64xf32, #tpu.memory_space<vmem>>, vector<1x8x8x64xf32>
    %3 = vector.shape_cast %2 : vector<1x8x8x64xf32> to vector<8x8x64xf32>
    %c1 = arith.constant 1 : index
    %c8 = arith.constant 8 : index
    %c0_6 = arith.constant 0 : index
    %4 = vector.load %arg34[%c1, %c8, %c0_6] : memref<10x17x192xf32, #tpu.memory_space<vmem>>, vector<8x8x64xf32>
    tpu.vector_store %arg34[%c1, %c8, %c0_6], %3 {strides = array<i32>} : memref<10x17x192xf32, #tpu.memory_space<vmem>>, vector<8x8x64xf32>,
    %c0_7 = arith.constant 0 : index
    %c0_8 = arith.constant 0 : index
    %c0_9 = arith.constant 0 : index
    %5 = vector.load %arg34[%c0_7, %c0_8, %c0_9] : memref<10x17x192xf32, #tpu.memory_space<vmem>>, vector<10x17x64xf32>
    %c0_10 = arith.constant 0 : index
    %c0_11 = arith.constant 0 : index
    %c0_12 = arith.constant 0 : index
    %6 = vector.load %arg2[%c0_10, %c0_11, %c0_12] : memref<9x64x32xbf16, #tpu.memory_space<vmem>>, vector<9x64x32xbf16>
    %cst_13 = arith.constant 0.000000e+00 : f32
    %7 = vector.broadcast %cst_13 : f32 to vector<64x32xf32>
    %8 = vector.extract_strided_slice %5 {offsets = [0, 7, 0], sizes = [8, 8, 64], strides = [1, 1, 1]} : vector<10x17x64xf32> to vector<8x8x64xf32>
    %9 = vector.shape_cast %8 : vector<8x8x64xf32> to vector<64x64xf32>
    %10 = arith.truncf %9 : vector<64x64xf32> to vector<64x64xbf16>
    %11 = vector.extract_strided_slice %6 {offsets = [0, 0, 0], sizes = [1, 64, 32], strides = [1, 1, 1]} : vector<9x64x32xbf16> to vector<1x64x32xbf16>
    %12 = vector.shape_cast %11 : vector<1x64x32xbf16> to vector<64x32xbf16>
    %cst_14 = arith.constant dense<0.000000e+00> : vector<64x32xf32>
    %13 = tpu.matmul %10, %12, %cst_14 {dimension_numbers = #tpu.dot_dimension_numbers<[1], [0], [0], [1], [0, 0, 1, 1], [], []>} : vector<64x64xbf16>, vector<64x32xbf16>, vector<64x32xf32> -> vector<64x32xf32>
    %14 = arith.addf %7, %13 : vector<64x32xf32>
    %15 = vector.extract_strided_slice %5 {offsets = [0, 8, 0], sizes = [8, 8, 64], strides = [1, 1, 1]} : vector<10x17x64xf32> to vector<8x8x64xf32>
    %16 = vector.shape_cast %15 : vector<8x8x64xf32> to vector<64x64xf32>
    %17 = arith.truncf %16 : vector<64x64xf32> to vector<64x64xbf16>
    %18 = vector.extract_strided_slice %6 {offsets = [1, 0, 0], sizes = [1, 64, 32], strides = [1, 1, 1]} : vector<9x64x32xbf16> to vector<1x64x32xbf16>
    %19 = vector.shape_cast %18 : vector<1x64x32xbf16> to vector<64x32xbf16>
    %cst_15 = arith.constant dense<0.000000e+00> : vector<64x32xf32>
    %20 = tpu.matmul %17, %19, %cst_15 {dimension_numbers = #tpu.dot_dimension_numbers<[1], [0], [0], [1], [0, 0, 1, 1], [], []>} : vector<64x64xbf16>, vector<64x32xbf16>, vector<64x32xf32> -> vector<64x32xf32>
    %21 = arith.addf %14, %20 : vector<64x32xf32>
    %22 = vector.extract_strided_slice %5 {offsets = [0, 9, 0], sizes = [8, 8, 64], strides = [1, 1, 1]} : vector<10x17x64xf32> to vector<8x8x64xf32>
    %23 = vector.shape_cast %22 : vector<8x8x64xf32> to vector<64x64xf32>
    %24 = arith.truncf %23 : vector<64x64xf32> to vector<64x64xbf16>
    %25 = vector.extract_strided_slice %6 {offsets = [2, 0, 0], sizes = [1, 64, 32], strides = [1, 1, 1]} : vector<9x64x32xbf16> to vector<1x64x32xbf16>
    %26 = vector.shape_cast %25 : vector<1x64x32xbf16> to vector<64x32xbf16>
    %cst_16 = arith.constant dense<0.000000e+00> : vector<64x32xf32>
    %27 = tpu.matmul %24, %26, %cst_16 {dimension_numbers = #tpu.dot_dimension_numbers<[1], [0], [0], [1], [0, 0, 1, 1], [], []>} : vector<64x64xbf16>, vector<64x32xbf16>, vector<64x32xf32> -> vector<64x32xf32>
    %28 = arith.addf %21, %27 : vector<64x32xf32>
    %29 = vector.extract_strided_slice %5 {offsets = [1, 7, 0], sizes = [8, 8, 64], strides = [1, 1, 1]} : vector<10x17x64xf32> to vector<8x8x64xf32>
    %30 = vector.shape_cast %29 : vector<8x8x64xf32> to vector<64x64xf32>
    %31 = arith.truncf %30 : vector<64x64xf32> to vector<64x64xbf16>
    %32 = vector.extract_strided_slice %6 {offsets = [3, 0, 0], sizes = [1, 64, 32], strides = [1, 1, 1]} : vector<9x64x32xbf16> to vector<1x64x32xbf16>
    %33 = vector.shape_cast %32 : vector<1x64x32xbf16> to vector<64x32xbf16>
    %cst_17 = arith.constant dense<0.000000e+00> : vector<64x32xf32>
    %34 = tpu.matmul %31, %33, %cst_17 {dimension_numbers = #tpu.dot_dimension_numbers<[1], [0], [0], [1], [0, 0, 1, 1], [], []>} : vector<64x64xbf16>, vector<64x32xbf16>, vector<64x32xf32> -> vector<64x32xf32>
    %35 = arith.addf %28, %34 : vector<64x32xf32>
    %36 = vector.extract_strided_slice %5 {offsets = [1, 8, 0], sizes = [8, 8, 64], strides = [1, 1, 1]} : vector<10x17x64xf32> to vector<8x8x64xf32>
    %37 = vector.shape_cast %36 : vector<8x8x64xf32> to vector<64x64xf32>
    %38 = arith.truncf %37 : vector<64x64xf32> to vector<64x64xbf16>
    %39 = vector.extract_strided_slice %6 {offsets = [4, 0, 0], sizes = [1, 64, 32], strides = [1, 1, 1]} : vector<9x64x32xbf16> to vector<1x64x32xbf16>
    %40 = vector.shape_cast %39 : vector<1x64x32xbf16> to vector<64x32xbf16>
    %cst_18 = arith.constant dense<0.000000e+00> : vector<64x32xf32>
    %41 = tpu.matmul %38, %40, %cst_18 {dimension_numbers = #tpu.dot_dimension_numbers<[1], [0], [0], [1], [0, 0, 1, 1], [], []>} : vector<64x64xbf16>, vector<64x32xbf16>, vector<64x32xf32> -> vector<64x32xf32>
    %42 = arith.addf %35, %41 : vector<64x32xf32>
    %43 = vector.extract_strided_slice %5 {offsets = [1, 9, 0], sizes = [8, 8, 64], strides = [1, 1, 1]} : vector<10x17x64xf32> to vector<8x8x64xf32>
    %44 = vector.shape_cast %43 : vector<8x8x64xf32> to vector<64x64xf32>
    %45 = arith.truncf %44 : vector<64x64xf32> to vector<64x64xbf16>
    %46 = vector.extract_strided_slice %6 {offsets = [5, 0, 0], sizes = [1, 64, 32], strides = [1, 1, 1]} : vector<9x64x32xbf16> to vector<1x64x32xbf16>
    %47 = vector.shape_cast %46 : vector<1x64x32xbf16> to vector<64x32xbf16>
    %cst_19 = arith.constant dense<0.000000e+00> : vector<64x32xf32>
    %48 = tpu.matmul %45, %47, %cst_19 {dimension_numbers = #tpu.dot_dimension_numbers<[1], [0], [0], [1], [0, 0, 1, 1], [], []>} : vector<64x64xbf16>, vector<64x32xbf16>, vector<64x32xf32> -> vector<64x32xf32>
    %49 = arith.addf %42, %48 : vector<64x32xf32>
    %50 = vector.extract_strided_slice %5 {offsets = [2, 7, 0], sizes = [8, 8, 64], strides = [1, 1, 1]} : vector<10x17x64xf32> to vector<8x8x64xf32>
    %51 = vector.shape_cast %50 : vector<8x8x64xf32> to vector<64x64xf32>
    %52 = arith.truncf %51 : vector<64x64xf32> to vector<64x64xbf16>
    %53 = vector.extract_strided_slice %6 {offsets = [6, 0, 0], sizes = [1, 64, 32], strides = [1, 1, 1]} : vector<9x64x32xbf16> to vector<1x64x32xbf16>
    %54 = vector.shape_cast %53 : vector<1x64x32xbf16> to vector<64x32xbf16>
    %cst_20 = arith.constant dense<0.000000e+00> : vector<64x32xf32>
    %55 = tpu.matmul %52, %54, %cst_20 {dimension_numbers = #tpu.dot_dimension_numbers<[1], [0], [0], [1], [0, 0, 1, 1], [], []>} : vector<64x64xbf16>, vector<64x32xbf16>, vector<64x32xf32> -> vector<64x32xf32>
    %56 = arith.addf %49, %55 : vector<64x32xf32>
    %57 = vector.extract_strided_slice %5 {offsets = [2, 8, 0], sizes = [8, 8, 64], strides = [1, 1, 1]} : vector<10x17x64xf32> to vector<8x8x64xf32>
    %58 = vector.shape_cast %57 : vector<8x8x64xf32> to vector<64x64xf32>
    %59 = arith.truncf %58 : vector<64x64xf32> to vector<64x64xbf16>
    %60 = vector.extract_strided_slice %6 {offsets = [7, 0, 0], sizes = [1, 64, 32], strides = [1, 1, 1]} : vector<9x64x32xbf16> to vector<1x64x32xbf16>
    %61 = vector.shape_cast %60 : vector<1x64x32xbf16> to vector<64x32xbf16>
    %cst_21 = arith.constant dense<0.000000e+00> : vector<64x32xf32>
    %62 = tpu.matmul %59, %61, %cst_21 {dimension_numbers = #tpu.dot_dimension_numbers<[1], [0], [0], [1], [0, 0, 1, 1], [], []>} : vector<64x64xbf16>, vector<64x32xbf16>, vector<64x32xf32> -> vector<64x32xf32>
    %63 = arith.addf %56, %62 : vector<64x32xf32>
    %64 = vector.extract_strided_slice %5 {offsets = [2, 9, 0], sizes = [8, 8, 64], strides = [1, 1, 1]} : vector<10x17x64xf32> to vector<8x8x64xf32>
    %65 = vector.shape_cast %64 : vector<8x8x64xf32> to vector<64x64xf32>
    %66 = arith.truncf %65 : vector<64x64xf32> to vector<64x64xbf16>
    %67 = vector.extract_strided_slice %6 {offsets = [8, 0, 0], sizes = [1, 64, 32], strides = [1, 1, 1]} : vector<9x64x32xbf16> to vector<1x64x32xbf16>
    %68 = vector.shape_cast %67 : vector<1x64x32xbf16> to vector<64x32xbf16>
    %cst_22 = arith.constant dense<0.000000e+00> : vector<64x32xf32>
    %69 = tpu.matmul %66, %68, %cst_22 {dimension_numbers = #tpu.dot_dimension_numbers<[1], [0], [0], [1], [0, 0, 1, 1], [], []>} : vector<64x64xbf16>, vector<64x32xbf16>, vector<64x32xf32> -> vector<64x32xf32>
    %70 = arith.addf %63, %69 : vector<64x32xf32>
    %c0_23 = arith.constant 0 : index
    %c0_24 = arith.constant 0 : index
    %71 = vector.load %arg3[%c0_23, %c0_24] : memref<1x32xf32, #tpu.memory_space<vmem>>, vector<1x32xf32>
    %72 = vector.broadcast %71 : vector<1x32xf32> to vector<64x32xf32>
    %73 = arith.mulf %70, %72 : vector<64x32xf32>
    %c0_25 = arith.constant 0 : index
    %c0_26 = arith.constant 0 : index
    %74 = vector.load %arg4[%c0_25, %c0_26] : memref<1x32xf32, #tpu.memory_space<vmem>>, vector<1x32xf32>
    %75 = vector.broadcast %74 : vector<1x32xf32> to vector<64x32xf32>
    %76 = arith.addf %73, %75 : vector<64x32xf32>
    %cst_27 = arith.constant 0.000000e+00 : f32
    %77 = vector.broadcast %cst_27 : f32 to vector<64x32xf32>
    %78 = arith.maximumf %76, %77 : vector<64x32xf32>
    %79 = vector.shape_cast %78 : vector<64x32xf32> to vector<8x8x32xf32>
    %c1_28 = arith.constant 1 : index
    %c8_29 = arith.constant 8 : index
    %c64 = arith.constant 64 : index
    %80 = vector.load %arg34[%c1_28, %c8_29, %c64] : memref<10x17x192xf32, #tpu.memory_space<vmem>>, vector<8x8x32xf32>
    tpu.vector_store %arg34[%c1_28, %c8_29, %c64], %79 {strides = array<i32>} : memref<10x17x192xf32, #tpu.memory_space<vmem>>, vector<8x8x32xf32>,
    %c0_30 = arith.constant 0 : index
    %c0_31 = arith.constant 0 : index
    %c0_32 = arith.constant 0 : index
    %81 = vector.load %arg34[%c0_30, %c0_31, %c0_32] : memref<10x17x192xf32, #tpu.memory_space<vmem>>, vector<10x17x96xf32>
    %82 = vector.extract_strided_slice %81 {offsets = [1, 8, 0], sizes = [8, 8, 96], strides = [1, 1, 1]} : vector<10x17x96xf32> to vector<8x8x96xf32>
    %83 = vector.shape_cast %82 : vector<8x8x96xf32> to vector<64x96xf32>
    %cst_33 = arith.constant dense<0.000000e+00> : vector<96xf32>
    %84 = vector.multi_reduction <add>, %83, %cst_33 [0] : vector<64x96xf32> to vector<96xf32>
    %85 = vector.shape_cast %84 : vector<96xf32> to vector<1x96xf32>
    %cst_34 = arith.constant 6.400000e+01 : f32
    %86 = vector.broadcast %cst_34 : f32 to vector<1x96xf32>
    %87 = arith.divf %85, %86 : vector<1x96xf32>
    %c0_35 = arith.constant 0 : index
    %c0_36 = arith.constant 0 : index
    %88 = vector.load %arg17[%c0_35, %c0_36] : memref<96x48xf32, #tpu.memory_space<vmem>>, vector<96x48xf32>
    %cst_37 = arith.constant dense<0.000000e+00> : vector<1x48xf32>
    %89 = tpu.matmul %87, %88, %cst_37 {dimension_numbers = #tpu.dot_dimension_numbers<[1], [0], [0], [1], [0, 0, 1, 1], [], []>} : vector<1x96xf32>, vector<96x48xf32>, vector<1x48xf32> -> vector<1x48xf32>
    %c0_38 = arith.constant 0 : index
    %c0_39 = arith.constant 0 : index
    %90 = vector.load %arg18[%c0_38, %c0_39] : memref<1x48xf32, #tpu.memory_space<vmem>>, vector<1x48xf32>
    %91 = arith.addf %89, %90 : vector<1x48xf32>
    %cst_40 = arith.constant 0.000000e+00 : f32
    %92 = vector.broadcast %cst_40 : f32 to vector<1x48xf32>
    %93 = arith.maximumf %91, %92 : vector<1x48xf32>
    %c0_41 = arith.constant 0 : index
    %c0_42 = arith.constant 0 : index
    %94 = vector.load %arg19[%c0_41, %c0_42] : memref<48x96xf32, #tpu.memory_space<vmem>>, vector<48x96xf32>
    %cst_43 = arith.constant dense<0.000000e+00> : vector<1x96xf32>
    %95 = tpu.matmul %93, %94, %cst_43 {dimension_numbers = #tpu.dot_dimension_numbers<[1], [0], [0], [1], [0, 0, 1, 1], [], []>} : vector<1x48xf32>, vector<48x96xf32>, vector<1x96xf32> -> vector<1x96xf32>
    %c0_44 = arith.constant 0 : index
    %c0_45 = arith.constant 0 : index
    %96 = vector.load %arg20[%c0_44, %c0_45] : memref<1x96xf32, #tpu.memory_space<vmem>>, vector<1x96xf32>
    %97 = arith.addf %95, %96 : vector<1x96xf32>
    %98 = arith.negf %97 : vector<1x96xf32>
    %99 = math.exp %98 : vector<1x96xf32>
    %cst_46 = arith.constant 1.000000e+00 : f32
    %100 = vector.broadcast %cst_46 : f32 to vector<1x96xf32>
    %101 = arith.addf %100, %99 : vector<1x96xf32>
    %102 = arith.divf %100, %101 : vector<1x96xf32>
    %103 = vector.shape_cast %102 : vector<1x96xf32> to vector<1x1x96xf32>
    %104 = vector.broadcast %103 : vector<1x1x96xf32> to vector<10x17x96xf32>
    %105 = arith.mulf %81, %104 : vector<10x17x96xf32>
    %c0_47 = arith.constant 0 : index
    %c0_48 = arith.constant 0 : index
    %c0_49 = arith.constant 0 : index
    %106 = vector.load %arg5[%c0_47, %c0_48, %c0_49] : memref<9x96x32xbf16, #tpu.memory_space<vmem>>, vector<9x96x32xbf16>
    %cst_50 = arith.constant 0.000000e+00 : f32
    %107 = vector.broadcast %cst_50 : f32 to vector<64x32xf32>
    %108 = vector.extract_strided_slice %105 {offsets = [0, 7, 0], sizes = [8, 8, 96], strides = [1, 1, 1]} : vector<10x17x96xf32> to vector<8x8x96xf32>
    %109 = vector.shape_cast %108 : vector<8x8x96xf32> to vector<64x96xf32>
    %110 = arith.truncf %109 : vector<64x96xf32> to vector<64x96xbf16>
    %111 = vector.extract_strided_slice %106 {offsets = [0, 0, 0], sizes = [1, 96, 32], strides = [1, 1, 1]} : vector<9x96x32xbf16> to vector<1x96x32xbf16>
    %112 = vector.shape_cast %111 : vector<1x96x32xbf16> to vector<96x32xbf16>
    %cst_51 = arith.constant dense<0.000000e+00> : vector<64x32xf32>
    %113 = tpu.matmul %110, %112, %cst_51 {dimension_numbers = #tpu.dot_dimension_numbers<[1], [0], [0], [1], [0, 0, 1, 1], [], []>} : vector<64x96xbf16>, vector<96x32xbf16>, vector<64x32xf32> -> vector<64x32xf32>
    %114 = arith.addf %107, %113 : vector<64x32xf32>
    %115 = vector.extract_strided_slice %105 {offsets = [0, 8, 0], sizes = [8, 8, 96], strides = [1, 1, 1]} : vector<10x17x96xf32> to vector<8x8x96xf32>
    %116 = vector.shape_cast %115 : vector<8x8x96xf32> to vector<64x96xf32>
    %117 = arith.truncf %116 : vector<64x96xf32> to vector<64x96xbf16>
    %118 = vector.extract_strided_slice %106 {offsets = [1, 0, 0], sizes = [1, 96, 32], strides = [1, 1, 1]} : vector<9x96x32xbf16> to vector<1x96x32xbf16>
    %119 = vector.shape_cast %118 : vector<1x96x32xbf16> to vector<96x32xbf16>
    %cst_52 = arith.constant dense<0.000000e+00> : vector<64x32xf32>
    %120 = tpu.matmul %117, %119, %cst_52 {dimension_numbers = #tpu.dot_dimension_numbers<[1], [0], [0], [1], [0, 0, 1, 1], [], []>} : vector<64x96xbf16>, vector<96x32xbf16>, vector<64x32xf32> -> vector<64x32xf32>
    %121 = arith.addf %114, %120 : vector<64x32xf32>
    %122 = vector.extract_strided_slice %105 {offsets = [0, 9, 0], sizes = [8, 8, 96], strides = [1, 1, 1]} : vector<10x17x96xf32> to vector<8x8x96xf32>
    %123 = vector.shape_cast %122 : vector<8x8x96xf32> to vector<64x96xf32>
    %124 = arith.truncf %123 : vector<64x96xf32> to vector<64x96xbf16>
    %125 = vector.extract_strided_slice %106 {offsets = [2, 0, 0], sizes = [1, 96, 32], strides = [1, 1, 1]} : vector<9x96x32xbf16> to vector<1x96x32xbf16>
    %126 = vector.shape_cast %125 : vector<1x96x32xbf16> to vector<96x32xbf16>
    %cst_53 = arith.constant dense<0.000000e+00> : vector<64x32xf32>
    %127 = tpu.matmul %124, %126, %cst_53 {dimension_numbers = #tpu.dot_dimension_numbers<[1], [0], [0], [1], [0, 0, 1, 1], [], []>} : vector<64x96xbf16>, vector<96x32xbf16>, vector<64x32xf32> -> vector<64x32xf32>
    %128 = arith.addf %121, %127 : vector<64x32xf32>
    %129 = vector.extract_strided_slice %105 {offsets = [1, 7, 0], sizes = [8, 8, 96], strides = [1, 1, 1]} : vector<10x17x96xf32> to vector<8x8x96xf32>
    %130 = vector.shape_cast %129 : vector<8x8x96xf32> to vector<64x96xf32>
    %131 = arith.truncf %130 : vector<64x96xf32> to vector<64x96xbf16>
    %132 = vector.extract_strided_slice %106 {offsets = [3, 0, 0], sizes = [1, 96, 32], strides = [1, 1, 1]} : vector<9x96x32xbf16> to vector<1x96x32xbf16>
    %133 = vector.shape_cast %132 : vector<1x96x32xbf16> to vector<96x32xbf16>
    %cst_54 = arith.constant dense<0.000000e+00> : vector<64x32xf32>
    %134 = tpu.matmul %131, %133, %cst_54 {dimension_numbers = #tpu.dot_dimension_numbers<[1], [0], [0], [1], [0, 0, 1, 1], [], []>} : vector<64x96xbf16>, vector<96x32xbf16>, vector<64x32xf32> -> vector<64x32xf32>
    %135 = arith.addf %128, %134 : vector<64x32xf32>
    %136 = vector.extract_strided_slice %105 {offsets = [1, 8, 0], sizes = [8, 8, 96], strides = [1, 1, 1]} : vector<10x17x96xf32> to vector<8x8x96xf32>
    %137 = vector.shape_cast %136 : vector<8x8x96xf32> to vector<64x96xf32>
    %138 = arith.truncf %137 : vector<64x96xf32> to vector<64x96xbf16>
    %139 = vector.extract_strided_slice %106 {offsets = [4, 0, 0], sizes = [1, 96, 32], strides = [1, 1, 1]} : vector<9x96x32xbf16> to vector<1x96x32xbf16>
    %140 = vector.shape_cast %139 : vector<1x96x32xbf16> to vector<96x32xbf16>
    %cst_55 = arith.constant dense<0.000000e+00> : vector<64x32xf32>
    %141 = tpu.matmul %138, %140, %cst_55 {dimension_numbers = #tpu.dot_dimension_numbers<[1], [0], [0], [1], [0, 0, 1, 1], [], []>} : vector<64x96xbf16>, vector<96x32xbf16>, vector<64x32xf32> -> vector<64x32xf32>
    %142 = arith.addf %135, %141 : vector<64x32xf32>
    %143 = vector.extract_strided_slice %105 {offsets = [1, 9, 0], sizes = [8, 8, 96], strides = [1, 1, 1]} : vector<10x17x96xf32> to vector<8x8x96xf32>
    %144 = vector.shape_cast %143 : vector<8x8x96xf32> to vector<64x96xf32>
    %145 = arith.truncf %144 : vector<64x96xf32> to vector<64x96xbf16>
    %146 = vector.extract_strided_slice %106 {offsets = [5, 0, 0], sizes = [1, 96, 32], strides = [1, 1, 1]} : vector<9x96x32xbf16> to vector<1x96x32xbf16>
    %147 = vector.shape_cast %146 : vector<1x96x32xbf16> to vector<96x32xbf16>
    %cst_56 = arith.constant dense<0.000000e+00> : vector<64x32xf32>
    %148 = tpu.matmul %145, %147, %cst_56 {dimension_numbers = #tpu.dot_dimension_numbers<[1], [0], [0], [1], [0, 0, 1, 1], [], []>} : vector<64x96xbf16>, vector<96x32xbf16>, vector<64x32xf32> -> vector<64x32xf32>
    %149 = arith.addf %142, %148 : vector<64x32xf32>
    %150 = vector.extract_strided_slice %105 {offsets = [2, 7, 0], sizes = [8, 8, 96], strides = [1, 1, 1]} : vector<10x17x96xf32> to vector<8x8x96xf32>
    %151 = vector.shape_cast %150 : vector<8x8x96xf32> to vector<64x96xf32>
    %152 = arith.truncf %151 : vector<64x96xf32> to vector<64x96xbf16>
    %153 = vector.extract_strided_slice %106 {offsets = [6, 0, 0], sizes = [1, 96, 32], strides = [1, 1, 1]} : vector<9x96x32xbf16> to vector<1x96x32xbf16>
    %154 = vector.shape_cast %153 : vector<1x96x32xbf16> to vector<96x32xbf16>
    %cst_57 = arith.constant dense<0.000000e+00> : vector<64x32xf32>
    %155 = tpu.matmul %152, %154, %cst_57 {dimension_numbers = #tpu.dot_dimension_numbers<[1], [0], [0], [1], [0, 0, 1, 1], [], []>} : vector<64x96xbf16>, vector<96x32xbf16>, vector<64x32xf32> -> vector<64x32xf32>
    %156 = arith.addf %149, %155 : vector<64x32xf32>
    %157 = vector.extract_strided_slice %105 {offsets = [2, 8, 0], sizes = [8, 8, 96], strides = [1, 1, 1]} : vector<10x17x96xf32> to vector<8x8x96xf32>
    %158 = vector.shape_cast %157 : vector<8x8x96xf32> to vector<64x96xf32>
    %159 = arith.truncf %158 : vector<64x96xf32> to vector<64x96xbf16>
    %160 = vector.extract_strided_slice %106 {offsets = [7, 0, 0], sizes = [1, 96, 32], strides = [1, 1, 1]} : vector<9x96x32xbf16> to vector<1x96x32xbf16>
    %161 = vector.shape_cast %160 : vector<1x96x32xbf16> to vector<96x32xbf16>
    %cst_58 = arith.constant dense<0.000000e+00> : vector<64x32xf32>
    %162 = tpu.matmul %159, %161, %cst_58 {dimension_numbers = #tpu.dot_dimension_numbers<[1], [0], [0], [1], [0, 0, 1, 1], [], []>} : vector<64x96xbf16>, vector<96x32xbf16>, vector<64x32xf32> -> vector<64x32xf32>
    %163 = arith.addf %156, %162 : vector<64x32xf32>
    %164 = vector.extract_strided_slice %105 {offsets = [2, 9, 0], sizes = [8, 8, 96], strides = [1, 1, 1]} : vector<10x17x96xf32> to vector<8x8x96xf32>
    %165 = vector.shape_cast %164 : vector<8x8x96xf32> to vector<64x96xf32>
    %166 = arith.truncf %165 : vector<64x96xf32> to vector<64x96xbf16>
    %167 = vector.extract_strided_slice %106 {offsets = [8, 0, 0], sizes = [1, 96, 32], strides = [1, 1, 1]} : vector<9x96x32xbf16> to vector<1x96x32xbf16>
    %168 = vector.shape_cast %167 : vector<1x96x32xbf16> to vector<96x32xbf16>
    %cst_59 = arith.constant dense<0.000000e+00> : vector<64x32xf32>
    %169 = tpu.matmul %166, %168, %cst_59 {dimension_numbers = #tpu.dot_dimension_numbers<[1], [0], [0], [1], [0, 0, 1, 1], [], []>} : vector<64x96xbf16>, vector<96x32xbf16>, vector<64x32xf32> -> vector<64x32xf32>
    %170 = arith.addf %163, %169 : vector<64x32xf32>
    %c0_60 = arith.constant 0 : index
    %c0_61 = arith.constant 0 : index
    %171 = vector.load %arg6[%c0_60, %c0_61] : memref<1x32xf32, #tpu.memory_space<vmem>>, vector<1x32xf32>
    %172 = vector.broadcast %171 : vector<1x32xf32> to vector<64x32xf32>
    %173 = arith.mulf %170, %172 : vector<64x32xf32>
    %c0_62 = arith.constant 0 : index
    %c0_63 = arith.constant 0 : index
    %174 = vector.load %arg7[%c0_62, %c0_63] : memref<1x32xf32, #tpu.memory_space<vmem>>, vector<1x32xf32>
    %175 = vector.broadcast %174 : vector<1x32xf32> to vector<64x32xf32>
    %176 = arith.addf %173, %175 : vector<64x32xf32>
    %cst_64 = arith.constant 0.000000e+00 : f32
    %177 = vector.broadcast %cst_64 : f32 to vector<64x32xf32>
    %178 = arith.maximumf %176, %177 : vector<64x32xf32>
    %179 = vector.shape_cast %178 : vector<64x32xf32> to vector<8x8x32xf32>
    %c1_65 = arith.constant 1 : index
    %c8_66 = arith.constant 8 : index
    %c96 = arith.constant 96 : index
    %180 = vector.load %arg34[%c1_65, %c8_66, %c96] : memref<10x17x192xf32, #tpu.memory_space<vmem>>, vector<8x8x32xf32>
    tpu.vector_store %arg34[%c1_65, %c8_66, %c96], %179 {strides = array<i32>} : memref<10x17x192xf32, #tpu.memory_space<vmem>>, vector<8x8x32xf32>,
    %c0_67 = arith.constant 0 : index
    %c0_68 = arith.constant 0 : index
    %c0_69 = arith.constant 0 : index
    %181 = vector.load %arg34[%c0_67, %c0_68, %c0_69] : memref<10x17x192xf32, #tpu.memory_space<vmem>>, vector<10x17x128xf32>
    %182 = vector.extract_strided_slice %181 {offsets = [1, 8, 0], sizes = [8, 8, 128], strides = [1, 1, 1]} : vector<10x17x128xf32> to vector<8x8x128xf32>
    %183 = vector.shape_cast %182 : vector<8x8x128xf32> to vector<64x128xf32>
    %cst_70 = arith.constant dense<0.000000e+00> : vector<128xf32>
    %184 = vector.multi_reduction <add>, %183, %cst_70 [0] : vector<64x128xf32> to vector<128xf32>
    %185 = vector.shape_cast %184 : vector<128xf32> to vector<1x128xf32>
    %cst_71 = arith.constant 6.400000e+01 : f32
    %186 = vector.broadcast %cst_71 : f32 to vector<1x128xf32>
    %187 = arith.divf %185, %186 : vector<1x128xf32>
    %c0_72 = arith.constant 0 : index
    %c0_73 = arith.constant 0 : index
    %188 = vector.load %arg21[%c0_72, %c0_73] : memref<128x64xf32, #tpu.memory_space<vmem>>, vector<128x64xf32>
    %cst_74 = arith.constant dense<0.000000e+00> : vector<1x64xf32>
    %189 = tpu.matmul %187, %188, %cst_74 {dimension_numbers = #tpu.dot_dimension_numbers<[1], [0], [0], [1], [0, 0, 1, 1], [], []>} : vector<1x128xf32>, vector<128x64xf32>, vector<1x64xf32> -> vector<1x64xf32>
    %c0_75 = arith.constant 0 : index
    %c0_76 = arith.constant 0 : index
    %190 = vector.load %arg22[%c0_75, %c0_76] : memref<1x64xf32, #tpu.memory_space<vmem>>, vector<1x64xf32>
    %191 = arith.addf %189, %190 : vector<1x64xf32>
    %cst_77 = arith.constant 0.000000e+00 : f32
    %192 = vector.broadcast %cst_77 : f32 to vector<1x64xf32>
    %193 = arith.maximumf %191, %192 : vector<1x64xf32>
    %c0_78 = arith.constant 0 : index
    %c0_79 = arith.constant 0 : index
    %194 = vector.load %arg23[%c0_78, %c0_79] : memref<64x128xf32, #tpu.memory_space<vmem>>, vector<64x128xf32>
    %cst_80 = arith.constant dense<0.000000e+00> : vector<1x128xf32>
    %195 = tpu.matmul %193, %194, %cst_80 {dimension_numbers = #tpu.dot_dimension_numbers<[1], [0], [0], [1], [0, 0, 1, 1], [], []>} : vector<1x64xf32>, vector<64x128xf32>, vector<1x128xf32> -> vector<1x128xf32>
    %c0_81 = arith.constant 0 : index
    %c0_82 = arith.constant 0 : index
    %196 = vector.load %arg24[%c0_81, %c0_82] : memref<1x128xf32, #tpu.memory_space<vmem>>, vector<1x128xf32>
    %197 = arith.addf %195, %196 : vector<1x128xf32>
    %198 = arith.negf %197 : vector<1x128xf32>
    %199 = math.exp %198 : vector<1x128xf32>
    %cst_83 = arith.constant 1.000000e+00 : f32
    %200 = vector.broadcast %cst_83 : f32 to vector<1x128xf32>
    %201 = arith.addf %200, %199 : vector<1x128xf32>
    %202 = arith.divf %200, %201 : vector<1x128xf32>
    %203 = vector.shape_cast %202 : vector<1x128xf32> to vector<1x1x128xf32>
    %204 = vector.broadcast %203 : vector<1x1x128xf32> to vector<10x17x128xf32>
    %205 = arith.mulf %181, %204 : vector<10x17x128xf32>
    %c0_84 = arith.constant 0 : index
    %c0_85 = arith.constant 0 : index
    %c0_86 = arith.constant 0 : index
    %206 = vector.load %arg8[%c0_84, %c0_85, %c0_86] : memref<9x128x32xbf16, #tpu.memory_space<vmem>>, vector<9x128x32xbf16>
    %cst_87 = arith.constant 0.000000e+00 : f32
    %207 = vector.broadcast %cst_87 : f32 to vector<64x32xf32>
    %208 = vector.extract_strided_slice %205 {offsets = [0, 7, 0], sizes = [8, 8, 128], strides = [1, 1, 1]} : vector<10x17x128xf32> to vector<8x8x128xf32>
    %209 = vector.shape_cast %208 : vector<8x8x128xf32> to vector<64x128xf32>
    %210 = arith.truncf %209 : vector<64x128xf32> to vector<64x128xbf16>
    %211 = vector.extract_strided_slice %206 {offsets = [0, 0, 0], sizes = [1, 128, 32], strides = [1, 1, 1]} : vector<9x128x32xbf16> to vector<1x128x32xbf16>
    %212 = vector.shape_cast %211 : vector<1x128x32xbf16> to vector<128x32xbf16>
    %cst_88 = arith.constant dense<0.000000e+00> : vector<64x32xf32>
    %213 = tpu.matmul %210, %212, %cst_88 {dimension_numbers = #tpu.dot_dimension_numbers<[1], [0], [0], [1], [0, 0, 1, 1], [], []>} : vector<64x128xbf16>, vector<128x32xbf16>, vector<64x32xf32> -> vector<64x32xf32>
    %214 = arith.addf %207, %213 : vector<64x32xf32>
    %215 = vector.extract_strided_slice %205 {offsets = [0, 8, 0], sizes = [8, 8, 128], strides = [1, 1, 1]} : vector<10x17x128xf32> to vector<8x8x128xf32>
    %216 = vector.shape_cast %215 : vector<8x8x128xf32> to vector<64x128xf32>
    %217 = arith.truncf %216 : vector<64x128xf32> to vector<64x128xbf16>
    %218 = vector.extract_strided_slice %206 {offsets = [1, 0, 0], sizes = [1, 128, 32], strides = [1, 1, 1]} : vector<9x128x32xbf16> to vector<1x128x32xbf16>
    %219 = vector.shape_cast %218 : vector<1x128x32xbf16> to vector<128x32xbf16>
    %cst_89 = arith.constant dense<0.000000e+00> : vector<64x32xf32>
    %220 = tpu.matmul %217, %219, %cst_89 {dimension_numbers = #tpu.dot_dimension_numbers<[1], [0], [0], [1], [0, 0, 1, 1], [], []>} : vector<64x128xbf16>, vector<128x32xbf16>, vector<64x32xf32> -> vector<64x32xf32>
    %221 = arith.addf %214, %220 : vector<64x32xf32>
    %222 = vector.extract_strided_slice %205 {offsets = [0, 9, 0], sizes = [8, 8, 128], strides = [1, 1, 1]} : vector<10x17x128xf32> to vector<8x8x128xf32>
    %223 = vector.shape_cast %222 : vector<8x8x128xf32> to vector<64x128xf32>
    %224 = arith.truncf %223 : vector<64x128xf32> to vector<64x128xbf16>
    %225 = vector.extract_strided_slice %206 {offsets = [2, 0, 0], sizes = [1, 128, 32], strides = [1, 1, 1]} : vector<9x128x32xbf16> to vector<1x128x32xbf16>
    %226 = vector.shape_cast %225 : vector<1x128x32xbf16> to vector<128x32xbf16>
    %cst_90 = arith.constant dense<0.000000e+00> : vector<64x32xf32>
    %227 = tpu.matmul %224, %226, %cst_90 {dimension_numbers = #tpu.dot_dimension_numbers<[1], [0], [0], [1], [0, 0, 1, 1], [], []>} : vector<64x128xbf16>, vector<128x32xbf16>, vector<64x32xf32> -> vector<64x32xf32>
    %228 = arith.addf %221, %227 : vector<64x32xf32>
    %229 = vector.extract_strided_slice %205 {offsets = [1, 7, 0], sizes = [8, 8, 128], strides = [1, 1, 1]} : vector<10x17x128xf32> to vector<8x8x128xf32>
    %230 = vector.shape_cast %229 : vector<8x8x128xf32> to vector<64x128xf32>
    %231 = arith.truncf %230 : vector<64x128xf32> to vector<64x128xbf16>
    %232 = vector.extract_strided_slice %206 {offsets = [3, 0, 0], sizes = [1, 128, 32], strides = [1, 1, 1]} : vector<9x128x32xbf16> to vector<1x128x32xbf16>
    %233 = vector.shape_cast %232 : vector<1x128x32xbf16> to vector<128x32xbf16>
    %cst_91 = arith.constant dense<0.000000e+00> : vector<64x32xf32>
    %234 = tpu.matmul %231, %233, %cst_91 {dimension_numbers = #tpu.dot_dimension_numbers<[1], [0], [0], [1], [0, 0, 1, 1], [], []>} : vector<64x128xbf16>, vector<128x32xbf16>, vector<64x32xf32> -> vector<64x32xf32>
    %235 = arith.addf %228, %234 : vector<64x32xf32>
    %236 = vector.extract_strided_slice %205 {offsets = [1, 8, 0], sizes = [8, 8, 128], strides = [1, 1, 1]} : vector<10x17x128xf32> to vector<8x8x128xf32>
    %237 = vector.shape_cast %236 : vector<8x8x128xf32> to vector<64x128xf32>
    %238 = arith.truncf %237 : vector<64x128xf32> to vector<64x128xbf16>
    %239 = vector.extract_strided_slice %206 {offsets = [4, 0, 0], sizes = [1, 128, 32], strides = [1, 1, 1]} : vector<9x128x32xbf16> to vector<1x128x32xbf16>
    %240 = vector.shape_cast %239 : vector<1x128x32xbf16> to vector<128x32xbf16>
    %cst_92 = arith.constant dense<0.000000e+00> : vector<64x32xf32>
    %241 = tpu.matmul %238, %240, %cst_92 {dimension_numbers = #tpu.dot_dimension_numbers<[1], [0], [0], [1], [0, 0, 1, 1], [], []>} : vector<64x128xbf16>, vector<128x32xbf16>, vector<64x32xf32> -> vector<64x32xf32>
    %242 = arith.addf %235, %241 : vector<64x32xf32>
    %243 = vector.extract_strided_slice %205 {offsets = [1, 9, 0], sizes = [8, 8, 128], strides = [1, 1, 1]} : vector<10x17x128xf32> to vector<8x8x128xf32>
    %244 = vector.shape_cast %243 : vector<8x8x128xf32> to vector<64x128xf32>
    %245 = arith.truncf %244 : vector<64x128xf32> to vector<64x128xbf16>
    %246 = vector.extract_strided_slice %206 {offsets = [5, 0, 0], sizes = [1, 128, 32], strides = [1, 1, 1]} : vector<9x128x32xbf16> to vector<1x128x32xbf16>
    %247 = vector.shape_cast %246 : vector<1x128x32xbf16> to vector<128x32xbf16>
    %cst_93 = arith.constant dense<0.000000e+00> : vector<64x32xf32>
    %248 = tpu.matmul %245, %247, %cst_93 {dimension_numbers = #tpu.dot_dimension_numbers<[1], [0], [0], [1], [0, 0, 1, 1], [], []>} : vector<64x128xbf16>, vector<128x32xbf16>, vector<64x32xf32> -> vector<64x32xf32>
    %249 = arith.addf %242, %248 : vector<64x32xf32>
    %250 = vector.extract_strided_slice %205 {offsets = [2, 7, 0], sizes = [8, 8, 128], strides = [1, 1, 1]} : vector<10x17x128xf32> to vector<8x8x128xf32>
    %251 = vector.shape_cast %250 : vector<8x8x128xf32> to vector<64x128xf32>
    %252 = arith.truncf %251 : vector<64x128xf32> to vector<64x128xbf16>
    %253 = vector.extract_strided_slice %206 {offsets = [6, 0, 0], sizes = [1, 128, 32], strides = [1, 1, 1]} : vector<9x128x32xbf16> to vector<1x128x32xbf16>
    %254 = vector.shape_cast %253 : vector<1x128x32xbf16> to vector<128x32xbf16>
    %cst_94 = arith.constant dense<0.000000e+00> : vector<64x32xf32>
    %255 = tpu.matmul %252, %254, %cst_94 {dimension_numbers = #tpu.dot_dimension_numbers<[1], [0], [0], [1], [0, 0, 1, 1], [], []>} : vector<64x128xbf16>, vector<128x32xbf16>, vector<64x32xf32> -> vector<64x32xf32>
    %256 = arith.addf %249, %255 : vector<64x32xf32>
    %257 = vector.extract_strided_slice %205 {offsets = [2, 8, 0], sizes = [8, 8, 128], strides = [1, 1, 1]} : vector<10x17x128xf32> to vector<8x8x128xf32>
    %258 = vector.shape_cast %257 : vector<8x8x128xf32> to vector<64x128xf32>
    %259 = arith.truncf %258 : vector<64x128xf32> to vector<64x128xbf16>
    %260 = vector.extract_strided_slice %206 {offsets = [7, 0, 0], sizes = [1, 128, 32], strides = [1, 1, 1]} : vector<9x128x32xbf16> to vector<1x128x32xbf16>
    %261 = vector.shape_cast %260 : vector<1x128x32xbf16> to vector<128x32xbf16>
    %cst_95 = arith.constant dense<0.000000e+00> : vector<64x32xf32>
    %262 = tpu.matmul %259, %261, %cst_95 {dimension_numbers = #tpu.dot_dimension_numbers<[1], [0], [0], [1], [0, 0, 1, 1], [], []>} : vector<64x128xbf16>, vector<128x32xbf16>, vector<64x32xf32> -> vector<64x32xf32>
    %263 = arith.addf %256, %262 : vector<64x32xf32>
    %264 = vector.extract_strided_slice %205 {offsets = [2, 9, 0], sizes = [8, 8, 128], strides = [1, 1, 1]} : vector<10x17x128xf32> to vector<8x8x128xf32>
    %265 = vector.shape_cast %264 : vector<8x8x128xf32> to vector<64x128xf32>
    %266 = arith.truncf %265 : vector<64x128xf32> to vector<64x128xbf16>
    %267 = vector.extract_strided_slice %206 {offsets = [8, 0, 0], sizes = [1, 128, 32], strides = [1, 1, 1]} : vector<9x128x32xbf16> to vector<1x128x32xbf16>
    %268 = vector.shape_cast %267 : vector<1x128x32xbf16> to vector<128x32xbf16>
    %cst_96 = arith.constant dense<0.000000e+00> : vector<64x32xf32>
    %269 = tpu.matmul %266, %268, %cst_96 {dimension_numbers = #tpu.dot_dimension_numbers<[1], [0], [0], [1], [0, 0, 1, 1], [], []>} : vector<64x128xbf16>, vector<128x32xbf16>, vector<64x32xf32> -> vector<64x32xf32>
    %270 = arith.addf %263, %269 : vector<64x32xf32>
    %c0_97 = arith.constant 0 : index
    %c0_98 = arith.constant 0 : index
    %271 = vector.load %arg9[%c0_97, %c0_98] : memref<1x32xf32, #tpu.memory_space<vmem>>, vector<1x32xf32>
    %272 = vector.broadcast %271 : vector<1x32xf32> to vector<64x32xf32>
    %273 = arith.mulf %270, %272 : vector<64x32xf32>
    %c0_99 = arith.constant 0 : index
    %c0_100 = arith.constant 0 : index
    %274 = vector.load %arg10[%c0_99, %c0_100] : memref<1x32xf32, #tpu.memory_space<vmem>>, vector<1x32xf32>
    %275 = vector.broadcast %274 : vector<1x32xf32> to vector<64x32xf32>
    %276 = arith.addf %273, %275 : vector<64x32xf32>
    %cst_101 = arith.constant 0.000000e+00 : f32
    %277 = vector.broadcast %cst_101 : f32 to vector<64x32xf32>
    %278 = arith.maximumf %276, %277 : vector<64x32xf32>
    %279 = vector.shape_cast %278 : vector<64x32xf32> to vector<8x8x32xf32>
    %c1_102 = arith.constant 1 : index
    %c8_103 = arith.constant 8 : index
    %c128 = arith.constant 128 : index
    %280 = vector.load %arg34[%c1_102, %c8_103, %c128] : memref<10x17x192xf32, #tpu.memory_space<vmem>>, vector<8x8x32xf32>
    tpu.vector_store %arg34[%c1_102, %c8_103, %c128], %279 {strides = array<i32>} : memref<10x17x192xf32, #tpu.memory_space<vmem>>, vector<8x8x32xf32>,
    %c0_104 = arith.constant 0 : index
    %c0_105 = arith.constant 0 : index
    %c0_106 = arith.constant 0 : index
    %281 = vector.load %arg34[%c0_104, %c0_105, %c0_106] : memref<10x17x192xf32, #tpu.memory_space<vmem>>, vector<10x17x160xf32>
    %282 = vector.extract_strided_slice %281 {offsets = [1, 8, 0], sizes = [8, 8, 160], strides = [1, 1, 1]} : vector<10x17x160xf32> to vector<8x8x160xf32>
    %283 = vector.shape_cast %282 : vector<8x8x160xf32> to vector<64x160xf32>
    %cst_107 = arith.constant dense<0.000000e+00> : vector<160xf32>
    %284 = vector.multi_reduction <add>, %283, %cst_107 [0] : vector<64x160xf32> to vector<160xf32>
    %285 = vector.shape_cast %284 : vector<160xf32> to vector<1x160xf32>
    %cst_108 = arith.constant 6.400000e+01 : f32
    %286 = vector.broadcast %cst_108 : f32 to vector<1x160xf32>
    %287 = arith.divf %285, %286 : vector<1x160xf32>
    %c0_109 = arith.constant 0 : index
    %c0_110 = arith.constant 0 : index
    %288 = vector.load %arg25[%c0_109, %c0_110] : memref<160x80xf32, #tpu.memory_space<vmem>>, vector<160x80xf32>
    %cst_111 = arith.constant dense<0.000000e+00> : vector<1x80xf32>
    %289 = tpu.matmul %287, %288, %cst_111 {dimension_numbers = #tpu.dot_dimension_numbers<[1], [0], [0], [1], [0, 0, 1, 1], [], []>} : vector<1x160xf32>, vector<160x80xf32>, vector<1x80xf32> -> vector<1x80xf32>
    %c0_112 = arith.constant 0 : index
    %c0_113 = arith.constant 0 : index
    %290 = vector.load %arg26[%c0_112, %c0_113] : memref<1x80xf32, #tpu.memory_space<vmem>>, vector<1x80xf32>
    %291 = arith.addf %289, %290 : vector<1x80xf32>
    %cst_114 = arith.constant 0.000000e+00 : f32
    %292 = vector.broadcast %cst_114 : f32 to vector<1x80xf32>
    %293 = arith.maximumf %291, %292 : vector<1x80xf32>
    %c0_115 = arith.constant 0 : index
    %c0_116 = arith.constant 0 : index
    %294 = vector.load %arg27[%c0_115, %c0_116] : memref<80x160xf32, #tpu.memory_space<vmem>>, vector<80x160xf32>
    %cst_117 = arith.constant dense<0.000000e+00> : vector<1x160xf32>
    %295 = tpu.matmul %293, %294, %cst_117 {dimension_numbers = #tpu.dot_dimension_numbers<[1], [0], [0], [1], [0, 0, 1, 1], [], []>} : vector<1x80xf32>, vector<80x160xf32>, vector<1x160xf32> -> vector<1x160xf32>
    %c0_118 = arith.constant 0 : index
    %c0_119 = arith.constant 0 : index
    %296 = vector.load %arg28[%c0_118, %c0_119] : memref<1x160xf32, #tpu.memory_space<vmem>>, vector<1x160xf32>
    %297 = arith.addf %295, %296 : vector<1x160xf32>
    %298 = arith.negf %297 : vector<1x160xf32>
    %299 = math.exp %298 : vector<1x160xf32>
    %cst_120 = arith.constant 1.000000e+00 : f32
    %300 = vector.broadcast %cst_120 : f32 to vector<1x160xf32>
    %301 = arith.addf %300, %299 : vector<1x160xf32>
    %302 = arith.divf %300, %301 : vector<1x160xf32>
    %303 = vector.shape_cast %302 : vector<1x160xf32> to vector<1x1x160xf32>
    %304 = vector.broadcast %303 : vector<1x1x160xf32> to vector<10x17x160xf32>
    %305 = arith.mulf %281, %304 : vector<10x17x160xf32>
    %c0_121 = arith.constant 0 : index
    %c0_122 = arith.constant 0 : index
    %c0_123 = arith.constant 0 : index
    %306 = vector.load %arg11[%c0_121, %c0_122, %c0_123] : memref<9x160x32xbf16, #tpu.memory_space<vmem>>, vector<9x160x32xbf16>
    %cst_124 = arith.constant 0.000000e+00 : f32
    %307 = vector.broadcast %cst_124 : f32 to vector<64x32xf32>
    %308 = vector.extract_strided_slice %305 {offsets = [0, 7, 0], sizes = [8, 8, 160], strides = [1, 1, 1]} : vector<10x17x160xf32> to vector<8x8x160xf32>
    %309 = vector.shape_cast %308 : vector<8x8x160xf32> to vector<64x160xf32>
    %310 = arith.truncf %309 : vector<64x160xf32> to vector<64x160xbf16>
    %311 = vector.extract_strided_slice %306 {offsets = [0, 0, 0], sizes = [1, 160, 32], strides = [1, 1, 1]} : vector<9x160x32xbf16> to vector<1x160x32xbf16>
    %312 = vector.shape_cast %311 : vector<1x160x32xbf16> to vector<160x32xbf16>
    %cst_125 = arith.constant dense<0.000000e+00> : vector<64x32xf32>
    %313 = tpu.matmul %310, %312, %cst_125 {dimension_numbers = #tpu.dot_dimension_numbers<[1], [0], [0], [1], [0, 0, 1, 1], [], []>} : vector<64x160xbf16>, vector<160x32xbf16>, vector<64x32xf32> -> vector<64x32xf32>
    %314 = arith.addf %307, %313 : vector<64x32xf32>
    %315 = vector.extract_strided_slice %305 {offsets = [0, 8, 0], sizes = [8, 8, 160], strides = [1, 1, 1]} : vector<10x17x160xf32> to vector<8x8x160xf32>
    %316 = vector.shape_cast %315 : vector<8x8x160xf32> to vector<64x160xf32>
    %317 = arith.truncf %316 : vector<64x160xf32> to vector<64x160xbf16>
    %318 = vector.extract_strided_slice %306 {offsets = [1, 0, 0], sizes = [1, 160, 32], strides = [1, 1, 1]} : vector<9x160x32xbf16> to vector<1x160x32xbf16>
    %319 = vector.shape_cast %318 : vector<1x160x32xbf16> to vector<160x32xbf16>
    %cst_126 = arith.constant dense<0.000000e+00> : vector<64x32xf32>
    %320 = tpu.matmul %317, %319, %cst_126 {dimension_numbers = #tpu.dot_dimension_numbers<[1], [0], [0], [1], [0, 0, 1, 1], [], []>} : vector<64x160xbf16>, vector<160x32xbf16>, vector<64x32xf32> -> vector<64x32xf32>
    %321 = arith.addf %314, %320 : vector<64x32xf32>
    %322 = vector.extract_strided_slice %305 {offsets = [0, 9, 0], sizes = [8, 8, 160], strides = [1, 1, 1]} : vector<10x17x160xf32> to vector<8x8x160xf32>
    %323 = vector.shape_cast %322 : vector<8x8x160xf32> to vector<64x160xf32>
    %324 = arith.truncf %323 : vector<64x160xf32> to vector<64x160xbf16>
    %325 = vector.extract_strided_slice %306 {offsets = [2, 0, 0], sizes = [1, 160, 32], strides = [1, 1, 1]} : vector<9x160x32xbf16> to vector<1x160x32xbf16>
    %326 = vector.shape_cast %325 : vector<1x160x32xbf16> to vector<160x32xbf16>
    %cst_127 = arith.constant dense<0.000000e+00> : vector<64x32xf32>
    %327 = tpu.matmul %324, %326, %cst_127 {dimension_numbers = #tpu.dot_dimension_numbers<[1], [0], [0], [1], [0, 0, 1, 1], [], []>} : vector<64x160xbf16>, vector<160x32xbf16>, vector<64x32xf32> -> vector<64x32xf32>
    %328 = arith.addf %321, %327 : vector<64x32xf32>
    %329 = vector.extract_strided_slice %305 {offsets = [1, 7, 0], sizes = [8, 8, 160], strides = [1, 1, 1]} : vector<10x17x160xf32> to vector<8x8x160xf32>
    %330 = vector.shape_cast %329 : vector<8x8x160xf32> to vector<64x160xf32>
    %331 = arith.truncf %330 : vector<64x160xf32> to vector<64x160xbf16>
    %332 = vector.extract_strided_slice %306 {offsets = [3, 0, 0], sizes = [1, 160, 32], strides = [1, 1, 1]} : vector<9x160x32xbf16> to vector<1x160x32xbf16>
    %333 = vector.shape_cast %332 : vector<1x160x32xbf16> to vector<160x32xbf16>
    %cst_128 = arith.constant dense<0.000000e+00> : vector<64x32xf32>
    %334 = tpu.matmul %331, %333, %cst_128 {dimension_numbers = #tpu.dot_dimension_numbers<[1], [0], [0], [1], [0, 0, 1, 1], [], []>} : vector<64x160xbf16>, vector<160x32xbf16>, vector<64x32xf32> -> vector<64x32xf32>
    %335 = arith.addf %328, %334 : vector<64x32xf32>
    %336 = vector.extract_strided_slice %305 {offsets = [1, 8, 0], sizes = [8, 8, 160], strides = [1, 1, 1]} : vector<10x17x160xf32> to vector<8x8x160xf32>
    %337 = vector.shape_cast %336 : vector<8x8x160xf32> to vector<64x160xf32>
    %338 = arith.truncf %337 : vector<64x160xf32> to vector<64x160xbf16>
    %339 = vector.extract_strided_slice %306 {offsets = [4, 0, 0], sizes = [1, 160, 32], strides = [1, 1, 1]} : vector<9x160x32xbf16> to vector<1x160x32xbf16>
    %340 = vector.shape_cast %339 : vector<1x160x32xbf16> to vector<160x32xbf16>
    %cst_129 = arith.constant dense<0.000000e+00> : vector<64x32xf32>
    %341 = tpu.matmul %338, %340, %cst_129 {dimension_numbers = #tpu.dot_dimension_numbers<[1], [0], [0], [1], [0, 0, 1, 1], [], []>} : vector<64x160xbf16>, vector<160x32xbf16>, vector<64x32xf32> -> vector<64x32xf32>
    %342 = arith.addf %335, %341 : vector<64x32xf32>
    %343 = vector.extract_strided_slice %305 {offsets = [1, 9, 0], sizes = [8, 8, 160], strides = [1, 1, 1]} : vector<10x17x160xf32> to vector<8x8x160xf32>
    %344 = vector.shape_cast %343 : vector<8x8x160xf32> to vector<64x160xf32>
    %345 = arith.truncf %344 : vector<64x160xf32> to vector<64x160xbf16>
    %346 = vector.extract_strided_slice %306 {offsets = [5, 0, 0], sizes = [1, 160, 32], strides = [1, 1, 1]} : vector<9x160x32xbf16> to vector<1x160x32xbf16>
    %347 = vector.shape_cast %346 : vector<1x160x32xbf16> to vector<160x32xbf16>
    %cst_130 = arith.constant dense<0.000000e+00> : vector<64x32xf32>
    %348 = tpu.matmul %345, %347, %cst_130 {dimension_numbers = #tpu.dot_dimension_numbers<[1], [0], [0], [1], [0, 0, 1, 1], [], []>} : vector<64x160xbf16>, vector<160x32xbf16>, vector<64x32xf32> -> vector<64x32xf32>
    %349 = arith.addf %342, %348 : vector<64x32xf32>
    %350 = vector.extract_strided_slice %305 {offsets = [2, 7, 0], sizes = [8, 8, 160], strides = [1, 1, 1]} : vector<10x17x160xf32> to vector<8x8x160xf32>
    %351 = vector.shape_cast %350 : vector<8x8x160xf32> to vector<64x160xf32>
    %352 = arith.truncf %351 : vector<64x160xf32> to vector<64x160xbf16>
    %353 = vector.extract_strided_slice %306 {offsets = [6, 0, 0], sizes = [1, 160, 32], strides = [1, 1, 1]} : vector<9x160x32xbf16> to vector<1x160x32xbf16>
    %354 = vector.shape_cast %353 : vector<1x160x32xbf16> to vector<160x32xbf16>
    %cst_131 = arith.constant dense<0.000000e+00> : vector<64x32xf32>
    %355 = tpu.matmul %352, %354, %cst_131 {dimension_numbers = #tpu.dot_dimension_numbers<[1], [0], [0], [1], [0, 0, 1, 1], [], []>} : vector<64x160xbf16>, vector<160x32xbf16>, vector<64x32xf32> -> vector<64x32xf32>
    %356 = arith.addf %349, %355 : vector<64x32xf32>
    %357 = vector.extract_strided_slice %305 {offsets = [2, 8, 0], sizes = [8, 8, 160], strides = [1, 1, 1]} : vector<10x17x160xf32> to vector<8x8x160xf32>
    %358 = vector.shape_cast %357 : vector<8x8x160xf32> to vector<64x160xf32>
    %359 = arith.truncf %358 : vector<64x160xf32> to vector<64x160xbf16>
    %360 = vector.extract_strided_slice %306 {offsets = [7, 0, 0], sizes = [1, 160, 32], strides = [1, 1, 1]} : vector<9x160x32xbf16> to vector<1x160x32xbf16>
    %361 = vector.shape_cast %360 : vector<1x160x32xbf16> to vector<160x32xbf16>
    %cst_132 = arith.constant dense<0.000000e+00> : vector<64x32xf32>
    %362 = tpu.matmul %359, %361, %cst_132 {dimension_numbers = #tpu.dot_dimension_numbers<[1], [0], [0], [1], [0, 0, 1, 1], [], []>} : vector<64x160xbf16>, vector<160x32xbf16>, vector<64x32xf32> -> vector<64x32xf32>
    %363 = arith.addf %356, %362 : vector<64x32xf32>
    %364 = vector.extract_strided_slice %305 {offsets = [2, 9, 0], sizes = [8, 8, 160], strides = [1, 1, 1]} : vector<10x17x160xf32> to vector<8x8x160xf32>
    %365 = vector.shape_cast %364 : vector<8x8x160xf32> to vector<64x160xf32>
    %366 = arith.truncf %365 : vector<64x160xf32> to vector<64x160xbf16>
    %367 = vector.extract_strided_slice %306 {offsets = [8, 0, 0], sizes = [1, 160, 32], strides = [1, 1, 1]} : vector<9x160x32xbf16> to vector<1x160x32xbf16>
    %368 = vector.shape_cast %367 : vector<1x160x32xbf16> to vector<160x32xbf16>
    %cst_133 = arith.constant dense<0.000000e+00> : vector<64x32xf32>
    %369 = tpu.matmul %366, %368, %cst_133 {dimension_numbers = #tpu.dot_dimension_numbers<[1], [0], [0], [1], [0, 0, 1, 1], [], []>} : vector<64x160xbf16>, vector<160x32xbf16>, vector<64x32xf32> -> vector<64x32xf32>
    %370 = arith.addf %363, %369 : vector<64x32xf32>
    %c0_134 = arith.constant 0 : index
    %c0_135 = arith.constant 0 : index
    %371 = vector.load %arg12[%c0_134, %c0_135] : memref<1x32xf32, #tpu.memory_space<vmem>>, vector<1x32xf32>
    %372 = vector.broadcast %371 : vector<1x32xf32> to vector<64x32xf32>
    %373 = arith.mulf %370, %372 : vector<64x32xf32>
    %c0_136 = arith.constant 0 : index
    %c0_137 = arith.constant 0 : index
    %374 = vector.load %arg13[%c0_136, %c0_137] : memref<1x32xf32, #tpu.memory_space<vmem>>, vector<1x32xf32>
    %375 = vector.broadcast %374 : vector<1x32xf32> to vector<64x32xf32>
    %376 = arith.addf %373, %375 : vector<64x32xf32>
    %cst_138 = arith.constant 0.000000e+00 : f32
    %377 = vector.broadcast %cst_138 : f32 to vector<64x32xf32>
    %378 = arith.maximumf %376, %377 : vector<64x32xf32>
    %379 = vector.shape_cast %378 : vector<64x32xf32> to vector<8x8x32xf32>
    %c1_139 = arith.constant 1 : index
    %c8_140 = arith.constant 8 : index
    %c160 = arith.constant 160 : index
    %380 = vector.load %arg34[%c1_139, %c8_140, %c160] : memref<10x17x192xf32, #tpu.memory_space<vmem>>, vector<8x8x32xf32>
    tpu.vector_store %arg34[%c1_139, %c8_140, %c160], %379 {strides = array<i32>} : memref<10x17x192xf32, #tpu.memory_space<vmem>>, vector<8x8x32xf32>,
    %c0_141 = arith.constant 0 : index
    %c0_142 = arith.constant 0 : index
    %c0_143 = arith.constant 0 : index
    %381 = vector.load %arg34[%c0_141, %c0_142, %c0_143] : memref<10x17x192xf32, #tpu.memory_space<vmem>>, vector<10x17x192xf32>
    %382 = vector.extract_strided_slice %381 {offsets = [1, 8, 0], sizes = [8, 8, 192], strides = [1, 1, 1]} : vector<10x17x192xf32> to vector<8x8x192xf32>
    %383 = vector.shape_cast %382 : vector<8x8x192xf32> to vector<64x192xf32>
    %cst_144 = arith.constant dense<0.000000e+00> : vector<192xf32>
    %384 = vector.multi_reduction <add>, %383, %cst_144 [0] : vector<64x192xf32> to vector<192xf32>
    %385 = vector.shape_cast %384 : vector<192xf32> to vector<1x192xf32>
    %cst_145 = arith.constant 6.400000e+01 : f32
    %386 = vector.broadcast %cst_145 : f32 to vector<1x192xf32>
    %387 = arith.divf %385, %386 : vector<1x192xf32>
    %c0_146 = arith.constant 0 : index
    %c0_147 = arith.constant 0 : index
    %388 = vector.load %arg29[%c0_146, %c0_147] : memref<192x96xf32, #tpu.memory_space<vmem>>, vector<192x96xf32>
    %cst_148 = arith.constant dense<0.000000e+00> : vector<1x96xf32>
    %389 = tpu.matmul %387, %388, %cst_148 {dimension_numbers = #tpu.dot_dimension_numbers<[1], [0], [0], [1], [0, 0, 1, 1], [], []>} : vector<1x192xf32>, vector<192x96xf32>, vector<1x96xf32> -> vector<1x96xf32>
    %c0_149 = arith.constant 0 : index
    %c0_150 = arith.constant 0 : index
    %390 = vector.load %arg30[%c0_149, %c0_150] : memref<1x96xf32, #tpu.memory_space<vmem>>, vector<1x96xf32>
    %391 = arith.addf %389, %390 : vector<1x96xf32>
    %cst_151 = arith.constant 0.000000e+00 : f32
    %392 = vector.broadcast %cst_151 : f32 to vector<1x96xf32>
    %393 = arith.maximumf %391, %392 : vector<1x96xf32>
    %c0_152 = arith.constant 0 : index
    %c0_153 = arith.constant 0 : index
    %394 = vector.load %arg31[%c0_152, %c0_153] : memref<96x192xf32, #tpu.memory_space<vmem>>, vector<96x192xf32>
    %cst_154 = arith.constant dense<0.000000e+00> : vector<1x192xf32>
    %395 = tpu.matmul %393, %394, %cst_154 {dimension_numbers = #tpu.dot_dimension_numbers<[1], [0], [0], [1], [0, 0, 1, 1], [], []>} : vector<1x96xf32>, vector<96x192xf32>, vector<1x192xf32> -> vector<1x192xf32>
    %c0_155 = arith.constant 0 : index
    %c0_156 = arith.constant 0 : index
    %396 = vector.load %arg32[%c0_155, %c0_156] : memref<1x192xf32, #tpu.memory_space<vmem>>, vector<1x192xf32>
    %397 = arith.addf %395, %396 : vector<1x192xf32>
    %398 = arith.negf %397 : vector<1x192xf32>
    %399 = math.exp %398 : vector<1x192xf32>
    %cst_157 = arith.constant 1.000000e+00 : f32
    %400 = vector.broadcast %cst_157 : f32 to vector<1x192xf32>
    %401 = arith.addf %400, %399 : vector<1x192xf32>
    %402 = arith.divf %400, %401 : vector<1x192xf32>
    %403 = vector.extract_strided_slice %381 {offsets = [1, 8, 0], sizes = [8, 8, 192], strides = [1, 1, 1]} : vector<10x17x192xf32> to vector<8x8x192xf32>
    %404 = vector.shape_cast %403 : vector<8x8x192xf32> to vector<64x192xf32>
    %405 = vector.broadcast %402 : vector<1x192xf32> to vector<64x192xf32>
    %406 = arith.mulf %404, %405 : vector<64x192xf32>
    %407 = arith.truncf %406 : vector<64x192xf32> to vector<64x192xbf16>
    %c0_158 = arith.constant 0 : index
    %c0_159 = arith.constant 0 : index
    %408 = vector.load %arg14[%c0_158, %c0_159] : memref<192x64xbf16, #tpu.memory_space<vmem>>, vector<192x64xbf16>
    %cst_160 = arith.constant dense<0.000000e+00> : vector<64x64xf32>
    %409 = tpu.matmul %407, %408, %cst_160 {dimension_numbers = #tpu.dot_dimension_numbers<[1], [0], [0], [1], [0, 0, 1, 1], [], []>} : vector<64x192xbf16>, vector<192x64xbf16>, vector<64x64xf32> -> vector<64x64xf32>
    %c0_161 = arith.constant 0 : index
    %c0_162 = arith.constant 0 : index
    %410 = vector.load %arg15[%c0_161, %c0_162] : memref<1x64xf32, #tpu.memory_space<vmem>>, vector<1x64xf32>
    %411 = vector.broadcast %410 : vector<1x64xf32> to vector<64x64xf32>
    %412 = arith.mulf %409, %411 : vector<64x64xf32>
    %c0_163 = arith.constant 0 : index
    %c0_164 = arith.constant 0 : index
    %413 = vector.load %arg16[%c0_163, %c0_164] : memref<1x64xf32, #tpu.memory_space<vmem>>, vector<1x64xf32>
    %414 = vector.broadcast %413 : vector<1x64xf32> to vector<64x64xf32>
    %415 = arith.addf %412, %414 : vector<64x64xf32>
    %cst_165 = arith.constant 0.000000e+00 : f32
    %416 = vector.broadcast %cst_165 : f32 to vector<64x64xf32>
    %417 = arith.maximumf %415, %416 : vector<64x64xf32>
    %418 = vector.extract_strided_slice %404 {offsets = [0, 0], sizes = [64, 64], strides = [1, 1]} : vector<64x192xf32> to vector<64x64xf32>
    %419 = arith.addf %417, %418 : vector<64x64xf32>
    %420 = vector.shape_cast %419 : vector<64x64xf32> to vector<8x8x64xf32>
    %c0_166 = arith.constant 0 : index
    %c0_167 = arith.constant 0 : index
    %c0_168 = arith.constant 0 : index
    %c0_169 = arith.constant 0 : index
    %421 = vector.load %arg33[%c0_166, %c0_167, %c0_168, %c0_169] : memref<1x8x8x64xf32, #tpu.memory_space<vmem>>, vector<1x8x8x64xf32>
    %422 = vector.shape_cast %421 : vector<1x8x8x64xf32> to vector<8x8x64xf32>
    %423 = vector.shape_cast %420 : vector<8x8x64xf32> to vector<1x8x8x64xf32>
    tpu.vector_store %arg33[%c0_166, %c0_167, %c0_168, %c0_169], %423 {strides = array<i32>} : memref<1x8x8x64xf32, #tpu.memory_space<vmem>>, vector<1x8x8x64xf32>,
    return
  }
  func.func @transform_0(%arg0: i32) -> (i32, i32, i32, i32) {
    %c0_i32 = arith.constant 0 : i32
    %c0_i32_0 = arith.constant 0 : i32
    %c0_i32_1 = arith.constant 0 : i32
    %c0_i32_2 = arith.constant 0 : i32
    return %arg0, %c0_i32, %c0_i32_0, %c0_i32_1 : i32, i32, i32, i32
  }
  func.func @transform_1(%arg0: i32) -> (i32, i32, i32) {
    %c0_i32 = arith.constant 0 : i32
    %c0_i32_0 = arith.constant 0 : i32
    %c0_i32_1 = arith.constant 0 : i32
    %c0_i32_2 = arith.constant 0 : i32
    return %c0_i32, %c0_i32_0, %c0_i32_1 : i32, i32, i32
  }
  func.func @transform_2(%arg0: i32) -> (i32, i32) {
    %c0_i32 = arith.constant 0 : i32
    %c0_i32_0 = arith.constant 0 : i32
    %c0_i32_1 = arith.constant 0 : i32
    return %c0_i32, %c0_i32_0 : i32, i32
  }
  func.func @transform_3(%arg0: i32) -> (i32, i32) {
    %c0_i32 = arith.constant 0 : i32
    %c0_i32_0 = arith.constant 0 : i32
    %c0_i32_1 = arith.constant 0 : i32
    return %c0_i32, %c0_i32_0 : i32, i32
  }
  func.func @transform_4(%arg0: i32) -> (i32, i32, i32) {
    %c0_i32 = arith.constant 0 : i32
    %c0_i32_0 = arith.constant 0 : i32
    %c0_i32_1 = arith.constant 0 : i32
    %c0_i32_2 = arith.constant 0 : i32
    return %c0_i32, %c0_i32_0, %c0_i32_1 : i32, i32, i32
  }
  func.func @transform_5(%arg0: i32) -> (i32, i32) {
    %c0_i32 = arith.constant 0 : i32
    %c0_i32_0 = arith.constant 0 : i32
    %c0_i32_1 = arith.constant 0 : i32
    return %c0_i32, %c0_i32_0 : i32, i32
  }
  func.func @transform_6(%arg0: i32) -> (i32, i32) {
    %c0_i32 = arith.constant 0 : i32
    %c0_i32_0 = arith.constant 0 : i32
    %c0_i32_1 = arith.constant 0 : i32
    return %c0_i32, %c0_i32_0 : i32, i32
  }
  func.func @transform_7(%arg0: i32) -> (i32, i32, i32) {
    %c0_i32 = arith.constant 0 : i32
    %c0_i32_0 = arith.constant 0 : i32
    %c0_i32_1 = arith.constant 0 : i32
    %c0_i32_2 = arith.constant 0 : i32
    return %c0_i32, %c0_i32_0, %c0_i32_1 : i32, i32, i32
  }
  func.func @transform_8(%arg0: i32) -> (i32, i32) {
    %c0_i32 = arith.constant 0 : i32
    %c0_i32_0 = arith.constant 0 : i32
    %c0_i32_1 = arith.constant 0 : i32
    return %c0_i32, %c0_i32_0 : i32, i32
  }
  func.func @transform_9(%arg0: i32) -> (i32, i32) {
    %c0_i32 = arith.constant 0 : i32
    %c0_i32_0 = arith.constant 0 : i32
    %c0_i32_1 = arith.constant 0 : i32
    return %c0_i32, %c0_i32_0 : i32, i32
  }
  func.func @transform_10(%arg0: i32) -> (i32, i32, i32) {
    %c0_i32 = arith.constant 0 : i32
    %c0_i32_0 = arith.constant 0 : i32
    %c0_i32_1 = arith.constant 0 : i32
    %c0_i32_2 = arith.constant 0 : i32
    return %c0_i32, %c0_i32_0, %c0_i32_1 : i32, i32, i32
  }
  func.func @transform_11(%arg0: i32) -> (i32, i32) {
    %c0_i32 = arith.constant 0 : i32
    %c0_i32_0 = arith.constant 0 : i32
    %c0_i32_1 = arith.constant 0 : i32
    return %c0_i32, %c0_i32_0 : i32, i32
  }
  func.func @transform_12(%arg0: i32) -> (i32, i32) {
    %c0_i32 = arith.constant 0 : i32
    %c0_i32_0 = arith.constant 0 : i32
    %c0_i32_1 = arith.constant 0 : i32
    return %c0_i32, %c0_i32_0 : i32, i32
  }
  func.func @transform_13(%arg0: i32) -> (i32, i32) {
    %c0_i32 = arith.constant 0 : i32
    %c0_i32_0 = arith.constant 0 : i32
    %c0_i32_1 = arith.constant 0 : i32
    return %c0_i32, %c0_i32_0 : i32, i32
  }
  func.func @transform_14(%arg0: i32) -> (i32, i32) {
    %c0_i32 = arith.constant 0 : i32
    %c0_i32_0 = arith.constant 0 : i32
    %c0_i32_1 = arith.constant 0 : i32
    return %c0_i32, %c0_i32_0 : i32, i32
  }
  func.func @transform_15(%arg0: i32) -> (i32, i32) {
    %c0_i32 = arith.constant 0 : i32
    %c0_i32_0 = arith.constant 0 : i32
    %c0_i32_1 = arith.constant 0 : i32
    return %c0_i32, %c0_i32_0 : i32, i32
  }
  func.func @transform_16(%arg0: i32) -> (i32, i32) {
    %c0_i32 = arith.constant 0 : i32
    %c0_i32_0 = arith.constant 0 : i32
    %c0_i32_1 = arith.constant 0 : i32
    return %c0_i32, %c0_i32_0 : i32, i32
  }
  func.func @transform_17(%arg0: i32) -> (i32, i32) {
    %c0_i32 = arith.constant 0 : i32
    %c0_i32_0 = arith.constant 0 : i32
    %c0_i32_1 = arith.constant 0 : i32
    return %c0_i32, %c0_i32_0 : i32, i32
  }
  func.func @transform_18(%arg0: i32) -> (i32, i32) {
    %c0_i32 = arith.constant 0 : i32
    %c0_i32_0 = arith.constant 0 : i32
    %c0_i32_1 = arith.constant 0 : i32
    return %c0_i32, %c0_i32_0 : i32, i32
  }
  func.func @transform_19(%arg0: i32) -> (i32, i32) {
    %c0_i32 = arith.constant 0 : i32
    %c0_i32_0 = arith.constant 0 : i32
    %c0_i32_1 = arith.constant 0 : i32
    return %c0_i32, %c0_i32_0 : i32, i32
  }
  func.func @transform_20(%arg0: i32) -> (i32, i32) {
    %c0_i32 = arith.constant 0 : i32
    %c0_i32_0 = arith.constant 0 : i32
    %c0_i32_1 = arith.constant 0 : i32
    return %c0_i32, %c0_i32_0 : i32, i32
  }
  func.func @transform_21(%arg0: i32) -> (i32, i32) {
    %c0_i32 = arith.constant 0 : i32
    %c0_i32_0 = arith.constant 0 : i32
    %c0_i32_1 = arith.constant 0 : i32
    return %c0_i32, %c0_i32_0 : i32, i32
  }
  func.func @transform_22(%arg0: i32) -> (i32, i32) {
    %c0_i32 = arith.constant 0 : i32
    %c0_i32_0 = arith.constant 0 : i32
    %c0_i32_1 = arith.constant 0 : i32
    return %c0_i32, %c0_i32_0 : i32, i32
  }
  func.func @transform_23(%arg0: i32) -> (i32, i32) {
    %c0_i32 = arith.constant 0 : i32
    %c0_i32_0 = arith.constant 0 : i32
    %c0_i32_1 = arith.constant 0 : i32
    return %c0_i32, %c0_i32_0 : i32, i32
  }
  func.func @transform_24(%arg0: i32) -> (i32, i32) {
    %c0_i32 = arith.constant 0 : i32
    %c0_i32_0 = arith.constant 0 : i32
    %c0_i32_1 = arith.constant 0 : i32
    return %c0_i32, %c0_i32_0 : i32, i32
  }
  func.func @transform_25(%arg0: i32) -> (i32, i32) {
    %c0_i32 = arith.constant 0 : i32
    %c0_i32_0 = arith.constant 0 : i32
    %c0_i32_1 = arith.constant 0 : i32
    return %c0_i32, %c0_i32_0 : i32, i32
  }
  func.func @transform_26(%arg0: i32) -> (i32, i32) {
    %c0_i32 = arith.constant 0 : i32
    %c0_i32_0 = arith.constant 0 : i32
    %c0_i32_1 = arith.constant 0 : i32
    return %c0_i32, %c0_i32_0 : i32, i32
  }
  func.func @transform_27(%arg0: i32) -> (i32, i32) {
    %c0_i32 = arith.constant 0 : i32
    %c0_i32_0 = arith.constant 0 : i32
    %c0_i32_1 = arith.constant 0 : i32
    return %c0_i32, %c0_i32_0 : i32, i32
  }
  func.func @transform_28(%arg0: i32) -> (i32, i32) {
    %c0_i32 = arith.constant 0 : i32
    %c0_i32_0 = arith.constant 0 : i32
    %c0_i32_1 = arith.constant 0 : i32
    return %c0_i32, %c0_i32_0 : i32, i32
  }
  func.func @transform_29(%arg0: i32) -> (i32, i32) {
    %c0_i32 = arith.constant 0 : i32
    %c0_i32_0 = arith.constant 0 : i32
    %c0_i32_1 = arith.constant 0 : i32
    return %c0_i32, %c0_i32_0 : i32, i32
  }
  func.func @transform_30(%arg0: i32) -> (i32, i32) {
    %c0_i32 = arith.constant 0 : i32
    %c0_i32_0 = arith.constant 0 : i32
    %c0_i32_1 = arith.constant 0 : i32
    return %c0_i32, %c0_i32_0 : i32, i32
  }
  func.func @transform_31(%arg0: i32) -> (i32, i32) {
    %c0_i32 = arith.constant 0 : i32
    %c0_i32_0 = arith.constant 0 : i32
    %c0_i32_1 = arith.constant 0 : i32
    return %c0_i32, %c0_i32_0 : i32, i32
  }
  func.func @transform_32(%arg0: i32) -> (i32, i32, i32, i32) {
    %c0_i32 = arith.constant 0 : i32
    %c0_i32_0 = arith.constant 0 : i32
    %c0_i32_1 = arith.constant 0 : i32
    %c0_i32_2 = arith.constant 0 : i32
    return %arg0, %c0_i32, %c0_i32_0, %c0_i32_1 : i32, i32, i32, i32
  }
}

</mosaic_0001>

<llo_original>
// kernel: rdb_forward.1
$region0: #{rdb_forward.1}
  #allocation0 [shape = 'u32[]', space=smem, size = 0x4, offset = 0x4, fixed_abs, tag = 'smem constant byte address 0x4 - core index']
  #allocation1 [shape = 'u32[144,128]{1,0:T(1,128)}', space=vmem, size = 0x12000, scoped, tag = 'internal scratch']
  #allocation2 [shape = 'f32[10,17,192]{2,1,0:T(8,128)}', space=vmem, size = 0x3c000, scoped, tag = 'scratch operand']
  %s0 = inlined_call_operand.smem [shape: u32[33], index: -1, kind: input, shape index: {}]
  %s1 = sld [smem:[%s0]]
  %s2 = scalar_lea.smem %s0, 1
  %s3 = sld [smem:[%s2]]
  %s4 = scalar_lea.smem %s0, 2
  %s5 = sld [smem:[%s4]]
  %s6 = scalar_lea.smem %s0, 3
  %s7 = sld [smem:[%s6]]
  %s8 = scalar_lea.smem %s0, 4
  %s9 = sld [smem:[%s8]]
  %s10 = scalar_lea.smem %s0, 5
  %s11 = sld [smem:[%s10]]
  %s12 = scalar_lea.smem %s0, 6
  %s13 = sld [smem:[%s12]]
  %s14 = scalar_lea.smem %s0, 7
  %s15 = sld [smem:[%s14]]
  %s16 = scalar_lea.smem %s0, 8
  %s17 = sld [smem:[%s16]]
  %s18 = scalar_lea.smem %s0, 9
  %s19 = sld [smem:[%s18]]
  %s20 = scalar_lea.smem %s0, 10
  %s21 = sld [smem:[%s20]]
  %s22 = scalar_lea.smem %s0, 11
  %s23 = sld [smem:[%s22]]
  %s24 = scalar_lea.smem %s0, 12
  %s25 = sld [smem:[%s24]]
  %s26 = scalar_lea.smem %s0, 13
  %s27 = sld [smem:[%s26]]
  %s28 = scalar_lea.smem %s0, 14
  %s29 = sld [smem:[%s28]]
  %s30 = scalar_lea.smem %s0, 15
  %s31 = sld [smem:[%s30]]
  %s32 = scalar_lea.smem %s0, 16
  %s33 = sld [smem:[%s32]]
  %s34 = scalar_lea.smem %s0, 17
  %s35 = sld [smem:[%s34]]
  %s36 = scalar_lea.smem %s0, 18
  %s37 = sld [smem:[%s36]]
  %s38 = scalar_lea.smem %s0, 19
  %s39 = sld [smem:[%s38]]
  %s40 = scalar_lea.smem %s0, 20
  %s41 = sld [smem:[%s40]]
  %s42 = scalar_lea.smem %s0, 21
  %s43 = sld [smem:[%s42]]
  %s44 = scalar_lea.smem %s0, 22
  %s45 = sld [smem:[%s44]]
  %s46 = scalar_lea.smem %s0, 23
  %s47 = sld [smem:[%s46]]
  %s48 = scalar_lea.smem %s0, 24
  %s49 = sld [smem:[%s48]]
  %s50 = scalar_lea.smem %s0, 25
  %s51 = sld [smem:[%s50]]
  %s52 = scalar_lea.smem %s0, 26
  %s53 = sld [smem:[%s52]]
  %s54 = scalar_lea.smem %s0, 27
  %s55 = sld [smem:[%s54]]
  %s56 = scalar_lea.smem %s0, 28
  %s57 = sld [smem:[%s56]]
  %s58 = scalar_lea.smem %s0, 29
  %s59 = sld [smem:[%s58]]
  %s60 = scalar_lea.smem %s0, 30
  %s61 = sld [smem:[%s60]]
  %s62 = scalar_lea.smem %s0, 31
  %s63 = sld [smem:[%s62]]
  %s64 = scalar_lea.smem %s0, 32
  %s65 = sld [smem:[%s64]]
  %s66 = sld [smem:[#allocation0]]
  $region161: #{rdb_forward.1} parent=0
    _
  %s68 = ssub.s32 1, %s66
  %s69 = scalar_select 0, %s68, %s66
  $region1: #{rdb_forward.1} parent=0
    #allocation3 [shape = 'u8[65536]{0}', space=vmem, size = 0x10000, scoped, tag = 'output window, operand 0']
    #allocation4 [shape = 's32[2]{0}', space=sflag, size = 0x8, scoped, tag = 'scoped memory for rdb_forward.1']
    %70 = vsyncpa [#allocation4], 0
    %s71 = scalar_lea.sflag [#allocation4], 1
    %72 = vsyncpa %s71, 0
    loop: start=0, step=1, limit=4
    $region2: #{rdb_forward.1} parent=1 // loop_pre_header
      _
    $region3: #{rdb_forward.1} parent=1 // loop_header
      %s74 = sphi 0, %s78
      %p75 = scmp.ge.s32.totalorder %s74, 4
      %s84 = sphi 0, %s86
      %s87 = sphi 0, %s84
      %s88 = sphi 0, %s87
      %s104 = sphi 0, %s88
      %s108 = sphi 0, %s108
      %s110 = sphi 0, %s108
      %s111 = sphi 0, %s110
      %s125 = sphi 0, %s111
      %s129 = sphi 0, %s129
      %s131 = sphi 0, %s129
      %s132 = sphi 0, %s131
      %s146 = sphi 0, %s132
      %s150 = sphi 0, %s150
      %s152 = sphi 0, %s150
      %s153 = sphi 0, %s152
      %s167 = sphi 0, %s153
      %s171 = sphi 0, %s171
      %s173 = sphi 0, %s171
      %s174 = sphi 0, %s173
      %s188 = sphi 0, %s174
      %s192 = sphi 0, %s192
      %s194 = sphi 0, %s192
      %s195 = sphi 0, %s194
      %s209 = sphi 0, %s195
      %s213 = sphi 0, %s213
      %s215 = sphi 0, %s213
      %s216 = sphi 0, %s215
      %s230 = sphi 0, %s216
      %s234 = sphi 0, %s234
      %s236 = sphi 0, %s234
      %s237 = sphi 0, %s236
      %s251 = sphi 0, %s237
      %s255 = sphi 0, %s255
      %s257 = sphi 0, %s255
      %s258 = sphi 0, %s257
      %s272 = sphi 0, %s258
      %s276 = sphi 0, %s276
      %s278 = sphi 0, %s276
      %s279 = sphi 0, %s278
      %s293 = sphi 0, %s279
      %s297 = sphi 0, %s297
      %s299 = sphi 0, %s297
      %s300 = sphi 0, %s299
      %s314 = sphi 0, %s300
      %s318 = sphi 0, %s318
      %s320 = sphi 0, %s318
      %s321 = sphi 0, %s320
      %s335 = sphi 0, %s321
      %s339 = sphi 0, %s339
      %s341 = sphi 0, %s339
      %s342 = sphi 0, %s341
      %s356 = sphi 0, %s342
      %s360 = sphi 0, %s360
      %s362 = sphi 0, %s360
      %s363 = sphi 0, %s362
      %s377 = sphi 0, %s363
      %s381 = sphi 0, %s381
      %s383 = sphi 0, %s381
      %s384 = sphi 0, %s383
      %s398 = sphi 0, %s384
      %s402 = sphi 0, %s402
      %s404 = sphi 0, %s402
      %s405 = sphi 0, %s404
      %s419 = sphi 0, %s405
      %s423 = sphi 0, %s423
      %s425 = sphi 0, %s423
      %s426 = sphi 0, %s425
      %s440 = sphi 0, %s426
      %s444 = sphi 0, %s444
      %s446 = sphi 0, %s444
      %s447 = sphi 0, %s446
      %s461 = sphi 0, %s447
      %s465 = sphi 0, %s465
      %s467 = sphi 0, %s465
      %s468 = sphi 0, %s467
      %s482 = sphi 0, %s468
      %s486 = sphi 0, %s486
      %s488 = sphi 0, %s486
      %s489 = sphi 0, %s488
      %s503 = sphi 0, %s489
      %s507 = sphi 0, %s507
      %s509 = sphi 0, %s507
      %s510 = sphi 0, %s509
      %s524 = sphi 0, %s510
      %s528 = sphi 0, %s528
      %s530 = sphi 0, %s528
      %s531 = sphi 0, %s530
      %s545 = sphi 0, %s531
      %s549 = sphi 0, %s549
      %s551 = sphi 0, %s549
      %s552 = sphi 0, %s551
      %s566 = sphi 0, %s552
      %s570 = sphi 0, %s570
      %s572 = sphi 0, %s570
      %s573 = sphi 0, %s572
      %s587 = sphi 0, %s573
      %s591 = sphi 0, %s591
      %s593 = sphi 0, %s591
      %s594 = sphi 0, %s593
      %s608 = sphi 0, %s594
      %s612 = sphi 0, %s612
      %s614 = sphi 0, %s612
      %s615 = sphi 0, %s614
      %s629 = sphi 0, %s615
      %s633 = sphi 0, %s633
      %s635 = sphi 0, %s633
      %s636 = sphi 0, %s635
      %s650 = sphi 0, %s636
      %s654 = sphi 0, %s654
      %s656 = sphi 0, %s654
      %s657 = sphi 0, %s656
      %s671 = sphi 0, %s657
      %s675 = sphi 0, %s675
      %s677 = sphi 0, %s675
      %s678 = sphi 0, %s677
      %s692 = sphi 0, %s678
      %s696 = sphi 0, %s696
      %s698 = sphi 0, %s696
      %s699 = sphi 0, %s698
      %s713 = sphi 0, %s699
      %s717 = sphi 0, %s717
      %s719 = sphi 0, %s717
      %s720 = sphi 0, %s719
      %s734 = sphi 0, %s720
      %s738 = sphi 0, %s738
      %s740 = sphi 0, %s738
      %s741 = sphi 0, %s740
      %s755 = sphi 0, %s741
      %s761 = sphi 0, %s763
      %s764 = sphi 0, %s761
      %s765 = sphi 0, %s764
      %s781 = sphi 0, %s765
    $region4: #{rdb_forward.1} parent=1 // loop_header_branch
      %77 = sbr.rel (%p75) target = $region8
    $region5: #{rdb_forward.1} parent=1 // loop_body
      %s79 = ssub.s32 %s74, 1
      %s80 = ssub.s32 %s74, 2
      %s81 = sadd.s32 %s74, 1
      %s82 = ssub.s32 %s74, %s81
      %p83 = scmp.eq.s32.totalorder %s82, 0
      %s85 = sadd.s32 %s84, 1
      %s86 = scalar_select %p83, %s84, %s85
      %p89 = pneg %p83
      %p90 = scmp.eq.s32.totalorder %s74, 1
      %p91 = por %p89, %p90
      %p92 = scmp.ne.s32.totalorder %s84, %s87
      %p93 = scmp.eq.s32.totalorder %s74, 0
      %p94 = por %p92, %p93
      %p95 = scmp.ne.s32.totalorder %s84, %s87
      %p96 = scmp.eq.s32.totalorder %s79, 1
      %p97 = por %p95, %p96
      %p98 = scmp.ne.s32.totalorder %s87, %s88
      %p99 = scmp.eq.s32.totalorder %s79, 0
      %p100 = por %p98, %p99
      %p101 = scmp.ne.s32.totalorder %s87, %s88
      %p102 = scmp.eq.s32.totalorder %s80, 1
      %p103 = por %p101, %p102
      %p105 = scmp.ne.s32.totalorder %s88, %s104
      %p106 = scmp.eq.s32.totalorder %s80, 0
      %p107 = por %p105, %p106
      %s109 = sadd.s32 %s108, 1
      %p112 = scmp.eq.s32.totalorder %s74, 1
      %p113 = scmp.ne.s32.totalorder %s108, %s110
      %p114 = scmp.eq.s32.totalorder %s74, 0
      %p115 = por %p113, %p114
      %p116 = scmp.ne.s32.totalorder %s108, %s110
      %p117 = scmp.eq.s32.totalorder %s79, 1
      %p118 = por %p116, %p117
      %p119 = scmp.ne.s32.totalorder %s110, %s111
      %p120 = scmp.eq.s32.totalorder %s79, 0
      %p121 = por %p119, %p120
      %p122 = scmp.ne.s32.totalorder %s110, %s111
      %p123 = scmp.eq.s32.totalorder %s80, 1
      %p124 = por %p122, %p123
      %p126 = scmp.ne.s32.totalorder %s111, %s125
      %p127 = scmp.eq.s32.totalorder %s80, 0
      %p128 = por %p126, %p127
      %s130 = sadd.s32 %s129, 1
      %p133 = scmp.eq.s32.totalorder %s74, 1
      %p134 = scmp.ne.s32.totalorder %s129, %s131
      %p135 = scmp.eq.s32.totalorder %s74, 0
      %p136 = por %p134, %p135
      %p137 = scmp.ne.s32.totalorder %s129, %s131
      %p138 = scmp.eq.s32.totalorder %s79, 1
      %p139 = por %p137, %p138
      %p140 = scmp.ne.s32.totalorder %s131, %s132
      %p141 = scmp.eq.s32.totalorder %s79, 0
      %p142 = por %p140, %p141
      %p143 = scmp.ne.s32.totalorder %s131, %s132
      %p144 = scmp.eq.s32.totalorder %s80, 1
      %p145 = por %p143, %p144
      %p147 = scmp.ne.s32.totalorder %s132, %s146
      %p148 = scmp.eq.s32.totalorder %s80, 0
      %p149 = por %p147, %p148
      %s151 = sadd.s32 %s150, 1
      %p154 = scmp.eq.s32.totalorder %s74, 1
      %p155 = scmp.ne.s32.totalorder %s150, %s152
      %p156 = scmp.eq.s32.totalorder %s74, 0
      %p157 = por %p155, %p156
      %p158 = scmp.ne.s32.totalorder %s150, %s152
      %p159 = scmp.eq.s32.totalorder %s79, 1
      %p160 = por %p158, %p159
      %p161 = scmp.ne.s32.totalorder %s152, %s153
      %p162 = scmp.eq.s32.totalorder %s79, 0
      %p163 = por %p161, %p162
      %p164 = scmp.ne.s32.totalorder %s152, %s153
      %p165 = scmp.eq.s32.totalorder %s80, 1
      %p166 = por %p164, %p165
      %p168 = scmp.ne.s32.totalorder %s153, %s167
      %p169 = scmp.eq.s32.totalorder %s80, 0
      %p170 = por %p168, %p169
      %s172 = sadd.s32 %s171, 1
      %p175 = scmp.eq.s32.totalorder %s74, 1
      %p176 = scmp.ne.s32.totalorder %s171, %s173
      %p177 = scmp.eq.s32.totalorder %s74, 0
      %p178 = por %p176, %p177
      %p179 = scmp.ne.s32.totalorder %s171, %s173
      %p180 = scmp.eq.s32.totalorder %s79, 1
      %p181 = por %p179, %p180
      %p182 = scmp.ne.s32.totalorder %s173, %s174
      %p183 = scmp.eq.s32.totalorder %s79, 0
      %p184 = por %p182, %p183
      %p185 = scmp.ne.s32.totalorder %s173, %s174
      %p186 = scmp.eq.s32.totalorder %s80, 1
      %p187 = por %p185, %p186
      %p189 = scmp.ne.s32.totalorder %s174, %s188
      %p190 = scmp.eq.s32.totalorder %s80, 0
      %p191 = por %p189, %p190
      %s193 = sadd.s32 %s192, 1
      %p196 = scmp.eq.s32.totalorder %s74, 1
      %p197 = scmp.ne.s32.totalorder %s192, %s194
      %p198 = scmp.eq.s32.totalorder %s74, 0
      %p199 = por %p197, %p198
      %p200 = scmp.ne.s32.totalorder %s192, %s194
      %p201 = scmp.eq.s32.totalorder %s79, 1
      %p202 = por %p200, %p201
      %p203 = scmp.ne.s32.totalorder %s194, %s195
      %p204 = scmp.eq.s32.totalorder %s79, 0
      %p205 = por %p203, %p204
      %p206 = scmp.ne.s32.totalorder %s194, %s195
      %p207 = scmp.eq.s32.totalorder %s80, 1
      %p208 = por %p206, %p207
      %p210 = scmp.ne.s32.totalorder %s195, %s209
      %p211 = scmp.eq.s32.totalorder %s80, 0
      %p212 = por %p210, %p211
      %s214 = sadd.s32 %s213, 1
      %p217 = scmp.eq.s32.totalorder %s74, 1
      %p218 = scmp.ne.s32.totalorder %s213, %s215
      %p219 = scmp.eq.s32.totalorder %s74, 0
      %p220 = por %p218, %p219
      %p221 = scmp.ne.s32.totalorder %s213, %s215
      %p222 = scmp.eq.s32.totalorder %s79, 1
      %p223 = por %p221, %p222
      %p224 = scmp.ne.s32.totalorder %s215, %s216
      %p225 = scmp.eq.s32.totalorder %s79, 0
      %p226 = por %p224, %p225
      %p227 = scmp.ne.s32.totalorder %s215, %s216
      %p228 = scmp.eq.s32.totalorder %s80, 1
      %p229 = por %p227, %p228
      %p231 = scmp.ne.s32.totalorder %s216, %s230
      %p232 = scmp.eq.s32.totalorder %s80, 0
      %p233 = por %p231, %p232
      %s235 = sadd.s32 %s234, 1
      %p238 = scmp.eq.s32.totalorder %s74, 1
      %p239 = scmp.ne.s32.totalorder %s234, %s236
      %p240 = scmp.eq.s32.totalorder %s74, 0
      %p241 = por %p239, %p240
      %p242 = scmp.ne.s32.totalorder %s234, %s236
      %p243 = scmp.eq.s32.totalorder %s79, 1
      %p244 = por %p242, %p243
      %p245 = scmp.ne.s32.totalorder %s236, %s237
      %p246 = scmp.eq.s32.totalorder %s79, 0
      %p247 = por %p245, %p246
      %p248 = scmp.ne.s32.totalorder %s236, %s237
      %p249 = scmp.eq.s32.totalorder %s80, 1
      %p250 = por %p248, %p249
      %p252 = scmp.ne.s32.totalorder %s237, %s251
      %p253 = scmp.eq.s32.totalorder %s80, 0
      %p254 = por %p252, %p253
      %s256 = sadd.s32 %s255, 1
      %p259 = scmp.eq.s32.totalorder %s74, 1
      %p260 = scmp.ne.s32.totalorder %s255, %s257
      %p261 = scmp.eq.s32.totalorder %s74, 0
      %p262 = por %p260, %p261
      %p263 = scmp.ne.s32.totalorder %s255, %s257
      %p264 = scmp.eq.s32.totalorder %s79, 1
      %p265 = por %p263, %p264
      %p266 = scmp.ne.s32.totalorder %s257, %s258
      %p267 = scmp.eq.s32.totalorder %s79, 0
      %p268 = por %p266, %p267
      %p269 = scmp.ne.s32.totalorder %s257, %s258
      %p270 = scmp.eq.s32.totalorder %s80, 1
      %p271 = por %p269, %p270
      %p273 = scmp.ne.s32.totalorder %s258, %s272
      %p274 = scmp.eq.s32.totalorder %s80, 0
      %p275 = por %p273, %p274
      %s277 = sadd.s32 %s276, 1
      %p280 = scmp.eq.s32.totalorder %s74, 1
      %p281 = scmp.ne.s32.totalorder %s276, %s278
      %p282 = scmp.eq.s32.totalorder %s74, 0
      %p283 = por %p281, %p282
      %p284 = scmp.ne.s32.totalorder %s276, %s278
      %p285 = scmp.eq.s32.totalorder %s79, 1
      %p286 = por %p284, %p285
      %p287 = scmp.ne.s32.totalorder %s278, %s279
      %p288 = scmp.eq.s32.totalorder %s79, 0
      %p289 = por %p287, %p288
      %p290 = scmp.ne.s32.totalorder %s278, %s279
      %p291 = scmp.eq.s32.totalorder %s80, 1
      %p292 = por %p290, %p291
      %p294 = scmp.ne.s32.totalorder %s279, %s293
      %p295 = scmp.eq.s32.totalorder %s80, 0
      %p296 = por %p294, %p295
      %s298 = sadd.s32 %s297, 1
      %p301 = scmp.eq.s32.totalorder %s74, 1
      %p302 = scmp.ne.s32.totalorder %s297, %s299
      %p303 = scmp.eq.s32.totalorder %s74, 0
      %p304 = por %p302, %p303
      %p305 = scmp.ne.s32.totalorder %s297, %s299
      %p306 = scmp.eq.s32.totalorder %s79, 1
      %p307 = por %p305, %p306
      %p308 = scmp.ne.s32.totalorder %s299, %s300
      %p309 = scmp.eq.s32.totalorder %s79, 0
      %p310 = por %p308, %p309
      %p311 = scmp.ne.s32.totalorder %s299, %s300
      %p312 = scmp.eq.s32.totalorder %s80, 1
      %p313 = por %p311, %p312
      %p315 = scmp.ne.s32.totalorder %s300, %s314
      %p316 = scmp.eq.s32.totalorder %s80, 0
      %p317 = por %p315, %p316
      %s319 = sadd.s32 %s318, 1
      %p322 = scmp.eq.s32.totalorder %s74, 1
      %p323 = scmp.ne.s32.totalorder %s318, %s320
      %p324 = scmp.eq.s32.totalorder %s74, 0
      %p325 = por %p323, %p324
      %p326 = scmp.ne.s32.totalorder %s318, %s320
      %p327 = scmp.eq.s32.totalorder %s79, 1
      %p328 = por %p326, %p327
      %p329 = scmp.ne.s32.totalorder %s320, %s321
      %p330 = scmp.eq.s32.totalorder %s79, 0
      %p331 = por %p329, %p330
      %p332 = scmp.ne.s32.totalorder %s320, %s321
      %p333 = scmp.eq.s32.totalorder %s80, 1
      %p334 = por %p332, %p333
      %p336 = scmp.ne.s32.totalorder %s321, %s335
      %p337 = scmp.eq.s32.totalorder %s80, 0
      %p338 = por %p336, %p337
      %s340 = sadd.s32 %s339, 1
      %p343 = scmp.eq.s32.totalorder %s74, 1
      %p344 = scmp.ne.s32.totalorder %s339, %s341
      %p345 = scmp.eq.s32.totalorder %s74, 0
      %p346 = por %p344, %p345
      %p347 = scmp.ne.s32.totalorder %s339, %s341
      %p348 = scmp.eq.s32.totalorder %s79, 1
      %p349 = por %p347, %p348
      %p350 = scmp.ne.s32.totalorder %s341, %s342
      %p351 = scmp.eq.s32.totalorder %s79, 0
      %p352 = por %p350, %p351
      %p353 = scmp.ne.s32.totalorder %s341, %s342
      %p354 = scmp.eq.s32.totalorder %s80, 1
      %p355 = por %p353, %p354
      %p357 = scmp.ne.s32.totalorder %s342, %s356
      %p358 = scmp.eq.s32.totalorder %s80, 0
      %p359 = por %p357, %p358
      %s361 = sadd.s32 %s360, 1
      %p364 = scmp.eq.s32.totalorder %s74, 1
      %p365 = scmp.ne.s32.totalorder %s360, %s362
      %p366 = scmp.eq.s32.totalorder %s74, 0
      %p367 = por %p365, %p366
      %p368 = scmp.ne.s32.totalorder %s360, %s362
      %p369 = scmp.eq.s32.totalorder %s79, 1
      %p370 = por %p368, %p369
      %p371 = scmp.ne.s32.totalorder %s362, %s363
      %p372 = scmp.eq.s32.totalorder %s79, 0
      %p373 = por %p371, %p372
      %p374 = scmp.ne.s32.totalorder %s362, %s363
      %p375 = scmp.eq.s32.totalorder %s80, 1
      %p376 = por %p374, %p375
      %p378 = scmp.ne.s32.totalorder %s363, %s377
      %p379 = scmp.eq.s32.totalorder %s80, 0
      %p380 = por %p378, %p379
      %s382 = sadd.s32 %s381, 1
      %p385 = scmp.eq.s32.totalorder %s74, 1
      %p386 = scmp.ne.s32.totalorder %s381, %s383
      %p387 = scmp.eq.s32.totalorder %s74, 0
      %p388 = por %p386, %p387
      %p389 = scmp.ne.s32.totalorder %s381, %s383
      %p390 = scmp.eq.s32.totalorder %s79, 1
      %p391 = por %p389, %p390
      %p392 = scmp.ne.s32.totalorder %s383, %s384
      %p393 = scmp.eq.s32.totalorder %s79, 0
      %p394 = por %p392, %p393
      %p395 = scmp.ne.s32.totalorder %s383, %s384
      %p396 = scmp.eq.s32.totalorder %s80, 1
      %p397 = por %p395, %p396
      %p399 = scmp.ne.s32.totalorder %s384, %s398
      %p400 = scmp.eq.s32.totalorder %s80, 0
      %p401 = por %p399, %p400
      %s403 = sadd.s32 %s402, 1
      %p406 = scmp.eq.s32.totalorder %s74, 1
      %p407 = scmp.ne.s32.totalorder %s402, %s404
      %p408 = scmp.eq.s32.totalorder %s74, 0
      %p409 = por %p407, %p408
      %p410 = scmp.ne.s32.totalorder %s402, %s404
      %p411 = scmp.eq.s32.totalorder %s79, 1
      %p412 = por %p410, %p411
      %p413 = scmp.ne.s32.totalorder %s404, %s405
      %p414 = scmp.eq.s32.totalorder %s79, 0
      %p415 = por %p413, %p414
      %p416 = scmp.ne.s32.totalorder %s404, %s405
      %p417 = scmp.eq.s32.totalorder %s80, 1
      %p418 = por %p416, %p417
      %p420 = scmp.ne.s32.totalorder %s405, %s419
      %p421 = scmp.eq.s32.totalorder %s80, 0
      %p422 = por %p420, %p421
      %s424 = sadd.s32 %s423, 1
      %p427 = scmp.eq.s32.totalorder %s74, 1
      %p428 = scmp.ne.s32.totalorder %s423, %s425
      %p429 = scmp.eq.s32.totalorder %s74, 0
      %p430 = por %p428, %p429
      %p431 = scmp.ne.s32.totalorder %s423, %s425
      %p432 = scmp.eq.s32.totalorder %s79, 1
      %p433 = por %p431, %p432
      %p434 = scmp.ne.s32.totalorder %s425, %s426
      %p435 = scmp.eq.s32.totalorder %s79, 0
      %p436 = por %p434, %p435
      %p437 = scmp.ne.s32.totalorder %s425, %s426
      %p438 = scmp.eq.s32.totalorder %s80, 1
      %p439 = por %p437, %p438
      %p441 = scmp.ne.s32.totalorder %s426, %s440
      %p442 = scmp.eq.s32.totalorder %s80, 0
      %p443 = por %p441, %p442
      %s445 = sadd.s32 %s444, 1
      %p448 = scmp.eq.s32.totalorder %s74, 1
      %p449 = scmp.ne.s32.totalorder %s444, %s446
      %p450 = scmp.eq.s32.totalorder %s74, 0
      %p451 = por %p449, %p450
      %p452 = scmp.ne.s32.totalorder %s444, %s446
      %p453 = scmp.eq.s32.totalorder %s79, 1
      %p454 = por %p452, %p453
      %p455 = scmp.ne.s32.totalorder %s446, %s447
      %p456 = scmp.eq.s32.totalorder %s79, 0
      %p457 = por %p455, %p456
      %p458 = scmp.ne.s32.totalorder %s446, %s447
      %p459 = scmp.eq.s32.totalorder %s80, 1
      %p460 = por %p458, %p459
      %p462 = scmp.ne.s32.totalorder %s447, %s461
      %p463 = scmp.eq.s32.totalorder %s80, 0
      %p464 = por %p462, %p463
      %s466 = sadd.s32 %s465, 1
      %p469 = scmp.eq.s32.totalorder %s74, 1
      %p470 = scmp.ne.s32.totalorder %s465, %s467
      %p471 = scmp.eq.s32.totalorder %s74, 0
      %p472 = por %p470, %p471
      %p473 = scmp.ne.s32.totalorder %s465, %s467
      %p474 = scmp.eq.s32.totalorder %s79, 1
      %p475 = por %p473, %p474
      %p476 = scmp.ne.s32.totalorder %s467, %s468
      %p477 = scmp.eq.s32.totalorder %s79, 0
      %p478 = por %p476, %p477
      %p479 = scmp.ne.s32.totalorder %s467, %s468
      %p480 = scmp.eq.s32.totalorder %s80, 1
      %p481 = por %p479, %p480
      %p483 = scmp.ne.s32.totalorder %s468, %s482
      %p484 = scmp.eq.s32.totalorder %s80, 0
      %p485 = por %p483, %p484
      %s487 = sadd.s32 %s486, 1
      %p490 = scmp.eq.s32.totalorder %s74, 1
      %p491 = scmp.ne.s32.totalorder %s486, %s488
      %p492 = scmp.eq.s32.totalorder %s74, 0
      %p493 = por %p491, %p492
      %p494 = scmp.ne.s32.totalorder %s486, %s488
      %p495 = scmp.eq.s32.totalorder %s79, 1
      %p496 = por %p494, %p495
      %p497 = scmp.ne.s32.totalorder %s488, %s489
      %p498 = scmp.eq.s32.totalorder %s79, 0
      %p499 = por %p497, %p498
      %p500 = scmp.ne.s32.totalorder %s488, %s489
      %p501 = scmp.eq.s32.totalorder %s80, 1
      %p502 = por %p500, %p501
      %p504 = scmp.ne.s32.totalorder %s489, %s503
      %p505 = scmp.eq.s32.totalorder %s80, 0
      %p506 = por %p504, %p505
      %s508 = sadd.s32 %s507, 1
      %p511 = scmp.eq.s32.totalorder %s74, 1
      %p512 = scmp.ne.s32.totalorder %s507, %s509
      %p513 = scmp.eq.s32.totalorder %s74, 0
      %p514 = por %p512, %p513
      %p515 = scmp.ne.s32.totalorder %s507, %s509
      %p516 = scmp.eq.s32.totalorder %s79, 1
      %p517 = por %p515, %p516
      %p518 = scmp.ne.s32.totalorder %s509, %s510
      %p519 = scmp.eq.s32.totalorder %s79, 0
      %p520 = por %p518, %p519
      %p521 = scmp.ne.s32.totalorder %s509, %s510
      %p522 = scmp.eq.s32.totalorder %s80, 1
      %p523 = por %p521, %p522
      %p525 = scmp.ne.s32.totalorder %s510, %s524
      %p526 = scmp.eq.s32.totalorder %s80, 0
      %p527 = por %p525, %p526
      %s529 = sadd.s32 %s528, 1
      %p532 = scmp.eq.s32.totalorder %s74, 1
      %p533 = scmp.ne.s32.totalorder %s528, %s530
      %p534 = scmp.eq.s32.totalorder %s74, 0
      %p535 = por %p533, %p534
      %p536 = scmp.ne.s32.totalorder %s528, %s530
      %p537 = scmp.eq.s32.totalorder %s79, 1
      %p538 = por %p536, %p537
      %p539 = scmp.ne.s32.totalorder %s530, %s531
      %p540 = scmp.eq.s32.totalorder %s79, 0
      %p541 = por %p539, %p540
      %p542 = scmp.ne.s32.totalorder %s530, %s531
      %p543 = scmp.eq.s32.totalorder %s80, 1
      %p544 = por %p542, %p543
      %p546 = scmp.ne.s32.totalorder %s531, %s545
      %p547 = scmp.eq.s32.totalorder %s80, 0
      %p548 = por %p546, %p547
      %s550 = sadd.s32 %s549, 1
      %p553 = scmp.eq.s32.totalorder %s74, 1
      %p554 = scmp.ne.s32.totalorder %s549, %s551
      %p555 = scmp.eq.s32.totalorder %s74, 0
      %p556 = por %p554, %p555
      %p557 = scmp.ne.s32.totalorder %s549, %s551
      %p558 = scmp.eq.s32.totalorder %s79, 1
      %p559 = por %p557, %p558
      %p560 = scmp.ne.s32.totalorder %s551, %s552
      %p561 = scmp.eq.s32.totalorder %s79, 0
      %p562 = por %p560, %p561
      %p563 = scmp.ne.s32.totalorder %s551, %s552
      %p564 = scmp.eq.s32.totalorder %s80, 1
      %p565 = por %p563, %p564
      %p567 = scmp.ne.s32.totalorder %s552, %s566
      %p568 = scmp.eq.s32.totalorder %s80, 0
      %p569 = por %p567, %p568
      %s571 = sadd.s32 %s570, 1
      %p574 = scmp.eq.s32.totalorder %s74, 1
      %p575 = scmp.ne.s32.totalorder %s570, %s572
      %p576 = scmp.eq.s32.totalorder %s74, 0
      %p577 = por %p575, %p576
      %p578 = scmp.ne.s32.totalorder %s570, %s572
      %p579 = scmp.eq.s32.totalorder %s79, 1
      %p580 = por %p578, %p579
      %p581 = scmp.ne.s32.totalorder %s572, %s573
      %p582 = scmp.eq.s32.totalorder %s79, 0
      %p583 = por %p581, %p582
      %p584 = scmp.ne.s32.totalorder %s572, %s573
      %p585 = scmp.eq.s32.totalorder %s80, 1
      %p586 = por %p584, %p585
      %p588 = scmp.ne.s32.totalorder %s573, %s587
      %p589 = scmp.eq.s32.totalorder %s80, 0
      %p590 = por %p588, %p589
      %s592 = sadd.s32 %s591, 1
      %p595 = scmp.eq.s32.totalorder %s74, 1
      %p596 = scmp.ne.s32.totalorder %s591, %s593
      %p597 = scmp.eq.s32.totalorder %s74, 0
      %p598 = por %p596, %p597
      %p599 = scmp.ne.s32.totalorder %s591, %s593
      %p600 = scmp.eq.s32.totalorder %s79, 1
      %p601 = por %p599, %p600
      %p602 = scmp.ne.s32.totalorder %s593, %s594
      %p603 = scmp.eq.s32.totalorder %s79, 0
      %p604 = por %p602, %p603
      %p605 = scmp.ne.s32.totalorder %s593, %s594
      %p606 = scmp.eq.s32.totalorder %s80, 1
      %p607 = por %p605, %p606
      %p609 = scmp.ne.s32.totalorder %s594, %s608
      %p610 = scmp.eq.s32.totalorder %s80, 0
      %p611 = por %p609, %p610
      %s613 = sadd.s32 %s612, 1
      %p616 = scmp.eq.s32.totalorder %s74, 1
      %p617 = scmp.ne.s32.totalorder %s612, %s614
      %p618 = scmp.eq.s32.totalorder %s74, 0
      %p619 = por %p617, %p618
      %p620 = scmp.ne.s32.totalorder %s612, %s614
      %p621 = scmp.eq.s32.totalorder %s79, 1
      %p622 = por %p620, %p621
      %p623 = scmp.ne.s32.totalorder %s614, %s615
      %p624 = scmp.eq.s32.totalorder %s79, 0
      %p625 = por %p623, %p624
      %p626 = scmp.ne.s32.totalorder %s614, %s615
      %p627 = scmp.eq.s32.totalorder %s80, 1
      %p628 = por %p626, %p627
      %p630 = scmp.ne.s32.totalorder %s615, %s629
      %p631 = scmp.eq.s32.totalorder %s80, 0
      %p632 = por %p630, %p631
      %s634 = sadd.s32 %s633, 1
      %p637 = scmp.eq.s32.totalorder %s74, 1
      %p638 = scmp.ne.s32.totalorder %s633, %s635
      %p639 = scmp.eq.s32.totalorder %s74, 0
      %p640 = por %p638, %p639
      %p641 = scmp.ne.s32.totalorder %s633, %s635
      %p642 = scmp.eq.s32.totalorder %s79, 1
      %p643 = por %p641, %p642
      %p644 = scmp.ne.s32.totalorder %s635, %s636
      %p645 = scmp.eq.s32.totalorder %s79, 0
      %p646 = por %p644, %p645
      %p647 = scmp.ne.s32.totalorder %s635, %s636
      %p648 = scmp.eq.s32.totalorder %s80, 1
      %p649 = por %p647, %p648
      %p651 = scmp.ne.s32.totalorder %s636, %s650
      %p652 = scmp.eq.s32.totalorder %s80, 0
      %p653 = por %p651, %p652
      %s655 = sadd.s32 %s654, 1
      %p658 = scmp.eq.s32.totalorder %s74, 1
      %p659 = scmp.ne.s32.totalorder %s654, %s656
      %p660 = scmp.eq.s32.totalorder %s74, 0
      %p661 = por %p659, %p660
      %p662 = scmp.ne.s32.totalorder %s654, %s656
      %p663 = scmp.eq.s32.totalorder %s79, 1
      %p664 = por %p662, %p663
      %p665 = scmp.ne.s32.totalorder %s656, %s657
      %p666 = scmp.eq.s32.totalorder %s79, 0
      %p667 = por %p665, %p666
      %p668 = scmp.ne.s32.totalorder %s656, %s657
      %p669 = scmp.eq.s32.totalorder %s80, 1
      %p670 = por %p668, %p669
      %p672 = scmp.ne.s32.totalorder %s657, %s671
      %p673 = scmp.eq.s32.totalorder %s80, 0
      %p674 = por %p672, %p673
      %s676 = sadd.s32 %s675, 1
      %p679 = scmp.eq.s32.totalorder %s74, 1
      %p680 = scmp.ne.s32.totalorder %s675, %s677
      %p681 = scmp.eq.s32.totalorder %s74, 0
      %p682 = por %p680, %p681
      %p683 = scmp.ne.s32.totalorder %s675, %s677
      %p684 = scmp.eq.s32.totalorder %s79, 1
      %p685 = por %p683, %p684
      %p686 = scmp.ne.s32.totalorder %s677, %s678
      %p687 = scmp.eq.s32.totalorder %s79, 0
      %p688 = por %p686, %p687
      %p689 = scmp.ne.s32.totalorder %s677, %s678
      %p690 = scmp.eq.s32.totalorder %s80, 1
      %p691 = por %p689, %p690
      %p693 = scmp.ne.s32.totalorder %s678, %s692
      %p694 = scmp.eq.s32.totalorder %s80, 0
      %p695 = por %p693, %p694
      %s697 = sadd.s32 %s696, 1
      %p700 = scmp.eq.s32.totalorder %s74, 1
      %p701 = scmp.ne.s32.totalorder %s696, %s698
      %p702 = scmp.eq.s32.totalorder %s74, 0
      %p703 = por %p701, %p702
      %p704 = scmp.ne.s32.totalorder %s696, %s698
      %p705 = scmp.eq.s32.totalorder %s79, 1
      %p706 = por %p704, %p705
      %p707 = scmp.ne.s32.totalorder %s698, %s699
      %p708 = scmp.eq.s32.totalorder %s79, 0
      %p709 = por %p707, %p708
      %p710 = scmp.ne.s32.totalorder %s698, %s699
      %p711 = scmp.eq.s32.totalorder %s80, 1
      %p712 = por %p710, %p711
      %p714 = scmp.ne.s32.totalorder %s699, %s713
      %p715 = scmp.eq.s32.totalorder %s80, 0
      %p716 = por %p714, %p715
      %s718 = sadd.s32 %s717, 1
      %p721 = scmp.eq.s32.totalorder %s74, 1
      %p722 = scmp.ne.s32.totalorder %s717, %s719
      %p723 = scmp.eq.s32.totalorder %s74, 0
      %p724 = por %p722, %p723
      %p725 = scmp.ne.s32.totalorder %s717, %s719
      %p726 = scmp.eq.s32.totalorder %s79, 1
      %p727 = por %p725, %p726
      %p728 = scmp.ne.s32.totalorder %s719, %s720
      %p729 = scmp.eq.s32.totalorder %s79, 0
      %p730 = por %p728, %p729
      %p731 = scmp.ne.s32.totalorder %s719, %s720
      %p732 = scmp.eq.s32.totalorder %s80, 1
      %p733 = por %p731, %p732
      %p735 = scmp.ne.s32.totalorder %s720, %s734
      %p736 = scmp.eq.s32.totalorder %s80, 0
      %p737 = por %p735, %p736
      %s739 = sadd.s32 %s738, 1
      %p742 = scmp.eq.s32.totalorder %s74, 1
      %p743 = scmp.ne.s32.totalorder %s738, %s740
      %p744 = scmp.eq.s32.totalorder %s74, 0
      %p745 = por %p743, %p744
      %p746 = scmp.ne.s32.totalorder %s738, %s740
      %p747 = scmp.eq.s32.totalorder %s79, 1
      %p748 = por %p746, %p747
      %p749 = scmp.ne.s32.totalorder %s740, %s741
      %p750 = scmp.eq.s32.totalorder %s79, 0
      %p751 = por %p749, %p750
      %p752 = scmp.ne.s32.totalorder %s740, %s741
      %p753 = scmp.eq.s32.totalorder %s80, 1
      %p754 = por %p752, %p753
      %p756 = scmp.ne.s32.totalorder %s741, %s755
      %p757 = scmp.eq.s32.totalorder %s80, 0
      %p758 = por %p756, %p757
      %s759 = ssub.s32 %s74, %s81
      %p760 = scmp.eq.s32.totalorder %s759, 0
      %s762 = sadd.s32 %s761, 1
      %s763 = scalar_select %p760, %s761, %s762
      %p766 = pneg %p760
      %p767 = scmp.eq.s32.totalorder %s74, 1
      %p768 = por %p766, %p767
      %p769 = scmp.ne.s32.totalorder %s761, %s764
      %p770 = scmp.eq.s32.totalorder %s74, 0
      %p771 = por %p769, %p770
      %p772 = scmp.ne.s32.totalorder %s761, %s764
      %p773 = scmp.eq.s32.totalorder %s79, 1
      %p774 = por %p772, %p773
      %p775 = scmp.ne.s32.totalorder %s764, %s765
      %p776 = scmp.eq.s32.totalorder %s79, 0
      %p777 = por %p775, %p776
      %p778 = scmp.ne.s32.totalorder %s764, %s765
      %p779 = scmp.eq.s32.totalorder %s80, 1
      %p780 = por %p778, %p779
      %p782 = scmp.ne.s32.totalorder %s765, %s781
      %p783 = scmp.eq.s32.totalorder %s80, 0
      %p784 = por %p782, %p783
      %p785 = scmp.le.s32.totalorder 1, %s74
      %p786 = scmp.lt.s32.totalorder %s74, 3
      %p787 = pnand %p785, %p786
      %p788 = pneg %p787
      // Predicated region
      $region9: #{rdb_forward.1} parent=5 // pred_check
        _
      $region10: #{rdb_forward.1} parent=5 // pred_check_branch
        %790 = sbr.rel (%p787) target = $region12
      $region11: #{rdb_forward.1} parent=5 // pred_region
        %s791 = ssub.s32 %s74, 1
        // Predicated region
        $region13: #{rdb_forward.1} parent=11 // pred_check
          %p792 = pneg %p121
        $region14: #{rdb_forward.1} parent=11 // pred_check_branch
          %794 = sbr.rel (%p792) target = $region16
        $region15: #{rdb_forward.1} parent=11 // pred_region
          _
        $region16: #{rdb_forward.1} parent=11 // pred_fallthru
          _
        // Predicated region
        $region17: #{rdb_forward.1} parent=11 // pred_check
          %p795 = pneg %p142
        $region18: #{rdb_forward.1} parent=11 // pred_check_branch
          %797 = sbr.rel (%p795) target = $region20
        $region19: #{rdb_forward.1} parent=11 // pred_region
          _
        $region20: #{rdb_forward.1} parent=11 // pred_fallthru
          _
        // Predicated region
        $region21: #{rdb_forward.1} parent=11 // pred_check
          %p798 = pneg %p163
        $region22: #{rdb_forward.1} parent=11 // pred_check_branch
          %800 = sbr.rel (%p798) target = $region24
        $region23: #{rdb_forward.1} parent=11 // pred_region
          _
        $region24: #{rdb_forward.1} parent=11 // pred_fallthru
          _
        // Predicated region
        $region25: #{rdb_forward.1} parent=11 // pred_check
          %p801 = pneg %p184
        $region26: #{rdb_forward.1} parent=11 // pred_check_branch
          %803 = sbr.rel (%p801) target = $region28
        $region27: #{rdb_forward.1} parent=11 // pred_region
          _
        $region28: #{rdb_forward.1} parent=11 // pred_fallthru
          _
        // Predicated region
        $region29: #{rdb_forward.1} parent=11 // pred_check
          %p804 = pneg %p205
        $region30: #{rdb_forward.1} parent=11 // pred_check_branch
          %806 = sbr.rel (%p804) target = $region32
        $region31: #{rdb_forward.1} parent=11 // pred_region
          _
        $region32: #{rdb_forward.1} parent=11 // pred_fallthru
          _
        // Predicated region
        $region33: #{rdb_forward.1} parent=11 // pred_check
          %p807 = pneg %p226
        $region34: #{rdb_forward.1} parent=11 // pred_check_branch
          %809 = sbr.rel (%p807) target = $region36
        $region35: #{rdb_forward.1} parent=11 // pred_region
          _
        $region36: #{rdb_forward.1} parent=11 // pred_fallthru
          _
        // Predicated region
        $region37: #{rdb_forward.1} parent=11 // pred_check
          %p810 = pneg %p247
        $region38: #{rdb_forward.1} parent=11 // pred_check_branch
          %812 = sbr.rel (%p810) target = $region40
        $region39: #{rdb_forward.1} parent=11 // pred_region
          _
        $region40: #{rdb_forward.1} parent=11 // pred_fallthru
          _
        // Predicated region
        $region41: #{rdb_forward.1} parent=11 // pred_check
          %p813 = pneg %p268
        $region42: #{rdb_forward.1} parent=11 // pred_check_branch
          %815 = sbr.rel (%p813) target = $region44
        $region43: #{rdb_forward.1} parent=11 // pred_region
          _
        $region44: #{rdb_forward.1} parent=11 // pred_fallthru
          _
        // Predicated region
        $region45: #{rdb_forward.1} parent=11 // pred_check
          %p816 = pneg %p289
        $region46: #{rdb_forward.1} parent=11 // pred_check_branch
          %818 = sbr.rel (%p816) target = $region48
        $region47: #{rdb_forward.1} parent=11 // pred_region
          _
        $region48: #{rdb_forward.1} parent=11 // pred_fallthru
          _
        // Predicated region
        $region49: #{rdb_forward.1} parent=11 // pred_check
          %p819 = pneg %p310
        $region50: #{rdb_forward.1} parent=11 // pred_check_branch
          %821 = sbr.rel (%p819) target = $region52
        $region51: #{rdb_forward.1} parent=11 // pred_region
          _
        $region52: #{rdb_forward.1} parent=11 // pred_fallthru
          _
        // Predicated region
        $region53: #{rdb_forward.1} parent=11 // pred_check
          %p822 = pneg %p331
        $region54: #{rdb_forward.1} parent=11 // pred_check_branch
          %824 = sbr.rel (%p822) target = $region56
        $region55: #{rdb_forward.1} parent=11 // pred_region
          _
        $region56: #{rdb_forward.1} parent=11 // pred_fallthru
          _
        // Predicated region
        $region57: #{rdb_forward.1} parent=11 // pred_check
          %p825 = pneg %p352
        $region58: #{rdb_forward.1} parent=11 // pred_check_branch
          %827 = sbr.rel (%p825) target = $region60
        $region59: #{rdb_forward.1} parent=11 // pred_region
          _
        $region60: #{rdb_forward.1} parent=11 // pred_fallthru
          _
        // Predicated region
        $region61: #{rdb_forward.1} parent=11 // pred_check
          %p828 = pneg %p373
        $region62: #{rdb_forward.1} parent=11 // pred_check_branch
          %830 = sbr.rel (%p828) target = $region64
        $region63: #{rdb_forward.1} parent=11 // pred_region
          _
        $region64: #{rdb_forward.1} parent=11 // pred_fallthru
          _
        // Predicated region
        $region65: #{rdb_forward.1} parent=11 // pred_check
          %p831 = pneg %p394
        $region66: #{rdb_forward.1} parent=11 // pred_check_branch
          %833 = sbr.rel (%p831) target = $region68
        $region67: #{rdb_forward.1} parent=11 // pred_region
          _
        $region68: #{rdb_forward.1} parent=11 // pred_fallthru
          _
        // Predicated region
        $region69: #{rdb_forward.1} parent=11 // pred_check
          %p834 = pneg %p415
        $region70: #{rdb_forward.1} parent=11 // pred_check_branch
          %836 = sbr.rel (%p834) target = $region72
        $region71: #{rdb_forward.1} parent=11 // pred_region
          _
        $region72: #{rdb_forward.1} parent=11 // pred_fallthru
          _
        // Predicated region
        $region73: #{rdb_forward.1} parent=11 // pred_check
          %p837 = pneg %p436
        $region74: #{rdb_forward.1} parent=11 // pred_check_branch
          %839 = sbr.rel (%p837) target = $region76
        $region75: #{rdb_forward.1} parent=11 // pred_region
          _
        $region76: #{rdb_forward.1} parent=11 // pred_fallthru
          _
        // Predicated region
        $region77: #{rdb_forward.1} parent=11 // pred_check
          %p840 = pneg %p457
        $region78: #{rdb_forward.1} parent=11 // pred_check_branch
          %842 = sbr.rel (%p840) target = $region80
        $region79: #{rdb_forward.1} parent=11 // pred_region
          _
        $region80: #{rdb_forward.1} parent=11 // pred_fallthru
          _
        // Predicated region
        $region81: #{rdb_forward.1} parent=11 // pred_check
          %p843 = pneg %p478
        $region82: #{rdb_forward.1} parent=11 // pred_check_branch
          %845 = sbr.rel (%p843) target = $region84
        $region83: #{rdb_forward.1} parent=11 // pred_region
          _
        $region84: #{rdb_forward.1} parent=11 // pred_fallthru
          _
        // Predicated region
        $region85: #{rdb_forward.1} parent=11 // pred_check
          %p846 = pneg %p499
        $region86: #{rdb_forward.1} parent=11 // pred_check_branch
          %848 = sbr.rel (%p846) target = $region88
        $region87: #{rdb_forward.1} parent=11 // pred_region
          _
        $region88: #{rdb_forward.1} parent=11 // pred_fallthru
          _
        // Predicated region
        $region89: #{rdb_forward.1} parent=11 // pred_check
          %p849 = pneg %p520
        $region90: #{rdb_forward.1} parent=11 // pred_check_branch
          %851 = sbr.rel (%p849) target = $region92
        $region91: #{rdb_forward.1} parent=11 // pred_region
          _
        $region92: #{rdb_forward.1} parent=11 // pred_fallthru
          _
        // Predicated region
        $region93: #{rdb_forward.1} parent=11 // pred_check
          %p852 = pneg %p541
        $region94: #{rdb_forward.1} parent=11 // pred_check_branch
          %854 = sbr.rel (%p852) target = $region96
        $region95: #{rdb_forward.1} parent=11 // pred_region
          _
        $region96: #{rdb_forward.1} parent=11 // pred_fallthru
          _
        // Predicated region
        $region97: #{rdb_forward.1} parent=11 // pred_check
          %p855 = pneg %p562
        $region98: #{rdb_forward.1} parent=11 // pred_check_branch
          %857 = sbr.rel (%p855) target = $region100
        $region99: #{rdb_forward.1} parent=11 // pred_region
          _
        $region100: #{rdb_forward.1} parent=11 // pred_fallthru
          _
        // Predicated region
        $region101: #{rdb_forward.1} parent=11 // pred_check
          %p858 = pneg %p583
        $region102: #{rdb_forward.1} parent=11 // pred_check_branch
          %860 = sbr.rel (%p858) target = $region104
        $region103: #{rdb_forward.1} parent=11 // pred_region
          _
        $region104: #{rdb_forward.1} parent=11 // pred_fallthru
          _
        // Predicated region
        $region105: #{rdb_forward.1} parent=11 // pred_check
          %p861 = pneg %p604
        $region106: #{rdb_forward.1} parent=11 // pred_check_branch
          %863 = sbr.rel (%p861) target = $region108
        $region107: #{rdb_forward.1} parent=11 // pred_region
          _
        $region108: #{rdb_forward.1} parent=11 // pred_fallthru
          _
        // Predicated region
        $region109: #{rdb_forward.1} parent=11 // pred_check
          %p864 = pneg %p625
        $region110: #{rdb_forward.1} parent=11 // pred_check_branch
          %866 = sbr.rel (%p864) target = $region112
        $region111: #{rdb_forward.1} parent=11 // pred_region
          _
        $region112: #{rdb_forward.1} parent=11 // pred_fallthru
          _
        // Predicated region
        $region113: #{rdb_forward.1} parent=11 // pred_check
          %p867 = pneg %p646
        $region114: #{rdb_forward.1} parent=11 // pred_check_branch
          %869 = sbr.rel (%p867) target = $region116
        $region115: #{rdb_forward.1} parent=11 // pred_region
          _
        $region116: #{rdb_forward.1} parent=11 // pred_fallthru
          _
        // Predicated region
        $region117: #{rdb_forward.1} parent=11 // pred_check
          %p870 = pneg %p667
        $region118: #{rdb_forward.1} parent=11 // pred_check_branch
          %872 = sbr.rel (%p870) target = $region120
        $region119: #{rdb_forward.1} parent=11 // pred_region
          _
        $region120: #{rdb_forward.1} parent=11 // pred_fallthru
          _
        // Predicated region
        $region121: #{rdb_forward.1} parent=11 // pred_check
          %p873 = pneg %p688
        $region122: #{rdb_forward.1} parent=11 // pred_check_branch
          %875 = sbr.rel (%p873) target = $region124
        $region123: #{rdb_forward.1} parent=11 // pred_region
          _
        $region124: #{rdb_forward.1} parent=11 // pred_fallthru
          _
        // Predicated region
        $region125: #{rdb_forward.1} parent=11 // pred_check
          %p876 = pneg %p709
        $region126: #{rdb_forward.1} parent=11 // pred_check_branch
          %878 = sbr.rel (%p876) target = $region128
        $region127: #{rdb_forward.1} parent=11 // pred_region
          _
        $region128: #{rdb_forward.1} parent=11 // pred_fallthru
          _
        // Predicated region
        $region129: #{rdb_forward.1} parent=11 // pred_check
          %p879 = pneg %p730
        $region130: #{rdb_forward.1} parent=11 // pred_check_branch
          %881 = sbr.rel (%p879) target = $region132
        $region131: #{rdb_forward.1} parent=11 // pred_region
          _
        $region132: #{rdb_forward.1} parent=11 // pred_fallthru
          _
        // Predicated region
        $region133: #{rdb_forward.1} parent=11 // pred_check
          %p882 = pneg %p751
        $region134: #{rdb_forward.1} parent=11 // pred_check_branch
          %884 = sbr.rel (%p882) target = $region136
        $region135: #{rdb_forward.1} parent=11 // pred_region
          _
        $region136: #{rdb_forward.1} parent=11 // pred_fallthru
          _
      $region12: #{rdb_forward.1} parent=5 // pred_fallthru
        _
      %p885 = scmp.lt.s32.totalorder %s74, 2
      // Predicated region
      $region137: #{rdb_forward.1} parent=5 // pred_check
        %p886 = pneg %p885
      $region138: #{rdb_forward.1} parent=5 // pred_check_branch
        %888 = sbr.rel (%p886) target = $region140
      $region139: #{rdb_forward.1} parent=5 // pred_region
        // Predicated region
        $region141: #{rdb_forward.1} parent=139 // pred_check
          %p889 = pneg %p94
        $region142: #{rdb_forward.1} parent=139 // pred_check_branch
          %891 = sbr.rel (%p889) target = $region144
        $region143: #{rdb_forward.1} parent=139 // pred_region
          %p892 = scmp.lt.s32.totalorder %s74, 1
          %s893 = scalar_select %p892, %s74, 1
          %s894 = smul.addr %s893, 8
          %s895 = smul.addr %s894, 8
          %s896 = scalar_lea.vmem %s1, %s895
        $region144: #{rdb_forward.1} parent=139 // pred_fallthru
          _
      $region140: #{rdb_forward.1} parent=5 // pred_fallthru
        _
      %p897 = scmp.le.s32.totalorder 1, %s74
      %p898 = scmp.lt.s32.totalorder %s74, 3
      %p899 = pnand %p897, %p898
      %p900 = pneg %p899
      // Predicated region
      $region145: #{rdb_forward.1} parent=5 // pred_check
        _
      $region146: #{rdb_forward.1} parent=5 // pred_check_branch
        %902 = sbr.rel (%p899) target = $region148
      $region147: #{rdb_forward.1} parent=5 // pred_region
        %s903 = ssub.s32 %s74, 1
        %p904 = scmp.lt.s32.totalorder %s79, 1
        %s905 = scalar_select %p904, %s79, 1
        %s906 = smul.addr %s905, 8
        %s907 = smul.addr %s906, 8
        %s908 = scalar_lea.vmem %s1, %s907
        %p909 = pneg %p100
        %p910 = pneg %p97
        %p911 = pneg %p121
        %p912 = pneg %p118
        %p913 = pneg %p142
        %p914 = pneg %p139
        %p915 = pneg %p163
        %p916 = pneg %p160
        %p917 = pneg %p184
        %p918 = pneg %p181
        %p919 = pneg %p205
        %p920 = pneg %p202
        %p921 = pneg %p226
        %p922 = pneg %p223
        %p923 = pneg %p247
        %p924 = pneg %p244
        %p925 = pneg %p268
        %p926 = pneg %p265
        %p927 = pneg %p289
        %p928 = pneg %p286
        %p929 = pneg %p310
        %p930 = pneg %p307
        %p931 = pneg %p331
        %p932 = pneg %p328
        %p933 = pneg %p352
        %p934 = pneg %p349
        %p935 = pneg %p373
        %p936 = pneg %p370
        %p937 = pneg %p394
        %p938 = pneg %p391
        %p939 = pneg %p415
        %p940 = pneg %p412
        %p941 = pneg %p436
        %p942 = pneg %p433
        %p943 = pneg %p457
        %p944 = pneg %p454
        %p945 = pneg %p478
        %p946 = pneg %p475
        %p947 = pneg %p499
        %p948 = pneg %p496
        %p949 = pneg %p520
        %p950 = pneg %p517
        %p951 = pneg %p541
        %p952 = pneg %p538
        %p953 = pneg %p562
        %p954 = pneg %p559
        %p955 = pneg %p583
        %p956 = pneg %p580
        %p957 = pneg %p604
        %p958 = pneg %p601
        %p959 = pneg %p625
        %p960 = pneg %p622
        %p961 = pneg %p646
        %p962 = pneg %p643
        %p963 = pneg %p667
        %p964 = pneg %p664
        %p965 = pneg %p688
        %p966 = pneg %p685
        %p967 = pneg %p709
        %p968 = pneg %p706
        %p969 = pneg %p730
        %p970 = pneg %p727
        %p971 = pneg %p751
        %p972 = pneg %p748
        %p973 = pneg %p777
        %p974 = pneg %p774
        %s975 = sand.u32 %s764, 1
        %s976 = scalar_lea.sflag [#allocation4], %s975
        %s977 = sand.u32 %s764, 1
        %s978 = smul.addr %s977, 64
        %s979 = scalar_lea.vmem [#allocation3], %s978
        %p980 = scmp.lt.s32.totalorder %s79, 1
        %s981 = scalar_select %p980, %s79, 1
        %s982 = smul.addr %s981, 8
        %s983 = smul.addr %s982, 8
        %s984 = scalar_lea.vmem %s1, %s983
        %986 = vst [vmem:[#allocation2] sm:$0xff] 0.0
        %vm987 = vcmask 523264
        %988 = vst.msk [vmem:[#allocation2 + $0x8] sm:$0xff] %vm987, 0.0
        %989 = vst [vmem:[#allocation2 + $0x10] sm:$0xff] 0.0
        %990 = vst.msk [vmem:[#allocation2 + $0x18] sm:$0xff] %vm987, 0.0
        %991 = vst [vmem:[#allocation2 + $0x20] sm:$0x1] 0.0
        %vm992 = vcmask 516096
        %993 = vst.msk [vmem:[#allocation2 + $0x28] sm:$0x1] %vm992, 0.0
        %994 = vst [vmem:[#allocation2 + $0x30] sm:$0xff] 0.0
        %995 = vst.msk [vmem:[#allocation2 + $0x38] sm:$0xff] %vm987, 0.0
        %996 = vst [vmem:[#allocation2 + $0x40] sm:$0xff] 0.0
        %997 = vst.msk [vmem:[#allocation2 + $0x48] sm:$0xff] %vm987, 0.0
        %998 = vst [vmem:[#allocation2 + $0x50] sm:$0x1] 0.0
        %999 = vst.msk [vmem:[#allocation2 + $0x58] sm:$0x1] %vm992, 0.0
        %1000 = vst [vmem:[#allocation2 + $0x60] sm:$0xff] 0.0
        %1001 = vst.msk [vmem:[#allocation2 + $0x68] sm:$0xff] %vm987, 0.0
        %1002 = vst [vmem:[#allocation2 + $0x70] sm:$0xff] 0.0
        %1003 = vst.msk [vmem:[#allocation2 + $0x78] sm:$0xff] %vm987, 0.0
        %1004 = vst [vmem:[#allocation2 + $0x80] sm:$0x1] 0.0
        %1005 = vst.msk [vmem:[#allocation2 + $0x88] sm:$0x1] %vm992, 0.0
        %1006 = vst [vmem:[#allocation2 + $0x90] sm:$0xff] 0.0
        %1007 = vst.msk [vmem:[#allocation2 + $0x98] sm:$0xff] %vm987, 0.0
        %1008 = vst [vmem:[#allocation2 + $0xa0] sm:$0xff] 0.0
        %1009 = vst.msk [vmem:[#allocation2 + $0xa8] sm:$0xff] %vm987, 0.0
        %1010 = vst [vmem:[#allocation2 + $0xb0] sm:$0x1] 0.0
        %1011 = vst.msk [vmem:[#allocation2 + $0xb8] sm:$0x1] %vm992, 0.0
        %1012 = vst [vmem:[#allocation2 + $0xc0] sm:$0xff] 0.0
        %1013 = vst.msk [vmem:[#allocation2 + $0xc8] sm:$0xff] %vm987, 0.0
        %1014 = vst [vmem:[#allocation2 + $0xd0] sm:$0xff] 0.0
        %1015 = vst.msk [vmem:[#allocation2 + $0xd8] sm:$0xff] %vm987, 0.0
        %1016 = vst [vmem:[#allocation2 + $0xe0] sm:$0x1] 0.0
        %1017 = vst.msk [vmem:[#allocation2 + $0xe8] sm:$0x1] %vm992, 0.0
        %1018 = vst [vmem:[#allocation2 + $0xf0] sm:$0xff] 0.0
        %1019 = vst.msk [vmem:[#allocation2 + $0xf8] sm:$0xff] %vm987, 0.0
        %1020 = vst [vmem:[#allocation2 + $0x100] sm:$0xff] 0.0
        %1021 = vst.msk [vmem:[#allocation2 + $0x108] sm:$0xff] %vm987, 0.0
        %1022 = vst [vmem:[#allocation2 + $0x110] sm:$0x1] 0.0
        %1023 = vst.msk [vmem:[#allocation2 + $0x118] sm:$0x1] %vm992, 0.0
        %1024 = vst [vmem:[#allocation2 + $0x120] sm:$0xff] 0.0
        %1025 = vst.msk [vmem:[#allocation2 + $0x128] sm:$0xff] %vm987, 0.0
        %1026 = vst [vmem:[#allocation2 + $0x130] sm:$0xff] 0.0
        %1027 = vst.msk [vmem:[#allocation2 + $0x138] sm:$0xff] %vm987, 0.0
        %1028 = vst [vmem:[#allocation2 + $0x140] sm:$0x1] 0.0
        %1029 = vst.msk [vmem:[#allocation2 + $0x148] sm:$0x1] %vm992, 0.0
        %1030 = vst [vmem:[#allocation2 + $0x150] sm:$0xff] 0.0
        %1031 = vst.msk [vmem:[#allocation2 + $0x158] sm:$0xff] %vm987, 0.0
        %1032 = vst [vmem:[#allocation2 + $0x160] sm:$0xff] 0.0
        %1033 = vst.msk [vmem:[#allocation2 + $0x168] sm:$0xff] %vm987, 0.0
        %1034 = vst [vmem:[#allocation2 + $0x170] sm:$0x1] 0.0
        %1035 = vst.msk [vmem:[#allocation2 + $0x178] sm:$0x1] %vm992, 0.0
        %1036 = vst [vmem:[#allocation2 + $0x180] sm:$0xff] 0.0
        %1037 = vst.msk [vmem:[#allocation2 + $0x188] sm:$0xff] %vm987, 0.0
        %1038 = vst [vmem:[#allocation2 + $0x190] sm:$0xff] 0.0
        %1039 = vst.msk [vmem:[#allocation2 + $0x198] sm:$0xff] %vm987, 0.0
        %1040 = vst [vmem:[#allocation2 + $0x1a0] sm:$0x1] 0.0
        %1041 = vst.msk [vmem:[#allocation2 + $0x1a8] sm:$0x1] %vm992, 0.0
        %1042 = vst [vmem:[#allocation2 + $0x1b0] sm:$0xff] 0.0
        %1043 = vst.msk [vmem:[#allocation2 + $0x1b8] sm:$0xff] %vm987, 0.0
        %1044 = vst [vmem:[#allocation2 + $0x1c0] sm:$0xff] 0.0
        %1045 = vst.msk [vmem:[#allocation2 + $0x1c8] sm:$0xff] %vm987, 0.0
        %1046 = vst [vmem:[#allocation2 + $0x1d0] sm:$0x1] 0.0
        %1047 = vst.msk [vmem:[#allocation2 + $0x1d8] sm:$0x1] %vm992, 0.0
        %v1048 = vld [vmem:[%s984] sm:$0xff]
        %v1049 = vld [vmem:[%s984 + $0x8] sm:$0xff]
        %v1050 = vld [vmem:[%s984 + $0x10] sm:$0xff]
        %v1051 = vld [vmem:[%s984 + $0x18] sm:$0xff]
        %v1052 = vld [vmem:[%s984 + $0x20] sm:$0xff]
        %v1053 = vld [vmem:[%s984 + $0x28] sm:$0xff]
        %v1054 = vld [vmem:[%s984 + $0x30] sm:$0xff]
        %v1055 = vld [vmem:[%s984 + $0x38] sm:$0xff]
        %s1056 = scalar_lea.vmem [#allocation2], 48
        %1057 = vst.msk [vmem:[%s1056 + $0x10] sm:$0xff] %vm987, %v1048
        %1058 = vst.msk [vmem:[%s1056 + $0x40] sm:$0xff] %vm987, %v1049
        %1059 = vst.msk [vmem:[%s1056 + $0x70] sm:$0xff] %vm987, %v1050
        %1060 = vst.msk [vmem:[%s1056 + $0xa0] sm:$0xff] %vm987, %v1051
        %1061 = vst.msk [vmem:[%s1056 + $0xd0] sm:$0xff] %vm987, %v1052
        %1062 = vst.msk [vmem:[%s1056 + $0x100] sm:$0xff] %vm987, %v1053
        %1063 = vst.msk [vmem:[%s1056 + $0x130] sm:$0xff] %vm987, %v1054
        %1064 = vst.msk [vmem:[%s1056 + $0x160] sm:$0xff] %vm987, %v1055
        %v1065 = vld [vmem:[#allocation2] sm:$0xff]
        %v1066 = vld [vmem:[#allocation2 + $0x10] sm:$0xff]
        %v1067 = vld [vmem:[#allocation2 + $0x20] sm:$0x1]
        %v1068 = vld [vmem:[#allocation2 + $0x30] sm:$0xff]
        %v1069 = vld [vmem:[#allocation2 + $0x40] sm:$0xff]
        %v1070 = vld [vmem:[#allocation2 + $0x50] sm:$0x1]
        %v1071 = vld [vmem:[#allocation2 + $0x60] sm:$0xff]
        %v1072 = vld [vmem:[#allocation2 + $0x70] sm:$0xff]
        %v1073 = vld [vmem:[#allocation2 + $0x80] sm:$0x1]
        %v1074 = vld [vmem:[#allocation2 + $0x90] sm:$0xff]
        %v1075 = vld [vmem:[#allocation2 + $0xa0] sm:$0xff]
        %v1076 = vld [vmem:[#allocation2 + $0xb0] sm:$0x1]
        %v1077 = vld [vmem:[#allocation2 + $0xc0] sm:$0xff]
        %v1078 = vld [vmem:[#allocation2 + $0xd0] sm:$0xff]
        %v1079 = vld [vmem:[#allocation2 + $0xe0] sm:$0x1]
        %v1080 = vld [vmem:[#allocation2 + $0xf0] sm:$0xff]
        %v1081 = vld [vmem:[#allocation2 + $0x100] sm:$0xff]
        %v1082 = vld [vmem:[#allocation2 + $0x110] sm:$0x1]
        %v1083 = vld [vmem:[#allocation2 + $0x120] sm:$0xff]
        %v1084 = vld [vmem:[#allocation2 + $0x130] sm:$0xff]
        %v1085 = vld [vmem:[#allocation2 + $0x140] sm:$0x1]
        %v1086 = vld [vmem:[#allocation2 + $0x150] sm:$0xff]
        %v1087 = vld [vmem:[#allocation2 + $0x160] sm:$0xff]
        %v1088 = vld [vmem:[#allocation2 + $0x170] sm:$0x1]
        %v1089 = vld [vmem:[#allocation2 + $0x180] sm:$0xff]
        %v1090 = vld [vmem:[#allocation2 + $0x190] sm:$0xff]
        %v1091 = vld [vmem:[#allocation2 + $0x1a0] sm:$0x1]
        %v1092 = vld [vmem:[#allocation2 + $0x1b0] sm:$0xff]
        %v1093 = vld [vmem:[#allocation2 + $0x1c0] sm:$0xff]
        %v1094 = vld [vmem:[#allocation2 + $0x1d0] sm:$0x1]
        %v1095 = vld [vmem:[%s3] sm:$0xf]
        %v1096 = vld [vmem:[%s3 + $0x4] sm:$0xf]
        %v1097 = vld [vmem:[%s3 + $0x8] sm:$0xf]
        %v1098 = vld [vmem:[%s3 + $0xc] sm:$0xf]
        %v1099 = vld [vmem:[%s3 + $0x10] sm:$0xf]
        %v1100 = vld [vmem:[%s3 + $0x14] sm:$0xf]
        %v1101 = vld [vmem:[%s3 + $0x18] sm:$0xf]
        %v1102 = vld [vmem:[%s3 + $0x1c] sm:$0xf]
        %v1103 = vld [vmem:[%s3 + $0x20] sm:$0xf]
        %v1104 = vld [vmem:[%s3 + $0x24] sm:$0xf]
        %v1105 = vld [vmem:[%s3 + $0x28] sm:$0xf]
        %v1106 = vld [vmem:[%s3 + $0x2c] sm:$0xf]
        %v1107 = vld [vmem:[%s3 + $0x30] sm:$0xf]
        %v1108 = vld [vmem:[%s3 + $0x34] sm:$0xf]
        %v1109 = vld [vmem:[%s3 + $0x38] sm:$0xf]
        %v1110 = vld [vmem:[%s3 + $0x3c] sm:$0xf]
        %v1111 = vld [vmem:[%s3 + $0x40] sm:$0xf]
        %v1112 = vld [vmem:[%s3 + $0x44] sm:$0xf]
        %v1113 = vld [vmem:[%s3 + $0x48] sm:$0xf]
        %v1114 = vld [vmem:[%s3 + $0x4c] sm:$0xf]
        %v1115 = vld [vmem:[%s3 + $0x50] sm:$0xf]
        %v1116 = vld [vmem:[%s3 + $0x54] sm:$0xf]
        %v1117 = vld [vmem:[%s3 + $0x58] sm:$0xf]
        %v1118 = vld [vmem:[%s3 + $0x5c] sm:$0xf]
        %v1119 = vld [vmem:[%s3 + $0x60] sm:$0xf]
        %v1120 = vld [vmem:[%s3 + $0x64] sm:$0xf]
        %v1121 = vld [vmem:[%s3 + $0x68] sm:$0xf]
        %v1122 = vld [vmem:[%s3 + $0x6c] sm:$0xf]
        %v1123 = vld [vmem:[%s3 + $0x70] sm:$0xf]
        %v1124 = vld [vmem:[%s3 + $0x74] sm:$0xf]
        %v1125 = vld [vmem:[%s3 + $0x78] sm:$0xf]
        %v1126 = vld [vmem:[%s3 + $0x7c] sm:$0xf]
        %v1127 = vld [vmem:[%s3 + $0x80] sm:$0xf]
        %v1128 = vld [vmem:[%s3 + $0x84] sm:$0xf]
        %v1129 = vld [vmem:[%s3 + $0x88] sm:$0xf]
        %v1130 = vld [vmem:[%s3 + $0x8c] sm:$0xf]
        %v1131 = vld [vmem:[%s3 + $0x90] sm:$0xf]
        %v1132 = vld [vmem:[%s3 + $0x94] sm:$0xf]
        %v1133 = vld [vmem:[%s3 + $0x98] sm:$0xf]
        %v1134 = vld [vmem:[%s3 + $0x9c] sm:$0xf]
        %v1135 = vld [vmem:[%s3 + $0xa0] sm:$0xf]
        %v1136 = vld [vmem:[%s3 + $0xa4] sm:$0xf]
        %v1137 = vld [vmem:[%s3 + $0xa8] sm:$0xf]
        %v1138 = vld [vmem:[%s3 + $0xac] sm:$0xf]
        %v1139 = vld [vmem:[%s3 + $0xb0] sm:$0xf]
        %v1140 = vld [vmem:[%s3 + $0xb4] sm:$0xf]
        %v1141 = vld [vmem:[%s3 + $0xb8] sm:$0xf]
        %v1142 = vld [vmem:[%s3 + $0xbc] sm:$0xf]
        %v1143 = vld [vmem:[%s3 + $0xc0] sm:$0xf]
        %v1144 = vld [vmem:[%s3 + $0xc4] sm:$0xf]
        %v1145 = vld [vmem:[%s3 + $0xc8] sm:$0xf]
        %v1146 = vld [vmem:[%s3 + $0xcc] sm:$0xf]
        %v1147 = vld [vmem:[%s3 + $0xd0] sm:$0xf]
        %v1148 = vld [vmem:[%s3 + $0xd4] sm:$0xf]
        %v1149 = vld [vmem:[%s3 + $0xd8] sm:$0xf]
        %v1150 = vld [vmem:[%s3 + $0xdc] sm:$0xf]
        %v1151 = vld [vmem:[%s3 + $0xe0] sm:$0xf]
        %v1152 = vld [vmem:[%s3 + $0xe4] sm:$0xf]
        %v1153 = vld [vmem:[%s3 + $0xe8] sm:$0xf]
        %v1154 = vld [vmem:[%s3 + $0xec] sm:$0xf]
        %v1155 = vld [vmem:[%s3 + $0xf0] sm:$0xf]
        %v1156 = vld [vmem:[%s3 + $0xf4] sm:$0xf]
        %v1157 = vld [vmem:[%s3 + $0xf8] sm:$0xf]
        %v1158 = vld [vmem:[%s3 + $0xfc] sm:$0xf]
        %v1159 = vld [vmem:[%s3 + $0x100] sm:$0xf]
        %v1160 = vld [vmem:[%s3 + $0x104] sm:$0xf]
        %v1161 = vld [vmem:[%s3 + $0x108] sm:$0xf]
        %v1162 = vld [vmem:[%s3 + $0x10c] sm:$0xf]
        %v1163 = vld [vmem:[%s3 + $0x110] sm:$0xf]
        %v1164 = vld [vmem:[%s3 + $0x114] sm:$0xf]
        %v1165 = vld [vmem:[%s3 + $0x118] sm:$0xf]
        %v1166 = vld [vmem:[%s3 + $0x11c] sm:$0xf]
        %vm1183 = vcmask 1040384
        %v1184 = vrot.slane %v1065, 7
        %v1185 = vrot.slane %v1066, 7
        %v1186 = vsel %vm1183, %v1184, %v1185
        %v1187 = vrot.slane %v1068, 7
        %v1188 = vrot.slane %v1069, 7
        %v1189 = vsel %vm1183, %v1187, %v1188
        %v1190 = vrot.slane %v1071, 7
        %v1191 = vrot.slane %v1072, 7
        %v1192 = vsel %vm1183, %v1190, %v1191
        %v1193 = vrot.slane %v1074, 7
        %v1194 = vrot.slane %v1075, 7
        %v1195 = vsel %vm1183, %v1193, %v1194
        %v1196 = vrot.slane %v1077, 7
        %v1197 = vrot.slane %v1078, 7
        %v1198 = vsel %vm1183, %v1196, %v1197
        %v1199 = vrot.slane %v1080, 7
        %v1200 = vrot.slane %v1081, 7
        %v1201 = vsel %vm1183, %v1199, %v1200
        %v1202 = vrot.slane %v1083, 7
        %v1203 = vrot.slane %v1084, 7
        %v1204 = vsel %vm1183, %v1202, %v1203
        %v1205 = vrot.slane %v1086, 7
        %v1206 = vrot.slane %v1087, 7
        %v1207 = vsel %vm1183, %v1205, %v1206
        %v1216 = vpack.c.bf16 %v1189, %v1186
        %v1217 = vpack.c.bf16 %v1195, %v1192
        %v1218 = vpack.c.bf16 %v1201, %v1198
        %v1219 = vpack.c.bf16 %v1207, %v1204
        %v1220 = vpack.c.bf16 %v1069, %v1066
        %v1221 = vpack.c.bf16 %v1075, %v1072
        %v1222 = vpack.c.bf16 %v1081, %v1078
        %v1223 = vpack.c.bf16 %v1087, %v1084
        %v1232 = vunpack.c.l.b16 %v1103
        %v1233 = vunpack.c.l.b16 %v1104
        %v1234 = vunpack.c.l.b16 %v1105
        %v1235 = vunpack.c.l.b16 %v1106
        %v1236 = vunpack.c.l.b16 %v1107
        %v1237 = vunpack.c.l.b16 %v1108
        %v1238 = vunpack.c.l.b16 %v1109
        %v1239 = vunpack.c.l.b16 %v1110
        %v1240 = vpack.c.b16 %v1233, %v1232
        %v1241 = vpack.c.b16 %v1235, %v1234
        %v1242 = vpack.c.b16 %v1237, %v1236
        %v1243 = vpack.c.b16 %v1239, %v1238
        %v1249 = vsel %vm987, %v1220, 0
        %v1252 = vsel %vm987, %v1221, 0
        %v1255 = vsel %vm987, %v1222, 0
        %v1258 = vsel %vm987, %v1223, 0
        %1260 = vmatprep.subr.bf16.mxu0 0
        %1261 = vmatpush1.bf16.msra.mxu0 %v1240
        %1262 = vmatprep.subr.bf16.mxu0 0
        %1263 = vmatpush1.bf16.msra.mxu0 %v1241
        %1264 = vmatprep.subr.bf16.mxu0 0
        %1265 = vmatpush1.bf16.msra.mxu0 %v1242
        %1266 = vmatprep.subr.bf16.mxu0 0
        %1267 = vmatpush1.bf16.msra.mxu0 %v1243
        %1268 = vmatprep.subr.bf16.mxu0 0
        %1269 = vmatpush1.bf16.msra.mxu0 0
        %1270 = vmatprep.subr.bf16.mxu0 0
        %1271 = vmatpush1.bf16.msra.mxu0 0
        %1272 = vmatprep.subr.bf16.mxu0 0
        %1273 = vmatpush1.bf16.msra.mxu0 0
        %1274 = vmatprep.subr.bf16.mxu0 0
        %1275 = vmatpush1.bf16.msra.mxu0 0
        %1276 = vmatprep.subr.bf16.mxu0 0
        %1277 = vmatpush1.bf16.msra.mxu0 0
        %1278 = vmatprep.subr.bf16.mxu0 0
        %1279 = vmatpush1.bf16.msra.mxu0 0
        %1280 = vmatprep.subr.bf16.mxu0 0
        %1281 = vmatpush1.bf16.msra.mxu0 0
        %1282 = vmatprep.subr.bf16.mxu0 0
        %1283 = vmatpush1.bf16.msra.mxu0 0
        %1284 = vmatprep.subr.bf16.mxu0 0
        %1285 = vmatpush1.bf16.msra.mxu0 0
        %1286 = vmatprep.subr.bf16.mxu0 0
        %1287 = vmatpush1.bf16.msra.mxu0 0
        %1288 = vmatprep.subr.bf16.mxu0 0
        %1289 = vmatpush1.bf16.msra.mxu0 0
        %1290 = vmatprep.subr.bf16.mxu0 0
        %1291 = vmatpush1.bf16.msra.mxu0 0
        %1292 = vmatprep.mubr.bf16.mxu0 0
        %1293 = vmatmul.mubr.bf16.gmra.mrb[0].mxu0 %v1249
        %v1294 = vpop.f32.mrb[0].mxu0
        %v1295 = vadd.f32 0.0, %v1294
        %v1296 = vpop.f32.mrb[0].mxu0
        %v1297 = vpop.f32.mrb[0].mxu0
        %v1298 = vadd.f32 0.0, %v1297
        %v1299 = vpop.f32.mrb[0].mxu0
        %1300 = vmatprep.mubr.bf16.mxu0 0
        %1301 = vmatmul.mubr.bf16.gmra.mrb[0].mxu0 %v1252
        %v1302 = vpop.f32.mrb[0].mxu0
        %v1303 = vadd.f32 0.0, %v1302
        %v1304 = vpop.f32.mrb[0].mxu0
        %v1305 = vpop.f32.mrb[0].mxu0
        %v1306 = vadd.f32 0.0, %v1305
        %v1307 = vpop.f32.mrb[0].mxu0
        %1308 = vmatprep.mubr.bf16.mxu0 0
        %1309 = vmatmul.mubr.bf16.gmra.mrb[0].mxu0 %v1255
        %v1310 = vpop.f32.mrb[0].mxu0
        %v1311 = vadd.f32 0.0, %v1310
        %v1312 = vpop.f32.mrb[0].mxu0
        %v1313 = vpop.f32.mrb[0].mxu0
        %v1314 = vadd.f32 0.0, %v1313
        %v1315 = vpop.f32.mrb[0].mxu0
        %1316 = vmatprep.mubr.bf16.mxu0 0
        %1317 = vmatmul.mubr.bf16.gmra.mrb[0].mxu0 %v1258
        %v1318 = vpop.f32.mrb[0].mxu0
        %v1319 = vadd.f32 0.0, %v1318
        %v1320 = vpop.f32.mrb[0].mxu0
        %v1321 = vpop.f32.mrb[0].mxu0
        %v1322 = vadd.f32 0.0, %v1321
        %v1323 = vpop.f32.mrb[0].mxu0
        %1324 = vdwg.mxu0
        %v1333 = vunpack.c.l.b16 %v1095
        %v1334 = vunpack.c.l.b16 %v1096
        %v1335 = vunpack.c.l.b16 %v1097
        %v1336 = vunpack.c.l.b16 %v1098
        %v1337 = vunpack.c.l.b16 %v1099
        %v1338 = vunpack.c.l.b16 %v1100
        %v1339 = vunpack.c.l.b16 %v1101
        %v1340 = vunpack.c.l.b16 %v1102
        %v1341 = vpack.c.b16 %v1334, %v1333
        %v1342 = vpack.c.b16 %v1336, %v1335
        %v1343 = vpack.c.b16 %v1338, %v1337
        %v1344 = vpack.c.b16 %v1340, %v1339
        %v1350 = vsel %vm987, %v1216, 0
        %v1353 = vsel %vm987, %v1217, 0
        %v1356 = vsel %vm987, %v1218, 0
        %v1359 = vsel %vm987, %v1219, 0
        %1361 = vmatprep.subr.bf16.mxu0 0
        %1362 = vmatpush1.bf16.msra.mxu0 %v1341
        %1363 = vmatprep.subr.bf16.mxu0 0
        %1364 = vmatpush1.bf16.msra.mxu0 %v1342
        %1365 = vmatprep.subr.bf16.mxu0 0
        %1366 = vmatpush1.bf16.msra.mxu0 %v1343
        %1367 = vmatprep.subr.bf16.mxu0 0
        %1368 = vmatpush1.bf16.msra.mxu0 %v1344
        %1369 = vmatprep.subr.bf16.mxu0 0
        %1370 = vmatpush1.bf16.msra.mxu0 0
        %1371 = vmatprep.subr.bf16.mxu0 0
        %1372 = vmatpush1.bf16.msra.mxu0 0
        %1373 = vmatprep.subr.bf16.mxu0 0
        %1374 = vmatpush1.bf16.msra.mxu0 0
        %1375 = vmatprep.subr.bf16.mxu0 0
        %1376 = vmatpush1.bf16.msra.mxu0 0
        %1377 = vmatprep.subr.bf16.mxu0 0
        %1378 = vmatpush1.bf16.msra.mxu0 0
        %1379 = vmatprep.subr.bf16.mxu0 0
        %1380 = vmatpush1.bf16.msra.mxu0 0
        %1381 = vmatprep.subr.bf16.mxu0 0
        %1382 = vmatpush1.bf16.msra.mxu0 0
        %1383 = vmatprep.subr.bf16.mxu0 0
        %1384 = vmatpush1.bf16.msra.mxu0 0
        %1385 = vmatprep.subr.bf16.mxu0 0
        %1386 = vmatpush1.bf16.msra.mxu0 0
        %1387 = vmatprep.subr.bf16.mxu0 0
        %1388 = vmatpush1.bf16.msra.mxu0 0
        %1389 = vmatprep.subr.bf16.mxu0 0
        %1390 = vmatpush1.bf16.msra.mxu0 0
        %1391 = vmatprep.subr.bf16.mxu0 0
        %1392 = vmatpush1.bf16.msra.mxu0 0
        %1393 = vmatprep.mubr.bf16.mxu0 0
        %1394 = vmatmul.mubr.bf16.gmra.mrb[0].mxu0 %v1350
        %v1395 = vpop.f32.mrb[0].mxu0
        %v1396 = vadd.f32 %v1295, %v1395
        %v1397 = vpop.f32.mrb[0].mxu0
        %v1398 = vpop.f32.mrb[0].mxu0
        %v1399 = vadd.f32 %v1298, %v1398
        %v1400 = vpop.f32.mrb[0].mxu0
        %1401 = vmatprep.mubr.bf16.mxu0 0
        %1402 = vmatmul.mubr.bf16.gmra.mrb[0].mxu0 %v1353
        %v1403 = vpop.f32.mrb[0].mxu0
        %v1404 = vadd.f32 %v1303, %v1403
        %v1405 = vpop.f32.mrb[0].mxu0
        %v1406 = vpop.f32.mrb[0].mxu0
        %v1407 = vadd.f32 %v1306, %v1406
        %v1408 = vpop.f32.mrb[0].mxu0
        %1409 = vmatprep.mubr.bf16.mxu0 0
        %1410 = vmatmul.mubr.bf16.gmra.mrb[0].mxu0 %v1356
        %v1411 = vpop.f32.mrb[0].mxu0
        %v1412 = vadd.f32 %v1311, %v1411
        %v1413 = vpop.f32.mrb[0].mxu0
        %v1414 = vpop.f32.mrb[0].mxu0
        %v1415 = vadd.f32 %v1314, %v1414
        %v1416 = vpop.f32.mrb[0].mxu0
        %1417 = vmatprep.mubr.bf16.mxu0 0
        %1418 = vmatmul.mubr.bf16.gmra.mrb[0].mxu0 %v1359
        %v1419 = vpop.f32.mrb[0].mxu0
        %v1420 = vadd.f32 %v1319, %v1419
        %v1421 = vpop.f32.mrb[0].mxu0
        %v1422 = vpop.f32.mrb[0].mxu0
        %v1423 = vadd.f32 %v1322, %v1422
        %v1424 = vpop.f32.mrb[0].mxu0
        %1425 = vdwg.mxu0
        %vm1434 = vcmask 1046528
        %v1435 = vrot.slane %v1066, 1
        %v1436 = vrot.slane %v1067, 1
        %v1437 = vsel %vm1434, %v1435, %v1436
        %v1438 = vrot.slane %v1069, 1
        %v1439 = vrot.slane %v1070, 1
        %v1440 = vsel %vm1434, %v1438, %v1439
        %v1441 = vrot.slane %v1072, 1
        %v1442 = vrot.slane %v1073, 1
        %v1443 = vsel %vm1434, %v1441, %v1442
        %v1444 = vrot.slane %v1075, 1
        %v1445 = vrot.slane %v1076, 1
        %v1446 = vsel %vm1434, %v1444, %v1445
        %v1447 = vrot.slane %v1078, 1
        %v1448 = vrot.slane %v1079, 1
        %v1449 = vsel %vm1434, %v1447, %v1448
        %v1450 = vrot.slane %v1081, 1
        %v1451 = vrot.slane %v1082, 1
        %v1452 = vsel %vm1434, %v1450, %v1451
        %v1453 = vrot.slane %v1084, 1
        %v1454 = vrot.slane %v1085, 1
        %v1455 = vsel %vm1434, %v1453, %v1454
        %v1456 = vrot.slane %v1087, 1
        %v1457 = vrot.slane %v1088, 1
        %v1458 = vsel %vm1434, %v1456, %v1457
        %v1467 = vpack.c.bf16 %v1440, %v1437
        %v1468 = vpack.c.bf16 %v1446, %v1443
        %v1469 = vpack.c.bf16 %v1452, %v1449
        %v1470 = vpack.c.bf16 %v1458, %v1455
        %v1479 = vunpack.c.l.b16 %v1111
        %v1480 = vunpack.c.l.b16 %v1112
        %v1481 = vunpack.c.l.b16 %v1113
        %v1482 = vunpack.c.l.b16 %v1114
        %v1483 = vunpack.c.l.b16 %v1115
        %v1484 = vunpack.c.l.b16 %v1116
        %v1485 = vunpack.c.l.b16 %v1117
        %v1486 = vunpack.c.l.b16 %v1118
        %v1487 = vpack.c.b16 %v1480, %v1479
        %v1488 = vpack.c.b16 %v1482, %v1481
        %v1489 = vpack.c.b16 %v1484, %v1483
        %v1490 = vpack.c.b16 %v1486, %v1485
        %v1496 = vsel %vm987, %v1467, 0
        %v1499 = vsel %vm987, %v1468, 0
        %v1502 = vsel %vm987, %v1469, 0
        %v1505 = vsel %vm987, %v1470, 0
        %1507 = vmatprep.subr.bf16.mxu0 0
        %1508 = vmatpush1.bf16.msra.mxu0 %v1487
        %1509 = vmatprep.subr.bf16.mxu0 0
        %1510 = vmatpush1.bf16.msra.mxu0 %v1488
        %1511 = vmatprep.subr.bf16.mxu0 0
        %1512 = vmatpush1.bf16.msra.mxu0 %v1489
        %1513 = vmatprep.subr.bf16.mxu0 0
        %1514 = vmatpush1.bf16.msra.mxu0 %v1490
        %1515 = vmatprep.subr.bf16.mxu0 0
        %1516 = vmatpush1.bf16.msra.mxu0 0
        %1517 = vmatprep.subr.bf16.mxu0 0
        %1518 = vmatpush1.bf16.msra.mxu0 0
        %1519 = vmatprep.subr.bf16.mxu0 0
        %1520 = vmatpush1.bf16.msra.mxu0 0
        %1521 = vmatprep.subr.bf16.mxu0 0
        %1522 = vmatpush1.bf16.msra.mxu0 0
        %1523 = vmatprep.subr.bf16.mxu0 0
        %1524 = vmatpush1.bf16.msra.mxu0 0
        %1525 = vmatprep.subr.bf16.mxu0 0
        %1526 = vmatpush1.bf16.msra.mxu0 0
        %1527 = vmatprep.subr.bf16.mxu0 0
        %1528 = vmatpush1.bf16.msra.mxu0 0
        %1529 = vmatprep.subr.bf16.mxu0 0
        %1530 = vmatpush1.bf16.msra.mxu0 0
        %1531 = vmatprep.subr.bf16.mxu0 0
        %1532 = vmatpush1.bf16.msra.mxu0 0
        %1533 = vmatprep.subr.bf16.mxu0 0
        %1534 = vmatpush1.bf16.msra.mxu0 0
        %1535 = vmatprep.subr.bf16.mxu0 0
        %1536 = vmatpush1.bf16.msra.mxu0 0
        %1537 = vmatprep.subr.bf16.mxu0 0
        %1538 = vmatpush1.bf16.msra.mxu0 0
        %1539 = vmatprep.mubr.bf16.mxu0 0
        %1540 = vmatmul.mubr.bf16.gmra.mrb[0].mxu0 %v1496
        %v1541 = vpop.f32.mrb[0].mxu0
        %v1542 = vadd.f32 0.0, %v1541
        %v1543 = vpop.f32.mrb[0].mxu0
        %v1544 = vpop.f32.mrb[0].mxu0
        %v1545 = vadd.f32 0.0, %v1544
        %v1546 = vpop.f32.mrb[0].mxu0
        %1547 = vmatprep.mubr.bf16.mxu0 0
        %1548 = vmatmul.mubr.bf16.gmra.mrb[0].mxu0 %v1499
        %v1549 = vpop.f32.mrb[0].mxu0
        %v1550 = vadd.f32 0.0, %v1549
        %v1551 = vpop.f32.mrb[0].mxu0
        %v1552 = vpop.f32.mrb[0].mxu0
        %v1553 = vadd.f32 0.0, %v1552
        %v1554 = vpop.f32.mrb[0].mxu0
        %1555 = vmatprep.mubr.bf16.mxu0 0
        %1556 = vmatmul.mubr.bf16.gmra.mrb[0].mxu0 %v1502
        %v1557 = vpop.f32.mrb[0].mxu0
        %v1558 = vadd.f32 0.0, %v1557
        %v1559 = vpop.f32.mrb[0].mxu0
        %v1560 = vpop.f32.mrb[0].mxu0
        %v1561 = vadd.f32 0.0, %v1560
        %v1562 = vpop.f32.mrb[0].mxu0
        %1563 = vmatprep.mubr.bf16.mxu0 0
        %1564 = vmatmul.mubr.bf16.gmra.mrb[0].mxu0 %v1505
        %v1565 = vpop.f32.mrb[0].mxu0
        %v1566 = vadd.f32 0.0, %v1565
        %v1567 = vpop.f32.mrb[0].mxu0
        %v1568 = vpop.f32.mrb[0].mxu0
        %v1569 = vadd.f32 0.0, %v1568
        %v1570 = vpop.f32.mrb[0].mxu0
        %1571 = vdwg.mxu0
        %v1572 = vadd.f32 %v1396, %v1542
        %v1573 = vadd.f32 %v1399, %v1545
        %v1574 = vadd.f32 %v1404, %v1550
        %v1575 = vadd.f32 %v1407, %v1553
        %v1576 = vadd.f32 %v1412, %v1558
        %v1577 = vadd.f32 %v1415, %v1561
        %v1578 = vadd.f32 %v1420, %v1566
        %v1579 = vadd.f32 %v1423, %v1569
        %v1582 = vrot.slane %v1089, 7
        %v1583 = vrot.slane %v1090, 7
        %v1584 = vsel %vm1183, %v1582, %v1583
        %v1586 = vpack.c.bf16 %v1192, %v1189
        %v1587 = vpack.c.bf16 %v1198, %v1195
        %v1588 = vpack.c.bf16 %v1204, %v1201
        %v1589 = vpack.c.bf16 %v1584, %v1207
        %v1598 = vunpack.c.l.b16 %v1119
        %v1599 = vunpack.c.l.b16 %v1120
        %v1600 = vunpack.c.l.b16 %v1121
        %v1601 = vunpack.c.l.b16 %v1122
        %v1602 = vunpack.c.l.b16 %v1123
        %v1603 = vunpack.c.l.b16 %v1124
        %v1604 = vunpack.c.l.b16 %v1125
        %v1605 = vunpack.c.l.b16 %v1126
        %v1606 = vpack.c.b16 %v1599, %v1598
        %v1607 = vpack.c.b16 %v1601, %v1600
        %v1608 = vpack.c.b16 %v1603, %v1602
        %v1609 = vpack.c.b16 %v1605, %v1604
        %v1615 = vsel %vm987, %v1586, 0
        %v1618 = vsel %vm987, %v1587, 0
        %v1621 = vsel %vm987, %v1588, 0
        %v1624 = vsel %vm987, %v1589, 0
        %1626 = vmatprep.subr.bf16.mxu0 0
        %1627 = vmatpush1.bf16.msra.mxu0 %v1606
        %1628 = vmatprep.subr.bf16.mxu0 0
        %1629 = vmatpush1.bf16.msra.mxu0 %v1607
        %1630 = vmatprep.subr.bf16.mxu0 0
        %1631 = vmatpush1.bf16.msra.mxu0 %v1608
        %1632 = vmatprep.subr.bf16.mxu0 0
        %1633 = vmatpush1.bf16.msra.mxu0 %v1609
        %1634 = vmatprep.subr.bf16.mxu0 0
        %1635 = vmatpush1.bf16.msra.mxu0 0
        %1636 = vmatprep.subr.bf16.mxu0 0
        %1637 = vmatpush1.bf16.msra.mxu0 0
        %1638 = vmatprep.subr.bf16.mxu0 0
        %1639 = vmatpush1.bf16.msra.mxu0 0
        %1640 = vmatprep.subr.bf16.mxu0 0
        %1641 = vmatpush1.bf16.msra.mxu0 0
        %1642 = vmatprep.subr.bf16.mxu0 0
        %1643 = vmatpush1.bf16.msra.mxu0 0
        %1644 = vmatprep.subr.bf16.mxu0 0
        %1645 = vmatpush1.bf16.msra.mxu0 0
        %1646 = vmatprep.subr.bf16.mxu0 0
        %1647 = vmatpush1.bf16.msra.mxu0 0
        %1648 = vmatprep.subr.bf16.mxu0 0
        %1649 = vmatpush1.bf16.msra.mxu0 0
        %1650 = vmatprep.subr.bf16.mxu0 0
        %1651 = vmatpush1.bf16.msra.mxu0 0
        %1652 = vmatprep.subr.bf16.mxu0 0
        %1653 = vmatpush1.bf16.msra.mxu0 0
        %1654 = vmatprep.subr.bf16.mxu0 0
        %1655 = vmatpush1.bf16.msra.mxu0 0
        %1656 = vmatprep.subr.bf16.mxu0 0
        %1657 = vmatpush1.bf16.msra.mxu0 0
        %1658 = vmatprep.mubr.bf16.mxu0 0
        %1659 = vmatmul.mubr.bf16.gmra.mrb[0].mxu0 %v1615
        %v1660 = vpop.f32.mrb[0].mxu0
        %v1661 = vadd.f32 0.0, %v1660
        %v1662 = vpop.f32.mrb[0].mxu0
        %v1663 = vpop.f32.mrb[0].mxu0
        %v1664 = vadd.f32 0.0, %v1663
        %v1665 = vpop.f32.mrb[0].mxu0
        %1666 = vmatprep.mubr.bf16.mxu0 0
        %1667 = vmatmul.mubr.bf16.gmra.mrb[0].mxu0 %v1618
        %v1668 = vpop.f32.mrb[0].mxu0
        %v1669 = vadd.f32 0.0, %v1668
        %v1670 = vpop.f32.mrb[0].mxu0
        %v1671 = vpop.f32.mrb[0].mxu0
        %v1672 = vadd.f32 0.0, %v1671
        %v1673 = vpop.f32.mrb[0].mxu0
        %1674 = vmatprep.mubr.bf16.mxu0 0
        %1675 = vmatmul.mubr.bf16.gmra.mrb[0].mxu0 %v1621
        %v1676 = vpop.f32.mrb[0].mxu0
        %v1677 = vadd.f32 0.0, %v1676
        %v1678 = vpop.f32.mrb[0].mxu0
        %v1679 = vpop.f32.mrb[0].mxu0
        %v1680 = vadd.f32 0.0, %v1679
        %v1681 = vpop.f32.mrb[0].mxu0
        %1682 = vmatprep.mubr.bf16.mxu0 0
        %1683 = vmatmul.mubr.bf16.gmra.mrb[0].mxu0 %v1624
        %v1684 = vpop.f32.mrb[0].mxu0
        %v1685 = vadd.f32 0.0, %v1684
        %v1686 = vpop.f32.mrb[0].mxu0
        %v1687 = vpop.f32.mrb[0].mxu0
        %v1688 = vadd.f32 0.0, %v1687
        %v1689 = vpop.f32.mrb[0].mxu0
        %1690 = vdwg.mxu0
        %v1691 = vadd.f32 %v1572, %v1661
        %v1692 = vadd.f32 %v1573, %v1664
        %v1693 = vadd.f32 %v1574, %v1669
        %v1694 = vadd.f32 %v1575, %v1672
        %v1695 = vadd.f32 %v1576, %v1677
        %v1696 = vadd.f32 %v1577, %v1680
        %v1697 = vadd.f32 %v1578, %v1685
        %v1698 = vadd.f32 %v1579, %v1688
        %v1699 = vpack.c.bf16 %v1072, %v1069
        %v1700 = vpack.c.bf16 %v1078, %v1075
        %v1701 = vpack.c.bf16 %v1084, %v1081
        %v1702 = vpack.c.bf16 %v1090, %v1087
        %v1711 = vunpack.c.l.b16 %v1127
        %v1712 = vunpack.c.l.b16 %v1128
        %v1713 = vunpack.c.l.b16 %v1129
        %v1714 = vunpack.c.l.b16 %v1130
        %v1715 = vunpack.c.l.b16 %v1131
        %v1716 = vunpack.c.l.b16 %v1132
        %v1717 = vunpack.c.l.b16 %v1133
        %v1718 = vunpack.c.l.b16 %v1134
        %v1719 = vpack.c.b16 %v1712, %v1711
        %v1720 = vpack.c.b16 %v1714, %v1713
        %v1721 = vpack.c.b16 %v1716, %v1715
        %v1722 = vpack.c.b16 %v1718, %v1717
        %v1728 = vsel %vm987, %v1699, 0
        %v1731 = vsel %vm987, %v1700, 0
        %v1734 = vsel %vm987, %v1701, 0
        %v1737 = vsel %vm987, %v1702, 0
        %1739 = vmatprep.subr.bf16.mxu0 0
        %1740 = vmatpush1.bf16.msra.mxu0 %v1719
        %1741 = vmatprep.subr.bf16.mxu0 0
        %1742 = vmatpush1.bf16.msra.mxu0 %v1720
        %1743 = vmatprep.subr.bf16.mxu0 0
        %1744 = vmatpush1.bf16.msra.mxu0 %v1721
        %1745 = vmatprep.subr.bf16.mxu0 0
        %1746 = vmatpush1.bf16.msra.mxu0 %v1722
        %1747 = vmatprep.subr.bf16.mxu0 0
        %1748 = vmatpush1.bf16.msra.mxu0 0
        %1749 = vmatprep.subr.bf16.mxu0 0
        %1750 = vmatpush1.bf16.msra.mxu0 0
        %1751 = vmatprep.subr.bf16.mxu0 0
        %1752 = vmatpush1.bf16.msra.mxu0 0
        %1753 = vmatprep.subr.bf16.mxu0 0
        %1754 = vmatpush1.bf16.msra.mxu0 0
        %1755 = vmatprep.subr.bf16.mxu0 0
        %1756 = vmatpush1.bf16.msra.mxu0 0
        %1757 = vmatprep.subr.bf16.mxu0 0
        %1758 = vmatpush1.bf16.msra.mxu0 0
        %1759 = vmatprep.subr.bf16.mxu0 0
        %1760 = vmatpush1.bf16.msra.mxu0 0
        %1761 = vmatprep.subr.bf16.mxu0 0
        %1762 = vmatpush1.bf16.msra.mxu0 0
        %1763 = vmatprep.subr.bf16.mxu0 0
        %1764 = vmatpush1.bf16.msra.mxu0 0
        %1765 = vmatprep.subr.bf16.mxu0 0
        %1766 = vmatpush1.bf16.msra.mxu0 0
        %1767 = vmatprep.subr.bf16.mxu0 0
        %1768 = vmatpush1.bf16.msra.mxu0 0
        %1769 = vmatprep.subr.bf16.mxu0 0
        %1770 = vmatpush1.bf16.msra.mxu0 0
        %1771 = vmatprep.mubr.bf16.mxu0 0
        %1772 = vmatmul.mubr.bf16.gmra.mrb[0].mxu0 %v1728
        %v1773 = vpop.f32.mrb[0].mxu0
        %v1774 = vadd.f32 0.0, %v1773
        %v1775 = vpop.f32.mrb[0].mxu0
        %v1776 = vpop.f32.mrb[0].mxu0
        %v1777 = vadd.f32 0.0, %v1776
        %v1778 = vpop.f32.mrb[0].mxu0
        %1779 = vmatprep.mubr.bf16.mxu0 0
        %1780 = vmatmul.mubr.bf16.gmra.mrb[0].mxu0 %v1731
        %v1781 = vpop.f32.mrb[0].mxu0
        %v1782 = vadd.f32 0.0, %v1781
        %v1783 = vpop.f32.mrb[0].mxu0
        %v1784 = vpop.f32.mrb[0].mxu0
        %v1785 = vadd.f32 0.0, %v1784
        %v1786 = vpop.f32.mrb[0].mxu0
        %1787 = vmatprep.mubr.bf16.mxu0 0
        %1788 = vmatmul.mubr.bf16.gmra.mrb[0].mxu0 %v1734
        %v1789 = vpop.f32.mrb[0].mxu0
        %v1790 = vadd.f32 0.0, %v1789
        %v1791 = vpop.f32.mrb[0].mxu0
        %v1792 = vpop.f32.mrb[0].mxu0
        %v1793 = vadd.f32 0.0, %v1792
        %v1794 = vpop.f32.mrb[0].mxu0
        %1795 = vmatprep.mubr.bf16.mxu0 0
        %1796 = vmatmul.mubr.bf16.gmra.mrb[0].mxu0 %v1737
        %v1797 = vpop.f32.mrb[0].mxu0
        %v1798 = vadd.f32 0.0, %v1797
        %v1799 = vpop.f32.mrb[0].mxu0
        %v1800 = vpop.f32.mrb[0].mxu0
        %v1801 = vadd.f32 0.0, %v1800
        %v1802 = vpop.f32.mrb[0].mxu0
        %1803 = vdwg.mxu0
        %v1804 = vadd.f32 %v1691, %v1774
        %v1805 = vadd.f32 %v1692, %v1777
        %v1806 = vadd.f32 %v1693, %v1782
        %v1807 = vadd.f32 %v1694, %v1785
        %v1808 = vadd.f32 %v1695, %v1790
        %v1809 = vadd.f32 %v1696, %v1793
        %v1810 = vadd.f32 %v1697, %v1798
        %v1811 = vadd.f32 %v1698, %v1801
        %v1813 = vrot.slane %v1090, 1
        %v1814 = vrot.slane %v1091, 1
        %v1815 = vsel %vm1434, %v1813, %v1814
        %v1817 = vpack.c.bf16 %v1443, %v1440
        %v1818 = vpack.c.bf16 %v1449, %v1446
        %v1819 = vpack.c.bf16 %v1455, %v1452
        %v1820 = vpack.c.bf16 %v1815, %v1458
        %v1829 = vunpack.c.l.b16 %v1135
        %v1830 = vunpack.c.l.b16 %v1136
        %v1831 = vunpack.c.l.b16 %v1137
        %v1832 = vunpack.c.l.b16 %v1138
        %v1833 = vunpack.c.l.b16 %v1139
        %v1834 = vunpack.c.l.b16 %v1140
        %v1835 = vunpack.c.l.b16 %v1141
        %v1836 = vunpack.c.l.b16 %v1142
        %v1837 = vpack.c.b16 %v1830, %v1829
        %v1838 = vpack.c.b16 %v1832, %v1831
        %v1839 = vpack.c.b16 %v1834, %v1833
        %v1840 = vpack.c.b16 %v1836, %v1835
        %v1846 = vsel %vm987, %v1817, 0
        %v1849 = vsel %vm987, %v1818, 0
        %v1852 = vsel %vm987, %v1819, 0
        %v1855 = vsel %vm987, %v1820, 0
        %1857 = vmatprep.subr.bf16.mxu0 0
        %1858 = vmatpush1.bf16.msra.mxu0 %v1837
        %1859 = vmatprep.subr.bf16.mxu0 0
        %1860 = vmatpush1.bf16.msra.mxu0 %v1838
        %1861 = vmatprep.subr.bf16.mxu0 0
        %1862 = vmatpush1.bf16.msra.mxu0 %v1839
        %1863 = vmatprep.subr.bf16.mxu0 0
        %1864 = vmatpush1.bf16.msra.mxu0 %v1840
        %1865 = vmatprep.subr.bf16.mxu0 0
        %1866 = vmatpush1.bf16.msra.mxu0 0
        %1867 = vmatprep.subr.bf16.mxu0 0
        %1868 = vmatpush1.bf16.msra.mxu0 0
        %1869 = vmatprep.subr.bf16.mxu0 0
        %1870 = vmatpush1.bf16.msra.mxu0 0
        %1871 = vmatprep.subr.bf16.mxu0 0
        %1872 = vmatpush1.bf16.msra.mxu0 0
        %1873 = vmatprep.subr.bf16.mxu0 0
        %1874 = vmatpush1.bf16.msra.mxu0 0
        %1875 = vmatprep.subr.bf16.mxu0 0
        %1876 = vmatpush1.bf16.msra.mxu0 0
        %1877 = vmatprep.subr.bf16.mxu0 0
        %1878 = vmatpush1.bf16.msra.mxu0 0
        %1879 = vmatprep.subr.bf16.mxu0 0
        %1880 = vmatpush1.bf16.msra.mxu0 0
        %1881 = vmatprep.subr.bf16.mxu0 0
        %1882 = vmatpush1.bf16.msra.mxu0 0
        %1883 = vmatprep.subr.bf16.mxu0 0
        %1884 = vmatpush1.bf16.msra.mxu0 0
        %1885 = vmatprep.subr.bf16.mxu0 0
        %1886 = vmatpush1.bf16.msra.mxu0 0
        %1887 = vmatprep.subr.bf16.mxu0 0
        %1888 = vmatpush1.bf16.msra.mxu0 0
        %1889 = vmatprep.mubr.bf16.mxu0 0
        %1890 = vmatmul.mubr.bf16.gmra.mrb[0].mxu0 %v1846
        %v1891 = vpop.f32.mrb[0].mxu0
        %v1892 = vadd.f32 0.0, %v1891
        %v1893 = vpop.f32.mrb[0].mxu0
        %v1894 = vpop.f32.mrb[0].mxu0
        %v1895 = vadd.f32 0.0, %v1894
        %v1896 = vpop.f32.mrb[0].mxu0
        %1897 = vmatprep.mubr.bf16.mxu0 0
        %1898 = vmatmul.mubr.bf16.gmra.mrb[0].mxu0 %v1849
        %v1899 = vpop.f32.mrb[0].mxu0
        %v1900 = vadd.f32 0.0, %v1899
        %v1901 = vpop.f32.mrb[0].mxu0
        %v1902 = vpop.f32.mrb[0].mxu0
        %v1903 = vadd.f32 0.0, %v1902
        %v1904 = vpop.f32.mrb[0].mxu0
        %1905 = vmatprep.mubr.bf16.mxu0 0
        %1906 = vmatmul.mubr.bf16.gmra.mrb[0].mxu0 %v1852
        %v1907 = vpop.f32.mrb[0].mxu0
        %v1908 = vadd.f32 0.0, %v1907
        %v1909 = vpop.f32.mrb[0].mxu0
        %v1910 = vpop.f32.mrb[0].mxu0
        %v1911 = vadd.f32 0.0, %v1910
        %v1912 = vpop.f32.mrb[0].mxu0
        %1913 = vmatprep.mubr.bf16.mxu0 0
        %1914 = vmatmul.mubr.bf16.gmra.mrb[0].mxu0 %v1855
        %v1915 = vpop.f32.mrb[0].mxu0
        %v1916 = vadd.f32 0.0, %v1915
        %v1917 = vpop.f32.mrb[0].mxu0
        %v1918 = vpop.f32.mrb[0].mxu0
        %v1919 = vadd.f32 0.0, %v1918
        %v1920 = vpop.f32.mrb[0].mxu0
        %1921 = vdwg.mxu0
        %v1922 = vadd.f32 %v1804, %v1892
        %v1923 = vadd.f32 %v1805, %v1895
        %v1924 = vadd.f32 %v1806, %v1900
        %v1925 = vadd.f32 %v1807, %v1903
        %v1926 = vadd.f32 %v1808, %v1908
        %v1927 = vadd.f32 %v1809, %v1911
        %v1928 = vadd.f32 %v1810, %v1916
        %v1929 = vadd.f32 %v1811, %v1919
        %v1932 = vrot.slane %v1092, 7
        %v1933 = vrot.slane %v1093, 7
        %v1934 = vsel %vm1183, %v1932, %v1933
        %v1936 = vpack.c.bf16 %v1934, %v1584
        %v1945 = vunpack.c.l.b16 %v1143
        %v1946 = vunpack.c.l.b16 %v1144
        %v1947 = vunpack.c.l.b16 %v1145
        %v1948 = vunpack.c.l.b16 %v1146
        %v1949 = vunpack.c.l.b16 %v1147
        %v1950 = vunpack.c.l.b16 %v1148
        %v1951 = vunpack.c.l.b16 %v1149
        %v1952 = vunpack.c.l.b16 %v1150
        %v1953 = vpack.c.b16 %v1946, %v1945
        %v1954 = vpack.c.b16 %v1948, %v1947
        %v1955 = vpack.c.b16 %v1950, %v1949
        %v1956 = vpack.c.b16 %v1952, %v1951
        %v1962 = vsel %vm987, %v1936, 0
        %1964 = vmatprep.subr.bf16.mxu0 0
        %1965 = vmatpush1.bf16.msra.mxu0 %v1953
        %1966 = vmatprep.subr.bf16.mxu0 0
        %1967 = vmatpush1.bf16.msra.mxu0 %v1954
        %1968 = vmatprep.subr.bf16.mxu0 0
        %1969 = vmatpush1.bf16.msra.mxu0 %v1955
        %1970 = vmatprep.subr.bf16.mxu0 0
        %1971 = vmatpush1.bf16.msra.mxu0 %v1956
        %1972 = vmatprep.subr.bf16.mxu0 0
        %1973 = vmatpush1.bf16.msra.mxu0 0
        %1974 = vmatprep.subr.bf16.mxu0 0
        %1975 = vmatpush1.bf16.msra.mxu0 0
        %1976 = vmatprep.subr.bf16.mxu0 0
        %1977 = vmatpush1.bf16.msra.mxu0 0
        %1978 = vmatprep.subr.bf16.mxu0 0
        %1979 = vmatpush1.bf16.msra.mxu0 0
        %1980 = vmatprep.subr.bf16.mxu0 0
        %1981 = vmatpush1.bf16.msra.mxu0 0
        %1982 = vmatprep.subr.bf16.mxu0 0
        %1983 = vmatpush1.bf16.msra.mxu0 0
        %1984 = vmatprep.subr.bf16.mxu0 0
        %1985 = vmatpush1.bf16.msra.mxu0 0
        %1986 = vmatprep.subr.bf16.mxu0 0
        %1987 = vmatpush1.bf16.msra.mxu0 0
        %1988 = vmatprep.subr.bf16.mxu0 0
        %1989 = vmatpush1.bf16.msra.mxu0 0
        %1990 = vmatprep.subr.bf16.mxu0 0
        %1991 = vmatpush1.bf16.msra.mxu0 0
        %1992 = vmatprep.subr.bf16.mxu0 0
        %1993 = vmatpush1.bf16.msra.mxu0 0
        %1994 = vmatprep.subr.bf16.mxu0 0
        %1995 = vmatpush1.bf16.msra.mxu0 0
        %1996 = vmatprep.mubr.bf16.mxu0 0
        %1997 = vmatmul.mubr.bf16.gmra.mrb[0].mxu0 %v1353
        %v1998 = vpop.f32.mrb[0].mxu0
        %v1999 = vadd.f32 0.0, %v1998
        %v2000 = vpop.f32.mrb[0].mxu0
        %v2001 = vpop.f32.mrb[0].mxu0
        %v2002 = vadd.f32 0.0, %v2001
        %v2003 = vpop.f32.mrb[0].mxu0
        %2004 = vmatprep.mubr.bf16.mxu0 0
        %2005 = vmatmul.mubr.bf16.gmra.mrb[0].mxu0 %v1356
        %v2006 = vpop.f32.mrb[0].mxu0
        %v2007 = vadd.f32 0.0, %v2006
        %v2008 = vpop.f32.mrb[0].mxu0
        %v2009 = vpop.f32.mrb[0].mxu0
        %v2010 = vadd.f32 0.0, %v2009
        %v2011 = vpop.f32.mrb[0].mxu0
        %2012 = vmatprep.mubr.bf16.mxu0 0
        %2013 = vmatmul.mubr.bf16.gmra.mrb[0].mxu0 %v1359
        %v2014 = vpop.f32.mrb[0].mxu0
        %v2015 = vadd.f32 0.0, %v2014
        %v2016 = vpop.f32.mrb[0].mxu0
        %v2017 = vpop.f32.mrb[0].mxu0
        %v2018 = vadd.f32 0.0, %v2017
        %v2019 = vpop.f32.mrb[0].mxu0
        %2020 = vmatprep.mubr.bf16.mxu0 0
        %2021 = vmatmul.mubr.bf16.gmra.mrb[0].mxu0 %v1962
        %v2022 = vpop.f32.mrb[0].mxu0
        %v2023 = vadd.f32 0.0, %v2022
        %v2024 = vpop.f32.mrb[0].mxu0
        %v2025 = vpop.f32.mrb[0].mxu0
        %v2026 = vadd.f32 0.0, %v2025
        %v2027 = vpop.f32.mrb[0].mxu0
        %2028 = vdwg.mxu0
        %v2029 = vadd.f32 %v1922, %v1999
        %v2030 = vadd.f32 %v1923, %v2002
        %v2031 = vadd.f32 %v1924, %v2007
        %v2032 = vadd.f32 %v1925, %v2010
        %v2033 = vadd.f32 %v1926, %v2015
        %v2034 = vadd.f32 %v1927, %v2018
        %v2035 = vadd.f32 %v1928, %v2023
        %v2036 = vadd.f32 %v1929, %v2026
        %v2037 = vpack.c.bf16 %v1093, %v1090
        %v2046 = vunpack.c.l.b16 %v1151
        %v2047 = vunpack.c.l.b16 %v1152
        %v2048 = vunpack.c.l.b16 %v1153
        %v2049 = vunpack.c.l.b16 %v1154
        %v2050 = vunpack.c.l.b16 %v1155
        %v2051 = vunpack.c.l.b16 %v1156
        %v2052 = vunpack.c.l.b16 %v1157
        %v2053 = vunpack.c.l.b16 %v1158
        %v2054 = vpack.c.b16 %v2047, %v2046
        %v2055 = vpack.c.b16 %v2049, %v2048
        %v2056 = vpack.c.b16 %v2051, %v2050
        %v2057 = vpack.c.b16 %v2053, %v2052
        %v2063 = vsel %vm987, %v2037, 0
        %2065 = vmatprep.subr.bf16.mxu0 0
        %2066 = vmatpush1.bf16.msra.mxu0 %v2054
        %2067 = vmatprep.subr.bf16.mxu0 0
        %2068 = vmatpush1.bf16.msra.mxu0 %v2055
        %2069 = vmatprep.subr.bf16.mxu0 0
        %2070 = vmatpush1.bf16.msra.mxu0 %v2056
        %2071 = vmatprep.subr.bf16.mxu0 0
        %2072 = vmatpush1.bf16.msra.mxu0 %v2057
        %2073 = vmatprep.subr.bf16.mxu0 0
        %2074 = vmatpush1.bf16.msra.mxu0 0
        %2075 = vmatprep.subr.bf16.mxu0 0
        %2076 = vmatpush1.bf16.msra.mxu0 0
        %2077 = vmatprep.subr.bf16.mxu0 0
        %2078 = vmatpush1.bf16.msra.mxu0 0
        %2079 = vmatprep.subr.bf16.mxu0 0
        %2080 = vmatpush1.bf16.msra.mxu0 0
        %2081 = vmatprep.subr.bf16.mxu0 0
        %2082 = vmatpush1.bf16.msra.mxu0 0
        %2083 = vmatprep.subr.bf16.mxu0 0
        %2084 = vmatpush1.bf16.msra.mxu0 0
        %2085 = vmatprep.subr.bf16.mxu0 0
        %2086 = vmatpush1.bf16.msra.mxu0 0
        %2087 = vmatprep.subr.bf16.mxu0 0
        %2088 = vmatpush1.bf16.msra.mxu0 0
        %2089 = vmatprep.subr.bf16.mxu0 0
        %2090 = vmatpush1.bf16.msra.mxu0 0
        %2091 = vmatprep.subr.bf16.mxu0 0
        %2092 = vmatpush1.bf16.msra.mxu0 0
        %2093 = vmatprep.subr.bf16.mxu0 0
        %2094 = vmatpush1.bf16.msra.mxu0 0
        %2095 = vmatprep.subr.bf16.mxu0 0
        %2096 = vmatpush1.bf16.msra.mxu0 0
        %2097 = vmatprep.mubr.bf16.mxu0 0
        %2098 = vmatmul.mubr.bf16.gmra.mrb[0].mxu0 %v1252
        %v2099 = vpop.f32.mrb[0].mxu0
        %v2100 = vadd.f32 0.0, %v2099
        %v2101 = vpop.f32.mrb[0].mxu0
        %v2102 = vpop.f32.mrb[0].mxu0
        %v2103 = vadd.f32 0.0, %v2102
        %v2104 = vpop.f32.mrb[0].mxu0
        %2105 = vmatprep.mubr.bf16.mxu0 0
        %2106 = vmatmul.mubr.bf16.gmra.mrb[0].mxu0 %v1255
        %v2107 = vpop.f32.mrb[0].mxu0
        %v2108 = vadd.f32 0.0, %v2107
        %v2109 = vpop.f32.mrb[0].mxu0
        %v2110 = vpop.f32.mrb[0].mxu0
        %v2111 = vadd.f32 0.0, %v2110
        %v2112 = vpop.f32.mrb[0].mxu0
        %2113 = vmatprep.mubr.bf16.mxu0 0
        %2114 = vmatmul.mubr.bf16.gmra.mrb[0].mxu0 %v1258
        %v2115 = vpop.f32.mrb[0].mxu0
        %v2116 = vadd.f32 0.0, %v2115
        %v2117 = vpop.f32.mrb[0].mxu0
        %v2118 = vpop.f32.mrb[0].mxu0
        %v2119 = vadd.f32 0.0, %v2118
        %v2120 = vpop.f32.mrb[0].mxu0
        %2121 = vmatprep.mubr.bf16.mxu0 0
        %2122 = vmatmul.mubr.bf16.gmra.mrb[0].mxu0 %v2063
        %v2123 = vpop.f32.mrb[0].mxu0
        %v2124 = vadd.f32 0.0, %v2123
        %v2125 = vpop.f32.mrb[0].mxu0
        %v2126 = vpop.f32.mrb[0].mxu0
        %v2127 = vadd.f32 0.0, %v2126
        %v2128 = vpop.f32.mrb[0].mxu0
        %2129 = vdwg.mxu0
        %v2130 = vadd.f32 %v2029, %v2100
        %v2131 = vadd.f32 %v2030, %v2103
        %v2132 = vadd.f32 %v2031, %v2108
        %v2133 = vadd.f32 %v2032, %v2111
        %v2134 = vadd.f32 %v2033, %v2116
        %v2135 = vadd.f32 %v2034, %v2119
        %v2136 = vadd.f32 %v2035, %v2124
        %v2137 = vadd.f32 %v2036, %v2127
        %v2139 = vrot.slane %v1093, 1
        %v2140 = vrot.slane %v1094, 1
        %v2141 = vsel %vm1434, %v2139, %v2140
        %v2143 = vpack.c.bf16 %v2141, %v1815
        %v2152 = vunpack.c.l.b16 %v1159
        %v2153 = vunpack.c.l.b16 %v1160
        %v2154 = vunpack.c.l.b16 %v1161
        %v2155 = vunpack.c.l.b16 %v1162
        %v2156 = vunpack.c.l.b16 %v1163
        %v2157 = vunpack.c.l.b16 %v1164
        %v2158 = vunpack.c.l.b16 %v1165
        %v2159 = vunpack.c.l.b16 %v1166
        %v2160 = vpack.c.b16 %v2153, %v2152
        %v2161 = vpack.c.b16 %v2155, %v2154
        %v2162 = vpack.c.b16 %v2157, %v2156
        %v2163 = vpack.c.b16 %v2159, %v2158
        %v2169 = vsel %vm987, %v2143, 0
        %2171 = vmatprep.subr.bf16.mxu0 0
        %2172 = vmatpush1.bf16.msra.mxu0 %v2160
        %2173 = vmatprep.subr.bf16.mxu0 0
        %2174 = vmatpush1.bf16.msra.mxu0 %v2161
        %2175 = vmatprep.subr.bf16.mxu0 0
        %2176 = vmatpush1.bf16.msra.mxu0 %v2162
        %2177 = vmatprep.subr.bf16.mxu0 0
        %2178 = vmatpush1.bf16.msra.mxu0 %v2163
        %2179 = vmatprep.subr.bf16.mxu0 0
        %2180 = vmatpush1.bf16.msra.mxu0 0
        %2181 = vmatprep.subr.bf16.mxu0 0
        %2182 = vmatpush1.bf16.msra.mxu0 0
        %2183 = vmatprep.subr.bf16.mxu0 0
        %2184 = vmatpush1.bf16.msra.mxu0 0
        %2185 = vmatprep.subr.bf16.mxu0 0
        %2186 = vmatpush1.bf16.msra.mxu0 0
        %2187 = vmatprep.subr.bf16.mxu0 0
        %2188 = vmatpush1.bf16.msra.mxu0 0
        %2189 = vmatprep.subr.bf16.mxu0 0
        %2190 = vmatpush1.bf16.msra.mxu0 0
        %2191 = vmatprep.subr.bf16.mxu0 0
        %2192 = vmatpush1.bf16.msra.mxu0 0
        %2193 = vmatprep.subr.bf16.mxu0 0
        %2194 = vmatpush1.bf16.msra.mxu0 0
        %2195 = vmatprep.subr.bf16.mxu0 0
        %2196 = vmatpush1.bf16.msra.mxu0 0
        %2197 = vmatprep.subr.bf16.mxu0 0
        %2198 = vmatpush1.bf16.msra.mxu0 0
        %2199 = vmatprep.subr.bf16.mxu0 0
        %2200 = vmatpush1.bf16.msra.mxu0 0
        %2201 = vmatprep.subr.bf16.mxu0 0
        %2202 = vmatpush1.bf16.msra.mxu0 0
        %2203 = vmatprep.mubr.bf16.mxu0 0
        %2204 = vmatmul.mubr.bf16.gmra.mrb[0].mxu0 %v1499
        %v2205 = vpop.f32.mrb[0].mxu0
        %v2206 = vadd.f32 0.0, %v2205
        %v2207 = vpop.f32.mrb[0].mxu0
        %v2208 = vpop.f32.mrb[0].mxu0
        %v2209 = vadd.f32 0.0, %v2208
        %v2210 = vpop.f32.mrb[0].mxu0
        %2211 = vmatprep.mubr.bf16.mxu0 0
        %2212 = vmatmul.mubr.bf16.gmra.mrb[0].mxu0 %v1502
        %v2213 = vpop.f32.mrb[0].mxu0
        %v2214 = vadd.f32 0.0, %v2213
        %v2215 = vpop.f32.mrb[0].mxu0
        %v2216 = vpop.f32.mrb[0].mxu0
        %v2217 = vadd.f32 0.0, %v2216
        %v2218 = vpop.f32.mrb[0].mxu0
        %2219 = vmatprep.mubr.bf16.mxu0 0
        %2220 = vmatmul.mubr.bf16.gmra.mrb[0].mxu0 %v1505
        %v2221 = vpop.f32.mrb[0].mxu0
        %v2222 = vadd.f32 0.0, %v2221
        %v2223 = vpop.f32.mrb[0].mxu0
        %v2224 = vpop.f32.mrb[0].mxu0
        %v2225 = vadd.f32 0.0, %v2224
        %v2226 = vpop.f32.mrb[0].mxu0
        %2227 = vmatprep.mubr.bf16.mxu0 0
        %2228 = vmatmul.mubr.bf16.gmra.mrb[0].mxu0 %v2169
        %v2229 = vpop.f32.mrb[0].mxu0
        %v2230 = vadd.f32 0.0, %v2229
        %v2231 = vpop.f32.mrb[0].mxu0
        %v2232 = vpop.f32.mrb[0].mxu0
        %v2233 = vadd.f32 0.0, %v2232
        %v2234 = vpop.f32.mrb[0].mxu0
        %2235 = vdwg.mxu0
        %v2236 = vadd.f32 %v2130, %v2206
        %v2237 = vadd.f32 %v2131, %v2209
        %v2238 = vadd.f32 %v2132, %v2214
        %v2239 = vadd.f32 %v2133, %v2217
        %v2240 = vadd.f32 %v2134, %v2222
        %v2241 = vadd.f32 %v2135, %v2225
        %v2242 = vadd.f32 %v2136, %v2230
        %v2243 = vadd.f32 %v2137, %v2233
        %v2244 = vld [vmem:[%s5] sm:$0x1]
        %v2246 = vlaneseq
        %v2247 = vshrl.u32 %v2246, 7
        %v2248 = vsub.s32 0, %v2247
        %v2249 = vrot.slane %v2244, %v2248
        %v2251 = vmul.f32 %v2236, %v2249
        %v2252 = vmul.f32 %v2237, %v2249
        %v2253 = vmul.f32 %v2238, %v2249
        %v2254 = vmul.f32 %v2239, %v2249
        %v2255 = vmul.f32 %v2240, %v2249
        %v2256 = vmul.f32 %v2241, %v2249
        %v2257 = vmul.f32 %v2242, %v2249
        %v2258 = vmul.f32 %v2243, %v2249
        %v2259 = vld [vmem:[%s7] sm:$0x1]
        %v2261 = vlaneseq
        %v2262 = vshrl.u32 %v2261, 7
        %v2263 = vsub.s32 0, %v2262
        %v2264 = vrot.slane %v2259, %v2263
        %v2266 = vadd.f32 %v2251, %v2264
        %v2267 = vadd.f32 %v2252, %v2264
        %v2268 = vadd.f32 %v2253, %v2264
        %v2269 = vadd.f32 %v2254, %v2264
        %v2270 = vadd.f32 %v2255, %v2264
        %v2271 = vadd.f32 %v2256, %v2264
        %v2272 = vadd.f32 %v2257, %v2264
        %v2273 = vadd.f32 %v2258, %v2264
        %v2274 = vmax.f32 %v2266, 0.0
        %v2275 = vmax.f32 %v2267, 0.0
        %v2276 = vmax.f32 %v2268, 0.0
        %v2277 = vmax.f32 %v2269, 0.0
        %v2278 = vmax.f32 %v2270, 0.0
        %v2279 = vmax.f32 %v2271, 0.0
        %v2280 = vmax.f32 %v2272, 0.0
        %v2281 = vmax.f32 %v2273, 0.0
        %2290 = vrot.lane.b32.xlu0 %v2274, 64
        %v2291 = vpop.permute.xlu0 %2290
        %2292 = vrot.lane.b32.xlu0 %v2275, 64
        %v2293 = vpop.permute.xlu0 %2292
        %2294 = vrot.lane.b32.xlu0 %v2276, 64
        %v2295 = vpop.permute.xlu0 %2294
        %2296 = vrot.lane.b32.xlu0 %v2277, 64
        %v2297 = vpop.permute.xlu0 %2296
        %2298 = vrot.lane.b32.xlu0 %v2278, 64
        %v2299 = vpop.permute.xlu0 %2298
        %2300 = vrot.lane.b32.xlu0 %v2279, 64
        %v2301 = vpop.permute.xlu0 %2300
        %2302 = vrot.lane.b32.xlu0 %v2280, 64
        %v2303 = vpop.permute.xlu0 %2302
        %2304 = vrot.lane.b32.xlu0 %v2281, 64
        %v2305 = vpop.permute.xlu0 %2304
        %vm2314 = vcmask 785920
        %2315 = vst.msk [vmem:[%s1056 + $0x10] sm:$0xff] %vm2314, %v2291
        %2316 = vst.msk [vmem:[%s1056 + $0x40] sm:$0xff] %vm2314, %v2293
        %2317 = vst.msk [vmem:[%s1056 + $0x70] sm:$0xff] %vm2314, %v2295
        %2318 = vst.msk [vmem:[%s1056 + $0xa0] sm:$0xff] %vm2314, %v2297
        %2319 = vst.msk [vmem:[%s1056 + $0xd0] sm:$0xff] %vm2314, %v2299
        %2320 = vst.msk [vmem:[%s1056 + $0x100] sm:$0xff] %vm2314, %v2301
        %2321 = vst.msk [vmem:[%s1056 + $0x130] sm:$0xff] %vm2314, %v2303
        %2322 = vst.msk [vmem:[%s1056 + $0x160] sm:$0xff] %vm2314, %v2305
        %v2323 = vld [vmem:[#allocation2] sm:$0xff]
        %v2324 = vld [vmem:[#allocation2 + $0x10] sm:$0xff]
        %v2325 = vld [vmem:[#allocation2 + $0x20] sm:$0x1]
        %v2326 = vld [vmem:[#allocation2 + $0x30] sm:$0xff]
        %v2327 = vld [vmem:[#allocation2 + $0x40] sm:$0xff]
        %v2328 = vld [vmem:[#allocation2 + $0x50] sm:$0x1]
        %v2329 = vld [vmem:[#allocation2 + $0x60] sm:$0xff]
        %v2330 = vld [vmem:[#allocation2 + $0x70] sm:$0xff]
        %v2331 = vld [vmem:[#allocation2 + $0x80] sm:$0x1]
        %v2332 = vld [vmem:[#allocation2 + $0x90] sm:$0xff]
        %v2333 = vld [vmem:[#allocation2 + $0xa0] sm:$0xff]
        %v2334 = vld [vmem:[#allocation2 + $0xb0] sm:$0x1]
        %v2335 = vld [vmem:[#allocation2 + $0xc0] sm:$0xff]
        %v2336 = vld [vmem:[#allocation2 + $0xd0] sm:$0xff]
        %v2337 = vld [vmem:[#allocation2 + $0xe0] sm:$0x1]
        %v2338 = vld [vmem:[#allocation2 + $0xf0] sm:$0xff]
        %v2339 = vld [vmem:[#allocation2 + $0x100] sm:$0xff]
        %v2340 = vld [vmem:[#allocation2 + $0x110] sm:$0x1]
        %v2341 = vld [vmem:[#allocation2 + $0x120] sm:$0xff]
        %v2342 = vld [vmem:[#allocation2 + $0x130] sm:$0xff]
        %v2343 = vld [vmem:[#allocation2 + $0x140] sm:$0x1]
        %v2344 = vld [vmem:[#allocation2 + $0x150] sm:$0xff]
        %v2345 = vld [vmem:[#allocation2 + $0x160] sm:$0xff]
        %v2346 = vld [vmem:[#allocation2 + $0x170] sm:$0x1]
        %v2347 = vld [vmem:[#allocation2 + $0x180] sm:$0xff]
        %v2348 = vld [vmem:[#allocation2 + $0x190] sm:$0xff]
        %v2349 = vld [vmem:[#allocation2 + $0x1a0] sm:$0x1]
        %v2350 = vld [vmem:[#allocation2 + $0x1b0] sm:$0xff]
        %v2351 = vld [vmem:[#allocation2 + $0x1c0] sm:$0xff]
        %v2352 = vld [vmem:[#allocation2 + $0x1d0] sm:$0x1]
        %vm2353 = vcmask 785408
        %v2354 = vsel %vm2353, %v2327, 0.0
        %v2355 = vsel %vm2353, %v2330, 0.0
        %v2356 = vadd.f32 %v2354, %v2355
        %v2357 = vsel %vm2353, %v2333, 0.0
        %v2358 = vadd.f32 %v2356, %v2357
        %v2359 = vsel %vm2353, %v2336, 0.0
        %v2360 = vadd.f32 %v2358, %v2359
        %v2361 = vsel %vm2353, %v2339, 0.0
        %v2362 = vadd.f32 %v2360, %v2361
        %v2363 = vsel %vm2353, %v2342, 0.0
        %v2364 = vadd.f32 %v2362, %v2363
        %v2365 = vsel %vm2353, %v2345, 0.0
        %v2366 = vadd.f32 %v2364, %v2365
        %v2367 = vsel %vm2353, %v2348, 0.0
        %v2368 = vadd.f32 %v2366, %v2367
        %v2369 = vrot.slane %v2368, 4
        %v2370 = vadd.f32 %v2368, %v2369
        %v2371 = vrot.slane %v2370, 2
        %v2372 = vadd.f32 %v2370, %v2371
        %v2373 = vrot.slane %v2372, 1
        %v2374 = vadd.f32 %v2372, %v2373
        %v2375 = vrcp.pop 64.0
        %v2376 = vmul.f32 %v2374, %v2375
        %v2377 = vld [vmem:[%s33] sm:$0xff]
        %v2378 = vld [vmem:[%s33 + $0x8] sm:$0xff]
        %v2379 = vld [vmem:[%s33 + $0x10] sm:$0xff]
        %v2380 = vld [vmem:[%s33 + $0x18] sm:$0xff]
        %v2381 = vld [vmem:[%s33 + $0x20] sm:$0xff]
        %v2382 = vld [vmem:[%s33 + $0x28] sm:$0xff]
        %v2383 = vld [vmem:[%s33 + $0x30] sm:$0xff]
        %v2384 = vld [vmem:[%s33 + $0x38] sm:$0xff]
        %v2385 = vld [vmem:[%s33 + $0x40] sm:$0xff]
        %v2386 = vld [vmem:[%s33 + $0x48] sm:$0xff]
        %v2387 = vld [vmem:[%s33 + $0x50] sm:$0xff]
        %v2388 = vld [vmem:[%s33 + $0x58] sm:$0xff]
        %v2389 = vld [vmem:[%s35] sm:$0x1]
        %v2391 = vsel %vm2353, %v2376, 0
        %2393 = vmatprep.subr.mxu0 0.0
        %2394 = vmatpush1.msra.mxu0 %v2377
        %2395 = vmatprep.subr.mxu0 0.0
        %2396 = vmatpush1.msra.mxu0 %v2378
        %2397 = vmatprep.subr.mxu0 0.0
        %2398 = vmatpush1.msra.mxu0 %v2379
        %2399 = vmatprep.subr.mxu0 0.0
        %2400 = vmatpush1.msra.mxu0 %v2380
        %2401 = vmatprep.subr.mxu0 0.0
        %2402 = vmatpush1.msra.mxu0 %v2381
        %2403 = vmatprep.subr.mxu0 0.0
        %2404 = vmatpush1.msra.mxu0 %v2382
        %2405 = vmatprep.subr.mxu0 0.0
        %2406 = vmatpush1.msra.mxu0 %v2383
        %2407 = vmatprep.subr.mxu0 0.0
        %2408 = vmatpush1.msra.mxu0 %v2384
        %2409 = vmatprep.subr.mxu0 0.0
        %2410 = vmatpush1.msra.mxu0 %v2385
        %2411 = vmatprep.subr.mxu0 0.0
        %2412 = vmatpush1.msra.mxu0 %v2386
        %2413 = vmatprep.subr.mxu0 0.0
        %2414 = vmatpush1.msra.mxu0 %v2387
        %2415 = vmatprep.subr.mxu0 0.0
        %2416 = vmatpush1.msra.mxu0 %v2388
        %2417 = vmatprep.subr.mxu0 0.0
        %2418 = vmatpush1.msra.mxu0 0.0
        %2419 = vmatprep.subr.mxu0 0.0
        %2420 = vmatpush1.msra.mxu0 0.0
        %2421 = vmatprep.subr.mxu0 0.0
        %2422 = vmatpush1.msra.mxu0 0.0
        %2423 = vmatprep.subr.mxu0 0.0
        %2424 = vmatpush1.msra.mxu0 0.0
        %2425 = vmatprep.subr.mxu0 0.0
        %2426 = vmatpush1.msra.mxu0 0.0
        %2427 = vmatprep.subr.mxu0 0.0
        %2428 = vmatpush1.msra.mxu0 0.0
        %2429 = vmatprep.subr.mxu0 0.0
        %2430 = vmatpush1.msra.mxu0 0.0
        %2431 = vmatprep.subr.mxu0 0.0
        %2432 = vmatpush1.msra.mxu0 0.0
        %2433 = vmatprep.subr.mxu0 0.0
        %2434 = vmatpush1.msra.mxu0 0.0
        %2435 = vmatprep.subr.mxu0 0.0
        %2436 = vmatpush1.msra.mxu0 0.0
        %2437 = vmatprep.subr.mxu0 0.0
        %2438 = vmatpush1.msra.mxu0 0.0
        %2439 = vmatprep.subr.mxu0 0.0
        %2440 = vmatpush1.msra.mxu0 0.0
        %2441 = vmatprep.subr.mxu0 0.0
        %2442 = vmatpush1.msra.mxu0 0.0
        %2443 = vmatprep.subr.mxu0 0.0
        %2444 = vmatpush1.msra.mxu0 0.0
        %2445 = vmatprep.subr.mxu0 0.0
        %2446 = vmatpush1.msra.mxu0 0.0
        %2447 = vmatprep.subr.mxu0 0.0
        %2448 = vmatpush1.msra.mxu0 0.0
        %2449 = vmatprep.subr.mxu0 0.0
        %2450 = vmatpush1.msra.mxu0 0.0
        %2451 = vmatprep.subr.mxu0 0.0
        %2452 = vmatpush1.msra.mxu0 0.0
        %2453 = vmatprep.subr.mxu0 0.0
        %2454 = vmatpush1.msra.mxu0 0.0
        %2455 = vmatprep.subr.mxu0 0.0
        %2456 = vmatpush1.msra.mxu0 0.0
        %2457 = vmatprep.mubr.f32.mxu0 0.0
        %2458 = vmatmul.mubr.f32.gmra.mrb[0].mxu0 %v2391
        %v2459 = vpop.f32.mrb[0].mxu0
        %v2460 = vadd.f32 %v2389, %v2459
        %v2461 = vpop.f32.mrb[0].mxu0
        %2462 = vdwg.mxu0
        %v2463 = vmax.f32 %v2460, 0.0
        %v2464 = vld [vmem:[%s37] sm:$0xff]
        %v2465 = vld [vmem:[%s37 + $0x8] sm:$0xff]
        %v2466 = vld [vmem:[%s37 + $0x10] sm:$0xff]
        %v2467 = vld [vmem:[%s37 + $0x18] sm:$0xff]
        %v2468 = vld [vmem:[%s37 + $0x20] sm:$0xff]
        %v2469 = vld [vmem:[%s37 + $0x28] sm:$0xff]
        %v2470 = vld [vmem:[%s39] sm:$0x1]
        %vm2471 = vcmask 392192
        %v2473 = vsel %vm2471, %v2463, 0
        %2475 = vmatprep.subr.mxu0 0.0
        %2476 = vmatpush1.msra.mxu0 %v2464
        %2477 = vmatprep.subr.mxu0 0.0
        %2478 = vmatpush1.msra.mxu0 %v2465
        %2479 = vmatprep.subr.mxu0 0.0
        %2480 = vmatpush1.msra.mxu0 %v2466
        %2481 = vmatprep.subr.mxu0 0.0
        %2482 = vmatpush1.msra.mxu0 %v2467
        %2483 = vmatprep.subr.mxu0 0.0
        %2484 = vmatpush1.msra.mxu0 %v2468
        %2485 = vmatprep.subr.mxu0 0.0
        %2486 = vmatpush1.msra.mxu0 %v2469
        %2487 = vmatprep.subr.mxu0 0.0
        %2488 = vmatpush1.msra.mxu0 0.0
        %2489 = vmatprep.subr.mxu0 0.0
        %2490 = vmatpush1.msra.mxu0 0.0
        %2491 = vmatprep.subr.mxu0 0.0
        %2492 = vmatpush1.msra.mxu0 0.0
        %2493 = vmatprep.subr.mxu0 0.0
        %2494 = vmatpush1.msra.mxu0 0.0
        %2495 = vmatprep.subr.mxu0 0.0
        %2496 = vmatpush1.msra.mxu0 0.0
        %2497 = vmatprep.subr.mxu0 0.0
        %2498 = vmatpush1.msra.mxu0 0.0
        %2499 = vmatprep.subr.mxu0 0.0
        %2500 = vmatpush1.msra.mxu0 0.0
        %2501 = vmatprep.subr.mxu0 0.0
        %2502 = vmatpush1.msra.mxu0 0.0
        %2503 = vmatprep.subr.mxu0 0.0
        %2504 = vmatpush1.msra.mxu0 0.0
        %2505 = vmatprep.subr.mxu0 0.0
        %2506 = vmatpush1.msra.mxu0 0.0
        %2507 = vmatprep.subr.mxu0 0.0
        %2508 = vmatpush1.msra.mxu0 0.0
        %2509 = vmatprep.subr.mxu0 0.0
        %2510 = vmatpush1.msra.mxu0 0.0
        %2511 = vmatprep.subr.mxu0 0.0
        %2512 = vmatpush1.msra.mxu0 0.0
        %2513 = vmatprep.subr.mxu0 0.0
        %2514 = vmatpush1.msra.mxu0 0.0
        %2515 = vmatprep.subr.mxu0 0.0
        %2516 = vmatpush1.msra.mxu0 0.0
        %2517 = vmatprep.subr.mxu0 0.0
        %2518 = vmatpush1.msra.mxu0 0.0
        %2519 = vmatprep.subr.mxu0 0.0
        %2520 = vmatpush1.msra.mxu0 0.0
        %2521 = vmatprep.subr.mxu0 0.0
        %2522 = vmatpush1.msra.mxu0 0.0
        %2523 = vmatprep.subr.mxu0 0.0
        %2524 = vmatpush1.msra.mxu0 0.0
        %2525 = vmatprep.subr.mxu0 0.0
        %2526 = vmatpush1.msra.mxu0 0.0
        %2527 = vmatprep.subr.mxu0 0.0
        %2528 = vmatpush1.msra.mxu0 0.0
        %2529 = vmatprep.subr.mxu0 0.0
        %2530 = vmatpush1.msra.mxu0 0.0
        %2531 = vmatprep.subr.mxu0 0.0
        %2532 = vmatpush1.msra.mxu0 0.0
        %2533 = vmatprep.subr.mxu0 0.0
        %2534 = vmatpush1.msra.mxu0 0.0
        %2535 = vmatprep.subr.mxu0 0.0
        %2536 = vmatpush1.msra.mxu0 0.0
        %2537 = vmatprep.subr.mxu0 0.0
        %2538 = vmatpush1.msra.mxu0 0.0
        %2539 = vmatprep.mubr.f32.mxu0 0.0
        %2540 = vmatmul.mubr.f32.gmra.mrb[0].mxu0 %v2473
        %v2541 = vpop.f32.mrb[0].mxu0
        %v2542 = vadd.f32 %v2470, %v2541
        %v2543 = vpop.f32.mrb[0].mxu0
        %2544 = vdwg.mxu0
        %v2545 = vxor.u32 %v2542, 2147483648
        %v2546 = vmul.f32 %v2545, 1.442695
        %v2547 = vpow.pop %v2546
        %v2548 = vadd.f32 %v2547, 1.0
        %v2549 = vrcp.pop %v2548
        %v2550 = vmul.f32 1.0, %v2549
        %v2551 = vlaneseq
        %v2552 = vshrl.u32 %v2551, 7
        %v2553 = vsub.s32 0, %v2552
        %v2554 = vrot.slane %v2550, %v2553
        %v2555 = vmul.f32 %v2323, %v2554
        %v2556 = vmul.f32 %v2324, %v2554
        %v2557 = vmul.f32 %v2325, %v2554
        %v2558 = vmul.f32 %v2326, %v2554
        %v2559 = vmul.f32 %v2327, %v2554
        %v2560 = vmul.f32 %v2328, %v2554
        %v2561 = vmul.f32 %v2329, %v2554
        %v2562 = vmul.f32 %v2330, %v2554
        %v2563 = vmul.f32 %v2331, %v2554
        %v2564 = vmul.f32 %v2332, %v2554
        %v2565 = vmul.f32 %v2333, %v2554
        %v2566 = vmul.f32 %v2334, %v2554
        %v2567 = vmul.f32 %v2335, %v2554
        %v2568 = vmul.f32 %v2336, %v2554
        %v2569 = vmul.f32 %v2337, %v2554
        %v2570 = vmul.f32 %v2338, %v2554
        %v2571 = vmul.f32 %v2339, %v2554
        %v2572 = vmul.f32 %v2340, %v2554
        %v2573 = vmul.f32 %v2341, %v2554
        %v2574 = vmul.f32 %v2342, %v2554
        %v2575 = vmul.f32 %v2343, %v2554
        %v2576 = vmul.f32 %v2344, %v2554
        %v2577 = vmul.f32 %v2345, %v2554
        %v2578 = vmul.f32 %v2346, %v2554
        %v2579 = vmul.f32 %v2347, %v2554
        %v2580 = vmul.f32 %v2348, %v2554
        %v2581 = vmul.f32 %v2349, %v2554
        %v2582 = vmul.f32 %v2350, %v2554
        %v2583 = vmul.f32 %v2351, %v2554
        %v2584 = vmul.f32 %v2352, %v2554
        %v2585 = vld [vmem:[%s9] sm:$0xf]
        %v2586 = vld [vmem:[%s9 + $0x4] sm:$0xf]
        %v2587 = vld [vmem:[%s9 + $0x8] sm:$0xf]
        %v2588 = vld [vmem:[%s9 + $0xc] sm:$0xf]
        %v2589 = vld [vmem:[%s9 + $0x10] sm:$0xf]
        %v2590 = vld [vmem:[%s9 + $0x14] sm:$0xf]
        %v2591 = vld [vmem:[%s9 + $0x18] sm:$0xf]
        %v2592 = vld [vmem:[%s9 + $0x1c] sm:$0xf]
        %v2593 = vld [vmem:[%s9 + $0x20] sm:$0xf]
        %v2594 = vld [vmem:[%s9 + $0x24] sm:$0xf]
        %v2595 = vld [vmem:[%s9 + $0x28] sm:$0xf]
        %v2596 = vld [vmem:[%s9 + $0x2c] sm:$0xf]
        %v2597 = vld [vmem:[%s9 + $0x30] sm:$0xf]
        %v2598 = vld [vmem:[%s9 + $0x34] sm:$0xf]
        %v2599 = vld [vmem:[%s9 + $0x38] sm:$0xf]
        %v2600 = vld [vmem:[%s9 + $0x3c] sm:$0xf]
        %v2601 = vld [vmem:[%s9 + $0x40] sm:$0xf]
        %v2602 = vld [vmem:[%s9 + $0x44] sm:$0xf]
        %v2603 = vld [vmem:[%s9 + $0x48] sm:$0xf]
        %v2604 = vld [vmem:[%s9 + $0x4c] sm:$0xf]
        %v2605 = vld [vmem:[%s9 + $0x50] sm:$0xf]
        %v2606 = vld [vmem:[%s9 + $0x54] sm:$0xf]
        %v2607 = vld [vmem:[%s9 + $0x58] sm:$0xf]
        %v2608 = vld [vmem:[%s9 + $0x5c] sm:$0xf]
        %v2609 = vld [vmem:[%s9 + $0x60] sm:$0xf]
        %v2610 = vld [vmem:[%s9 + $0x64] sm:$0xf]
        %v2611 = vld [vmem:[%s9 + $0x68] sm:$0xf]
        %v2612 = vld [vmem:[%s9 + $0x6c] sm:$0xf]
        %v2613 = vld [vmem:[%s9 + $0x70] sm:$0xf]
        %v2614 = vld [vmem:[%s9 + $0x74] sm:$0xf]
        %v2615 = vld [vmem:[%s9 + $0x78] sm:$0xf]
        %v2616 = vld [vmem:[%s9 + $0x7c] sm:$0xf]
        %v2617 = vld [vmem:[%s9 + $0x80] sm:$0xf]
        %v2618 = vld [vmem:[%s9 + $0x84] sm:$0xf]
        %v2619 = vld [vmem:[%s9 + $0x88] sm:$0xf]
        %v2620 = vld [vmem:[%s9 + $0x8c] sm:$0xf]
        %v2621 = vld [vmem:[%s9 + $0x90] sm:$0xf]
        %v2622 = vld [vmem:[%s9 + $0x94] sm:$0xf]
        %v2623 = vld [vmem:[%s9 + $0x98] sm:$0xf]
        %v2624 = vld [vmem:[%s9 + $0x9c] sm:$0xf]
        %v2625 = vld [vmem:[%s9 + $0xa0] sm:$0xf]
        %v2626 = vld [vmem:[%s9 + $0xa4] sm:$0xf]
        %v2627 = vld [vmem:[%s9 + $0xa8] sm:$0xf]
        %v2628 = vld [vmem:[%s9 + $0xac] sm:$0xf]
        %v2629 = vld [vmem:[%s9 + $0xb0] sm:$0xf]
        %v2630 = vld [vmem:[%s9 + $0xb4] sm:$0xf]
        %v2631 = vld [vmem:[%s9 + $0xb8] sm:$0xf]
        %v2632 = vld [vmem:[%s9 + $0xbc] sm:$0xf]
        %v2633 = vld [vmem:[%s9 + $0xc0] sm:$0xf]
        %v2634 = vld [vmem:[%s9 + $0xc4] sm:$0xf]
        %v2635 = vld [vmem:[%s9 + $0xc8] sm:$0xf]
        %v2636 = vld [vmem:[%s9 + $0xcc] sm:$0xf]
        %v2637 = vld [vmem:[%s9 + $0xd0] sm:$0xf]
        %v2638 = vld [vmem:[%s9 + $0xd4] sm:$0xf]
        %v2639 = vld [vmem:[%s9 + $0xd8] sm:$0xf]
        %v2640 = vld [vmem:[%s9 + $0xdc] sm:$0xf]
        %v2641 = vld [vmem:[%s9 + $0xe0] sm:$0xf]
        %v2642 = vld [vmem:[%s9 + $0xe4] sm:$0xf]
        %v2643 = vld [vmem:[%s9 + $0xe8] sm:$0xf]
        %v2644 = vld [vmem:[%s9 + $0xec] sm:$0xf]
        %v2645 = vld [vmem:[%s9 + $0xf0] sm:$0xf]
        %v2646 = vld [vmem:[%s9 + $0xf4] sm:$0xf]
        %v2647 = vld [vmem:[%s9 + $0xf8] sm:$0xf]
        %v2648 = vld [vmem:[%s9 + $0xfc] sm:$0xf]
        %v2649 = vld [vmem:[%s9 + $0x100] sm:$0xf]
        %v2650 = vld [vmem:[%s9 + $0x104] sm:$0xf]
        %v2651 = vld [vmem:[%s9 + $0x108] sm:$0xf]
        %v2652 = vld [vmem:[%s9 + $0x10c] sm:$0xf]
        %v2653 = vld [vmem:[%s9 + $0x110] sm:$0xf]
        %v2654 = vld [vmem:[%s9 + $0x114] sm:$0xf]
        %v2655 = vld [vmem:[%s9 + $0x118] sm:$0xf]
        %v2656 = vld [vmem:[%s9 + $0x11c] sm:$0xf]
        %v2657 = vld [vmem:[%s9 + $0x120] sm:$0xf]
        %v2658 = vld [vmem:[%s9 + $0x124] sm:$0xf]
        %v2659 = vld [vmem:[%s9 + $0x128] sm:$0xf]
        %v2660 = vld [vmem:[%s9 + $0x12c] sm:$0xf]
        %v2661 = vld [vmem:[%s9 + $0x130] sm:$0xf]
        %v2662 = vld [vmem:[%s9 + $0x134] sm:$0xf]
        %v2663 = vld [vmem:[%s9 + $0x138] sm:$0xf]
        %v2664 = vld [vmem:[%s9 + $0x13c] sm:$0xf]
        %v2665 = vld [vmem:[%s9 + $0x140] sm:$0xf]
        %v2666 = vld [vmem:[%s9 + $0x144] sm:$0xf]
        %v2667 = vld [vmem:[%s9 + $0x148] sm:$0xf]
        %v2668 = vld [vmem:[%s9 + $0x14c] sm:$0xf]
        %v2669 = vld [vmem:[%s9 + $0x150] sm:$0xf]
        %v2670 = vld [vmem:[%s9 + $0x154] sm:$0xf]
        %v2671 = vld [vmem:[%s9 + $0x158] sm:$0xf]
        %v2672 = vld [vmem:[%s9 + $0x15c] sm:$0xf]
        %v2673 = vld [vmem:[%s9 + $0x160] sm:$0xf]
        %v2674 = vld [vmem:[%s9 + $0x164] sm:$0xf]
        %v2675 = vld [vmem:[%s9 + $0x168] sm:$0xf]
        %v2676 = vld [vmem:[%s9 + $0x16c] sm:$0xf]
        %v2677 = vld [vmem:[%s9 + $0x170] sm:$0xf]
        %v2678 = vld [vmem:[%s9 + $0x174] sm:$0xf]
        %v2679 = vld [vmem:[%s9 + $0x178] sm:$0xf]
        %v2680 = vld [vmem:[%s9 + $0x17c] sm:$0xf]
        %v2681 = vld [vmem:[%s9 + $0x180] sm:$0xf]
        %v2682 = vld [vmem:[%s9 + $0x184] sm:$0xf]
        %v2683 = vld [vmem:[%s9 + $0x188] sm:$0xf]
        %v2684 = vld [vmem:[%s9 + $0x18c] sm:$0xf]
        %v2685 = vld [vmem:[%s9 + $0x190] sm:$0xf]
        %v2686 = vld [vmem:[%s9 + $0x194] sm:$0xf]
        %v2687 = vld [vmem:[%s9 + $0x198] sm:$0xf]
        %v2688 = vld [vmem:[%s9 + $0x19c] sm:$0xf]
        %v2689 = vld [vmem:[%s9 + $0x1a0] sm:$0xf]
        %v2690 = vld [vmem:[%s9 + $0x1a4] sm:$0xf]
        %v2691 = vld [vmem:[%s9 + $0x1a8] sm:$0xf]
        %v2692 = vld [vmem:[%s9 + $0x1ac] sm:$0xf]
        %v2709 = vrot.slane %v2555, 7
        %v2710 = vrot.slane %v2556, 7
        %v2711 = vsel %vm1183, %v2709, %v2710
        %v2712 = vrot.slane %v2558, 7
        %v2713 = vrot.slane %v2559, 7
        %v2714 = vsel %vm1183, %v2712, %v2713
        %v2715 = vrot.slane %v2561, 7
        %v2716 = vrot.slane %v2562, 7
        %v2717 = vsel %vm1183, %v2715, %v2716
        %v2718 = vrot.slane %v2564, 7
        %v2719 = vrot.slane %v2565, 7
        %v2720 = vsel %vm1183, %v2718, %v2719
        %v2721 = vrot.slane %v2567, 7
        %v2722 = vrot.slane %v2568, 7
        %v2723 = vsel %vm1183, %v2721, %v2722
        %v2724 = vrot.slane %v2570, 7
        %v2725 = vrot.slane %v2571, 7
        %v2726 = vsel %vm1183, %v2724, %v2725
        %v2727 = vrot.slane %v2573, 7
        %v2728 = vrot.slane %v2574, 7
        %v2729 = vsel %vm1183, %v2727, %v2728
        %v2730 = vrot.slane %v2576, 7
        %v2731 = vrot.slane %v2577, 7
        %v2732 = vsel %vm1183, %v2730, %v2731
        %v2741 = vpack.c.bf16 %v2714, %v2711
        %v2742 = vpack.c.bf16 %v2720, %v2717
        %v2743 = vpack.c.bf16 %v2726, %v2723
        %v2744 = vpack.c.bf16 %v2732, %v2729
        %v2745 = vpack.c.bf16 %v2559, %v2556
        %v2746 = vpack.c.bf16 %v2565, %v2562
        %v2747 = vpack.c.bf16 %v2571, %v2568
        %v2748 = vpack.c.bf16 %v2577, %v2574
        %v2761 = vunpack.c.l.b16 %v2597
        %v2762 = vunpack.c.l.b16 %v2598
        %v2763 = vunpack.c.l.b16 %v2599
        %v2764 = vunpack.c.l.b16 %v2600
        %v2765 = vunpack.c.l.b16 %v2601
        %v2766 = vunpack.c.l.b16 %v2602
        %v2767 = vunpack.c.l.b16 %v2603
        %v2768 = vunpack.c.l.b16 %v2604
        %v2769 = vunpack.c.l.b16 %v2605
        %v2770 = vunpack.c.l.b16 %v2606
        %v2771 = vunpack.c.l.b16 %v2607
        %v2772 = vunpack.c.l.b16 %v2608
        %v2773 = vpack.c.b16 %v2762, %v2761
        %v2774 = vpack.c.b16 %v2764, %v2763
        %v2775 = vpack.c.b16 %v2766, %v2765
        %v2776 = vpack.c.b16 %v2768, %v2767
        %v2777 = vpack.c.b16 %v2770, %v2769
        %v2778 = vpack.c.b16 %v2772, %v2771
        %v2786 = vsel %vm2353, %v2745, 0
        %v2789 = vsel %vm2353, %v2746, 0
        %v2792 = vsel %vm2353, %v2747, 0
        %v2795 = vsel %vm2353, %v2748, 0
        %2797 = vmatprep.subr.bf16.mxu0 0
        %2798 = vmatpush1.bf16.msra.mxu0 %v2773
        %2799 = vmatprep.subr.bf16.mxu0 0
        %2800 = vmatpush1.bf16.msra.mxu0 %v2774
        %2801 = vmatprep.subr.bf16.mxu0 0
        %2802 = vmatpush1.bf16.msra.mxu0 %v2775
        %2803 = vmatprep.subr.bf16.mxu0 0
        %2804 = vmatpush1.bf16.msra.mxu0 %v2776
        %2805 = vmatprep.subr.bf16.mxu0 0
        %2806 = vmatpush1.bf16.msra.mxu0 %v2777
        %2807 = vmatprep.subr.bf16.mxu0 0
        %2808 = vmatpush1.bf16.msra.mxu0 %v2778
        %2809 = vmatprep.subr.bf16.mxu0 0
        %2810 = vmatpush1.bf16.msra.mxu0 0
        %2811 = vmatprep.subr.bf16.mxu0 0
        %2812 = vmatpush1.bf16.msra.mxu0 0
        %2813 = vmatprep.subr.bf16.mxu0 0
        %2814 = vmatpush1.bf16.msra.mxu0 0
        %2815 = vmatprep.subr.bf16.mxu0 0
        %2816 = vmatpush1.bf16.msra.mxu0 0
        %2817 = vmatprep.subr.bf16.mxu0 0
        %2818 = vmatpush1.bf16.msra.mxu0 0
        %2819 = vmatprep.subr.bf16.mxu0 0
        %2820 = vmatpush1.bf16.msra.mxu0 0
        %2821 = vmatprep.subr.bf16.mxu0 0
        %2822 = vmatpush1.bf16.msra.mxu0 0
        %2823 = vmatprep.subr.bf16.mxu0 0
        %2824 = vmatpush1.bf16.msra.mxu0 0
        %2825 = vmatprep.subr.bf16.mxu0 0
        %2826 = vmatpush1.bf16.msra.mxu0 0
        %2827 = vmatprep.subr.bf16.mxu0 0
        %2828 = vmatpush1.bf16.msra.mxu0 0
        %2829 = vmatprep.mubr.bf16.mxu0 0
        %2830 = vmatmul.mubr.bf16.gmra.mrb[0].mxu0 %v2786
        %v2831 = vpop.f32.mrb[0].mxu0
        %v2832 = vadd.f32 0.0, %v2831
        %v2833 = vpop.f32.mrb[0].mxu0
        %v2834 = vpop.f32.mrb[0].mxu0
        %v2835 = vadd.f32 0.0, %v2834
        %v2836 = vpop.f32.mrb[0].mxu0
        %2837 = vmatprep.mubr.bf16.mxu0 0
        %2838 = vmatmul.mubr.bf16.gmra.mrb[0].mxu0 %v2789
        %v2839 = vpop.f32.mrb[0].mxu0
        %v2840 = vadd.f32 0.0, %v2839
        %v2841 = vpop.f32.mrb[0].mxu0
        %v2842 = vpop.f32.mrb[0].mxu0
        %v2843 = vadd.f32 0.0, %v2842
        %v2844 = vpop.f32.mrb[0].mxu0
        %2845 = vmatprep.mubr.bf16.mxu0 0
        %2846 = vmatmul.mubr.bf16.gmra.mrb[0].mxu0 %v2792
        %v2847 = vpop.f32.mrb[0].mxu0
        %v2848 = vadd.f32 0.0, %v2847
        %v2849 = vpop.f32.mrb[0].mxu0
        %v2850 = vpop.f32.mrb[0].mxu0
        %v2851 = vadd.f32 0.0, %v2850
        %v2852 = vpop.f32.mrb[0].mxu0
        %2853 = vmatprep.mubr.bf16.mxu0 0
        %2854 = vmatmul.mubr.bf16.gmra.mrb[0].mxu0 %v2795
        %v2855 = vpop.f32.mrb[0].mxu0
        %v2856 = vadd.f32 0.0, %v2855
        %v2857 = vpop.f32.mrb[0].mxu0
        %v2858 = vpop.f32.mrb[0].mxu0
        %v2859 = vadd.f32 0.0, %v2858
        %v2860 = vpop.f32.mrb[0].mxu0
        %2861 = vdwg.mxu0
        %v2874 = vunpack.c.l.b16 %v2585
        %v2875 = vunpack.c.l.b16 %v2586
        %v2876 = vunpack.c.l.b16 %v2587
        %v2877 = vunpack.c.l.b16 %v2588
        %v2878 = vunpack.c.l.b16 %v2589
        %v2879 = vunpack.c.l.b16 %v2590
        %v2880 = vunpack.c.l.b16 %v2591
        %v2881 = vunpack.c.l.b16 %v2592
        %v2882 = vunpack.c.l.b16 %v2593
        %v2883 = vunpack.c.l.b16 %v2594
        %v2884 = vunpack.c.l.b16 %v2595
        %v2885 = vunpack.c.l.b16 %v2596
        %v2886 = vpack.c.b16 %v2875, %v2874
        %v2887 = vpack.c.b16 %v2877, %v2876
        %v2888 = vpack.c.b16 %v2879, %v2878
        %v2889 = vpack.c.b16 %v2881, %v2880
        %v2890 = vpack.c.b16 %v2883, %v2882
        %v2891 = vpack.c.b16 %v2885, %v2884
        %v2899 = vsel %vm2353, %v2741, 0
        %v2902 = vsel %vm2353, %v2742, 0
        %v2905 = vsel %vm2353, %v2743, 0
        %v2908 = vsel %vm2353, %v2744, 0
        %2910 = vmatprep.subr.bf16.mxu0 0
        %2911 = vmatpush1.bf16.msra.mxu0 %v2886
        %2912 = vmatprep.subr.bf16.mxu0 0
        %2913 = vmatpush1.bf16.msra.mxu0 %v2887
        %2914 = vmatprep.subr.bf16.mxu0 0
        %2915 = vmatpush1.bf16.msra.mxu0 %v2888
        %2916 = vmatprep.subr.bf16.mxu0 0
        %2917 = vmatpush1.bf16.msra.mxu0 %v2889
        %2918 = vmatprep.subr.bf16.mxu0 0
        %2919 = vmatpush1.bf16.msra.mxu0 %v2890
        %2920 = vmatprep.subr.bf16.mxu0 0
        %2921 = vmatpush1.bf16.msra.mxu0 %v2891
        %2922 = vmatprep.subr.bf16.mxu0 0
        %2923 = vmatpush1.bf16.msra.mxu0 0
        %2924 = vmatprep.subr.bf16.mxu0 0
        %2925 = vmatpush1.bf16.msra.mxu0 0
        %2926 = vmatprep.subr.bf16.mxu0 0
        %2927 = vmatpush1.bf16.msra.mxu0 0
        %2928 = vmatprep.subr.bf16.mxu0 0
        %2929 = vmatpush1.bf16.msra.mxu0 0
        %2930 = vmatprep.subr.bf16.mxu0 0
        %2931 = vmatpush1.bf16.msra.mxu0 0
        %2932 = vmatprep.subr.bf16.mxu0 0
        %2933 = vmatpush1.bf16.msra.mxu0 0
        %2934 = vmatprep.subr.bf16.mxu0 0
        %2935 = vmatpush1.bf16.msra.mxu0 0
        %2936 = vmatprep.subr.bf16.mxu0 0
        %2937 = vmatpush1.bf16.msra.mxu0 0
        %2938 = vmatprep.subr.bf16.mxu0 0
        %2939 = vmatpush1.bf16.msra.mxu0 0
        %2940 = vmatprep.subr.bf16.mxu0 0
        %2941 = vmatpush1.bf16.msra.mxu0 0
        %2942 = vmatprep.mubr.bf16.mxu0 0
        %2943 = vmatmul.mubr.bf16.gmra.mrb[0].mxu0 %v2899
        %v2944 = vpop.f32.mrb[0].mxu0
        %v2945 = vadd.f32 %v2832, %v2944
        %v2946 = vpop.f32.mrb[0].mxu0
        %v2947 = vpop.f32.mrb[0].mxu0
        %v2948 = vadd.f32 %v2835, %v2947
        %v2949 = vpop.f32.mrb[0].mxu0
        %2950 = vmatprep.mubr.bf16.mxu0 0
        %2951 = vmatmul.mubr.bf16.gmra.mrb[0].mxu0 %v2902
        %v2952 = vpop.f32.mrb[0].mxu0
        %v2953 = vadd.f32 %v2840, %v2952
        %v2954 = vpop.f32.mrb[0].mxu0
        %v2955 = vpop.f32.mrb[0].mxu0
        %v2956 = vadd.f32 %v2843, %v2955
        %v2957 = vpop.f32.mrb[0].mxu0
        %2958 = vmatprep.mubr.bf16.mxu0 0
        %2959 = vmatmul.mubr.bf16.gmra.mrb[0].mxu0 %v2905
        %v2960 = vpop.f32.mrb[0].mxu0
        %v2961 = vadd.f32 %v2848, %v2960
        %v2962 = vpop.f32.mrb[0].mxu0
        %v2963 = vpop.f32.mrb[0].mxu0
        %v2964 = vadd.f32 %v2851, %v2963
        %v2965 = vpop.f32.mrb[0].mxu0
        %2966 = vmatprep.mubr.bf16.mxu0 0
        %2967 = vmatmul.mubr.bf16.gmra.mrb[0].mxu0 %v2908
        %v2968 = vpop.f32.mrb[0].mxu0
        %v2969 = vadd.f32 %v2856, %v2968
        %v2970 = vpop.f32.mrb[0].mxu0
        %v2971 = vpop.f32.mrb[0].mxu0
        %v2972 = vadd.f32 %v2859, %v2971
        %v2973 = vpop.f32.mrb[0].mxu0
        %2974 = vdwg.mxu0
        %v2983 = vrot.slane %v2556, 1
        %v2984 = vrot.slane %v2557, 1
        %v2985 = vsel %vm1434, %v2983, %v2984
        %v2986 = vrot.slane %v2559, 1
        %v2987 = vrot.slane %v2560, 1
        %v2988 = vsel %vm1434, %v2986, %v2987
        %v2989 = vrot.slane %v2562, 1
        %v2990 = vrot.slane %v2563, 1
        %v2991 = vsel %vm1434, %v2989, %v2990
        %v2992 = vrot.slane %v2565, 1
        %v2993 = vrot.slane %v2566, 1
        %v2994 = vsel %vm1434, %v2992, %v2993
        %v2995 = vrot.slane %v2568, 1
        %v2996 = vrot.slane %v2569, 1
        %v2997 = vsel %vm1434, %v2995, %v2996
        %v2998 = vrot.slane %v2571, 1
        %v2999 = vrot.slane %v2572, 1
        %v3000 = vsel %vm1434, %v2998, %v2999
        %v3001 = vrot.slane %v2574, 1
        %v3002 = vrot.slane %v2575, 1
        %v3003 = vsel %vm1434, %v3001, %v3002
        %v3004 = vrot.slane %v2577, 1
        %v3005 = vrot.slane %v2578, 1
        %v3006 = vsel %vm1434, %v3004, %v3005
        %v3015 = vpack.c.bf16 %v2988, %v2985
        %v3016 = vpack.c.bf16 %v2994, %v2991
        %v3017 = vpack.c.bf16 %v3000, %v2997
        %v3018 = vpack.c.bf16 %v3006, %v3003
        %v3031 = vunpack.c.l.b16 %v2609
        %v3032 = vunpack.c.l.b16 %v2610
        %v3033 = vunpack.c.l.b16 %v2611
        %v3034 = vunpack.c.l.b16 %v2612
        %v3035 = vunpack.c.l.b16 %v2613
        %v3036 = vunpack.c.l.b16 %v2614
        %v3037 = vunpack.c.l.b16 %v2615
        %v3038 = vunpack.c.l.b16 %v2616
        %v3039 = vunpack.c.l.b16 %v2617
        %v3040 = vunpack.c.l.b16 %v2618
        %v3041 = vunpack.c.l.b16 %v2619
        %v3042 = vunpack.c.l.b16 %v2620
        %v3043 = vpack.c.b16 %v3032, %v3031
        %v3044 = vpack.c.b16 %v3034, %v3033
        %v3045 = vpack.c.b16 %v3036, %v3035
        %v3046 = vpack.c.b16 %v3038, %v3037
        %v3047 = vpack.c.b16 %v3040, %v3039
        %v3048 = vpack.c.b16 %v3042, %v3041
        %v3056 = vsel %vm2353, %v3015, 0
        %v3059 = vsel %vm2353, %v3016, 0
        %v3062 = vsel %vm2353, %v3017, 0
        %v3065 = vsel %vm2353, %v3018, 0
        %3067 = vmatprep.subr.bf16.mxu0 0
        %3068 = vmatpush1.bf16.msra.mxu0 %v3043
        %3069 = vmatprep.subr.bf16.mxu0 0
        %3070 = vmatpush1.bf16.msra.mxu0 %v3044
        %3071 = vmatprep.subr.bf16.mxu0 0
        %3072 = vmatpush1.bf16.msra.mxu0 %v3045
        %3073 = vmatprep.subr.bf16.mxu0 0
        %3074 = vmatpush1.bf16.msra.mxu0 %v3046
        %3075 = vmatprep.subr.bf16.mxu0 0
        %3076 = vmatpush1.bf16.msra.mxu0 %v3047
        %3077 = vmatprep.subr.bf16.mxu0 0
        %3078 = vmatpush1.bf16.msra.mxu0 %v3048
        %3079 = vmatprep.subr.bf16.mxu0 0
        %3080 = vmatpush1.bf16.msra.mxu0 0
        %3081 = vmatprep.subr.bf16.mxu0 0
        %3082 = vmatpush1.bf16.msra.mxu0 0
        %3083 = vmatprep.subr.bf16.mxu0 0
        %3084 = vmatpush1.bf16.msra.mxu0 0
        %3085 = vmatprep.subr.bf16.mxu0 0
        %3086 = vmatpush1.bf16.msra.mxu0 0
        %3087 = vmatprep.subr.bf16.mxu0 0
        %3088 = vmatpush1.bf16.msra.mxu0 0
        %3089 = vmatprep.subr.bf16.mxu0 0
        %3090 = vmatpush1.bf16.msra.mxu0 0
        %3091 = vmatprep.subr.bf16.mxu0 0
        %3092 = vmatpush1.bf16.msra.mxu0 0
        %3093 = vmatprep.subr.bf16.mxu0 0
        %3094 = vmatpush1.bf16.msra.mxu0 0
        %3095 = vmatprep.subr.bf16.mxu0 0
        %3096 = vmatpush1.bf16.msra.mxu0 0
        %3097 = vmatprep.subr.bf16.mxu0 0
        %3098 = vmatpush1.bf16.msra.mxu0 0
        %3099 = vmatprep.mubr.bf16.mxu0 0
        %3100 = vmatmul.mubr.bf16.gmra.mrb[0].mxu0 %v3056
        %v3101 = vpop.f32.mrb[0].mxu0
        %v3102 = vadd.f32 0.0, %v3101
        %v3103 = vpop.f32.mrb[0].mxu0
        %v3104 = vpop.f32.mrb[0].mxu0
        %v3105 = vadd.f32 0.0, %v3104
        %v3106 = vpop.f32.mrb[0].mxu0
        %3107 = vmatprep.mubr.bf16.mxu0 0
        %3108 = vmatmul.mubr.bf16.gmra.mrb[0].mxu0 %v3059
        %v3109 = vpop.f32.mrb[0].mxu0
        %v3110 = vadd.f32 0.0, %v3109
        %v3111 = vpop.f32.mrb[0].mxu0
        %v3112 = vpop.f32.mrb[0].mxu0
        %v3113 = vadd.f32 0.0, %v3112
        %v3114 = vpop.f32.mrb[0].mxu0
        %3115 = vmatprep.mubr.bf16.mxu0 0
        %3116 = vmatmul.mubr.bf16.gmra.mrb[0].mxu0 %v3062
        %v3117 = vpop.f32.mrb[0].mxu0
        %v3118 = vadd.f32 0.0, %v3117
        %v3119 = vpop.f32.mrb[0].mxu0
        %v3120 = vpop.f32.mrb[0].mxu0
        %v3121 = vadd.f32 0.0, %v3120
        %v3122 = vpop.f32.mrb[0].mxu0
        %3123 = vmatprep.mubr.bf16.mxu0 0
        %3124 = vmatmul.mubr.bf16.gmra.mrb[0].mxu0 %v3065
        %v3125 = vpop.f32.mrb[0].mxu0
        %v3126 = vadd.f32 0.0, %v3125
        %v3127 = vpop.f32.mrb[0].mxu0
        %v3128 = vpop.f32.mrb[0].mxu0
        %v3129 = vadd.f32 0.0, %v3128
        %v3130 = vpop.f32.mrb[0].mxu0
        %3131 = vdwg.mxu0
        %v3132 = vadd.f32 %v2945, %v3102
        %v3133 = vadd.f32 %v2948, %v3105
        %v3134 = vadd.f32 %v2953, %v3110
        %v3135 = vadd.f32 %v2956, %v3113
        %v3136 = vadd.f32 %v2961, %v3118
        %v3137 = vadd.f32 %v2964, %v3121
        %v3138 = vadd.f32 %v2969, %v3126
        %v3139 = vadd.f32 %v2972, %v3129
        %v3142 = vrot.slane %v2579, 7
        %v3143 = vrot.slane %v2580, 7
        %v3144 = vsel %vm1183, %v3142, %v3143
        %v3146 = vpack.c.bf16 %v2717, %v2714
        %v3147 = vpack.c.bf16 %v2723, %v2720
        %v3148 = vpack.c.bf16 %v2729, %v2726
        %v3149 = vpack.c.bf16 %v3144, %v2732
        %v3162 = vunpack.c.l.b16 %v2621
        %v3163 = vunpack.c.l.b16 %v2622
        %v3164 = vunpack.c.l.b16 %v2623
        %v3165 = vunpack.c.l.b16 %v2624
        %v3166 = vunpack.c.l.b16 %v2625
        %v3167 = vunpack.c.l.b16 %v2626
        %v3168 = vunpack.c.l.b16 %v2627
        %v3169 = vunpack.c.l.b16 %v2628
        %v3170 = vunpack.c.l.b16 %v2629
        %v3171 = vunpack.c.l.b16 %v2630
        %v3172 = vunpack.c.l.b16 %v2631
        %v3173 = vunpack.c.l.b16 %v2632
        %v3174 = vpack.c.b16 %v3163, %v3162
        %v3175 = vpack.c.b16 %v3165, %v3164
        %v3176 = vpack.c.b16 %v3167, %v3166
        %v3177 = vpack.c.b16 %v3169, %v3168
        %v3178 = vpack.c.b16 %v3171, %v3170
        %v3179 = vpack.c.b16 %v3173, %v3172
        %v3187 = vsel %vm2353, %v3146, 0
        %v3190 = vsel %vm2353, %v3147, 0
        %v3193 = vsel %vm2353, %v3148, 0
        %v3196 = vsel %vm2353, %v3149, 0
        %3198 = vmatprep.subr.bf16.mxu0 0
        %3199 = vmatpush1.bf16.msra.mxu0 %v3174
        %3200 = vmatprep.subr.bf16.mxu0 0
        %3201 = vmatpush1.bf16.msra.mxu0 %v3175
        %3202 = vmatprep.subr.bf16.mxu0 0
        %3203 = vmatpush1.bf16.msra.mxu0 %v3176
        %3204 = vmatprep.subr.bf16.mxu0 0
        %3205 = vmatpush1.bf16.msra.mxu0 %v3177
        %3206 = vmatprep.subr.bf16.mxu0 0
        %3207 = vmatpush1.bf16.msra.mxu0 %v3178
        %3208 = vmatprep.subr.bf16.mxu0 0
        %3209 = vmatpush1.bf16.msra.mxu0 %v3179
        %3210 = vmatprep.subr.bf16.mxu0 0
        %3211 = vmatpush1.bf16.msra.mxu0 0
        %3212 = vmatprep.subr.bf16.mxu0 0
        %3213 = vmatpush1.bf16.msra.mxu0 0
        %3214 = vmatprep.subr.bf16.mxu0 0
        %3215 = vmatpush1.bf16.msra.mxu0 0
        %3216 = vmatprep.subr.bf16.mxu0 0
        %3217 = vmatpush1.bf16.msra.mxu0 0
        %3218 = vmatprep.subr.bf16.mxu0 0
        %3219 = vmatpush1.bf16.msra.mxu0 0
        %3220 = vmatprep.subr.bf16.mxu0 0
        %3221 = vmatpush1.bf16.msra.mxu0 0
        %3222 = vmatprep.subr.bf16.mxu0 0
        %3223 = vmatpush1.bf16.msra.mxu0 0
        %3224 = vmatprep.subr.bf16.mxu0 0
        %3225 = vmatpush1.bf16.msra.mxu0 0
        %3226 = vmatprep.subr.bf16.mxu0 0
        %3227 = vmatpush1.bf16.msra.mxu0 0
        %3228 = vmatprep.subr.bf16.mxu0 0
        %3229 = vmatpush1.bf16.msra.mxu0 0
        %3230 = vmatprep.mubr.bf16.mxu0 0
        %3231 = vmatmul.mubr.bf16.gmra.mrb[0].mxu0 %v3187
        %v3232 = vpop.f32.mrb[0].mxu0
        %v3233 = vadd.f32 0.0, %v3232
        %v3234 = vpop.f32.mrb[0].mxu0
        %v3235 = vpop.f32.mrb[0].mxu0
        %v3236 = vadd.f32 0.0, %v3235
        %v3237 = vpop.f32.mrb[0].mxu0
        %3238 = vmatprep.mubr.bf16.mxu0 0
        %3239 = vmatmul.mubr.bf16.gmra.mrb[0].mxu0 %v3190
        %v3240 = vpop.f32.mrb[0].mxu0
        %v3241 = vadd.f32 0.0, %v3240
        %v3242 = vpop.f32.mrb[0].mxu0
        %v3243 = vpop.f32.mrb[0].mxu0
        %v3244 = vadd.f32 0.0, %v3243
        %v3245 = vpop.f32.mrb[0].mxu0
        %3246 = vmatprep.mubr.bf16.mxu0 0
        %3247 = vmatmul.mubr.bf16.gmra.mrb[0].mxu0 %v3193
        %v3248 = vpop.f32.mrb[0].mxu0
        %v3249 = vadd.f32 0.0, %v3248
        %v3250 = vpop.f32.mrb[0].mxu0
        %v3251 = vpop.f32.mrb[0].mxu0
        %v3252 = vadd.f32 0.0, %v3251
        %v3253 = vpop.f32.mrb[0].mxu0
        %3254 = vmatprep.mubr.bf16.mxu0 0
        %3255 = vmatmul.mubr.bf16.gmra.mrb[0].mxu0 %v3196
        %v3256 = vpop.f32.mrb[0].mxu0
        %v3257 = vadd.f32 0.0, %v3256
        %v3258 = vpop.f32.mrb[0].mxu0
        %v3259 = vpop.f32.mrb[0].mxu0
        %v3260 = vadd.f32 0.0, %v3259
        %v3261 = vpop.f32.mrb[0].mxu0
        %3262 = vdwg.mxu0
        %v3263 = vadd.f32 %v3132, %v3233
        %v3264 = vadd.f32 %v3133, %v3236
        %v3265 = vadd.f32 %v3134, %v3241
        %v3266 = vadd.f32 %v3135, %v3244
        %v3267 = vadd.f32 %v3136, %v3249
        %v3268 = vadd.f32 %v3137, %v3252
        %v3269 = vadd.f32 %v3138, %v3257
        %v3270 = vadd.f32 %v3139, %v3260
        %v3271 = vpack.c.bf16 %v2562, %v2559
        %v3272 = vpack.c.bf16 %v2568, %v2565
        %v3273 = vpack.c.bf16 %v2574, %v2571
        %v3274 = vpack.c.bf16 %v2580, %v2577
        %v3287 = vunpack.c.l.b16 %v2633
        %v3288 = vunpack.c.l.b16 %v2634
        %v3289 = vunpack.c.l.b16 %v2635
        %v3290 = vunpack.c.l.b16 %v2636
        %v3291 = vunpack.c.l.b16 %v2637
        %v3292 = vunpack.c.l.b16 %v2638
        %v3293 = vunpack.c.l.b16 %v2639
        %v3294 = vunpack.c.l.b16 %v2640
        %v3295 = vunpack.c.l.b16 %v2641
        %v3296 = vunpack.c.l.b16 %v2642
        %v3297 = vunpack.c.l.b16 %v2643
        %v3298 = vunpack.c.l.b16 %v2644
        %v3299 = vpack.c.b16 %v3288, %v3287
        %v3300 = vpack.c.b16 %v3290, %v3289
        %v3301 = vpack.c.b16 %v3292, %v3291
        %v3302 = vpack.c.b16 %v3294, %v3293
        %v3303 = vpack.c.b16 %v3296, %v3295
        %v3304 = vpack.c.b16 %v3298, %v3297
        %v3312 = vsel %vm2353, %v3271, 0
        %v3315 = vsel %vm2353, %v3272, 0
        %v3318 = vsel %vm2353, %v3273, 0
        %v3321 = vsel %vm2353, %v3274, 0
        %3323 = vmatprep.subr.bf16.mxu0 0
        %3324 = vmatpush1.bf16.msra.mxu0 %v3299
        %3325 = vmatprep.subr.bf16.mxu0 0
        %3326 = vmatpush1.bf16.msra.mxu0 %v3300
        %3327 = vmatprep.subr.bf16.mxu0 0
        %3328 = vmatpush1.bf16.msra.mxu0 %v3301
        %3329 = vmatprep.subr.bf16.mxu0 0
        %3330 = vmatpush1.bf16.msra.mxu0 %v3302
        %3331 = vmatprep.subr.bf16.mxu0 0
        %3332 = vmatpush1.bf16.msra.mxu0 %v3303
        %3333 = vmatprep.subr.bf16.mxu0 0
        %3334 = vmatpush1.bf16.msra.mxu0 %v3304
        %3335 = vmatprep.subr.bf16.mxu0 0
        %3336 = vmatpush1.bf16.msra.mxu0 0
        %3337 = vmatprep.subr.bf16.mxu0 0
        %3338 = vmatpush1.bf16.msra.mxu0 0
        %3339 = vmatprep.subr.bf16.mxu0 0
        %3340 = vmatpush1.bf16.msra.mxu0 0
        %3341 = vmatprep.subr.bf16.mxu0 0
        %3342 = vmatpush1.bf16.msra.mxu0 0
        %3343 = vmatprep.subr.bf16.mxu0 0
        %3344 = vmatpush1.bf16.msra.mxu0 0
        %3345 = vmatprep.subr.bf16.mxu0 0
        %3346 = vmatpush1.bf16.msra.mxu0 0
        %3347 = vmatprep.subr.bf16.mxu0 0
        %3348 = vmatpush1.bf16.msra.mxu0 0
        %3349 = vmatprep.subr.bf16.mxu0 0
        %3350 = vmatpush1.bf16.msra.mxu0 0
        %3351 = vmatprep.subr.bf16.mxu0 0
        %3352 = vmatpush1.bf16.msra.mxu0 0
        %3353 = vmatprep.subr.bf16.mxu0 0
        %3354 = vmatpush1.bf16.msra.mxu0 0
        %3355 = vmatprep.mubr.bf16.mxu0 0
        %3356 = vmatmul.mubr.bf16.gmra.mrb[0].mxu0 %v3312
        %v3357 = vpop.f32.mrb[0].mxu0
        %v3358 = vadd.f32 0.0, %v3357
        %v3359 = vpop.f32.mrb[0].mxu0
        %v3360 = vpop.f32.mrb[0].mxu0
        %v3361 = vadd.f32 0.0, %v3360
        %v3362 = vpop.f32.mrb[0].mxu0
        %3363 = vmatprep.mubr.bf16.mxu0 0
        %3364 = vmatmul.mubr.bf16.gmra.mrb[0].mxu0 %v3315
        %v3365 = vpop.f32.mrb[0].mxu0
        %v3366 = vadd.f32 0.0, %v3365
        %v3367 = vpop.f32.mrb[0].mxu0
        %v3368 = vpop.f32.mrb[0].mxu0
        %v3369 = vadd.f32 0.0, %v3368
        %v3370 = vpop.f32.mrb[0].mxu0
        %3371 = vmatprep.mubr.bf16.mxu0 0
        %3372 = vmatmul.mubr.bf16.gmra.mrb[0].mxu0 %v3318
        %v3373 = vpop.f32.mrb[0].mxu0
        %v3374 = vadd.f32 0.0, %v3373
        %v3375 = vpop.f32.mrb[0].mxu0
        %v3376 = vpop.f32.mrb[0].mxu0
        %v3377 = vadd.f32 0.0, %v3376
        %v3378 = vpop.f32.mrb[0].mxu0
        %3379 = vmatprep.mubr.bf16.mxu0 0
        %3380 = vmatmul.mubr.bf16.gmra.mrb[0].mxu0 %v3321
        %v3381 = vpop.f32.mrb[0].mxu0
        %v3382 = vadd.f32 0.0, %v3381
        %v3383 = vpop.f32.mrb[0].mxu0
        %v3384 = vpop.f32.mrb[0].mxu0
        %v3385 = vadd.f32 0.0, %v3384
        %v3386 = vpop.f32.mrb[0].mxu0
        %3387 = vdwg.mxu0
        %v3388 = vadd.f32 %v3263, %v3358
        %v3389 = vadd.f32 %v3264, %v3361
        %v3390 = vadd.f32 %v3265, %v3366
        %v3391 = vadd.f32 %v3266, %v3369
        %v3392 = vadd.f32 %v3267, %v3374
        %v3393 = vadd.f32 %v3268, %v3377
        %v3394 = vadd.f32 %v3269, %v3382
        %v3395 = vadd.f32 %v3270, %v3385
        %v3397 = vrot.slane %v2580, 1
        %v3398 = vrot.slane %v2581, 1
        %v3399 = vsel %vm1434, %v3397, %v3398
        %v3401 = vpack.c.bf16 %v2991, %v2988
        %v3402 = vpack.c.bf16 %v2997, %v2994
        %v3403 = vpack.c.bf16 %v3003, %v3000
        %v3404 = vpack.c.bf16 %v3399, %v3006
        %v3417 = vunpack.c.l.b16 %v2645
        %v3418 = vunpack.c.l.b16 %v2646
        %v3419 = vunpack.c.l.b16 %v2647
        %v3420 = vunpack.c.l.b16 %v2648
        %v3421 = vunpack.c.l.b16 %v2649
        %v3422 = vunpack.c.l.b16 %v2650
        %v3423 = vunpack.c.l.b16 %v2651
        %v3424 = vunpack.c.l.b16 %v2652
        %v3425 = vunpack.c.l.b16 %v2653
        %v3426 = vunpack.c.l.b16 %v2654
        %v3427 = vunpack.c.l.b16 %v2655
        %v3428 = vunpack.c.l.b16 %v2656
        %v3429 = vpack.c.b16 %v3418, %v3417
        %v3430 = vpack.c.b16 %v3420, %v3419
        %v3431 = vpack.c.b16 %v3422, %v3421
        %v3432 = vpack.c.b16 %v3424, %v3423
        %v3433 = vpack.c.b16 %v3426, %v3425
        %v3434 = vpack.c.b16 %v3428, %v3427
        %v3442 = vsel %vm2353, %v3401, 0
        %v3445 = vsel %vm2353, %v3402, 0
        %v3448 = vsel %vm2353, %v3403, 0
        %v3451 = vsel %vm2353, %v3404, 0
        %3453 = vmatprep.subr.bf16.mxu0 0
        %3454 = vmatpush1.bf16.msra.mxu0 %v3429
        %3455 = vmatprep.subr.bf16.mxu0 0
        %3456 = vmatpush1.bf16.msra.mxu0 %v3430
        %3457 = vmatprep.subr.bf16.mxu0 0
        %3458 = vmatpush1.bf16.msra.mxu0 %v3431
        %3459 = vmatprep.subr.bf16.mxu0 0
        %3460 = vmatpush1.bf16.msra.mxu0 %v3432
        %3461 = vmatprep.subr.bf16.mxu0 0
        %3462 = vmatpush1.bf16.msra.mxu0 %v3433
        %3463 = vmatprep.subr.bf16.mxu0 0
        %3464 = vmatpush1.bf16.msra.mxu0 %v3434
        %3465 = vmatprep.subr.bf16.mxu0 0
        %3466 = vmatpush1.bf16.msra.mxu0 0
        %3467 = vmatprep.subr.bf16.mxu0 0
        %3468 = vmatpush1.bf16.msra.mxu0 0
        %3469 = vmatprep.subr.bf16.mxu0 0
        %3470 = vmatpush1.bf16.msra.mxu0 0
        %3471 = vmatprep.subr.bf16.mxu0 0
        %3472 = vmatpush1.bf16.msra.mxu0 0
        %3473 = vmatprep.subr.bf16.mxu0 0
        %3474 = vmatpush1.bf16.msra.mxu0 0
        %3475 = vmatprep.subr.bf16.mxu0 0
        %3476 = vmatpush1.bf16.msra.mxu0 0
        %3477 = vmatprep.subr.bf16.mxu0 0
        %3478 = vmatpush1.bf16.msra.mxu0 0
        %3479 = vmatprep.subr.bf16.mxu0 0
        %3480 = vmatpush1.bf16.msra.mxu0 0
        %3481 = vmatprep.subr.bf16.mxu0 0
        %3482 = vmatpush1.bf16.msra.mxu0 0
        %3483 = vmatprep.subr.bf16.mxu0 0
        %3484 = vmatpush1.bf16.msra.mxu0 0
        %3485 = vmatprep.mubr.bf16.mxu0 0
        %3486 = vmatmul.mubr.bf16.gmra.mrb[0].mxu0 %v3442
        %v3487 = vpop.f32.mrb[0].mxu0
        %v3488 = vadd.f32 0.0, %v3487
        %v3489 = vpop.f32.mrb[0].mxu0
        %v3490 = vpop.f32.mrb[0].mxu0
        %v3491 = vadd.f32 0.0, %v3490
        %v3492 = vpop.f32.mrb[0].mxu0
        %3493 = vmatprep.mubr.bf16.mxu0 0
        %3494 = vmatmul.mubr.bf16.gmra.mrb[0].mxu0 %v3445
        %v3495 = vpop.f32.mrb[0].mxu0
        %v3496 = vadd.f32 0.0, %v3495
        %v3497 = vpop.f32.mrb[0].mxu0
        %v3498 = vpop.f32.mrb[0].mxu0
        %v3499 = vadd.f32 0.0, %v3498
        %v3500 = vpop.f32.mrb[0].mxu0
        %3501 = vmatprep.mubr.bf16.mxu0 0
        %3502 = vmatmul.mubr.bf16.gmra.mrb[0].mxu0 %v3448
        %v3503 = vpop.f32.mrb[0].mxu0
        %v3504 = vadd.f32 0.0, %v3503
        %v3505 = vpop.f32.mrb[0].mxu0
        %v3506 = vpop.f32.mrb[0].mxu0
        %v3507 = vadd.f32 0.0, %v3506
        %v3508 = vpop.f32.mrb[0].mxu0
        %3509 = vmatprep.mubr.bf16.mxu0 0
        %3510 = vmatmul.mubr.bf16.gmra.mrb[0].mxu0 %v3451
        %v3511 = vpop.f32.mrb[0].mxu0
        %v3512 = vadd.f32 0.0, %v3511
        %v3513 = vpop.f32.mrb[0].mxu0
        %v3514 = vpop.f32.mrb[0].mxu0
        %v3515 = vadd.f32 0.0, %v3514
        %v3516 = vpop.f32.mrb[0].mxu0
        %3517 = vdwg.mxu0
        %v3518 = vadd.f32 %v3388, %v3488
        %v3519 = vadd.f32 %v3389, %v3491
        %v3520 = vadd.f32 %v3390, %v3496
        %v3521 = vadd.f32 %v3391, %v3499
        %v3522 = vadd.f32 %v3392, %v3504
        %v3523 = vadd.f32 %v3393, %v3507
        %v3524 = vadd.f32 %v3394, %v3512
        %v3525 = vadd.f32 %v3395, %v3515
        %v3528 = vrot.slane %v2582, 7
        %v3529 = vrot.slane %v2583, 7
        %v3530 = vsel %vm1183, %v3528, %v3529
        %v3532 = vpack.c.bf16 %v3530, %v3144
        %v3545 = vunpack.c.l.b16 %v2657
        %v3546 = vunpack.c.l.b16 %v2658
        %v3547 = vunpack.c.l.b16 %v2659
        %v3548 = vunpack.c.l.b16 %v2660
        %v3549 = vunpack.c.l.b16 %v2661
        %v3550 = vunpack.c.l.b16 %v2662
        %v3551 = vunpack.c.l.b16 %v2663
        %v3552 = vunpack.c.l.b16 %v2664
        %v3553 = vunpack.c.l.b16 %v2665
        %v3554 = vunpack.c.l.b16 %v2666
        %v3555 = vunpack.c.l.b16 %v2667
        %v3556 = vunpack.c.l.b16 %v2668
        %v3557 = vpack.c.b16 %v3546, %v3545
        %v3558 = vpack.c.b16 %v3548, %v3547
        %v3559 = vpack.c.b16 %v3550, %v3549
        %v3560 = vpack.c.b16 %v3552, %v3551
        %v3561 = vpack.c.b16 %v3554, %v3553
        %v3562 = vpack.c.b16 %v3556, %v3555
        %v3570 = vsel %vm2353, %v3532, 0
        %3572 = vmatprep.subr.bf16.mxu0 0
        %3573 = vmatpush1.bf16.msra.mxu0 %v3557
        %3574 = vmatprep.subr.bf16.mxu0 0
        %3575 = vmatpush1.bf16.msra.mxu0 %v3558
        %3576 = vmatprep.subr.bf16.mxu0 0
        %3577 = vmatpush1.bf16.msra.mxu0 %v3559
        %3578 = vmatprep.subr.bf16.mxu0 0
        %3579 = vmatpush1.bf16.msra.mxu0 %v3560
        %3580 = vmatprep.subr.bf16.mxu0 0
        %3581 = vmatpush1.bf16.msra.mxu0 %v3561
        %3582 = vmatprep.subr.bf16.mxu0 0
        %3583 = vmatpush1.bf16.msra.mxu0 %v3562
        %3584 = vmatprep.subr.bf16.mxu0 0
        %3585 = vmatpush1.bf16.msra.mxu0 0
        %3586 = vmatprep.subr.bf16.mxu0 0
        %3587 = vmatpush1.bf16.msra.mxu0 0
        %3588 = vmatprep.subr.bf16.mxu0 0
        %3589 = vmatpush1.bf16.msra.mxu0 0
        %3590 = vmatprep.subr.bf16.mxu0 0
        %3591 = vmatpush1.bf16.msra.mxu0 0
        %3592 = vmatprep.subr.bf16.mxu0 0
        %3593 = vmatpush1.bf16.msra.mxu0 0
        %3594 = vmatprep.subr.bf16.mxu0 0
        %3595 = vmatpush1.bf16.msra.mxu0 0
        %3596 = vmatprep.subr.bf16.mxu0 0
        %3597 = vmatpush1.bf16.msra.mxu0 0
        %3598 = vmatprep.subr.bf16.mxu0 0
        %3599 = vmatpush1.bf16.msra.mxu0 0
        %3600 = vmatprep.subr.bf16.mxu0 0
        %3601 = vmatpush1.bf16.msra.mxu0 0
        %3602 = vmatprep.subr.bf16.mxu0 0
        %3603 = vmatpush1.bf16.msra.mxu0 0
        %3604 = vmatprep.mubr.bf16.mxu0 0
        %3605 = vmatmul.mubr.bf16.gmra.mrb[0].mxu0 %v2902
        %v3606 = vpop.f32.mrb[0].mxu0
        %v3607 = vadd.f32 0.0, %v3606
        %v3608 = vpop.f32.mrb[0].mxu0
        %v3609 = vpop.f32.mrb[0].mxu0
        %v3610 = vadd.f32 0.0, %v3609
        %v3611 = vpop.f32.mrb[0].mxu0
        %3612 = vmatprep.mubr.bf16.mxu0 0
        %3613 = vmatmul.mubr.bf16.gmra.mrb[0].mxu0 %v2905
        %v3614 = vpop.f32.mrb[0].mxu0
        %v3615 = vadd.f32 0.0, %v3614
        %v3616 = vpop.f32.mrb[0].mxu0
        %v3617 = vpop.f32.mrb[0].mxu0
        %v3618 = vadd.f32 0.0, %v3617
        %v3619 = vpop.f32.mrb[0].mxu0
        %3620 = vmatprep.mubr.bf16.mxu0 0
        %3621 = vmatmul.mubr.bf16.gmra.mrb[0].mxu0 %v2908
        %v3622 = vpop.f32.mrb[0].mxu0
        %v3623 = vadd.f32 0.0, %v3622
        %v3624 = vpop.f32.mrb[0].mxu0
        %v3625 = vpop.f32.mrb[0].mxu0
        %v3626 = vadd.f32 0.0, %v3625
        %v3627 = vpop.f32.mrb[0].mxu0
        %3628 = vmatprep.mubr.bf16.mxu0 0
        %3629 = vmatmul.mubr.bf16.gmra.mrb[0].mxu0 %v3570
        %v3630 = vpop.f32.mrb[0].mxu0
        %v3631 = vadd.f32 0.0, %v3630
        %v3632 = vpop.f32.mrb[0].mxu0
        %v3633 = vpop.f32.mrb[0].mxu0
        %v3634 = vadd.f32 0.0, %v3633
        %v3635 = vpop.f32.mrb[0].mxu0
        %3636 = vdwg.mxu0
        %v3637 = vadd.f32 %v3518, %v3607
        %v3638 = vadd.f32 %v3519, %v3610
        %v3639 = vadd.f32 %v3520, %v3615
        %v3640 = vadd.f32 %v3521, %v3618
        %v3641 = vadd.f32 %v3522, %v3623
        %v3642 = vadd.f32 %v3523, %v3626
        %v3643 = vadd.f32 %v3524, %v3631
        %v3644 = vadd.f32 %v3525, %v3634
        %v3645 = vpack.c.bf16 %v2583, %v2580
        %v3658 = vunpack.c.l.b16 %v2669
        %v3659 = vunpack.c.l.b16 %v2670
        %v3660 = vunpack.c.l.b16 %v2671
        %v3661 = vunpack.c.l.b16 %v2672
        %v3662 = vunpack.c.l.b16 %v2673
        %v3663 = vunpack.c.l.b16 %v2674
        %v3664 = vunpack.c.l.b16 %v2675
        %v3665 = vunpack.c.l.b16 %v2676
        %v3666 = vunpack.c.l.b16 %v2677
        %v3667 = vunpack.c.l.b16 %v2678
        %v3668 = vunpack.c.l.b16 %v2679
        %v3669 = vunpack.c.l.b16 %v2680
        %v3670 = vpack.c.b16 %v3659, %v3658
        %v3671 = vpack.c.b16 %v3661, %v3660
        %v3672 = vpack.c.b16 %v3663, %v3662
        %v3673 = vpack.c.b16 %v3665, %v3664
        %v3674 = vpack.c.b16 %v3667, %v3666
        %v3675 = vpack.c.b16 %v3669, %v3668
        %v3683 = vsel %vm2353, %v3645, 0
        %3685 = vmatprep.subr.bf16.mxu0 0
        %3686 = vmatpush1.bf16.msra.mxu0 %v3670
        %3687 = vmatprep.subr.bf16.mxu0 0
        %3688 = vmatpush1.bf16.msra.mxu0 %v3671
        %3689 = vmatprep.subr.bf16.mxu0 0
        %3690 = vmatpush1.bf16.msra.mxu0 %v3672
        %3691 = vmatprep.subr.bf16.mxu0 0
        %3692 = vmatpush1.bf16.msra.mxu0 %v3673
        %3693 = vmatprep.subr.bf16.mxu0 0
        %3694 = vmatpush1.bf16.msra.mxu0 %v3674
        %3695 = vmatprep.subr.bf16.mxu0 0
        %3696 = vmatpush1.bf16.msra.mxu0 %v3675
        %3697 = vmatprep.subr.bf16.mxu0 0
        %3698 = vmatpush1.bf16.msra.mxu0 0
        %3699 = vmatprep.subr.bf16.mxu0 0
        %3700 = vmatpush1.bf16.msra.mxu0 0
        %3701 = vmatprep.subr.bf16.mxu0 0
        %3702 = vmatpush1.bf16.msra.mxu0 0
        %3703 = vmatprep.subr.bf16.mxu0 0
        %3704 = vmatpush1.bf16.msra.mxu0 0
        %3705 = vmatprep.subr.bf16.mxu0 0
        %3706 = vmatpush1.bf16.msra.mxu0 0
        %3707 = vmatprep.subr.bf16.mxu0 0
        %3708 = vmatpush1.bf16.msra.mxu0 0
        %3709 = vmatprep.subr.bf16.mxu0 0
        %3710 = vmatpush1.bf16.msra.mxu0 0
        %3711 = vmatprep.subr.bf16.mxu0 0
        %3712 = vmatpush1.bf16.msra.mxu0 0
        %3713 = vmatprep.subr.bf16.mxu0 0
        %3714 = vmatpush1.bf16.msra.mxu0 0
        %3715 = vmatprep.subr.bf16.mxu0 0
        %3716 = vmatpush1.bf16.msra.mxu0 0
        %3717 = vmatprep.mubr.bf16.mxu0 0
        %3718 = vmatmul.mubr.bf16.gmra.mrb[0].mxu0 %v2789
        %v3719 = vpop.f32.mrb[0].mxu0
        %v3720 = vadd.f32 0.0, %v3719
        %v3721 = vpop.f32.mrb[0].mxu0
        %v3722 = vpop.f32.mrb[0].mxu0
        %v3723 = vadd.f32 0.0, %v3722
        %v3724 = vpop.f32.mrb[0].mxu0
        %3725 = vmatprep.mubr.bf16.mxu0 0
        %3726 = vmatmul.mubr.bf16.gmra.mrb[0].mxu0 %v2792
        %v3727 = vpop.f32.mrb[0].mxu0
        %v3728 = vadd.f32 0.0, %v3727
        %v3729 = vpop.f32.mrb[0].mxu0
        %v3730 = vpop.f32.mrb[0].mxu0
        %v3731 = vadd.f32 0.0, %v3730
        %v3732 = vpop.f32.mrb[0].mxu0
        %3733 = vmatprep.mubr.bf16.mxu0 0
        %3734 = vmatmul.mubr.bf16.gmra.mrb[0].mxu0 %v2795
        %v3735 = vpop.f32.mrb[0].mxu0
        %v3736 = vadd.f32 0.0, %v3735
        %v3737 = vpop.f32.mrb[0].mxu0
        %v3738 = vpop.f32.mrb[0].mxu0
        %v3739 = vadd.f32 0.0, %v3738
        %v3740 = vpop.f32.mrb[0].mxu0
        %3741 = vmatprep.mubr.bf16.mxu0 0
        %3742 = vmatmul.mubr.bf16.gmra.mrb[0].mxu0 %v3683
        %v3743 = vpop.f32.mrb[0].mxu0
        %v3744 = vadd.f32 0.0, %v3743
        %v3745 = vpop.f32.mrb[0].mxu0
        %v3746 = vpop.f32.mrb[0].mxu0
        %v3747 = vadd.f32 0.0, %v3746
        %v3748 = vpop.f32.mrb[0].mxu0
        %3749 = vdwg.mxu0
        %v3750 = vadd.f32 %v3637, %v3720
        %v3751 = vadd.f32 %v3638, %v3723
        %v3752 = vadd.f32 %v3639, %v3728
        %v3753 = vadd.f32 %v3640, %v3731
        %v3754 = vadd.f32 %v3641, %v3736
        %v3755 = vadd.f32 %v3642, %v3739
        %v3756 = vadd.f32 %v3643, %v3744
        %v3757 = vadd.f32 %v3644, %v3747
        %v3759 = vrot.slane %v2583, 1
        %v3760 = vrot.slane %v2584, 1
        %v3761 = vsel %vm1434, %v3759, %v3760
        %v3763 = vpack.c.bf16 %v3761, %v3399
        %v3776 = vunpack.c.l.b16 %v2681
        %v3777 = vunpack.c.l.b16 %v2682
        %v3778 = vunpack.c.l.b16 %v2683
        %v3779 = vunpack.c.l.b16 %v2684
        %v3780 = vunpack.c.l.b16 %v2685
        %v3781 = vunpack.c.l.b16 %v2686
        %v3782 = vunpack.c.l.b16 %v2687
        %v3783 = vunpack.c.l.b16 %v2688
        %v3784 = vunpack.c.l.b16 %v2689
        %v3785 = vunpack.c.l.b16 %v2690
        %v3786 = vunpack.c.l.b16 %v2691
        %v3787 = vunpack.c.l.b16 %v2692
        %v3788 = vpack.c.b16 %v3777, %v3776
        %v3789 = vpack.c.b16 %v3779, %v3778
        %v3790 = vpack.c.b16 %v3781, %v3780
        %v3791 = vpack.c.b16 %v3783, %v3782
        %v3792 = vpack.c.b16 %v3785, %v3784
        %v3793 = vpack.c.b16 %v3787, %v3786
        %v3801 = vsel %vm2353, %v3763, 0
        %3803 = vmatprep.subr.bf16.mxu0 0
        %3804 = vmatpush1.bf16.msra.mxu0 %v3788
        %3805 = vmatprep.subr.bf16.mxu0 0
        %3806 = vmatpush1.bf16.msra.mxu0 %v3789
        %3807 = vmatprep.subr.bf16.mxu0 0
        %3808 = vmatpush1.bf16.msra.mxu0 %v3790
        %3809 = vmatprep.subr.bf16.mxu0 0
        %3810 = vmatpush1.bf16.msra.mxu0 %v3791
        %3811 = vmatprep.subr.bf16.mxu0 0
        %3812 = vmatpush1.bf16.msra.mxu0 %v3792
        %3813 = vmatprep.subr.bf16.mxu0 0
        %3814 = vmatpush1.bf16.msra.mxu0 %v3793
        %3815 = vmatprep.subr.bf16.mxu0 0
        %3816 = vmatpush1.bf16.msra.mxu0 0
        %3817 = vmatprep.subr.bf16.mxu0 0
        %3818 = vmatpush1.bf16.msra.mxu0 0
        %3819 = vmatprep.subr.bf16.mxu0 0
        %3820 = vmatpush1.bf16.msra.mxu0 0
        %3821 = vmatprep.subr.bf16.mxu0 0
        %3822 = vmatpush1.bf16.msra.mxu0 0
        %3823 = vmatprep.subr.bf16.mxu0 0
        %3824 = vmatpush1.bf16.msra.mxu0 0
        %3825 = vmatprep.subr.bf16.mxu0 0
        %3826 = vmatpush1.bf16.msra.mxu0 0
        %3827 = vmatprep.subr.bf16.mxu0 0
        %3828 = vmatpush1.bf16.msra.mxu0 0
        %3829 = vmatprep.subr.bf16.mxu0 0
        %3830 = vmatpush1.bf16.msra.mxu0 0
        %3831 = vmatprep.subr.bf16.mxu0 0
        %3832 = vmatpush1.bf16.msra.mxu0 0
        %3833 = vmatprep.subr.bf16.mxu0 0
        %3834 = vmatpush1.bf16.msra.mxu0 0
        %3835 = vmatprep.mubr.bf16.mxu0 0
        %3836 = vmatmul.mubr.bf16.gmra.mrb[0].mxu0 %v3059
        %v3837 = vpop.f32.mrb[0].mxu0
        %v3838 = vadd.f32 0.0, %v3837
        %v3839 = vpop.f32.mrb[0].mxu0
        %v3840 = vpop.f32.mrb[0].mxu0
        %v3841 = vadd.f32 0.0, %v3840
        %v3842 = vpop.f32.mrb[0].mxu0
        %3843 = vmatprep.mubr.bf16.mxu0 0
        %3844 = vmatmul.mubr.bf16.gmra.mrb[0].mxu0 %v3062
        %v3845 = vpop.f32.mrb[0].mxu0
        %v3846 = vadd.f32 0.0, %v3845
        %v3847 = vpop.f32.mrb[0].mxu0
        %v3848 = vpop.f32.mrb[0].mxu0
        %v3849 = vadd.f32 0.0, %v3848
        %v3850 = vpop.f32.mrb[0].mxu0
        %3851 = vmatprep.mubr.bf16.mxu0 0
        %3852 = vmatmul.mubr.bf16.gmra.mrb[0].mxu0 %v3065
        %v3853 = vpop.f32.mrb[0].mxu0
        %v3854 = vadd.f32 0.0, %v3853
        %v3855 = vpop.f32.mrb[0].mxu0
        %v3856 = vpop.f32.mrb[0].mxu0
        %v3857 = vadd.f32 0.0, %v3856
        %v3858 = vpop.f32.mrb[0].mxu0
        %3859 = vmatprep.mubr.bf16.mxu0 0
        %3860 = vmatmul.mubr.bf16.gmra.mrb[0].mxu0 %v3801
        %v3861 = vpop.f32.mrb[0].mxu0
        %v3862 = vadd.f32 0.0, %v3861
        %v3863 = vpop.f32.mrb[0].mxu0
        %v3864 = vpop.f32.mrb[0].mxu0
        %v3865 = vadd.f32 0.0, %v3864
        %v3866 = vpop.f32.mrb[0].mxu0
        %3867 = vdwg.mxu0
        %v3868 = vadd.f32 %v3750, %v3838
        %v3869 = vadd.f32 %v3751, %v3841
        %v3870 = vadd.f32 %v3752, %v3846
        %v3871 = vadd.f32 %v3753, %v3849
        %v3872 = vadd.f32 %v3754, %v3854
        %v3873 = vadd.f32 %v3755, %v3857
        %v3874 = vadd.f32 %v3756, %v3862
        %v3875 = vadd.f32 %v3757, %v3865
        %v3876 = vld [vmem:[%s11] sm:$0x1]
        %v3878 = vlaneseq
        %v3879 = vshrl.u32 %v3878, 7
        %v3880 = vsub.s32 0, %v3879
        %v3881 = vrot.slane %v3876, %v3880
        %v3883 = vmul.f32 %v3868, %v3881
        %v3884 = vmul.f32 %v3869, %v3881
        %v3885 = vmul.f32 %v3870, %v3881
        %v3886 = vmul.f32 %v3871, %v3881
        %v3887 = vmul.f32 %v3872, %v3881
        %v3888 = vmul.f32 %v3873, %v3881
        %v3889 = vmul.f32 %v3874, %v3881
        %v3890 = vmul.f32 %v3875, %v3881
        %v3891 = vld [vmem:[%s13] sm:$0x1]
        %v3893 = vlaneseq
        %v3894 = vshrl.u32 %v3893, 7
        %v3895 = vsub.s32 0, %v3894
        %v3896 = vrot.slane %v3891, %v3895
        %v3898 = vadd.f32 %v3883, %v3896
        %v3899 = vadd.f32 %v3884, %v3896
        %v3900 = vadd.f32 %v3885, %v3896
        %v3901 = vadd.f32 %v3886, %v3896
        %v3902 = vadd.f32 %v3887, %v3896
        %v3903 = vadd.f32 %v3888, %v3896
        %v3904 = vadd.f32 %v3889, %v3896
        %v3905 = vadd.f32 %v3890, %v3896
        %v3906 = vmax.f32 %v3898, 0.0
        %v3907 = vmax.f32 %v3899, 0.0
        %v3908 = vmax.f32 %v3900, 0.0
        %v3909 = vmax.f32 %v3901, 0.0
        %v3910 = vmax.f32 %v3902, 0.0
        %v3911 = vmax.f32 %v3903, 0.0
        %v3912 = vmax.f32 %v3904, 0.0
        %v3913 = vmax.f32 %v3905, 0.0
        %3922 = vrot.lane.b32.xlu0 %v3906, 96
        %v3923 = vpop.permute.xlu0 %3922
        %3924 = vrot.lane.b32.xlu0 %v3907, 96
        %v3925 = vpop.permute.xlu0 %3924
        %3926 = vrot.lane.b32.xlu0 %v3908, 96
        %v3927 = vpop.permute.xlu0 %3926
        %3928 = vrot.lane.b32.xlu0 %v3909, 96
        %v3929 = vpop.permute.xlu0 %3928
        %3930 = vrot.lane.b32.xlu0 %v3910, 96
        %v3931 = vpop.permute.xlu0 %3930
        %3932 = vrot.lane.b32.xlu0 %v3911, 96
        %v3933 = vpop.permute.xlu0 %3932
        %3934 = vrot.lane.b32.xlu0 %v3912, 96
        %v3935 = vpop.permute.xlu0 %3934
        %3936 = vrot.lane.b32.xlu0 %v3913, 96
        %v3937 = vpop.permute.xlu0 %3936
        %vm3946 = vcmask 1048320
        %3947 = vst.msk [vmem:[%s1056 + $0x10] sm:$0xff] %vm3946, %v3923
        %3948 = vst.msk [vmem:[%s1056 + $0x40] sm:$0xff] %vm3946, %v3925
        %3949 = vst.msk [vmem:[%s1056 + $0x70] sm:$0xff] %vm3946, %v3927
        %3950 = vst.msk [vmem:[%s1056 + $0xa0] sm:$0xff] %vm3946, %v3929
        %3951 = vst.msk [vmem:[%s1056 + $0xd0] sm:$0xff] %vm3946, %v3931
        %3952 = vst.msk [vmem:[%s1056 + $0x100] sm:$0xff] %vm3946, %v3933
        %3953 = vst.msk [vmem:[%s1056 + $0x130] sm:$0xff] %vm3946, %v3935
        %3954 = vst.msk [vmem:[%s1056 + $0x160] sm:$0xff] %vm3946, %v3937
        %v3955 = vld [vmem:[#allocation2] sm:$0xff]
        %v3956 = vld [vmem:[#allocation2 + $0x10] sm:$0xff]
        %v3957 = vld [vmem:[#allocation2 + $0x20] sm:$0x1]
        %v3958 = vld [vmem:[#allocation2 + $0x30] sm:$0xff]
        %v3959 = vld [vmem:[#allocation2 + $0x40] sm:$0xff]
        %v3960 = vld [vmem:[#allocation2 + $0x50] sm:$0x1]
        %v3961 = vld [vmem:[#allocation2 + $0x60] sm:$0xff]
        %v3962 = vld [vmem:[#allocation2 + $0x70] sm:$0xff]
        %v3963 = vld [vmem:[#allocation2 + $0x80] sm:$0x1]
        %v3964 = vld [vmem:[#allocation2 + $0x90] sm:$0xff]
        %v3965 = vld [vmem:[#allocation2 + $0xa0] sm:$0xff]
        %v3966 = vld [vmem:[#allocation2 + $0xb0] sm:$0x1]
        %v3967 = vld [vmem:[#allocation2 + $0xc0] sm:$0xff]
        %v3968 = vld [vmem:[#allocation2 + $0xd0] sm:$0xff]
        %v3969 = vld [vmem:[#allocation2 + $0xe0] sm:$0x1]
        %v3970 = vld [vmem:[#allocation2 + $0xf0] sm:$0xff]
        %v3971 = vld [vmem:[#allocation2 + $0x100] sm:$0xff]
        %v3972 = vld [vmem:[#allocation2 + $0x110] sm:$0x1]
        %v3973 = vld [vmem:[#allocation2 + $0x120] sm:$0xff]
        %v3974 = vld [vmem:[#allocation2 + $0x130] sm:$0xff]
        %v3975 = vld [vmem:[#allocation2 + $0x140] sm:$0x1]
        %v3976 = vld [vmem:[#allocation2 + $0x150] sm:$0xff]
        %v3977 = vld [vmem:[#allocation2 + $0x160] sm:$0xff]
        %v3978 = vld [vmem:[#allocation2 + $0x170] sm:$0x1]
        %v3979 = vld [vmem:[#allocation2 + $0x180] sm:$0xff]
        %v3980 = vld [vmem:[#allocation2 + $0x190] sm:$0xff]
        %v3981 = vld [vmem:[#allocation2 + $0x1a0] sm:$0x1]
        %v3982 = vld [vmem:[#allocation2 + $0x1b0] sm:$0xff]
        %v3983 = vld [vmem:[#allocation2 + $0x1c0] sm:$0xff]
        %v3984 = vld [vmem:[#allocation2 + $0x1d0] sm:$0x1]
        %v3985 = vadd.f32 %v3959, %v3962
        %v3986 = vadd.f32 %v3985, %v3965
        %v3987 = vadd.f32 %v3986, %v3968
        %v3988 = vadd.f32 %v3987, %v3971
        %v3989 = vadd.f32 %v3988, %v3974
        %v3990 = vadd.f32 %v3989, %v3977
        %v3991 = vadd.f32 %v3990, %v3980
        %v3992 = vrot.slane %v3991, 4
        %v3993 = vadd.f32 %v3991, %v3992
        %v3994 = vrot.slane %v3993, 2
        %v3995 = vadd.f32 %v3993, %v3994
        %v3996 = vrot.slane %v3995, 1
        %v3997 = vadd.f32 %v3995, %v3996
        %v3998 = vmul.f32 %v3997, %v2375
        %v3999 = vld [vmem:[%s41] sm:$0xff]
        %v4000 = vld [vmem:[%s41 + $0x8] sm:$0xff]
        %v4001 = vld [vmem:[%s41 + $0x10] sm:$0xff]
        %v4002 = vld [vmem:[%s41 + $0x18] sm:$0xff]
        %v4003 = vld [vmem:[%s41 + $0x20] sm:$0xff]
        %v4004 = vld [vmem:[%s41 + $0x28] sm:$0xff]
        %v4005 = vld [vmem:[%s41 + $0x30] sm:$0xff]
        %v4006 = vld [vmem:[%s41 + $0x38] sm:$0xff]
        %v4007 = vld [vmem:[%s41 + $0x40] sm:$0xff]
        %v4008 = vld [vmem:[%s41 + $0x48] sm:$0xff]
        %v4009 = vld [vmem:[%s41 + $0x50] sm:$0xff]
        %v4010 = vld [vmem:[%s41 + $0x58] sm:$0xff]
        %v4011 = vld [vmem:[%s41 + $0x60] sm:$0xff]
        %v4012 = vld [vmem:[%s41 + $0x68] sm:$0xff]
        %v4013 = vld [vmem:[%s41 + $0x70] sm:$0xff]
        %v4014 = vld [vmem:[%s41 + $0x78] sm:$0xff]
        %v4015 = vld [vmem:[%s43] sm:$0x1]
        %4016 = vmatprep.subr.mxu0 0.0
        %4017 = vmatpush1.msra.mxu0 %v3999
        %4018 = vmatprep.subr.mxu0 0.0
        %4019 = vmatpush1.msra.mxu0 %v4000
        %4020 = vmatprep.subr.mxu0 0.0
        %4021 = vmatpush1.msra.mxu0 %v4001
        %4022 = vmatprep.subr.mxu0 0.0
        %4023 = vmatpush1.msra.mxu0 %v4002
        %4024 = vmatprep.subr.mxu0 0.0
        %4025 = vmatpush1.msra.mxu0 %v4003
        %4026 = vmatprep.subr.mxu0 0.0
        %4027 = vmatpush1.msra.mxu0 %v4004
        %4028 = vmatprep.subr.mxu0 0.0
        %4029 = vmatpush1.msra.mxu0 %v4005
        %4030 = vmatprep.subr.mxu0 0.0
        %4031 = vmatpush1.msra.mxu0 %v4006
        %4032 = vmatprep.subr.mxu0 0.0
        %4033 = vmatpush1.msra.mxu0 %v4007
        %4034 = vmatprep.subr.mxu0 0.0
        %4035 = vmatpush1.msra.mxu0 %v4008
        %4036 = vmatprep.subr.mxu0 0.0
        %4037 = vmatpush1.msra.mxu0 %v4009
        %4038 = vmatprep.subr.mxu0 0.0
        %4039 = vmatpush1.msra.mxu0 %v4010
        %4040 = vmatprep.subr.mxu0 0.0
        %4041 = vmatpush1.msra.mxu0 %v4011
        %4042 = vmatprep.subr.mxu0 0.0
        %4043 = vmatpush1.msra.mxu0 %v4012
        %4044 = vmatprep.subr.mxu0 0.0
        %4045 = vmatpush1.msra.mxu0 %v4013
        %4046 = vmatprep.subr.mxu0 0.0
        %4047 = vmatpush1.msra.mxu0 %v4014
        %4048 = vmatprep.subr.mxu0 0.0
        %4049 = vmatpush1.msra.mxu0 0.0
        %4050 = vmatprep.subr.mxu0 0.0
        %4051 = vmatpush1.msra.mxu0 0.0
        %4052 = vmatprep.subr.mxu0 0.0
        %4053 = vmatpush1.msra.mxu0 0.0
        %4054 = vmatprep.subr.mxu0 0.0
        %4055 = vmatpush1.msra.mxu0 0.0
        %4056 = vmatprep.subr.mxu0 0.0
        %4057 = vmatpush1.msra.mxu0 0.0
        %4058 = vmatprep.subr.mxu0 0.0
        %4059 = vmatpush1.msra.mxu0 0.0
        %4060 = vmatprep.subr.mxu0 0.0
        %4061 = vmatpush1.msra.mxu0 0.0
        %4062 = vmatprep.subr.mxu0 0.0
        %4063 = vmatpush1.msra.mxu0 0.0
        %4064 = vmatprep.subr.mxu0 0.0
        %4065 = vmatpush1.msra.mxu0 0.0
        %4066 = vmatprep.subr.mxu0 0.0
        %4067 = vmatpush1.msra.mxu0 0.0
        %4068 = vmatprep.subr.mxu0 0.0
        %4069 = vmatpush1.msra.mxu0 0.0
        %4070 = vmatprep.subr.mxu0 0.0
        %4071 = vmatpush1.msra.mxu0 0.0
        %4072 = vmatprep.subr.mxu0 0.0
        %4073 = vmatpush1.msra.mxu0 0.0
        %4074 = vmatprep.subr.mxu0 0.0
        %4075 = vmatpush1.msra.mxu0 0.0
        %4076 = vmatprep.subr.mxu0 0.0
        %4077 = vmatpush1.msra.mxu0 0.0
        %4078 = vmatprep.subr.mxu0 0.0
        %4079 = vmatpush1.msra.mxu0 0.0
        %4080 = vmatprep.mubr.f32.mxu0 0.0
        %4081 = vmatmul.mubr.f32.gmra.mrb[0].mxu0 %v3998
        %v4082 = vpop.f32.mrb[0].mxu0
        %v4083 = vadd.f32 %v4015, %v4082
        %v4084 = vpop.f32.mrb[0].mxu0
        %4085 = vdwg.mxu0
        %v4086 = vmax.f32 %v4083, 0.0
        %v4087 = vld [vmem:[%s45] sm:$0xff]
        %v4088 = vld [vmem:[%s45 + $0x8] sm:$0xff]
        %v4089 = vld [vmem:[%s45 + $0x10] sm:$0xff]
        %v4090 = vld [vmem:[%s45 + $0x18] sm:$0xff]
        %v4091 = vld [vmem:[%s45 + $0x20] sm:$0xff]
        %v4092 = vld [vmem:[%s45 + $0x28] sm:$0xff]
        %v4093 = vld [vmem:[%s45 + $0x30] sm:$0xff]
        %v4094 = vld [vmem:[%s45 + $0x38] sm:$0xff]
        %v4095 = vld [vmem:[%s47] sm:$0x1]
        %v4097 = vsel %vm987, %v4086, 0
        %4099 = vmatprep.subr.mxu0 0.0
        %4100 = vmatpush1.msra.mxu0 %v4087
        %4101 = vmatprep.subr.mxu0 0.0
        %4102 = vmatpush1.msra.mxu0 %v4088
        %4103 = vmatprep.subr.mxu0 0.0
        %4104 = vmatpush1.msra.mxu0 %v4089
        %4105 = vmatprep.subr.mxu0 0.0
        %4106 = vmatpush1.msra.mxu0 %v4090
        %4107 = vmatprep.subr.mxu0 0.0
        %4108 = vmatpush1.msra.mxu0 %v4091
        %4109 = vmatprep.subr.mxu0 0.0
        %4110 = vmatpush1.msra.mxu0 %v4092
        %4111 = vmatprep.subr.mxu0 0.0
        %4112 = vmatpush1.msra.mxu0 %v4093
        %4113 = vmatprep.subr.mxu0 0.0
        %4114 = vmatpush1.msra.mxu0 %v4094
        %4115 = vmatprep.subr.mxu0 0.0
        %4116 = vmatpush1.msra.mxu0 0.0
        %4117 = vmatprep.subr.mxu0 0.0
        %4118 = vmatpush1.msra.mxu0 0.0
        %4119 = vmatprep.subr.mxu0 0.0
        %4120 = vmatpush1.msra.mxu0 0.0
        %4121 = vmatprep.subr.mxu0 0.0
        %4122 = vmatpush1.msra.mxu0 0.0
        %4123 = vmatprep.subr.mxu0 0.0
        %4124 = vmatpush1.msra.mxu0 0.0
        %4125 = vmatprep.subr.mxu0 0.0
        %4126 = vmatpush1.msra.mxu0 0.0
        %4127 = vmatprep.subr.mxu0 0.0
        %4128 = vmatpush1.msra.mxu0 0.0
        %4129 = vmatprep.subr.mxu0 0.0
        %4130 = vmatpush1.msra.mxu0 0.0
        %4131 = vmatprep.subr.mxu0 0.0
        %4132 = vmatpush1.msra.mxu0 0.0
        %4133 = vmatprep.subr.mxu0 0.0
        %4134 = vmatpush1.msra.mxu0 0.0
        %4135 = vmatprep.subr.mxu0 0.0
        %4136 = vmatpush1.msra.mxu0 0.0
        %4137 = vmatprep.subr.mxu0 0.0
        %4138 = vmatpush1.msra.mxu0 0.0
        %4139 = vmatprep.subr.mxu0 0.0
        %4140 = vmatpush1.msra.mxu0 0.0
        %4141 = vmatprep.subr.mxu0 0.0
        %4142 = vmatpush1.msra.mxu0 0.0
        %4143 = vmatprep.subr.mxu0 0.0
        %4144 = vmatpush1.msra.mxu0 0.0
        %4145 = vmatprep.subr.mxu0 0.0
        %4146 = vmatpush1.msra.mxu0 0.0
        %4147 = vmatprep.subr.mxu0 0.0
        %4148 = vmatpush1.msra.mxu0 0.0
        %4149 = vmatprep.subr.mxu0 0.0
        %4150 = vmatpush1.msra.mxu0 0.0
        %4151 = vmatprep.subr.mxu0 0.0
        %4152 = vmatpush1.msra.mxu0 0.0
        %4153 = vmatprep.subr.mxu0 0.0
        %4154 = vmatpush1.msra.mxu0 0.0
        %4155 = vmatprep.subr.mxu0 0.0
        %4156 = vmatpush1.msra.mxu0 0.0
        %4157 = vmatprep.subr.mxu0 0.0
        %4158 = vmatpush1.msra.mxu0 0.0
        %4159 = vmatprep.subr.mxu0 0.0
        %4160 = vmatpush1.msra.mxu0 0.0
        %4161 = vmatprep.subr.mxu0 0.0
        %4162 = vmatpush1.msra.mxu0 0.0
        %4163 = vmatprep.mubr.f32.mxu0 0.0
        %4164 = vmatmul.mubr.f32.gmra.mrb[0].mxu0 %v4097
        %v4165 = vpop.f32.mrb[0].mxu0
        %v4166 = vadd.f32 %v4095, %v4165
        %v4167 = vpop.f32.mrb[0].mxu0
        %4168 = vdwg.mxu0
        %v4169 = vxor.u32 %v4166, 2147483648
        %v4170 = vmul.f32 %v4169, 1.442695
        %v4171 = vpow.pop %v4170
        %v4172 = vadd.f32 %v4171, 1.0
        %v4173 = vrcp.pop %v4172
        %v4174 = vmul.f32 1.0, %v4173
        %v4175 = vlaneseq
        %v4176 = vshrl.u32 %v4175, 7
        %v4177 = vsub.s32 0, %v4176
        %v4178 = vrot.slane %v4174, %v4177
        %v4179 = vmul.f32 %v3955, %v4178
        %v4180 = vmul.f32 %v3956, %v4178
        %v4181 = vmul.f32 %v3957, %v4178
        %v4182 = vmul.f32 %v3958, %v4178
        %v4183 = vmul.f32 %v3959, %v4178
        %v4184 = vmul.f32 %v3960, %v4178
        %v4185 = vmul.f32 %v3961, %v4178
        %v4186 = vmul.f32 %v3962, %v4178
        %v4187 = vmul.f32 %v3963, %v4178
        %v4188 = vmul.f32 %v3964, %v4178
        %v4189 = vmul.f32 %v3965, %v4178
        %v4190 = vmul.f32 %v3966, %v4178
        %v4191 = vmul.f32 %v3967, %v4178
        %v4192 = vmul.f32 %v3968, %v4178
        %v4193 = vmul.f32 %v3969, %v4178
        %v4194 = vmul.f32 %v3970, %v4178
        %v4195 = vmul.f32 %v3971, %v4178
        %v4196 = vmul.f32 %v3972, %v4178
        %v4197 = vmul.f32 %v3973, %v4178
        %v4198 = vmul.f32 %v3974, %v4178
        %v4199 = vmul.f32 %v3975, %v4178
        %v4200 = vmul.f32 %v3976, %v4178
        %v4201 = vmul.f32 %v3977, %v4178
        %v4202 = vmul.f32 %v3978, %v4178
        %v4203 = vmul.f32 %v3979, %v4178
        %v4204 = vmul.f32 %v3980, %v4178
        %v4205 = vmul.f32 %v3981, %v4178
        %v4206 = vmul.f32 %v3982, %v4178
        %v4207 = vmul.f32 %v3983, %v4178
        %v4208 = vmul.f32 %v3984, %v4178
        %v4209 = vld [vmem:[%s15] sm:$0xf]
        %v4210 = vld [vmem:[%s15 + $0x4] sm:$0xf]
        %v4211 = vld [vmem:[%s15 + $0x8] sm:$0xf]
        %v4212 = vld [vmem:[%s15 + $0xc] sm:$0xf]
        %v4213 = vld [vmem:[%s15 + $0x10] sm:$0xf]
        %v4214 = vld [vmem:[%s15 + $0x14] sm:$0xf]
        %v4215 = vld [vmem:[%s15 + $0x18] sm:$0xf]
        %v4216 = vld [vmem:[%s15 + $0x1c] sm:$0xf]
        %v4217 = vld [vmem:[%s15 + $0x20] sm:$0xf]
        %v4218 = vld [vmem:[%s15 + $0x24] sm:$0xf]
        %v4219 = vld [vmem:[%s15 + $0x28] sm:$0xf]
        %v4220 = vld [vmem:[%s15 + $0x2c] sm:$0xf]
        %v4221 = vld [vmem:[%s15 + $0x30] sm:$0xf]
        %v4222 = vld [vmem:[%s15 + $0x34] sm:$0xf]
        %v4223 = vld [vmem:[%s15 + $0x38] sm:$0xf]
        %v4224 = vld [vmem:[%s15 + $0x3c] sm:$0xf]
        %v4225 = vld [vmem:[%s15 + $0x40] sm:$0xf]
        %v4226 = vld [vmem:[%s15 + $0x44] sm:$0xf]
        %v4227 = vld [vmem:[%s15 + $0x48] sm:$0xf]
        %v4228 = vld [vmem:[%s15 + $0x4c] sm:$0xf]
        %v4229 = vld [vmem:[%s15 + $0x50] sm:$0xf]
        %v4230 = vld [vmem:[%s15 + $0x54] sm:$0xf]
        %v4231 = vld [vmem:[%s15 + $0x58] sm:$0xf]
        %v4232 = vld [vmem:[%s15 + $0x5c] sm:$0xf]
        %v4233 = vld [vmem:[%s15 + $0x60] sm:$0xf]
        %v4234 = vld [vmem:[%s15 + $0x64] sm:$0xf]
        %v4235 = vld [vmem:[%s15 + $0x68] sm:$0xf]
        %v4236 = vld [vmem:[%s15 + $0x6c] sm:$0xf]
        %v4237 = vld [vmem:[%s15 + $0x70] sm:$0xf]
        %v4238 = vld [vmem:[%s15 + $0x74] sm:$0xf]
        %v4239 = vld [vmem:[%s15 + $0x78] sm:$0xf]
        %v4240 = vld [vmem:[%s15 + $0x7c] sm:$0xf]
        %v4241 = vld [vmem:[%s15 + $0x80] sm:$0xf]
        %v4242 = vld [vmem:[%s15 + $0x84] sm:$0xf]
        %v4243 = vld [vmem:[%s15 + $0x88] sm:$0xf]
        %v4244 = vld [vmem:[%s15 + $0x8c] sm:$0xf]
        %v4245 = vld [vmem:[%s15 + $0x90] sm:$0xf]
        %v4246 = vld [vmem:[%s15 + $0x94] sm:$0xf]
        %v4247 = vld [vmem:[%s15 + $0x98] sm:$0xf]
        %v4248 = vld [vmem:[%s15 + $0x9c] sm:$0xf]
        %v4249 = vld [vmem:[%s15 + $0xa0] sm:$0xf]
        %v4250 = vld [vmem:[%s15 + $0xa4] sm:$0xf]
        %v4251 = vld [vmem:[%s15 + $0xa8] sm:$0xf]
        %v4252 = vld [vmem:[%s15 + $0xac] sm:$0xf]
        %v4253 = vld [vmem:[%s15 + $0xb0] sm:$0xf]
        %v4254 = vld [vmem:[%s15 + $0xb4] sm:$0xf]
        %v4255 = vld [vmem:[%s15 + $0xb8] sm:$0xf]
        %v4256 = vld [vmem:[%s15 + $0xbc] sm:$0xf]
        %v4257 = vld [vmem:[%s15 + $0xc0] sm:$0xf]
        %v4258 = vld [vmem:[%s15 + $0xc4] sm:$0xf]
        %v4259 = vld [vmem:[%s15 + $0xc8] sm:$0xf]
        %v4260 = vld [vmem:[%s15 + $0xcc] sm:$0xf]
        %v4261 = vld [vmem:[%s15 + $0xd0] sm:$0xf]
        %v4262 = vld [vmem:[%s15 + $0xd4] sm:$0xf]
        %v4263 = vld [vmem:[%s15 + $0xd8] sm:$0xf]
        %v4264 = vld [vmem:[%s15 + $0xdc] sm:$0xf]
        %v4265 = vld [vmem:[%s15 + $0xe0] sm:$0xf]
        %v4266 = vld [vmem:[%s15 + $0xe4] sm:$0xf]
        %v4267 = vld [vmem:[%s15 + $0xe8] sm:$0xf]
        %v4268 = vld [vmem:[%s15 + $0xec] sm:$0xf]
        %v4269 = vld [vmem:[%s15 + $0xf0] sm:$0xf]
        %v4270 = vld [vmem:[%s15 + $0xf4] sm:$0xf]
        %v4271 = vld [vmem:[%s15 + $0xf8] sm:$0xf]
        %v4272 = vld [vmem:[%s15 + $0xfc] sm:$0xf]
        %v4273 = vld [vmem:[%s15 + $0x100] sm:$0xf]
        %v4274 = vld [vmem:[%s15 + $0x104] sm:$0xf]
        %v4275 = vld [vmem:[%s15 + $0x108] sm:$0xf]
        %v4276 = vld [vmem:[%s15 + $0x10c] sm:$0xf]
        %v4277 = vld [vmem:[%s15 + $0x110] sm:$0xf]
        %v4278 = vld [vmem:[%s15 + $0x114] sm:$0xf]
        %v4279 = vld [vmem:[%s15 + $0x118] sm:$0xf]
        %v4280 = vld [vmem:[%s15 + $0x11c] sm:$0xf]
        %v4281 = vld [vmem:[%s15 + $0x120] sm:$0xf]
        %v4282 = vld [vmem:[%s15 + $0x124] sm:$0xf]
        %v4283 = vld [vmem:[%s15 + $0x128] sm:$0xf]
        %v4284 = vld [vmem:[%s15 + $0x12c] sm:$0xf]
        %v4285 = vld [vmem:[%s15 + $0x130] sm:$0xf]
        %v4286 = vld [vmem:[%s15 + $0x134] sm:$0xf]
        %v4287 = vld [vmem:[%s15 + $0x138] sm:$0xf]
        %v4288 = vld [vmem:[%s15 + $0x13c] sm:$0xf]
        %v4289 = vld [vmem:[%s15 + $0x140] sm:$0xf]
        %v4290 = vld [vmem:[%s15 + $0x144] sm:$0xf]
        %v4291 = vld [vmem:[%s15 + $0x148] sm:$0xf]
        %v4292 = vld [vmem:[%s15 + $0x14c] sm:$0xf]
        %v4293 = vld [vmem:[%s15 + $0x150] sm:$0xf]
        %v4294 = vld [vmem:[%s15 + $0x154] sm:$0xf]
        %v4295 = vld [vmem:[%s15 + $0x158] sm:$0xf]
        %v4296 = vld [vmem:[%s15 + $0x15c] sm:$0xf]
        %v4297 = vld [vmem:[%s15 + $0x160] sm:$0xf]
        %v4298 = vld [vmem:[%s15 + $0x164] sm:$0xf]
        %v4299 = vld [vmem:[%s15 + $0x168] sm:$0xf]
        %v4300 = vld [vmem:[%s15 + $0x16c] sm:$0xf]
        %v4301 = vld [vmem:[%s15 + $0x170] sm:$0xf]
        %v4302 = vld [vmem:[%s15 + $0x174] sm:$0xf]
        %v4303 = vld [vmem:[%s15 + $0x178] sm:$0xf]
        %v4304 = vld [vmem:[%s15 + $0x17c] sm:$0xf]
        %v4305 = vld [vmem:[%s15 + $0x180] sm:$0xf]
        %v4306 = vld [vmem:[%s15 + $0x184] sm:$0xf]
        %v4307 = vld [vmem:[%s15 + $0x188] sm:$0xf]
        %v4308 = vld [vmem:[%s15 + $0x18c] sm:$0xf]
        %v4309 = vld [vmem:[%s15 + $0x190] sm:$0xf]
        %v4310 = vld [vmem:[%s15 + $0x194] sm:$0xf]
        %v4311 = vld [vmem:[%s15 + $0x198] sm:$0xf]
        %v4312 = vld [vmem:[%s15 + $0x19c] sm:$0xf]
        %v4313 = vld [vmem:[%s15 + $0x1a0] sm:$0xf]
        %v4314 = vld [vmem:[%s15 + $0x1a4] sm:$0xf]
        %v4315 = vld [vmem:[%s15 + $0x1a8] sm:$0xf]
        %v4316 = vld [vmem:[%s15 + $0x1ac] sm:$0xf]
        %v4317 = vld [vmem:[%s15 + $0x1b0] sm:$0xf]
        %v4318 = vld [vmem:[%s15 + $0x1b4] sm:$0xf]
        %v4319 = vld [vmem:[%s15 + $0x1b8] sm:$0xf]
        %v4320 = vld [vmem:[%s15 + $0x1bc] sm:$0xf]
        %v4321 = vld [vmem:[%s15 + $0x1c0] sm:$0xf]
        %v4322 = vld [vmem:[%s15 + $0x1c4] sm:$0xf]
        %v4323 = vld [vmem:[%s15 + $0x1c8] sm:$0xf]
        %v4324 = vld [vmem:[%s15 + $0x1cc] sm:$0xf]
        %v4325 = vld [vmem:[%s15 + $0x1d0] sm:$0xf]
        %v4326 = vld [vmem:[%s15 + $0x1d4] sm:$0xf]
        %v4327 = vld [vmem:[%s15 + $0x1d8] sm:$0xf]
        %v4328 = vld [vmem:[%s15 + $0x1dc] sm:$0xf]
        %v4329 = vld [vmem:[%s15 + $0x1e0] sm:$0xf]
        %v4330 = vld [vmem:[%s15 + $0x1e4] sm:$0xf]
        %v4331 = vld [vmem:[%s15 + $0x1e8] sm:$0xf]
        %v4332 = vld [vmem:[%s15 + $0x1ec] sm:$0xf]
        %v4333 = vld [vmem:[%s15 + $0x1f0] sm:$0xf]
        %v4334 = vld [vmem:[%s15 + $0x1f4] sm:$0xf]
        %v4335 = vld [vmem:[%s15 + $0x1f8] sm:$0xf]
        %v4336 = vld [vmem:[%s15 + $0x1fc] sm:$0xf]
        %v4337 = vld [vmem:[%s15 + $0x200] sm:$0xf]
        %v4338 = vld [vmem:[%s15 + $0x204] sm:$0xf]
        %v4339 = vld [vmem:[%s15 + $0x208] sm:$0xf]
        %v4340 = vld [vmem:[%s15 + $0x20c] sm:$0xf]
        %v4341 = vld [vmem:[%s15 + $0x210] sm:$0xf]
        %v4342 = vld [vmem:[%s15 + $0x214] sm:$0xf]
        %v4343 = vld [vmem:[%s15 + $0x218] sm:$0xf]
        %v4344 = vld [vmem:[%s15 + $0x21c] sm:$0xf]
        %v4345 = vld [vmem:[%s15 + $0x220] sm:$0xf]
        %v4346 = vld [vmem:[%s15 + $0x224] sm:$0xf]
        %v4347 = vld [vmem:[%s15 + $0x228] sm:$0xf]
        %v4348 = vld [vmem:[%s15 + $0x22c] sm:$0xf]
        %v4349 = vld [vmem:[%s15 + $0x230] sm:$0xf]
        %v4350 = vld [vmem:[%s15 + $0x234] sm:$0xf]
        %v4351 = vld [vmem:[%s15 + $0x238] sm:$0xf]
        %v4352 = vld [vmem:[%s15 + $0x23c] sm:$0xf]
        %v4369 = vrot.slane %v4179, 7
        %v4370 = vrot.slane %v4180, 7
        %v4371 = vsel %vm1183, %v4369, %v4370
        %v4372 = vrot.slane %v4182, 7
        %v4373 = vrot.slane %v4183, 7
        %v4374 = vsel %vm1183, %v4372, %v4373
        %v4375 = vrot.slane %v4185, 7
        %v4376 = vrot.slane %v4186, 7
        %v4377 = vsel %vm1183, %v4375, %v4376
        %v4378 = vrot.slane %v4188, 7
        %v4379 = vrot.slane %v4189, 7
        %v4380 = vsel %vm1183, %v4378, %v4379
        %v4381 = vrot.slane %v4191, 7
        %v4382 = vrot.slane %v4192, 7
        %v4383 = vsel %vm1183, %v4381, %v4382
        %v4384 = vrot.slane %v4194, 7
        %v4385 = vrot.slane %v4195, 7
        %v4386 = vsel %vm1183, %v4384, %v4385
        %v4387 = vrot.slane %v4197, 7
        %v4388 = vrot.slane %v4198, 7
        %v4389 = vsel %vm1183, %v4387, %v4388
        %v4390 = vrot.slane %v4200, 7
        %v4391 = vrot.slane %v4201, 7
        %v4392 = vsel %vm1183, %v4390, %v4391
        %v4401 = vpack.c.bf16 %v4374, %v4371
        %v4402 = vpack.c.bf16 %v4380, %v4377
        %v4403 = vpack.c.bf16 %v4386, %v4383
        %v4404 = vpack.c.bf16 %v4392, %v4389
        %v4405 = vpack.c.bf16 %v4183, %v4180
        %v4406 = vpack.c.bf16 %v4189, %v4186
        %v4407 = vpack.c.bf16 %v4195, %v4192
        %v4408 = vpack.c.bf16 %v4201, %v4198
        %v4425 = vunpack.c.l.b16 %v4225
        %v4426 = vunpack.c.l.b16 %v4226
        %v4427 = vunpack.c.l.b16 %v4227
        %v4428 = vunpack.c.l.b16 %v4228
        %v4429 = vunpack.c.l.b16 %v4229
        %v4430 = vunpack.c.l.b16 %v4230
        %v4431 = vunpack.c.l.b16 %v4231
        %v4432 = vunpack.c.l.b16 %v4232
        %v4433 = vunpack.c.l.b16 %v4233
        %v4434 = vunpack.c.l.b16 %v4234
        %v4435 = vunpack.c.l.b16 %v4235
        %v4436 = vunpack.c.l.b16 %v4236
        %v4437 = vunpack.c.l.b16 %v4237
        %v4438 = vunpack.c.l.b16 %v4238
        %v4439 = vunpack.c.l.b16 %v4239
        %v4440 = vunpack.c.l.b16 %v4240
        %v4441 = vpack.c.b16 %v4426, %v4425
        %v4442 = vpack.c.b16 %v4428, %v4427
        %v4443 = vpack.c.b16 %v4430, %v4429
        %v4444 = vpack.c.b16 %v4432, %v4431
        %v4445 = vpack.c.b16 %v4434, %v4433
        %v4446 = vpack.c.b16 %v4436, %v4435
        %v4447 = vpack.c.b16 %v4438, %v4437
        %v4448 = vpack.c.b16 %v4440, %v4439
        %4457 = vmatprep.subr.bf16.mxu0 0
        %4458 = vmatpush1.bf16.msra.mxu0 %v4441
        %4459 = vmatprep.subr.bf16.mxu0 0
        %4460 = vmatpush1.bf16.msra.mxu0 %v4442
        %4461 = vmatprep.subr.bf16.mxu0 0
        %4462 = vmatpush1.bf16.msra.mxu0 %v4443
        %4463 = vmatprep.subr.bf16.mxu0 0
        %4464 = vmatpush1.bf16.msra.mxu0 %v4444
        %4465 = vmatprep.subr.bf16.mxu0 0
        %4466 = vmatpush1.bf16.msra.mxu0 %v4445
        %4467 = vmatprep.subr.bf16.mxu0 0
        %4468 = vmatpush1.bf16.msra.mxu0 %v4446
        %4469 = vmatprep.subr.bf16.mxu0 0
        %4470 = vmatpush1.bf16.msra.mxu0 %v4447
        %4471 = vmatprep.subr.bf16.mxu0 0
        %4472 = vmatpush1.bf16.msra.mxu0 %v4448
        %4473 = vmatprep.subr.bf16.mxu0 0
        %4474 = vmatpush1.bf16.msra.mxu0 0
        %4475 = vmatprep.subr.bf16.mxu0 0
        %4476 = vmatpush1.bf16.msra.mxu0 0
        %4477 = vmatprep.subr.bf16.mxu0 0
        %4478 = vmatpush1.bf16.msra.mxu0 0
        %4479 = vmatprep.subr.bf16.mxu0 0
        %4480 = vmatpush1.bf16.msra.mxu0 0
        %4481 = vmatprep.subr.bf16.mxu0 0
        %4482 = vmatpush1.bf16.msra.mxu0 0
        %4483 = vmatprep.subr.bf16.mxu0 0
        %4484 = vmatpush1.bf16.msra.mxu0 0
        %4485 = vmatprep.subr.bf16.mxu0 0
        %4486 = vmatpush1.bf16.msra.mxu0 0
        %4487 = vmatprep.subr.bf16.mxu0 0
        %4488 = vmatpush1.bf16.msra.mxu0 0
        %4489 = vmatprep.mubr.bf16.mxu0 0
        %4490 = vmatmul.mubr.bf16.gmra.mrb[0].mxu0 %v4405
        %v4491 = vpop.f32.mrb[0].mxu0
        %v4492 = vadd.f32 0.0, %v4491
        %v4493 = vpop.f32.mrb[0].mxu0
        %v4494 = vpop.f32.mrb[0].mxu0
        %v4495 = vadd.f32 0.0, %v4494
        %v4496 = vpop.f32.mrb[0].mxu0
        %4497 = vmatprep.mubr.bf16.mxu0 0
        %4498 = vmatmul.mubr.bf16.gmra.mrb[0].mxu0 %v4406
        %v4499 = vpop.f32.mrb[0].mxu0
        %v4500 = vadd.f32 0.0, %v4499
        %v4501 = vpop.f32.mrb[0].mxu0
        %v4502 = vpop.f32.mrb[0].mxu0
        %v4503 = vadd.f32 0.0, %v4502
        %v4504 = vpop.f32.mrb[0].mxu0
        %4505 = vmatprep.mubr.bf16.mxu0 0
        %4506 = vmatmul.mubr.bf16.gmra.mrb[0].mxu0 %v4407
        %v4507 = vpop.f32.mrb[0].mxu0
        %v4508 = vadd.f32 0.0, %v4507
        %v4509 = vpop.f32.mrb[0].mxu0
        %v4510 = vpop.f32.mrb[0].mxu0
        %v4511 = vadd.f32 0.0, %v4510
        %v4512 = vpop.f32.mrb[0].mxu0
        %4513 = vmatprep.mubr.bf16.mxu0 0
        %4514 = vmatmul.mubr.bf16.gmra.mrb[0].mxu0 %v4408
        %v4515 = vpop.f32.mrb[0].mxu0
        %v4516 = vadd.f32 0.0, %v4515
        %v4517 = vpop.f32.mrb[0].mxu0
        %v4518 = vpop.f32.mrb[0].mxu0
        %v4519 = vadd.f32 0.0, %v4518
        %v4520 = vpop.f32.mrb[0].mxu0
        %4521 = vdwg.mxu0
        %v4538 = vunpack.c.l.b16 %v4209
        %v4539 = vunpack.c.l.b16 %v4210
        %v4540 = vunpack.c.l.b16 %v4211
        %v4541 = vunpack.c.l.b16 %v4212
        %v4542 = vunpack.c.l.b16 %v4213
        %v4543 = vunpack.c.l.b16 %v4214
        %v4544 = vunpack.c.l.b16 %v4215
        %v4545 = vunpack.c.l.b16 %v4216
        %v4546 = vunpack.c.l.b16 %v4217
        %v4547 = vunpack.c.l.b16 %v4218
        %v4548 = vunpack.c.l.b16 %v4219
        %v4549 = vunpack.c.l.b16 %v4220
        %v4550 = vunpack.c.l.b16 %v4221
        %v4551 = vunpack.c.l.b16 %v4222
        %v4552 = vunpack.c.l.b16 %v4223
        %v4553 = vunpack.c.l.b16 %v4224
        %v4554 = vpack.c.b16 %v4539, %v4538
        %v4555 = vpack.c.b16 %v4541, %v4540
        %v4556 = vpack.c.b16 %v4543, %v4542
        %v4557 = vpack.c.b16 %v4545, %v4544
        %v4558 = vpack.c.b16 %v4547, %v4546
        %v4559 = vpack.c.b16 %v4549, %v4548
        %v4560 = vpack.c.b16 %v4551, %v4550
        %v4561 = vpack.c.b16 %v4553, %v4552
        %4570 = vmatprep.subr.bf16.mxu0 0
        %4571 = vmatpush1.bf16.msra.mxu0 %v4554
        %4572 = vmatprep.subr.bf16.mxu0 0
        %4573 = vmatpush1.bf16.msra.mxu0 %v4555
        %4574 = vmatprep.subr.bf16.mxu0 0
        %4575 = vmatpush1.bf16.msra.mxu0 %v4556
        %4576 = vmatprep.subr.bf16.mxu0 0
        %4577 = vmatpush1.bf16.msra.mxu0 %v4557
        %4578 = vmatprep.subr.bf16.mxu0 0
        %4579 = vmatpush1.bf16.msra.mxu0 %v4558
        %4580 = vmatprep.subr.bf16.mxu0 0
        %4581 = vmatpush1.bf16.msra.mxu0 %v4559
        %4582 = vmatprep.subr.bf16.mxu0 0
        %4583 = vmatpush1.bf16.msra.mxu0 %v4560
        %4584 = vmatprep.subr.bf16.mxu0 0
        %4585 = vmatpush1.bf16.msra.mxu0 %v4561
        %4586 = vmatprep.subr.bf16.mxu0 0
        %4587 = vmatpush1.bf16.msra.mxu0 0
        %4588 = vmatprep.subr.bf16.mxu0 0
        %4589 = vmatpush1.bf16.msra.mxu0 0
        %4590 = vmatprep.subr.bf16.mxu0 0
        %4591 = vmatpush1.bf16.msra.mxu0 0
        %4592 = vmatprep.subr.bf16.mxu0 0
        %4593 = vmatpush1.bf16.msra.mxu0 0
        %4594 = vmatprep.subr.bf16.mxu0 0
        %4595 = vmatpush1.bf16.msra.mxu0 0
        %4596 = vmatprep.subr.bf16.mxu0 0
        %4597 = vmatpush1.bf16.msra.mxu0 0
        %4598 = vmatprep.subr.bf16.mxu0 0
        %4599 = vmatpush1.bf16.msra.mxu0 0
        %4600 = vmatprep.subr.bf16.mxu0 0
        %4601 = vmatpush1.bf16.msra.mxu0 0
        %4602 = vmatprep.mubr.bf16.mxu0 0
        %4603 = vmatmul.mubr.bf16.gmra.mrb[0].mxu0 %v4401
        %v4604 = vpop.f32.mrb[0].mxu0
        %v4605 = vadd.f32 %v4492, %v4604
        %v4606 = vpop.f32.mrb[0].mxu0
        %v4607 = vpop.f32.mrb[0].mxu0
        %v4608 = vadd.f32 %v4495, %v4607
        %v4609 = vpop.f32.mrb[0].mxu0
        %4610 = vmatprep.mubr.bf16.mxu0 0
        %4611 = vmatmul.mubr.bf16.gmra.mrb[0].mxu0 %v4402
        %v4612 = vpop.f32.mrb[0].mxu0
        %v4613 = vadd.f32 %v4500, %v4612
        %v4614 = vpop.f32.mrb[0].mxu0
        %v4615 = vpop.f32.mrb[0].mxu0
        %v4616 = vadd.f32 %v4503, %v4615
        %v4617 = vpop.f32.mrb[0].mxu0
        %4618 = vmatprep.mubr.bf16.mxu0 0
        %4619 = vmatmul.mubr.bf16.gmra.mrb[0].mxu0 %v4403
        %v4620 = vpop.f32.mrb[0].mxu0
        %v4621 = vadd.f32 %v4508, %v4620
        %v4622 = vpop.f32.mrb[0].mxu0
        %v4623 = vpop.f32.mrb[0].mxu0
        %v4624 = vadd.f32 %v4511, %v4623
        %v4625 = vpop.f32.mrb[0].mxu0
        %4626 = vmatprep.mubr.bf16.mxu0 0
        %4627 = vmatmul.mubr.bf16.gmra.mrb[0].mxu0 %v4404
        %v4628 = vpop.f32.mrb[0].mxu0
        %v4629 = vadd.f32 %v4516, %v4628
        %v4630 = vpop.f32.mrb[0].mxu0
        %v4631 = vpop.f32.mrb[0].mxu0
        %v4632 = vadd.f32 %v4519, %v4631
        %v4633 = vpop.f32.mrb[0].mxu0
        %4634 = vdwg.mxu0
        %v4643 = vrot.slane %v4180, 1
        %v4644 = vrot.slane %v4181, 1
        %v4645 = vsel %vm1434, %v4643, %v4644
        %v4646 = vrot.slane %v4183, 1
        %v4647 = vrot.slane %v4184, 1
        %v4648 = vsel %vm1434, %v4646, %v4647
        %v4649 = vrot.slane %v4186, 1
        %v4650 = vrot.slane %v4187, 1
        %v4651 = vsel %vm1434, %v4649, %v4650
        %v4652 = vrot.slane %v4189, 1
        %v4653 = vrot.slane %v4190, 1
        %v4654 = vsel %vm1434, %v4652, %v4653
        %v4655 = vrot.slane %v4192, 1
        %v4656 = vrot.slane %v4193, 1
        %v4657 = vsel %vm1434, %v4655, %v4656
        %v4658 = vrot.slane %v4195, 1
        %v4659 = vrot.slane %v4196, 1
        %v4660 = vsel %vm1434, %v4658, %v4659
        %v4661 = vrot.slane %v4198, 1
        %v4662 = vrot.slane %v4199, 1
        %v4663 = vsel %vm1434, %v4661, %v4662
        %v4664 = vrot.slane %v4201, 1
        %v4665 = vrot.slane %v4202, 1
        %v4666 = vsel %vm1434, %v4664, %v4665
        %v4675 = vpack.c.bf16 %v4648, %v4645
        %v4676 = vpack.c.bf16 %v4654, %v4651
        %v4677 = vpack.c.bf16 %v4660, %v4657
        %v4678 = vpack.c.bf16 %v4666, %v4663
        %v4695 = vunpack.c.l.b16 %v4241
        %v4696 = vunpack.c.l.b16 %v4242
        %v4697 = vunpack.c.l.b16 %v4243
        %v4698 = vunpack.c.l.b16 %v4244
        %v4699 = vunpack.c.l.b16 %v4245
        %v4700 = vunpack.c.l.b16 %v4246
        %v4701 = vunpack.c.l.b16 %v4247
        %v4702 = vunpack.c.l.b16 %v4248
        %v4703 = vunpack.c.l.b16 %v4249
        %v4704 = vunpack.c.l.b16 %v4250
        %v4705 = vunpack.c.l.b16 %v4251
        %v4706 = vunpack.c.l.b16 %v4252
        %v4707 = vunpack.c.l.b16 %v4253
        %v4708 = vunpack.c.l.b16 %v4254
        %v4709 = vunpack.c.l.b16 %v4255
        %v4710 = vunpack.c.l.b16 %v4256
        %v4711 = vpack.c.b16 %v4696, %v4695
        %v4712 = vpack.c.b16 %v4698, %v4697
        %v4713 = vpack.c.b16 %v4700, %v4699
        %v4714 = vpack.c.b16 %v4702, %v4701
        %v4715 = vpack.c.b16 %v4704, %v4703
        %v4716 = vpack.c.b16 %v4706, %v4705
        %v4717 = vpack.c.b16 %v4708, %v4707
        %v4718 = vpack.c.b16 %v4710, %v4709
        %4727 = vmatprep.subr.bf16.mxu0 0
        %4728 = vmatpush1.bf16.msra.mxu0 %v4711
        %4729 = vmatprep.subr.bf16.mxu0 0
        %4730 = vmatpush1.bf16.msra.mxu0 %v4712
        %4731 = vmatprep.subr.bf16.mxu0 0
        %4732 = vmatpush1.bf16.msra.mxu0 %v4713
        %4733 = vmatprep.subr.bf16.mxu0 0
        %4734 = vmatpush1.bf16.msra.mxu0 %v4714
        %4735 = vmatprep.subr.bf16.mxu0 0
        %4736 = vmatpush1.bf16.msra.mxu0 %v4715
        %4737 = vmatprep.subr.bf16.mxu0 0
        %4738 = vmatpush1.bf16.msra.mxu0 %v4716
        %4739 = vmatprep.subr.bf16.mxu0 0
        %4740 = vmatpush1.bf16.msra.mxu0 %v4717
        %4741 = vmatprep.subr.bf16.mxu0 0
        %4742 = vmatpush1.bf16.msra.mxu0 %v4718
        %4743 = vmatprep.subr.bf16.mxu0 0
        %4744 = vmatpush1.bf16.msra.mxu0 0
        %4745 = vmatprep.subr.bf16.mxu0 0
        %4746 = vmatpush1.bf16.msra.mxu0 0
        %4747 = vmatprep.subr.bf16.mxu0 0
        %4748 = vmatpush1.bf16.msra.mxu0 0
        %4749 = vmatprep.subr.bf16.mxu0 0
        %4750 = vmatpush1.bf16.msra.mxu0 0
        %4751 = vmatprep.subr.bf16.mxu0 0
        %4752 = vmatpush1.bf16.msra.mxu0 0
        %4753 = vmatprep.subr.bf16.mxu0 0
        %4754 = vmatpush1.bf16.msra.mxu0 0
        %4755 = vmatprep.subr.bf16.mxu0 0
        %4756 = vmatpush1.bf16.msra.mxu0 0
        %4757 = vmatprep.subr.bf16.mxu0 0
        %4758 = vmatpush1.bf16.msra.mxu0 0
        %4759 = vmatprep.mubr.bf16.mxu0 0
        %4760 = vmatmul.mubr.bf16.gmra.mrb[0].mxu0 %v4675
        %v4761 = vpop.f32.mrb[0].mxu0
        %v4762 = vadd.f32 0.0, %v4761
        %v4763 = vpop.f32.mrb[0].mxu0
        %v4764 = vpop.f32.mrb[0].mxu0
        %v4765 = vadd.f32 0.0, %v4764
        %v4766 = vpop.f32.mrb[0].mxu0
        %4767 = vmatprep.mubr.bf16.mxu0 0
        %4768 = vmatmul.mubr.bf16.gmra.mrb[0].mxu0 %v4676
        %v4769 = vpop.f32.mrb[0].mxu0
        %v4770 = vadd.f32 0.0, %v4769
        %v4771 = vpop.f32.mrb[0].mxu0
        %v4772 = vpop.f32.mrb[0].mxu0
        %v4773 = vadd.f32 0.0, %v4772
        %v4774 = vpop.f32.mrb[0].mxu0
        %4775 = vmatprep.mubr.bf16.mxu0 0
        %4776 = vmatmul.mubr.bf16.gmra.mrb[0].mxu0 %v4677
        %v4777 = vpop.f32.mrb[0].mxu0
        %v4778 = vadd.f32 0.0, %v4777
        %v4779 = vpop.f32.mrb[0].mxu0
        %v4780 = vpop.f32.mrb[0].mxu0
        %v4781 = vadd.f32 0.0, %v4780
        %v4782 = vpop.f32.mrb[0].mxu0
        %4783 = vmatprep.mubr.bf16.mxu0 0
        %4784 = vmatmul.mubr.bf16.gmra.mrb[0].mxu0 %v4678
        %v4785 = vpop.f32.mrb[0].mxu0
        %v4786 = vadd.f32 0.0, %v4785
        %v4787 = vpop.f32.mrb[0].mxu0
        %v4788 = vpop.f32.mrb[0].mxu0
        %v4789 = vadd.f32 0.0, %v4788
        %v4790 = vpop.f32.mrb[0].mxu0
        %4791 = vdwg.mxu0
        %v4792 = vadd.f32 %v4605, %v4762
        %v4793 = vadd.f32 %v4608, %v4765
        %v4794 = vadd.f32 %v4613, %v4770
        %v4795 = vadd.f32 %v4616, %v4773
        %v4796 = vadd.f32 %v4621, %v4778
        %v4797 = vadd.f32 %v4624, %v4781
        %v4798 = vadd.f32 %v4629, %v4786
        %v4799 = vadd.f32 %v4632, %v4789
        %v4802 = vrot.slane %v4203, 7
        %v4803 = vrot.slane %v4204, 7
        %v4804 = vsel %vm1183, %v4802, %v4803
        %v4806 = vpack.c.bf16 %v4377, %v4374
        %v4807 = vpack.c.bf16 %v4383, %v4380
        %v4808 = vpack.c.bf16 %v4389, %v4386
        %v4809 = vpack.c.bf16 %v4804, %v4392
        %v4826 = vunpack.c.l.b16 %v4257
        %v4827 = vunpack.c.l.b16 %v4258
        %v4828 = vunpack.c.l.b16 %v4259
        %v4829 = vunpack.c.l.b16 %v4260
        %v4830 = vunpack.c.l.b16 %v4261
        %v4831 = vunpack.c.l.b16 %v4262
        %v4832 = vunpack.c.l.b16 %v4263
        %v4833 = vunpack.c.l.b16 %v4264
        %v4834 = vunpack.c.l.b16 %v4265
        %v4835 = vunpack.c.l.b16 %v4266
        %v4836 = vunpack.c.l.b16 %v4267
        %v4837 = vunpack.c.l.b16 %v4268
        %v4838 = vunpack.c.l.b16 %v4269
        %v4839 = vunpack.c.l.b16 %v4270
        %v4840 = vunpack.c.l.b16 %v4271
        %v4841 = vunpack.c.l.b16 %v4272
        %v4842 = vpack.c.b16 %v4827, %v4826
        %v4843 = vpack.c.b16 %v4829, %v4828
        %v4844 = vpack.c.b16 %v4831, %v4830
        %v4845 = vpack.c.b16 %v4833, %v4832
        %v4846 = vpack.c.b16 %v4835, %v4834
        %v4847 = vpack.c.b16 %v4837, %v4836
        %v4848 = vpack.c.b16 %v4839, %v4838
        %v4849 = vpack.c.b16 %v4841, %v4840
        %4858 = vmatprep.subr.bf16.mxu0 0
        %4859 = vmatpush1.bf16.msra.mxu0 %v4842
        %4860 = vmatprep.subr.bf16.mxu0 0
        %4861 = vmatpush1.bf16.msra.mxu0 %v4843
        %4862 = vmatprep.subr.bf16.mxu0 0
        %4863 = vmatpush1.bf16.msra.mxu0 %v4844
        %4864 = vmatprep.subr.bf16.mxu0 0
        %4865 = vmatpush1.bf16.msra.mxu0 %v4845
        %4866 = vmatprep.subr.bf16.mxu0 0
        %4867 = vmatpush1.bf16.msra.mxu0 %v4846
        %4868 = vmatprep.subr.bf16.mxu0 0
        %4869 = vmatpush1.bf16.msra.mxu0 %v4847
        %4870 = vmatprep.subr.bf16.mxu0 0
        %4871 = vmatpush1.bf16.msra.mxu0 %v4848
        %4872 = vmatprep.subr.bf16.mxu0 0
        %4873 = vmatpush1.bf16.msra.mxu0 %v4849
        %4874 = vmatprep.subr.bf16.mxu0 0
        %4875 = vmatpush1.bf16.msra.mxu0 0
        %4876 = vmatprep.subr.bf16.mxu0 0
        %4877 = vmatpush1.bf16.msra.mxu0 0
        %4878 = vmatprep.subr.bf16.mxu0 0
        %4879 = vmatpush1.bf16.msra.mxu0 0
        %4880 = vmatprep.subr.bf16.mxu0 0
        %4881 = vmatpush1.bf16.msra.mxu0 0
        %4882 = vmatprep.subr.bf16.mxu0 0
        %4883 = vmatpush1.bf16.msra.mxu0 0
        %4884 = vmatprep.subr.bf16.mxu0 0
        %4885 = vmatpush1.bf16.msra.mxu0 0
        %4886 = vmatprep.subr.bf16.mxu0 0
        %4887 = vmatpush1.bf16.msra.mxu0 0
        %4888 = vmatprep.subr.bf16.mxu0 0
        %4889 = vmatpush1.bf16.msra.mxu0 0
        %4890 = vmatprep.mubr.bf16.mxu0 0
        %4891 = vmatmul.mubr.bf16.gmra.mrb[0].mxu0 %v4806
        %v4892 = vpop.f32.mrb[0].mxu0
        %v4893 = vadd.f32 0.0, %v4892
        %v4894 = vpop.f32.mrb[0].mxu0
        %v4895 = vpop.f32.mrb[0].mxu0
        %v4896 = vadd.f32 0.0, %v4895
        %v4897 = vpop.f32.mrb[0].mxu0
        %4898 = vmatprep.mubr.bf16.mxu0 0
        %4899 = vmatmul.mubr.bf16.gmra.mrb[0].mxu0 %v4807
        %v4900 = vpop.f32.mrb[0].mxu0
        %v4901 = vadd.f32 0.0, %v4900
        %v4902 = vpop.f32.mrb[0].mxu0
        %v4903 = vpop.f32.mrb[0].mxu0
        %v4904 = vadd.f32 0.0, %v4903
        %v4905 = vpop.f32.mrb[0].mxu0
        %4906 = vmatprep.mubr.bf16.mxu0 0
        %4907 = vmatmul.mubr.bf16.gmra.mrb[0].mxu0 %v4808
        %v4908 = vpop.f32.mrb[0].mxu0
        %v4909 = vadd.f32 0.0, %v4908
        %v4910 = vpop.f32.mrb[0].mxu0
        %v4911 = vpop.f32.mrb[0].mxu0
        %v4912 = vadd.f32 0.0, %v4911
        %v4913 = vpop.f32.mrb[0].mxu0
        %4914 = vmatprep.mubr.bf16.mxu0 0
        %4915 = vmatmul.mubr.bf16.gmra.mrb[0].mxu0 %v4809
        %v4916 = vpop.f32.mrb[0].mxu0
        %v4917 = vadd.f32 0.0, %v4916
        %v4918 = vpop.f32.mrb[0].mxu0
        %v4919 = vpop.f32.mrb[0].mxu0
        %v4920 = vadd.f32 0.0, %v4919
        %v4921 = vpop.f32.mrb[0].mxu0
        %4922 = vdwg.mxu0
        %v4923 = vadd.f32 %v4792, %v4893
        %v4924 = vadd.f32 %v4793, %v4896
        %v4925 = vadd.f32 %v4794, %v4901
        %v4926 = vadd.f32 %v4795, %v4904
        %v4927 = vadd.f32 %v4796, %v4909
        %v4928 = vadd.f32 %v4797, %v4912
        %v4929 = vadd.f32 %v4798, %v4917
        %v4930 = vadd.f32 %v4799, %v4920
        %v4931 = vpack.c.bf16 %v4186, %v4183
        %v4932 = vpack.c.bf16 %v4192, %v4189
        %v4933 = vpack.c.bf16 %v4198, %v4195
        %v4934 = vpack.c.bf16 %v4204, %v4201
        %v4951 = vunpack.c.l.b16 %v4273
        %v4952 = vunpack.c.l.b16 %v4274
        %v4953 = vunpack.c.l.b16 %v4275
        %v4954 = vunpack.c.l.b16 %v4276
        %v4955 = vunpack.c.l.b16 %v4277
        %v4956 = vunpack.c.l.b16 %v4278
        %v4957 = vunpack.c.l.b16 %v4279
        %v4958 = vunpack.c.l.b16 %v4280
        %v4959 = vunpack.c.l.b16 %v4281
        %v4960 = vunpack.c.l.b16 %v4282
        %v4961 = vunpack.c.l.b16 %v4283
        %v4962 = vunpack.c.l.b16 %v4284
        %v4963 = vunpack.c.l.b16 %v4285
        %v4964 = vunpack.c.l.b16 %v4286
        %v4965 = vunpack.c.l.b16 %v4287
        %v4966 = vunpack.c.l.b16 %v4288
        %v4967 = vpack.c.b16 %v4952, %v4951
        %v4968 = vpack.c.b16 %v4954, %v4953
        %v4969 = vpack.c.b16 %v4956, %v4955
        %v4970 = vpack.c.b16 %v4958, %v4957
        %v4971 = vpack.c.b16 %v4960, %v4959
        %v4972 = vpack.c.b16 %v4962, %v4961
        %v4973 = vpack.c.b16 %v4964, %v4963
        %v4974 = vpack.c.b16 %v4966, %v4965
        %4983 = vmatprep.subr.bf16.mxu0 0
        %4984 = vmatpush1.bf16.msra.mxu0 %v4967
        %4985 = vmatprep.subr.bf16.mxu0 0
        %4986 = vmatpush1.bf16.msra.mxu0 %v4968
        %4987 = vmatprep.subr.bf16.mxu0 0
        %4988 = vmatpush1.bf16.msra.mxu0 %v4969
        %4989 = vmatprep.subr.bf16.mxu0 0
        %4990 = vmatpush1.bf16.msra.mxu0 %v4970
        %4991 = vmatprep.subr.bf16.mxu0 0
        %4992 = vmatpush1.bf16.msra.mxu0 %v4971
        %4993 = vmatprep.subr.bf16.mxu0 0
        %4994 = vmatpush1.bf16.msra.mxu0 %v4972
        %4995 = vmatprep.subr.bf16.mxu0 0
        %4996 = vmatpush1.bf16.msra.mxu0 %v4973
        %4997 = vmatprep.subr.bf16.mxu0 0
        %4998 = vmatpush1.bf16.msra.mxu0 %v4974
        %4999 = vmatprep.subr.bf16.mxu0 0
        %5000 = vmatpush1.bf16.msra.mxu0 0
        %5001 = vmatprep.subr.bf16.mxu0 0
        %5002 = vmatpush1.bf16.msra.mxu0 0
        %5003 = vmatprep.subr.bf16.mxu0 0
        %5004 = vmatpush1.bf16.msra.mxu0 0
        %5005 = vmatprep.subr.bf16.mxu0 0
        %5006 = vmatpush1.bf16.msra.mxu0 0
        %5007 = vmatprep.subr.bf16.mxu0 0
        %5008 = vmatpush1.bf16.msra.mxu0 0
        %5009 = vmatprep.subr.bf16.mxu0 0
        %5010 = vmatpush1.bf16.msra.mxu0 0
        %5011 = vmatprep.subr.bf16.mxu0 0
        %5012 = vmatpush1.bf16.msra.mxu0 0
        %5013 = vmatprep.subr.bf16.mxu0 0
        %5014 = vmatpush1.bf16.msra.mxu0 0
        %5015 = vmatprep.mubr.bf16.mxu0 0
        %5016 = vmatmul.mubr.bf16.gmra.mrb[0].mxu0 %v4931
        %v5017 = vpop.f32.mrb[0].mxu0
        %v5018 = vadd.f32 0.0, %v5017
        %v5019 = vpop.f32.mrb[0].mxu0
        %v5020 = vpop.f32.mrb[0].mxu0
        %v5021 = vadd.f32 0.0, %v5020
        %v5022 = vpop.f32.mrb[0].mxu0
        %5023 = vmatprep.mubr.bf16.mxu0 0
        %5024 = vmatmul.mubr.bf16.gmra.mrb[0].mxu0 %v4932
        %v5025 = vpop.f32.mrb[0].mxu0
        %v5026 = vadd.f32 0.0, %v5025
        %v5027 = vpop.f32.mrb[0].mxu0
        %v5028 = vpop.f32.mrb[0].mxu0
        %v5029 = vadd.f32 0.0, %v5028
        %v5030 = vpop.f32.mrb[0].mxu0
        %5031 = vmatprep.mubr.bf16.mxu0 0
        %5032 = vmatmul.mubr.bf16.gmra.mrb[0].mxu0 %v4933
        %v5033 = vpop.f32.mrb[0].mxu0
        %v5034 = vadd.f32 0.0, %v5033
        %v5035 = vpop.f32.mrb[0].mxu0
        %v5036 = vpop.f32.mrb[0].mxu0
        %v5037 = vadd.f32 0.0, %v5036
        %v5038 = vpop.f32.mrb[0].mxu0
        %5039 = vmatprep.mubr.bf16.mxu0 0
        %5040 = vmatmul.mubr.bf16.gmra.mrb[0].mxu0 %v4934
        %v5041 = vpop.f32.mrb[0].mxu0
        %v5042 = vadd.f32 0.0, %v5041
        %v5043 = vpop.f32.mrb[0].mxu0
        %v5044 = vpop.f32.mrb[0].mxu0
        %v5045 = vadd.f32 0.0, %v5044
        %v5046 = vpop.f32.mrb[0].mxu0
        %5047 = vdwg.mxu0
        %v5048 = vadd.f32 %v4923, %v5018
        %v5049 = vadd.f32 %v4924, %v5021
        %v5050 = vadd.f32 %v4925, %v5026
        %v5051 = vadd.f32 %v4926, %v5029
        %v5052 = vadd.f32 %v4927, %v5034
        %v5053 = vadd.f32 %v4928, %v5037
        %v5054 = vadd.f32 %v4929, %v5042
        %v5055 = vadd.f32 %v4930, %v5045
        %v5057 = vrot.slane %v4204, 1
        %v5058 = vrot.slane %v4205, 1
        %v5059 = vsel %vm1434, %v5057, %v5058
        %v5061 = vpack.c.bf16 %v4651, %v4648
        %v5062 = vpack.c.bf16 %v4657, %v4654
        %v5063 = vpack.c.bf16 %v4663, %v4660
        %v5064 = vpack.c.bf16 %v5059, %v4666
        %v5081 = vunpack.c.l.b16 %v4289
        %v5082 = vunpack.c.l.b16 %v4290
        %v5083 = vunpack.c.l.b16 %v4291
        %v5084 = vunpack.c.l.b16 %v4292
        %v5085 = vunpack.c.l.b16 %v4293
        %v5086 = vunpack.c.l.b16 %v4294
        %v5087 = vunpack.c.l.b16 %v4295
        %v5088 = vunpack.c.l.b16 %v4296
        %v5089 = vunpack.c.l.b16 %v4297
        %v5090 = vunpack.c.l.b16 %v4298
        %v5091 = vunpack.c.l.b16 %v4299
        %v5092 = vunpack.c.l.b16 %v4300
        %v5093 = vunpack.c.l.b16 %v4301
        %v5094 = vunpack.c.l.b16 %v4302
        %v5095 = vunpack.c.l.b16 %v4303
        %v5096 = vunpack.c.l.b16 %v4304
        %v5097 = vpack.c.b16 %v5082, %v5081
        %v5098 = vpack.c.b16 %v5084, %v5083
        %v5099 = vpack.c.b16 %v5086, %v5085
        %v5100 = vpack.c.b16 %v5088, %v5087
        %v5101 = vpack.c.b16 %v5090, %v5089
        %v5102 = vpack.c.b16 %v5092, %v5091
        %v5103 = vpack.c.b16 %v5094, %v5093
        %v5104 = vpack.c.b16 %v5096, %v5095
        %5113 = vmatprep.subr.bf16.mxu0 0
        %5114 = vmatpush1.bf16.msra.mxu0 %v5097
        %5115 = vmatprep.subr.bf16.mxu0 0
        %5116 = vmatpush1.bf16.msra.mxu0 %v5098
        %5117 = vmatprep.subr.bf16.mxu0 0
        %5118 = vmatpush1.bf16.msra.mxu0 %v5099
        %5119 = vmatprep.subr.bf16.mxu0 0
        %5120 = vmatpush1.bf16.msra.mxu0 %v5100
        %5121 = vmatprep.subr.bf16.mxu0 0
        %5122 = vmatpush1.bf16.msra.mxu0 %v5101
        %5123 = vmatprep.subr.bf16.mxu0 0
        %5124 = vmatpush1.bf16.msra.mxu0 %v5102
        %5125 = vmatprep.subr.bf16.mxu0 0
        %5126 = vmatpush1.bf16.msra.mxu0 %v5103
        %5127 = vmatprep.subr.bf16.mxu0 0
        %5128 = vmatpush1.bf16.msra.mxu0 %v5104
        %5129 = vmatprep.subr.bf16.mxu0 0
        %5130 = vmatpush1.bf16.msra.mxu0 0
        %5131 = vmatprep.subr.bf16.mxu0 0
        %5132 = vmatpush1.bf16.msra.mxu0 0
        %5133 = vmatprep.subr.bf16.mxu0 0
        %5134 = vmatpush1.bf16.msra.mxu0 0
        %5135 = vmatprep.subr.bf16.mxu0 0
        %5136 = vmatpush1.bf16.msra.mxu0 0
        %5137 = vmatprep.subr.bf16.mxu0 0
        %5138 = vmatpush1.bf16.msra.mxu0 0
        %5139 = vmatprep.subr.bf16.mxu0 0
        %5140 = vmatpush1.bf16.msra.mxu0 0
        %5141 = vmatprep.subr.bf16.mxu0 0
        %5142 = vmatpush1.bf16.msra.mxu0 0
        %5143 = vmatprep.subr.bf16.mxu0 0
        %5144 = vmatpush1.bf16.msra.mxu0 0
        %5145 = vmatprep.mubr.bf16.mxu0 0
        %5146 = vmatmul.mubr.bf16.gmra.mrb[0].mxu0 %v5061
        %v5147 = vpop.f32.mrb[0].mxu0
        %v5148 = vadd.f32 0.0, %v5147
        %v5149 = vpop.f32.mrb[0].mxu0
        %v5150 = vpop.f32.mrb[0].mxu0
        %v5151 = vadd.f32 0.0, %v5150
        %v5152 = vpop.f32.mrb[0].mxu0
        %5153 = vmatprep.mubr.bf16.mxu0 0
        %5154 = vmatmul.mubr.bf16.gmra.mrb[0].mxu0 %v5062
        %v5155 = vpop.f32.mrb[0].mxu0
        %v5156 = vadd.f32 0.0, %v5155
        %v5157 = vpop.f32.mrb[0].mxu0
        %v5158 = vpop.f32.mrb[0].mxu0
        %v5159 = vadd.f32 0.0, %v5158
        %v5160 = vpop.f32.mrb[0].mxu0
        %5161 = vmatprep.mubr.bf16.mxu0 0
        %5162 = vmatmul.mubr.bf16.gmra.mrb[0].mxu0 %v5063
        %v5163 = vpop.f32.mrb[0].mxu0
        %v5164 = vadd.f32 0.0, %v5163
        %v5165 = vpop.f32.mrb[0].mxu0
        %v5166 = vpop.f32.mrb[0].mxu0
        %v5167 = vadd.f32 0.0, %v5166
        %v5168 = vpop.f32.mrb[0].mxu0
        %5169 = vmatprep.mubr.bf16.mxu0 0
        %5170 = vmatmul.mubr.bf16.gmra.mrb[0].mxu0 %v5064
        %v5171 = vpop.f32.mrb[0].mxu0
        %v5172 = vadd.f32 0.0, %v5171
        %v5173 = vpop.f32.mrb[0].mxu0
        %v5174 = vpop.f32.mrb[0].mxu0
        %v5175 = vadd.f32 0.0, %v5174
        %v5176 = vpop.f32.mrb[0].mxu0
        %5177 = vdwg.mxu0
        %v5178 = vadd.f32 %v5048, %v5148
        %v5179 = vadd.f32 %v5049, %v5151
        %v5180 = vadd.f32 %v5050, %v5156
        %v5181 = vadd.f32 %v5051, %v5159
        %v5182 = vadd.f32 %v5052, %v5164
        %v5183 = vadd.f32 %v5053, %v5167
        %v5184 = vadd.f32 %v5054, %v5172
        %v5185 = vadd.f32 %v5055, %v5175
        %v5188 = vrot.slane %v4206, 7
        %v5189 = vrot.slane %v4207, 7
        %v5190 = vsel %vm1183, %v5188, %v5189
        %v5192 = vpack.c.bf16 %v5190, %v4804
        %v5209 = vunpack.c.l.b16 %v4305
        %v5210 = vunpack.c.l.b16 %v4306
        %v5211 = vunpack.c.l.b16 %v4307
        %v5212 = vunpack.c.l.b16 %v4308
        %v5213 = vunpack.c.l.b16 %v4309
        %v5214 = vunpack.c.l.b16 %v4310
        %v5215 = vunpack.c.l.b16 %v4311
        %v5216 = vunpack.c.l.b16 %v4312
        %v5217 = vunpack.c.l.b16 %v4313
        %v5218 = vunpack.c.l.b16 %v4314
        %v5219 = vunpack.c.l.b16 %v4315
        %v5220 = vunpack.c.l.b16 %v4316
        %v5221 = vunpack.c.l.b16 %v4317
        %v5222 = vunpack.c.l.b16 %v4318
        %v5223 = vunpack.c.l.b16 %v4319
        %v5224 = vunpack.c.l.b16 %v4320
        %v5225 = vpack.c.b16 %v5210, %v5209
        %v5226 = vpack.c.b16 %v5212, %v5211
        %v5227 = vpack.c.b16 %v5214, %v5213
        %v5228 = vpack.c.b16 %v5216, %v5215
        %v5229 = vpack.c.b16 %v5218, %v5217
        %v5230 = vpack.c.b16 %v5220, %v5219
        %v5231 = vpack.c.b16 %v5222, %v5221
        %v5232 = vpack.c.b16 %v5224, %v5223
        %5241 = vmatprep.subr.bf16.mxu0 0
        %5242 = vmatpush1.bf16.msra.mxu0 %v5225
        %5243 = vmatprep.subr.bf16.mxu0 0
        %5244 = vmatpush1.bf16.msra.mxu0 %v5226
        %5245 = vmatprep.subr.bf16.mxu0 0
        %5246 = vmatpush1.bf16.msra.mxu0 %v5227
        %5247 = vmatprep.subr.bf16.mxu0 0
        %5248 = vmatpush1.bf16.msra.mxu0 %v5228
        %5249 = vmatprep.subr.bf16.mxu0 0
        %5250 = vmatpush1.bf16.msra.mxu0 %v5229
        %5251 = vmatprep.subr.bf16.mxu0 0
        %5252 = vmatpush1.bf16.msra.mxu0 %v5230
        %5253 = vmatprep.subr.bf16.mxu0 0
        %5254 = vmatpush1.bf16.msra.mxu0 %v5231
        %5255 = vmatprep.subr.bf16.mxu0 0
        %5256 = vmatpush1.bf16.msra.mxu0 %v5232
        %5257 = vmatprep.subr.bf16.mxu0 0
        %5258 = vmatpush1.bf16.msra.mxu0 0
        %5259 = vmatprep.subr.bf16.mxu0 0
        %5260 = vmatpush1.bf16.msra.mxu0 0
        %5261 = vmatprep.subr.bf16.mxu0 0
        %5262 = vmatpush1.bf16.msra.mxu0 0
        %5263 = vmatprep.subr.bf16.mxu0 0
        %5264 = vmatpush1.bf16.msra.mxu0 0
        %5265 = vmatprep.subr.bf16.mxu0 0
        %5266 = vmatpush1.bf16.msra.mxu0 0
        %5267 = vmatprep.subr.bf16.mxu0 0
        %5268 = vmatpush1.bf16.msra.mxu0 0
        %5269 = vmatprep.subr.bf16.mxu0 0
        %5270 = vmatpush1.bf16.msra.mxu0 0
        %5271 = vmatprep.subr.bf16.mxu0 0
        %5272 = vmatpush1.bf16.msra.mxu0 0
        %5273 = vmatprep.mubr.bf16.mxu0 0
        %5274 = vmatmul.mubr.bf16.gmra.mrb[0].mxu0 %v4402
        %v5275 = vpop.f32.mrb[0].mxu0
        %v5276 = vadd.f32 0.0, %v5275
        %v5277 = vpop.f32.mrb[0].mxu0
        %v5278 = vpop.f32.mrb[0].mxu0
        %v5279 = vadd.f32 0.0, %v5278
        %v5280 = vpop.f32.mrb[0].mxu0
        %5281 = vmatprep.mubr.bf16.mxu0 0
        %5282 = vmatmul.mubr.bf16.gmra.mrb[0].mxu0 %v4403
        %v5283 = vpop.f32.mrb[0].mxu0
        %v5284 = vadd.f32 0.0, %v5283
        %v5285 = vpop.f32.mrb[0].mxu0
        %v5286 = vpop.f32.mrb[0].mxu0
        %v5287 = vadd.f32 0.0, %v5286
        %v5288 = vpop.f32.mrb[0].mxu0
        %5289 = vmatprep.mubr.bf16.mxu0 0
        %5290 = vmatmul.mubr.bf16.gmra.mrb[0].mxu0 %v4404
        %v5291 = vpop.f32.mrb[0].mxu0
        %v5292 = vadd.f32 0.0, %v5291
        %v5293 = vpop.f32.mrb[0].mxu0
        %v5294 = vpop.f32.mrb[0].mxu0
        %v5295 = vadd.f32 0.0, %v5294
        %v5296 = vpop.f32.mrb[0].mxu0
        %5297 = vmatprep.mubr.bf16.mxu0 0
        %5298 = vmatmul.mubr.bf16.gmra.mrb[0].mxu0 %v5192
        %v5299 = vpop.f32.mrb[0].mxu0
        %v5300 = vadd.f32 0.0, %v5299
        %v5301 = vpop.f32.mrb[0].mxu0
        %v5302 = vpop.f32.mrb[0].mxu0
        %v5303 = vadd.f32 0.0, %v5302
        %v5304 = vpop.f32.mrb[0].mxu0
        %5305 = vdwg.mxu0
        %v5306 = vadd.f32 %v5178, %v5276
        %v5307 = vadd.f32 %v5179, %v5279
        %v5308 = vadd.f32 %v5180, %v5284
        %v5309 = vadd.f32 %v5181, %v5287
        %v5310 = vadd.f32 %v5182, %v5292
        %v5311 = vadd.f32 %v5183, %v5295
        %v5312 = vadd.f32 %v5184, %v5300
        %v5313 = vadd.f32 %v5185, %v5303
        %v5314 = vpack.c.bf16 %v4207, %v4204
        %v5331 = vunpack.c.l.b16 %v4321
        %v5332 = vunpack.c.l.b16 %v4322
        %v5333 = vunpack.c.l.b16 %v4323
        %v5334 = vunpack.c.l.b16 %v4324
        %v5335 = vunpack.c.l.b16 %v4325
        %v5336 = vunpack.c.l.b16 %v4326
        %v5337 = vunpack.c.l.b16 %v4327
        %v5338 = vunpack.c.l.b16 %v4328
        %v5339 = vunpack.c.l.b16 %v4329
        %v5340 = vunpack.c.l.b16 %v4330
        %v5341 = vunpack.c.l.b16 %v4331
        %v5342 = vunpack.c.l.b16 %v4332
        %v5343 = vunpack.c.l.b16 %v4333
        %v5344 = vunpack.c.l.b16 %v4334
        %v5345 = vunpack.c.l.b16 %v4335
        %v5346 = vunpack.c.l.b16 %v4336
        %v5347 = vpack.c.b16 %v5332, %v5331
        %v5348 = vpack.c.b16 %v5334, %v5333
        %v5349 = vpack.c.b16 %v5336, %v5335
        %v5350 = vpack.c.b16 %v5338, %v5337
        %v5351 = vpack.c.b16 %v5340, %v5339
        %v5352 = vpack.c.b16 %v5342, %v5341
        %v5353 = vpack.c.b16 %v5344, %v5343
        %v5354 = vpack.c.b16 %v5346, %v5345
        %5363 = vmatprep.subr.bf16.mxu0 0
        %5364 = vmatpush1.bf16.msra.mxu0 %v5347
        %5365 = vmatprep.subr.bf16.mxu0 0
        %5366 = vmatpush1.bf16.msra.mxu0 %v5348
        %5367 = vmatprep.subr.bf16.mxu0 0
        %5368 = vmatpush1.bf16.msra.mxu0 %v5349
        %5369 = vmatprep.subr.bf16.mxu0 0
        %5370 = vmatpush1.bf16.msra.mxu0 %v5350
        %5371 = vmatprep.subr.bf16.mxu0 0
        %5372 = vmatpush1.bf16.msra.mxu0 %v5351
        %5373 = vmatprep.subr.bf16.mxu0 0
        %5374 = vmatpush1.bf16.msra.mxu0 %v5352
        %5375 = vmatprep.subr.bf16.mxu0 0
        %5376 = vmatpush1.bf16.msra.mxu0 %v5353
        %5377 = vmatprep.subr.bf16.mxu0 0
        %5378 = vmatpush1.bf16.msra.mxu0 %v5354
        %5379 = vmatprep.subr.bf16.mxu0 0
        %5380 = vmatpush1.bf16.msra.mxu0 0
        %5381 = vmatprep.subr.bf16.mxu0 0
        %5382 = vmatpush1.bf16.msra.mxu0 0
        %5383 = vmatprep.subr.bf16.mxu0 0
        %5384 = vmatpush1.bf16.msra.mxu0 0
        %5385 = vmatprep.subr.bf16.mxu0 0
        %5386 = vmatpush1.bf16.msra.mxu0 0
        %5387 = vmatprep.subr.bf16.mxu0 0
        %5388 = vmatpush1.bf16.msra.mxu0 0
        %5389 = vmatprep.subr.bf16.mxu0 0
        %5390 = vmatpush1.bf16.msra.mxu0 0
        %5391 = vmatprep.subr.bf16.mxu0 0
        %5392 = vmatpush1.bf16.msra.mxu0 0
        %5393 = vmatprep.subr.bf16.mxu0 0
        %5394 = vmatpush1.bf16.msra.mxu0 0
        %5395 = vmatprep.mubr.bf16.mxu0 0
        %5396 = vmatmul.mubr.bf16.gmra.mrb[0].mxu0 %v4406
        %v5397 = vpop.f32.mrb[0].mxu0
        %v5398 = vadd.f32 0.0, %v5397
        %v5399 = vpop.f32.mrb[0].mxu0
        %v5400 = vpop.f32.mrb[0].mxu0
        %v5401 = vadd.f32 0.0, %v5400
        %v5402 = vpop.f32.mrb[0].mxu0
        %5403 = vmatprep.mubr.bf16.mxu0 0
        %5404 = vmatmul.mubr.bf16.gmra.mrb[0].mxu0 %v4407
        %v5405 = vpop.f32.mrb[0].mxu0
        %v5406 = vadd.f32 0.0, %v5405
        %v5407 = vpop.f32.mrb[0].mxu0
        %v5408 = vpop.f32.mrb[0].mxu0
        %v5409 = vadd.f32 0.0, %v5408
        %v5410 = vpop.f32.mrb[0].mxu0
        %5411 = vmatprep.mubr.bf16.mxu0 0
        %5412 = vmatmul.mubr.bf16.gmra.mrb[0].mxu0 %v4408
        %v5413 = vpop.f32.mrb[0].mxu0
        %v5414 = vadd.f32 0.0, %v5413
        %v5415 = vpop.f32.mrb[0].mxu0
        %v5416 = vpop.f32.mrb[0].mxu0
        %v5417 = vadd.f32 0.0, %v5416
        %v5418 = vpop.f32.mrb[0].mxu0
        %5419 = vmatprep.mubr.bf16.mxu0 0
        %5420 = vmatmul.mubr.bf16.gmra.mrb[0].mxu0 %v5314
        %v5421 = vpop.f32.mrb[0].mxu0
        %v5422 = vadd.f32 0.0, %v5421
        %v5423 = vpop.f32.mrb[0].mxu0
        %v5424 = vpop.f32.mrb[0].mxu0
        %v5425 = vadd.f32 0.0, %v5424
        %v5426 = vpop.f32.mrb[0].mxu0
        %5427 = vdwg.mxu0
        %v5428 = vadd.f32 %v5306, %v5398
        %v5429 = vadd.f32 %v5307, %v5401
        %v5430 = vadd.f32 %v5308, %v5406
        %v5431 = vadd.f32 %v5309, %v5409
        %v5432 = vadd.f32 %v5310, %v5414
        %v5433 = vadd.f32 %v5311, %v5417
        %v5434 = vadd.f32 %v5312, %v5422
        %v5435 = vadd.f32 %v5313, %v5425
        %v5437 = vrot.slane %v4207, 1
        %v5438 = vrot.slane %v4208, 1
        %v5439 = vsel %vm1434, %v5437, %v5438
        %v5441 = vpack.c.bf16 %v5439, %v5059
        %v5458 = vunpack.c.l.b16 %v4337
        %v5459 = vunpack.c.l.b16 %v4338
        %v5460 = vunpack.c.l.b16 %v4339
        %v5461 = vunpack.c.l.b16 %v4340
        %v5462 = vunpack.c.l.b16 %v4341
        %v5463 = vunpack.c.l.b16 %v4342
        %v5464 = vunpack.c.l.b16 %v4343
        %v5465 = vunpack.c.l.b16 %v4344
        %v5466 = vunpack.c.l.b16 %v4345
        %v5467 = vunpack.c.l.b16 %v4346
        %v5468 = vunpack.c.l.b16 %v4347
        %v5469 = vunpack.c.l.b16 %v4348
        %v5470 = vunpack.c.l.b16 %v4349
        %v5471 = vunpack.c.l.b16 %v4350
        %v5472 = vunpack.c.l.b16 %v4351
        %v5473 = vunpack.c.l.b16 %v4352
        %v5474 = vpack.c.b16 %v5459, %v5458
        %v5475 = vpack.c.b16 %v5461, %v5460
        %v5476 = vpack.c.b16 %v5463, %v5462
        %v5477 = vpack.c.b16 %v5465, %v5464
        %v5478 = vpack.c.b16 %v5467, %v5466
        %v5479 = vpack.c.b16 %v5469, %v5468
        %v5480 = vpack.c.b16 %v5471, %v5470
        %v5481 = vpack.c.b16 %v5473, %v5472
        %5490 = vmatprep.subr.bf16.mxu0 0
        %5491 = vmatpush1.bf16.msra.mxu0 %v5474
        %5492 = vmatprep.subr.bf16.mxu0 0
        %5493 = vmatpush1.bf16.msra.mxu0 %v5475
        %5494 = vmatprep.subr.bf16.mxu0 0
        %5495 = vmatpush1.bf16.msra.mxu0 %v5476
        %5496 = vmatprep.subr.bf16.mxu0 0
        %5497 = vmatpush1.bf16.msra.mxu0 %v5477
        %5498 = vmatprep.subr.bf16.mxu0 0
        %5499 = vmatpush1.bf16.msra.mxu0 %v5478
        %5500 = vmatprep.subr.bf16.mxu0 0
        %5501 = vmatpush1.bf16.msra.mxu0 %v5479
        %5502 = vmatprep.subr.bf16.mxu0 0
        %5503 = vmatpush1.bf16.msra.mxu0 %v5480
        %5504 = vmatprep.subr.bf16.mxu0 0
        %5505 = vmatpush1.bf16.msra.mxu0 %v5481
        %5506 = vmatprep.subr.bf16.mxu0 0
        %5507 = vmatpush1.bf16.msra.mxu0 0
        %5508 = vmatprep.subr.bf16.mxu0 0
        %5509 = vmatpush1.bf16.msra.mxu0 0
        %5510 = vmatprep.subr.bf16.mxu0 0
        %5511 = vmatpush1.bf16.msra.mxu0 0
        %5512 = vmatprep.subr.bf16.mxu0 0
        %5513 = vmatpush1.bf16.msra.mxu0 0
        %5514 = vmatprep.subr.bf16.mxu0 0
        %5515 = vmatpush1.bf16.msra.mxu0 0
        %5516 = vmatprep.subr.bf16.mxu0 0
        %5517 = vmatpush1.bf16.msra.mxu0 0
        %5518 = vmatprep.subr.bf16.mxu0 0
        %5519 = vmatpush1.bf16.msra.mxu0 0
        %5520 = vmatprep.subr.bf16.mxu0 0
        %5521 = vmatpush1.bf16.msra.mxu0 0
        %5522 = vmatprep.mubr.bf16.mxu0 0
        %5523 = vmatmul.mubr.bf16.gmra.mrb[0].mxu0 %v4676
        %v5524 = vpop.f32.mrb[0].mxu0
        %v5525 = vadd.f32 0.0, %v5524
        %v5526 = vpop.f32.mrb[0].mxu0
        %v5527 = vpop.f32.mrb[0].mxu0
        %v5528 = vadd.f32 0.0, %v5527
        %v5529 = vpop.f32.mrb[0].mxu0
        %5530 = vmatprep.mubr.bf16.mxu0 0
        %5531 = vmatmul.mubr.bf16.gmra.mrb[0].mxu0 %v4677
        %v5532 = vpop.f32.mrb[0].mxu0
        %v5533 = vadd.f32 0.0, %v5532
        %v5534 = vpop.f32.mrb[0].mxu0
        %v5535 = vpop.f32.mrb[0].mxu0
        %v5536 = vadd.f32 0.0, %v5535
        %v5537 = vpop.f32.mrb[0].mxu0
        %5538 = vmatprep.mubr.bf16.mxu0 0
        %5539 = vmatmul.mubr.bf16.gmra.mrb[0].mxu0 %v4678
        %v5540 = vpop.f32.mrb[0].mxu0
        %v5541 = vadd.f32 0.0, %v5540
        %v5542 = vpop.f32.mrb[0].mxu0
        %v5543 = vpop.f32.mrb[0].mxu0
        %v5544 = vadd.f32 0.0, %v5543
        %v5545 = vpop.f32.mrb[0].mxu0
        %5546 = vmatprep.mubr.bf16.mxu0 0
        %5547 = vmatmul.mubr.bf16.gmra.mrb[0].mxu0 %v5441
        %v5548 = vpop.f32.mrb[0].mxu0
        %v5549 = vadd.f32 0.0, %v5548
        %v5550 = vpop.f32.mrb[0].mxu0
        %v5551 = vpop.f32.mrb[0].mxu0
        %v5552 = vadd.f32 0.0, %v5551
        %v5553 = vpop.f32.mrb[0].mxu0
        %5554 = vdwg.mxu0
        %v5555 = vadd.f32 %v5428, %v5525
        %v5556 = vadd.f32 %v5429, %v5528
        %v5557 = vadd.f32 %v5430, %v5533
        %v5558 = vadd.f32 %v5431, %v5536
        %v5559 = vadd.f32 %v5432, %v5541
        %v5560 = vadd.f32 %v5433, %v5544
        %v5561 = vadd.f32 %v5434, %v5549
        %v5562 = vadd.f32 %v5435, %v5552
        %v5563 = vld [vmem:[%s17] sm:$0x1]
        %v5565 = vlaneseq
        %v5566 = vshrl.u32 %v5565, 7
        %v5567 = vsub.s32 0, %v5566
        %v5568 = vrot.slane %v5563, %v5567
        %v5570 = vmul.f32 %v5555, %v5568
        %v5571 = vmul.f32 %v5556, %v5568
        %v5572 = vmul.f32 %v5557, %v5568
        %v5573 = vmul.f32 %v5558, %v5568
        %v5574 = vmul.f32 %v5559, %v5568
        %v5575 = vmul.f32 %v5560, %v5568
        %v5576 = vmul.f32 %v5561, %v5568
        %v5577 = vmul.f32 %v5562, %v5568
        %v5578 = vld [vmem:[%s19] sm:$0x1]
        %v5580 = vlaneseq
        %v5581 = vshrl.u32 %v5580, 7
        %v5582 = vsub.s32 0, %v5581
        %v5583 = vrot.slane %v5578, %v5582
        %v5585 = vadd.f32 %v5570, %v5583
        %v5586 = vadd.f32 %v5571, %v5583
        %v5587 = vadd.f32 %v5572, %v5583
        %v5588 = vadd.f32 %v5573, %v5583
        %v5589 = vadd.f32 %v5574, %v5583
        %v5590 = vadd.f32 %v5575, %v5583
        %v5591 = vadd.f32 %v5576, %v5583
        %v5592 = vadd.f32 %v5577, %v5583
        %v5593 = vmax.f32 %v5585, 0.0
        %v5594 = vmax.f32 %v5586, 0.0
        %v5595 = vmax.f32 %v5587, 0.0
        %v5596 = vmax.f32 %v5588, 0.0
        %v5597 = vmax.f32 %v5589, 0.0
        %v5598 = vmax.f32 %v5590, 0.0
        %v5599 = vmax.f32 %v5591, 0.0
        %v5600 = vmax.f32 %v5592, 0.0
        %vm5601 = vcmask 261120
        %5602 = vst.msk [vmem:[%s1056 + $0x18] sm:$0xff] %vm5601, %v5593
        %5603 = vst.msk [vmem:[%s1056 + $0x48] sm:$0xff] %vm5601, %v5594
        %5604 = vst.msk [vmem:[%s1056 + $0x78] sm:$0xff] %vm5601, %v5595
        %5605 = vst.msk [vmem:[%s1056 + $0xa8] sm:$0xff] %vm5601, %v5596
        %5606 = vst.msk [vmem:[%s1056 + $0xd8] sm:$0xff] %vm5601, %v5597
        %5607 = vst.msk [vmem:[%s1056 + $0x108] sm:$0xff] %vm5601, %v5598
        %5608 = vst.msk [vmem:[%s1056 + $0x138] sm:$0xff] %vm5601, %v5599
        %5609 = vst.msk [vmem:[%s1056 + $0x168] sm:$0xff] %vm5601, %v5600
        %v5610 = vld [vmem:[#allocation2] sm:$0xff]
        %v5611 = vld [vmem:[#allocation2 + $0x8] sm:$0xff]
        %v5612 = vld [vmem:[#allocation2 + $0x10] sm:$0xff]
        %v5613 = vld [vmem:[#allocation2 + $0x18] sm:$0xff]
        %v5614 = vld [vmem:[#allocation2 + $0x20] sm:$0x1]
        %v5615 = vld [vmem:[#allocation2 + $0x28] sm:$0x1]
        %v5616 = vld [vmem:[#allocation2 + $0x30] sm:$0xff]
        %v5617 = vld [vmem:[#allocation2 + $0x38] sm:$0xff]
        %v5618 = vld [vmem:[#allocation2 + $0x40] sm:$0xff]
        %v5619 = vld [vmem:[#allocation2 + $0x48] sm:$0xff]
        %v5620 = vld [vmem:[#allocation2 + $0x50] sm:$0x1]
        %v5621 = vld [vmem:[#allocation2 + $0x58] sm:$0x1]
        %v5622 = vld [vmem:[#allocation2 + $0x60] sm:$0xff]
        %v5623 = vld [vmem:[#allocation2 + $0x68] sm:$0xff]
        %v5624 = vld [vmem:[#allocation2 + $0x70] sm:$0xff]
        %v5625 = vld [vmem:[#allocation2 + $0x78] sm:$0xff]
        %v5626 = vld [vmem:[#allocation2 + $0x80] sm:$0x1]
        %v5627 = vld [vmem:[#allocation2 + $0x88] sm:$0x1]
        %v5628 = vld [vmem:[#allocation2 + $0x90] sm:$0xff]
        %v5629 = vld [vmem:[#allocation2 + $0x98] sm:$0xff]
        %v5630 = vld [vmem:[#allocation2 + $0xa0] sm:$0xff]
        %v5631 = vld [vmem:[#allocation2 + $0xa8] sm:$0xff]
        %v5632 = vld [vmem:[#allocation2 + $0xb0] sm:$0x1]
        %v5633 = vld [vmem:[#allocation2 + $0xb8] sm:$0x1]
        %v5634 = vld [vmem:[#allocation2 + $0xc0] sm:$0xff]
        %v5635 = vld [vmem:[#allocation2 + $0xc8] sm:$0xff]
        %v5636 = vld [vmem:[#allocation2 + $0xd0] sm:$0xff]
        %v5637 = vld [vmem:[#allocation2 + $0xd8] sm:$0xff]
        %v5638 = vld [vmem:[#allocation2 + $0xe0] sm:$0x1]
        %v5639 = vld [vmem:[#allocation2 + $0xe8] sm:$0x1]
        %v5640 = vld [vmem:[#allocation2 + $0xf0] sm:$0xff]
        %v5641 = vld [vmem:[#allocation2 + $0xf8] sm:$0xff]
        %v5642 = vld [vmem:[#allocation2 + $0x100] sm:$0xff]
        %v5643 = vld [vmem:[#allocation2 + $0x108] sm:$0xff]
        %v5644 = vld [vmem:[#allocation2 + $0x110] sm:$0x1]
        %v5645 = vld [vmem:[#allocation2 + $0x118] sm:$0x1]
        %v5646 = vld [vmem:[#allocation2 + $0x120] sm:$0xff]
        %v5647 = vld [vmem:[#allocation2 + $0x128] sm:$0xff]
        %v5648 = vld [vmem:[#allocation2 + $0x130] sm:$0xff]
        %v5649 = vld [vmem:[#allocation2 + $0x138] sm:$0xff]
        %v5650 = vld [vmem:[#allocation2 + $0x140] sm:$0x1]
        %v5651 = vld [vmem:[#allocation2 + $0x148] sm:$0x1]
        %v5652 = vld [vmem:[#allocation2 + $0x150] sm:$0xff]
        %v5653 = vld [vmem:[#allocation2 + $0x158] sm:$0xff]
        %v5654 = vld [vmem:[#allocation2 + $0x160] sm:$0xff]
        %v5655 = vld [vmem:[#allocation2 + $0x168] sm:$0xff]
        %v5656 = vld [vmem:[#allocation2 + $0x170] sm:$0x1]
        %v5657 = vld [vmem:[#allocation2 + $0x178] sm:$0x1]
        %v5658 = vld [vmem:[#allocation2 + $0x180] sm:$0xff]
        %v5659 = vld [vmem:[#allocation2 + $0x188] sm:$0xff]
        %v5660 = vld [vmem:[#allocation2 + $0x190] sm:$0xff]
        %v5661 = vld [vmem:[#allocation2 + $0x198] sm:$0xff]
        %v5662 = vld [vmem:[#allocation2 + $0x1a0] sm:$0x1]
        %v5663 = vld [vmem:[#allocation2 + $0x1a8] sm:$0x1]
        %v5664 = vld [vmem:[#allocation2 + $0x1b0] sm:$0xff]
        %v5665 = vld [vmem:[#allocation2 + $0x1b8] sm:$0xff]
        %v5666 = vld [vmem:[#allocation2 + $0x1c0] sm:$0xff]
        %v5667 = vld [vmem:[#allocation2 + $0x1c8] sm:$0xff]
        %v5668 = vld [vmem:[#allocation2 + $0x1d0] sm:$0x1]
        %v5669 = vld [vmem:[#allocation2 + $0x1d8] sm:$0x1]
        %v5670 = vadd.f32 %v5618, %v5624
        %v5671 = vadd.f32 %v5670, %v5630
        %v5672 = vadd.f32 %v5671, %v5636
        %v5673 = vadd.f32 %v5672, %v5642
        %v5674 = vadd.f32 %v5673, %v5648
        %v5675 = vadd.f32 %v5674, %v5654
        %v5676 = vadd.f32 %v5675, %v5660
        %v5677 = vrot.slane %v5676, 4
        %v5678 = vadd.f32 %v5676, %v5677
        %v5679 = vrot.slane %v5678, 2
        %v5680 = vadd.f32 %v5678, %v5679
        %v5681 = vrot.slane %v5680, 1
        %v5682 = vadd.f32 %v5680, %v5681
        %v5683 = vsel %vm5601, %v5619, 0.0
        %v5684 = vsel %vm5601, %v5625, 0.0
        %v5685 = vadd.f32 %v5683, %v5684
        %v5686 = vsel %vm5601, %v5631, 0.0
        %v5687 = vadd.f32 %v5685, %v5686
        %v5688 = vsel %vm5601, %v5637, 0.0
        %v5689 = vadd.f32 %v5687, %v5688
        %v5690 = vsel %vm5601, %v5643, 0.0
        %v5691 = vadd.f32 %v5689, %v5690
        %v5692 = vsel %vm5601, %v5649, 0.0
        %v5693 = vadd.f32 %v5691, %v5692
        %v5694 = vsel %vm5601, %v5655, 0.0
        %v5695 = vadd.f32 %v5693, %v5694
        %v5696 = vsel %vm5601, %v5661, 0.0
        %v5697 = vadd.f32 %v5695, %v5696
        %v5698 = vrot.slane %v5697, 4
        %v5699 = vadd.f32 %v5697, %v5698
        %v5700 = vrot.slane %v5699, 2
        %v5701 = vadd.f32 %v5699, %v5700
        %v5702 = vrot.slane %v5701, 1
        %v5703 = vadd.f32 %v5701, %v5702
        %v5704 = vmul.f32 %v5682, %v2375
        %v5705 = vmul.f32 %v5703, %v2375
        %v5706 = vld [vmem:[%s49] sm:$0xff]
        %v5707 = vld [vmem:[%s49 + $0x8] sm:$0xff]
        %v5708 = vld [vmem:[%s49 + $0x10] sm:$0xff]
        %v5709 = vld [vmem:[%s49 + $0x18] sm:$0xff]
        %v5710 = vld [vmem:[%s49 + $0x20] sm:$0xff]
        %v5711 = vld [vmem:[%s49 + $0x28] sm:$0xff]
        %v5712 = vld [vmem:[%s49 + $0x30] sm:$0xff]
        %v5713 = vld [vmem:[%s49 + $0x38] sm:$0xff]
        %v5714 = vld [vmem:[%s49 + $0x40] sm:$0xff]
        %v5715 = vld [vmem:[%s49 + $0x48] sm:$0xff]
        %v5716 = vld [vmem:[%s49 + $0x50] sm:$0xff]
        %v5717 = vld [vmem:[%s49 + $0x58] sm:$0xff]
        %v5718 = vld [vmem:[%s49 + $0x60] sm:$0xff]
        %v5719 = vld [vmem:[%s49 + $0x68] sm:$0xff]
        %v5720 = vld [vmem:[%s49 + $0x70] sm:$0xff]
        %v5721 = vld [vmem:[%s49 + $0x78] sm:$0xff]
        %v5722 = vld [vmem:[%s49 + $0x80] sm:$0xff]
        %v5723 = vld [vmem:[%s49 + $0x88] sm:$0xff]
        %v5724 = vld [vmem:[%s49 + $0x90] sm:$0xff]
        %v5725 = vld [vmem:[%s49 + $0x98] sm:$0xff]
        %v5726 = vld [vmem:[%s51] sm:$0x1]
        %v5728 = vsel %vm5601, %v5705, 0
        %5730 = vmatprep.subr.mxu0 0.0
        %5731 = vmatpush1.msra.mxu0 %v5706
        %5732 = vmatprep.subr.mxu0 0.0
        %5733 = vmatpush1.msra.mxu0 %v5707
        %5734 = vmatprep.subr.mxu0 0.0
        %5735 = vmatpush1.msra.mxu0 %v5708
        %5736 = vmatprep.subr.mxu0 0.0
        %5737 = vmatpush1.msra.mxu0 %v5709
        %5738 = vmatprep.subr.mxu0 0.0
        %5739 = vmatpush1.msra.mxu0 %v5710
        %5740 = vmatprep.subr.mxu0 0.0
        %5741 = vmatpush1.msra.mxu0 %v5711
        %5742 = vmatprep.subr.mxu0 0.0
        %5743 = vmatpush1.msra.mxu0 %v5712
        %5744 = vmatprep.subr.mxu0 0.0
        %5745 = vmatpush1.msra.mxu0 %v5713
        %5746 = vmatprep.subr.mxu0 0.0
        %5747 = vmatpush1.msra.mxu0 %v5714
        %5748 = vmatprep.subr.mxu0 0.0
        %5749 = vmatpush1.msra.mxu0 %v5715
        %5750 = vmatprep.subr.mxu0 0.0
        %5751 = vmatpush1.msra.mxu0 %v5716
        %5752 = vmatprep.subr.mxu0 0.0
        %5753 = vmatpush1.msra.mxu0 %v5717
        %5754 = vmatprep.subr.mxu0 0.0
        %5755 = vmatpush1.msra.mxu0 %v5718
        %5756 = vmatprep.subr.mxu0 0.0
        %5757 = vmatpush1.msra.mxu0 %v5719
        %5758 = vmatprep.subr.mxu0 0.0
        %5759 = vmatpush1.msra.mxu0 %v5720
        %5760 = vmatprep.subr.mxu0 0.0
        %5761 = vmatpush1.msra.mxu0 %v5721
        %5762 = vmatprep.subr.mxu0 0.0
        %5763 = vmatpush1.msra.mxu0 %v5722
        %5764 = vmatprep.subr.mxu0 0.0
        %5765 = vmatpush1.msra.mxu0 %v5723
        %5766 = vmatprep.subr.mxu0 0.0
        %5767 = vmatpush1.msra.mxu0 %v5724
        %5768 = vmatprep.subr.mxu0 0.0
        %5769 = vmatpush1.msra.mxu0 %v5725
        %5770 = vmatprep.subr.mxu0 0.0
        %5771 = vmatpush1.msra.mxu0 0.0
        %5772 = vmatprep.subr.mxu0 0.0
        %5773 = vmatpush1.msra.mxu0 0.0
        %5774 = vmatprep.subr.mxu0 0.0
        %5775 = vmatpush1.msra.mxu0 0.0
        %5776 = vmatprep.subr.mxu0 0.0
        %5777 = vmatpush1.msra.mxu0 0.0
        %5778 = vmatprep.subr.mxu0 0.0
        %5779 = vmatpush1.msra.mxu0 0.0
        %5780 = vmatprep.subr.mxu0 0.0
        %5781 = vmatpush1.msra.mxu0 0.0
        %5782 = vmatprep.subr.mxu0 0.0
        %5783 = vmatpush1.msra.mxu0 0.0
        %5784 = vmatprep.subr.mxu0 0.0
        %5785 = vmatpush1.msra.mxu0 0.0
        %5786 = vmatprep.subr.mxu0 0.0
        %5787 = vmatpush1.msra.mxu0 0.0
        %5788 = vmatprep.subr.mxu0 0.0
        %5789 = vmatpush1.msra.mxu0 0.0
        %5790 = vmatprep.subr.mxu0 0.0
        %5791 = vmatpush1.msra.mxu0 0.0
        %5792 = vmatprep.subr.mxu0 0.0
        %5793 = vmatpush1.msra.mxu0 0.0
        %5794 = vmatprep.mubr.f32.mxu0 %v5728
        %5795 = vmatmul.mubr.f32.gmra.mrb[0].mxu0 %v5704
        %v5796 = vpop.f32.mrb[0].mxu0
        %v5797 = vadd.f32 %v5726, %v5796
        %v5798 = vpop.f32.mrb[0].mxu0
        %5799 = vdwg.mxu0
        %v5800 = vmax.f32 %v5797, 0.0
        %v5801 = vld [vmem:[%s53] sm:$0xff]
        %v5802 = vld [vmem:[%s53 + $0x8] sm:$0xff]
        %v5803 = vld [vmem:[%s53 + $0x10] sm:$0xff]
        %v5804 = vld [vmem:[%s53 + $0x18] sm:$0xff]
        %v5805 = vld [vmem:[%s53 + $0x20] sm:$0xff]
        %v5806 = vld [vmem:[%s53 + $0x28] sm:$0xff]
        %v5807 = vld [vmem:[%s53 + $0x30] sm:$0xff]
        %v5808 = vld [vmem:[%s53 + $0x38] sm:$0xff]
        %v5809 = vld [vmem:[%s53 + $0x40] sm:$0xff]
        %v5810 = vld [vmem:[%s53 + $0x48] sm:$0xff]
        %v5811 = vld [vmem:[%s53 + $0x50] sm:$0xff]
        %v5812 = vld [vmem:[%s53 + $0x58] sm:$0xff]
        %v5813 = vld [vmem:[%s53 + $0x60] sm:$0xff]
        %v5814 = vld [vmem:[%s53 + $0x68] sm:$0xff]
        %v5815 = vld [vmem:[%s53 + $0x70] sm:$0xff]
        %v5816 = vld [vmem:[%s53 + $0x78] sm:$0xff]
        %v5817 = vld [vmem:[%s53 + $0x80] sm:$0xff]
        %v5818 = vld [vmem:[%s53 + $0x88] sm:$0xff]
        %v5819 = vld [vmem:[%s53 + $0x90] sm:$0xff]
        %v5820 = vld [vmem:[%s53 + $0x98] sm:$0xff]
        %v5821 = vld [vmem:[%s55] sm:$0x3]
        %v5823 = vlaneseq
        %v5824 = vshrl.u32 %v5823, 7
        %v5825 = vsub.s32 0, %v5824
        %v5826 = vrot.slane %v5821, %v5825
        %v5827 = vlaneseq
        %v5828 = vshrl.u32 %v5827, 7
        %v5829 = vsub.s32 1, %v5828
        %v5830 = vrot.slane %v5821, %v5829
        %vm5833 = vcmask 654336
        %v5835 = vsel %vm5833, %v5800, 0
        %5837 = vmatprep.subr.mxu0 %v5802
        %5838 = vmatpush1.msra.mxu0 %v5801
        %5839 = vmatprep.subr.mxu0 %v5804
        %5840 = vmatpush1.msra.mxu0 %v5803
        %5841 = vmatprep.subr.mxu0 %v5806
        %5842 = vmatpush1.msra.mxu0 %v5805
        %5843 = vmatprep.subr.mxu0 %v5808
        %5844 = vmatpush1.msra.mxu0 %v5807
        %5845 = vmatprep.subr.mxu0 %v5810
        %5846 = vmatpush1.msra.mxu0 %v5809
        %5847 = vmatprep.subr.mxu0 %v5812
        %5848 = vmatpush1.msra.mxu0 %v5811
        %5849 = vmatprep.subr.mxu0 %v5814
        %5850 = vmatpush1.msra.mxu0 %v5813
        %5851 = vmatprep.subr.mxu0 %v5816
        %5852 = vmatpush1.msra.mxu0 %v5815
        %5853 = vmatprep.subr.mxu0 %v5818
        %5854 = vmatpush1.msra.mxu0 %v5817
        %5855 = vmatprep.subr.mxu0 %v5820
        %5856 = vmatpush1.msra.mxu0 %v5819
        %5857 = vmatprep.subr.mxu0 0.0
        %5858 = vmatpush1.msra.mxu0 0.0
        %5859 = vmatprep.subr.mxu0 0.0
        %5860 = vmatpush1.msra.mxu0 0.0
        %5861 = vmatprep.subr.mxu0 0.0
        %5862 = vmatpush1.msra.mxu0 0.0
        %5863 = vmatprep.subr.mxu0 0.0
        %5864 = vmatpush1.msra.mxu0 0.0
        %5865 = vmatprep.subr.mxu0 0.0
        %5866 = vmatpush1.msra.mxu0 0.0
        %5867 = vmatprep.subr.mxu0 0.0
        %5868 = vmatpush1.msra.mxu0 0.0
        %5869 = vmatprep.subr.mxu0 0.0
        %5870 = vmatpush1.msra.mxu0 0.0
        %5871 = vmatprep.subr.mxu0 0.0
        %5872 = vmatpush1.msra.mxu0 0.0
        %5873 = vmatprep.subr.mxu0 0.0
        %5874 = vmatpush1.msra.mxu0 0.0
        %5875 = vmatprep.subr.mxu0 0.0
        %5876 = vmatpush1.msra.mxu0 0.0
        %5877 = vmatprep.subr.mxu0 0.0
        %5878 = vmatpush1.msra.mxu0 0.0
        %5879 = vmatprep.subr.mxu0 0.0
        %5880 = vmatpush1.msra.mxu0 0.0
        %5881 = vmatprep.subr.mxu0 0.0
        %5882 = vmatpush1.msra.mxu0 0.0
        %5883 = vmatprep.subr.mxu0 0.0
        %5884 = vmatpush1.msra.mxu0 0.0
        %5885 = vmatprep.subr.mxu0 0.0
        %5886 = vmatpush1.msra.mxu0 0.0
        %5887 = vmatprep.subr.mxu0 0.0
        %5888 = vmatpush1.msra.mxu0 0.0
        %5889 = vmatprep.subr.mxu0 0.0
        %5890 = vmatpush1.msra.mxu0 0.0
        %5891 = vmatprep.subr.mxu0 0.0
        %5892 = vmatpush1.msra.mxu0 0.0
        %5893 = vmatprep.subr.mxu0 0.0
        %5894 = vmatpush1.msra.mxu0 0.0
        %5895 = vmatprep.subr.mxu0 0.0
        %5896 = vmatpush1.msra.mxu0 0.0
        %5897 = vmatprep.subr.mxu0 0.0
        %5898 = vmatpush1.msra.mxu0 0.0
        %5899 = vmatprep.subr.mxu0 0.0
        %5900 = vmatpush1.msra.mxu0 0.0
        %5901 = vmatprep.mubr.f32.mxu0 0.0
        %5902 = vmatmul.mubr.f32.gmra.mrb[0].mxu0 %v5835
        %v5903 = vpop.f32.mrb[0].mxu0
        %v5904 = vadd.f32 %v5826, %v5903
        %v5905 = vpop.f32.mrb[0].mxu0
        %v5906 = vadd.f32 %v5830, %v5905
        %5907 = vdwg.mxu0
        %v5908 = vxor.u32 %v5904, 2147483648
        %v5909 = vxor.u32 %v5906, 2147483648
        %v5910 = vmul.f32 %v5908, 1.442695
        %v5911 = vpow.pop %v5910
        %v5912 = vmul.f32 %v5909, 1.442695
        %v5913 = vpow.pop %v5912
        %v5914 = vadd.f32 %v5911, 1.0
        %v5915 = vadd.f32 %v5913, 1.0
        %v5916 = vrcp.pop %v5914
        %v5917 = vmul.f32 1.0, %v5916
        %v5918 = vrcp.pop %v5915
        %v5919 = vmul.f32 1.0, %v5918
        %v5920 = vlaneseq
        %v5921 = vshrl.u32 %v5920, 7
        %v5922 = vsub.s32 0, %v5921
        %v5923 = vrot.slane %v5917, %v5922
        %v5924 = vlaneseq
        %v5925 = vshrl.u32 %v5924, 7
        %v5926 = vsub.s32 0, %v5925
        %v5927 = vrot.slane %v5919, %v5926
        %v5928 = vmul.f32 %v5610, %v5923
        %v5929 = vmul.f32 %v5611, %v5927
        %v5930 = vmul.f32 %v5612, %v5923
        %v5931 = vmul.f32 %v5613, %v5927
        %v5932 = vmul.f32 %v5614, %v5923
        %v5933 = vmul.f32 %v5615, %v5927
        %v5934 = vmul.f32 %v5616, %v5923
        %v5935 = vmul.f32 %v5617, %v5927
        %v5936 = vmul.f32 %v5618, %v5923
        %v5937 = vmul.f32 %v5619, %v5927
        %v5938 = vmul.f32 %v5620, %v5923
        %v5939 = vmul.f32 %v5621, %v5927
        %v5940 = vmul.f32 %v5622, %v5923
        %v5941 = vmul.f32 %v5623, %v5927
        %v5942 = vmul.f32 %v5624, %v5923
        %v5943 = vmul.f32 %v5625, %v5927
        %v5944 = vmul.f32 %v5626, %v5923
        %v5945 = vmul.f32 %v5627, %v5927
        %v5946 = vmul.f32 %v5628, %v5923
        %v5947 = vmul.f32 %v5629, %v5927
        %v5948 = vmul.f32 %v5630, %v5923
        %v5949 = vmul.f32 %v5631, %v5927
        %v5950 = vmul.f32 %v5632, %v5923
        %v5951 = vmul.f32 %v5633, %v5927
        %v5952 = vmul.f32 %v5634, %v5923
        %v5953 = vmul.f32 %v5635, %v5927
        %v5954 = vmul.f32 %v5636, %v5923
        %v5955 = vmul.f32 %v5637, %v5927
        %v5956 = vmul.f32 %v5638, %v5923
        %v5957 = vmul.f32 %v5639, %v5927
        %v5958 = vmul.f32 %v5640, %v5923
        %v5959 = vmul.f32 %v5641, %v5927
        %v5960 = vmul.f32 %v5642, %v5923
        %v5961 = vmul.f32 %v5643, %v5927
        %v5962 = vmul.f32 %v5644, %v5923
        %v5963 = vmul.f32 %v5645, %v5927
        %v5964 = vmul.f32 %v5646, %v5923
        %v5965 = vmul.f32 %v5647, %v5927
        %v5966 = vmul.f32 %v5648, %v5923
        %v5967 = vmul.f32 %v5649, %v5927
        %v5968 = vmul.f32 %v5650, %v5923
        %v5969 = vmul.f32 %v5651, %v5927
        %v5970 = vmul.f32 %v5652, %v5923
        %v5971 = vmul.f32 %v5653, %v5927
        %v5972 = vmul.f32 %v5654, %v5923
        %v5973 = vmul.f32 %v5655, %v5927
        %v5974 = vmul.f32 %v5656, %v5923
        %v5975 = vmul.f32 %v5657, %v5927
        %v5976 = vmul.f32 %v5658, %v5923
        %v5977 = vmul.f32 %v5659, %v5927
        %v5978 = vmul.f32 %v5660, %v5923
        %v5979 = vmul.f32 %v5661, %v5927
        %v5980 = vmul.f32 %v5662, %v5923
        %v5981 = vmul.f32 %v5663, %v5927
        %v5982 = vmul.f32 %v5664, %v5923
        %v5983 = vmul.f32 %v5665, %v5927
        %v5984 = vmul.f32 %v5666, %v5923
        %v5985 = vmul.f32 %v5667, %v5927
        %v5986 = vmul.f32 %v5668, %v5923
        %v5987 = vmul.f32 %v5669, %v5927
        %v5988 = vld [vmem:[%s21] sm:$0xf]
        %v5989 = vld [vmem:[%s21 + $0x4] sm:$0xf]
        %v5990 = vld [vmem:[%s21 + $0x8] sm:$0xf]
        %v5991 = vld [vmem:[%s21 + $0xc] sm:$0xf]
        %v5992 = vld [vmem:[%s21 + $0x10] sm:$0xf]
        %v5993 = vld [vmem:[%s21 + $0x14] sm:$0xf]
        %v5994 = vld [vmem:[%s21 + $0x18] sm:$0xf]
        %v5995 = vld [vmem:[%s21 + $0x1c] sm:$0xf]
        %v5996 = vld [vmem:[%s21 + $0x20] sm:$0xf]
        %v5997 = vld [vmem:[%s21 + $0x24] sm:$0xf]
        %v5998 = vld [vmem:[%s21 + $0x28] sm:$0xf]
        %v5999 = vld [vmem:[%s21 + $0x2c] sm:$0xf]
        %v6000 = vld [vmem:[%s21 + $0x30] sm:$0xf]
        %v6001 = vld [vmem:[%s21 + $0x34] sm:$0xf]
        %v6002 = vld [vmem:[%s21 + $0x38] sm:$0xf]
        %v6003 = vld [vmem:[%s21 + $0x3c] sm:$0xf]
        %v6004 = vld [vmem:[%s21 + $0x40] sm:$0xf]
        %v6005 = vld [vmem:[%s21 + $0x44] sm:$0xf]
        %v6006 = vld [vmem:[%s21 + $0x48] sm:$0xf]
        %v6007 = vld [vmem:[%s21 + $0x4c] sm:$0xf]
        %v6008 = vld [vmem:[%s21 + $0x50] sm:$0xf]
        %v6009 = vld [vmem:[%s21 + $0x54] sm:$0xf]
        %v6010 = vld [vmem:[%s21 + $0x58] sm:$0xf]
        %v6011 = vld [vmem:[%s21 + $0x5c] sm:$0xf]
        %v6012 = vld [vmem:[%s21 + $0x60] sm:$0xf]
        %v6013 = vld [vmem:[%s21 + $0x64] sm:$0xf]
        %v6014 = vld [vmem:[%s21 + $0x68] sm:$0xf]
        %v6015 = vld [vmem:[%s21 + $0x6c] sm:$0xf]
        %v6016 = vld [vmem:[%s21 + $0x70] sm:$0xf]
        %v6017 = vld [vmem:[%s21 + $0x74] sm:$0xf]
        %v6018 = vld [vmem:[%s21 + $0x78] sm:$0xf]
        %v6019 = vld [vmem:[%s21 + $0x7c] sm:$0xf]
        %v6020 = vld [vmem:[%s21 + $0x80] sm:$0xf]
        %v6021 = vld [vmem:[%s21 + $0x84] sm:$0xf]
        %v6022 = vld [vmem:[%s21 + $0x88] sm:$0xf]
        %v6023 = vld [vmem:[%s21 + $0x8c] sm:$0xf]
        %v6024 = vld [vmem:[%s21 + $0x90] sm:$0xf]
        %v6025 = vld [vmem:[%s21 + $0x94] sm:$0xf]
        %v6026 = vld [vmem:[%s21 + $0x98] sm:$0xf]
        %v6027 = vld [vmem:[%s21 + $0x9c] sm:$0xf]
        %v6028 = vld [vmem:[%s21 + $0xa0] sm:$0xf]
        %v6029 = vld [vmem:[%s21 + $0xa4] sm:$0xf]
        %v6030 = vld [vmem:[%s21 + $0xa8] sm:$0xf]
        %v6031 = vld [vmem:[%s21 + $0xac] sm:$0xf]
        %v6032 = vld [vmem:[%s21 + $0xb0] sm:$0xf]
        %v6033 = vld [vmem:[%s21 + $0xb4] sm:$0xf]
        %v6034 = vld [vmem:[%s21 + $0xb8] sm:$0xf]
        %v6035 = vld [vmem:[%s21 + $0xbc] sm:$0xf]
        %v6036 = vld [vmem:[%s21 + $0xc0] sm:$0xf]
        %v6037 = vld [vmem:[%s21 + $0xc4] sm:$0xf]
        %v6038 = vld [vmem:[%s21 + $0xc8] sm:$0xf]
        %v6039 = vld [vmem:[%s21 + $0xcc] sm:$0xf]
        %v6040 = vld [vmem:[%s21 + $0xd0] sm:$0xf]
        %v6041 = vld [vmem:[%s21 + $0xd4] sm:$0xf]
        %v6042 = vld [vmem:[%s21 + $0xd8] sm:$0xf]
        %v6043 = vld [vmem:[%s21 + $0xdc] sm:$0xf]
        %v6044 = vld [vmem:[%s21 + $0xe0] sm:$0xf]
        %v6045 = vld [vmem:[%s21 + $0xe4] sm:$0xf]
        %v6046 = vld [vmem:[%s21 + $0xe8] sm:$0xf]
        %v6047 = vld [vmem:[%s21 + $0xec] sm:$0xf]
        %v6048 = vld [vmem:[%s21 + $0xf0] sm:$0xf]
        %v6049 = vld [vmem:[%s21 + $0xf4] sm:$0xf]
        %v6050 = vld [vmem:[%s21 + $0xf8] sm:$0xf]
        %v6051 = vld [vmem:[%s21 + $0xfc] sm:$0xf]
        %v6052 = vld [vmem:[%s21 + $0x100] sm:$0xf]
        %v6053 = vld [vmem:[%s21 + $0x104] sm:$0xf]
        %v6054 = vld [vmem:[%s21 + $0x108] sm:$0xf]
        %v6055 = vld [vmem:[%s21 + $0x10c] sm:$0xf]
        %v6056 = vld [vmem:[%s21 + $0x110] sm:$0xf]
        %v6057 = vld [vmem:[%s21 + $0x114] sm:$0xf]
        %v6058 = vld [vmem:[%s21 + $0x118] sm:$0xf]
        %v6059 = vld [vmem:[%s21 + $0x11c] sm:$0xf]
        %v6060 = vld [vmem:[%s21 + $0x120] sm:$0xf]
        %v6061 = vld [vmem:[%s21 + $0x124] sm:$0xf]
        %v6062 = vld [vmem:[%s21 + $0x128] sm:$0xf]
        %v6063 = vld [vmem:[%s21 + $0x12c] sm:$0xf]
        %v6064 = vld [vmem:[%s21 + $0x130] sm:$0xf]
        %v6065 = vld [vmem:[%s21 + $0x134] sm:$0xf]
        %v6066 = vld [vmem:[%s21 + $0x138] sm:$0xf]
        %v6067 = vld [vmem:[%s21 + $0x13c] sm:$0xf]
        %v6068 = vld [vmem:[%s21 + $0x140] sm:$0xf]
        %v6069 = vld [vmem:[%s21 + $0x144] sm:$0xf]
        %v6070 = vld [vmem:[%s21 + $0x148] sm:$0xf]
        %v6071 = vld [vmem:[%s21 + $0x14c] sm:$0xf]
        %v6072 = vld [vmem:[%s21 + $0x150] sm:$0xf]
        %v6073 = vld [vmem:[%s21 + $0x154] sm:$0xf]
        %v6074 = vld [vmem:[%s21 + $0x158] sm:$0xf]
        %v6075 = vld [vmem:[%s21 + $0x15c] sm:$0xf]
        %v6076 = vld [vmem:[%s21 + $0x160] sm:$0xf]
        %v6077 = vld [vmem:[%s21 + $0x164] sm:$0xf]
        %v6078 = vld [vmem:[%s21 + $0x168] sm:$0xf]
        %v6079 = vld [vmem:[%s21 + $0x16c] sm:$0xf]
        %v6080 = vld [vmem:[%s21 + $0x170] sm:$0xf]
        %v6081 = vld [vmem:[%s21 + $0x174] sm:$0xf]
        %v6082 = vld [vmem:[%s21 + $0x178] sm:$0xf]
        %v6083 = vld [vmem:[%s21 + $0x17c] sm:$0xf]
        %v6084 = vld [vmem:[%s21 + $0x180] sm:$0xf]
        %v6085 = vld [vmem:[%s21 + $0x184] sm:$0xf]
        %v6086 = vld [vmem:[%s21 + $0x188] sm:$0xf]
        %v6087 = vld [vmem:[%s21 + $0x18c] sm:$0xf]
        %v6088 = vld [vmem:[%s21 + $0x190] sm:$0xf]
        %v6089 = vld [vmem:[%s21 + $0x194] sm:$0xf]
        %v6090 = vld [vmem:[%s21 + $0x198] sm:$0xf]
        %v6091 = vld [vmem:[%s21 + $0x19c] sm:$0xf]
        %v6092 = vld [vmem:[%s21 + $0x1a0] sm:$0xf]
        %v6093 = vld [vmem:[%s21 + $0x1a4] sm:$0xf]
        %v6094 = vld [vmem:[%s21 + $0x1a8] sm:$0xf]
        %v6095 = vld [vmem:[%s21 + $0x1ac] sm:$0xf]
        %v6096 = vld [vmem:[%s21 + $0x1b0] sm:$0xf]
        %v6097 = vld [vmem:[%s21 + $0x1b4] sm:$0xf]
        %v6098 = vld [vmem:[%s21 + $0x1b8] sm:$0xf]
        %v6099 = vld [vmem:[%s21 + $0x1bc] sm:$0xf]
        %v6100 = vld [vmem:[%s21 + $0x1c0] sm:$0xf]
        %v6101 = vld [vmem:[%s21 + $0x1c4] sm:$0xf]
        %v6102 = vld [vmem:[%s21 + $0x1c8] sm:$0xf]
        %v6103 = vld [vmem:[%s21 + $0x1cc] sm:$0xf]
        %v6104 = vld [vmem:[%s21 + $0x1d0] sm:$0xf]
        %v6105 = vld [vmem:[%s21 + $0x1d4] sm:$0xf]
        %v6106 = vld [vmem:[%s21 + $0x1d8] sm:$0xf]
        %v6107 = vld [vmem:[%s21 + $0x1dc] sm:$0xf]
        %v6108 = vld [vmem:[%s21 + $0x1e0] sm:$0xf]
        %v6109 = vld [vmem:[%s21 + $0x1e4] sm:$0xf]
        %v6110 = vld [vmem:[%s21 + $0x1e8] sm:$0xf]
        %v6111 = vld [vmem:[%s21 + $0x1ec] sm:$0xf]
        %v6112 = vld [vmem:[%s21 + $0x1f0] sm:$0xf]
        %v6113 = vld [vmem:[%s21 + $0x1f4] sm:$0xf]
        %v6114 = vld [vmem:[%s21 + $0x1f8] sm:$0xf]
        %v6115 = vld [vmem:[%s21 + $0x1fc] sm:$0xf]
        %v6116 = vld [vmem:[%s21 + $0x200] sm:$0xf]
        %v6117 = vld [vmem:[%s21 + $0x204] sm:$0xf]
        %v6118 = vld [vmem:[%s21 + $0x208] sm:$0xf]
        %v6119 = vld [vmem:[%s21 + $0x20c] sm:$0xf]
        %v6120 = vld [vmem:[%s21 + $0x210] sm:$0xf]
        %v6121 = vld [vmem:[%s21 + $0x214] sm:$0xf]
        %v6122 = vld [vmem:[%s21 + $0x218] sm:$0xf]
        %v6123 = vld [vmem:[%s21 + $0x21c] sm:$0xf]
        %v6124 = vld [vmem:[%s21 + $0x220] sm:$0xf]
        %v6125 = vld [vmem:[%s21 + $0x224] sm:$0xf]
        %v6126 = vld [vmem:[%s21 + $0x228] sm:$0xf]
        %v6127 = vld [vmem:[%s21 + $0x22c] sm:$0xf]
        %v6128 = vld [vmem:[%s21 + $0x230] sm:$0xf]
        %v6129 = vld [vmem:[%s21 + $0x234] sm:$0xf]
        %v6130 = vld [vmem:[%s21 + $0x238] sm:$0xf]
        %v6131 = vld [vmem:[%s21 + $0x23c] sm:$0xf]
        %v6132 = vld [vmem:[%s21 + $0x240] sm:$0xf]
        %v6133 = vld [vmem:[%s21 + $0x244] sm:$0xf]
        %v6134 = vld [vmem:[%s21 + $0x248] sm:$0xf]
        %v6135 = vld [vmem:[%s21 + $0x24c] sm:$0xf]
        %v6136 = vld [vmem:[%s21 + $0x250] sm:$0xf]
        %v6137 = vld [vmem:[%s21 + $0x254] sm:$0xf]
        %v6138 = vld [vmem:[%s21 + $0x258] sm:$0xf]
        %v6139 = vld [vmem:[%s21 + $0x25c] sm:$0xf]
        %v6140 = vld [vmem:[%s21 + $0x260] sm:$0xf]
        %v6141 = vld [vmem:[%s21 + $0x264] sm:$0xf]
        %v6142 = vld [vmem:[%s21 + $0x268] sm:$0xf]
        %v6143 = vld [vmem:[%s21 + $0x26c] sm:$0xf]
        %v6144 = vld [vmem:[%s21 + $0x270] sm:$0xf]
        %v6145 = vld [vmem:[%s21 + $0x274] sm:$0xf]
        %v6146 = vld [vmem:[%s21 + $0x278] sm:$0xf]
        %v6147 = vld [vmem:[%s21 + $0x27c] sm:$0xf]
        %v6148 = vld [vmem:[%s21 + $0x280] sm:$0xf]
        %v6149 = vld [vmem:[%s21 + $0x284] sm:$0xf]
        %v6150 = vld [vmem:[%s21 + $0x288] sm:$0xf]
        %v6151 = vld [vmem:[%s21 + $0x28c] sm:$0xf]
        %v6152 = vld [vmem:[%s21 + $0x290] sm:$0xf]
        %v6153 = vld [vmem:[%s21 + $0x294] sm:$0xf]
        %v6154 = vld [vmem:[%s21 + $0x298] sm:$0xf]
        %v6155 = vld [vmem:[%s21 + $0x29c] sm:$0xf]
        %v6156 = vld [vmem:[%s21 + $0x2a0] sm:$0xf]
        %v6157 = vld [vmem:[%s21 + $0x2a4] sm:$0xf]
        %v6158 = vld [vmem:[%s21 + $0x2a8] sm:$0xf]
        %v6159 = vld [vmem:[%s21 + $0x2ac] sm:$0xf]
        %v6160 = vld [vmem:[%s21 + $0x2b0] sm:$0xf]
        %v6161 = vld [vmem:[%s21 + $0x2b4] sm:$0xf]
        %v6162 = vld [vmem:[%s21 + $0x2b8] sm:$0xf]
        %v6163 = vld [vmem:[%s21 + $0x2bc] sm:$0xf]
        %v6164 = vld [vmem:[%s21 + $0x2c0] sm:$0xf]
        %v6165 = vld [vmem:[%s21 + $0x2c4] sm:$0xf]
        %v6166 = vld [vmem:[%s21 + $0x2c8] sm:$0xf]
        %v6167 = vld [vmem:[%s21 + $0x2cc] sm:$0xf]
        %v6200 = vrot.slane %v5928, 7
        %v6201 = vrot.slane %v5930, 7
        %v6202 = vsel %vm1183, %v6200, %v6201
        %v6203 = vrot.slane %v5929, 7
        %v6204 = vrot.slane %v5931, 7
        %v6205 = vsel %vm1183, %v6203, %v6204
        %v6206 = vrot.slane %v5934, 7
        %v6207 = vrot.slane %v5936, 7
        %v6208 = vsel %vm1183, %v6206, %v6207
        %v6209 = vrot.slane %v5935, 7
        %v6210 = vrot.slane %v5937, 7
        %v6211 = vsel %vm1183, %v6209, %v6210
        %v6212 = vrot.slane %v5940, 7
        %v6213 = vrot.slane %v5942, 7
        %v6214 = vsel %vm1183, %v6212, %v6213
        %v6215 = vrot.slane %v5941, 7
        %v6216 = vrot.slane %v5943, 7
        %v6217 = vsel %vm1183, %v6215, %v6216
        %v6218 = vrot.slane %v5946, 7
        %v6219 = vrot.slane %v5948, 7
        %v6220 = vsel %vm1183, %v6218, %v6219
        %v6221 = vrot.slane %v5947, 7
        %v6222 = vrot.slane %v5949, 7
        %v6223 = vsel %vm1183, %v6221, %v6222
        %v6224 = vrot.slane %v5952, 7
        %v6225 = vrot.slane %v5954, 7
        %v6226 = vsel %vm1183, %v6224, %v6225
        %v6227 = vrot.slane %v5953, 7
        %v6228 = vrot.slane %v5955, 7
        %v6229 = vsel %vm1183, %v6227, %v6228
        %v6230 = vrot.slane %v5958, 7
        %v6231 = vrot.slane %v5960, 7
        %v6232 = vsel %vm1183, %v6230, %v6231
        %v6233 = vrot.slane %v5959, 7
        %v6234 = vrot.slane %v5961, 7
        %v6235 = vsel %vm1183, %v6233, %v6234
        %v6236 = vrot.slane %v5964, 7
        %v6237 = vrot.slane %v5966, 7
        %v6238 = vsel %vm1183, %v6236, %v6237
        %v6239 = vrot.slane %v5965, 7
        %v6240 = vrot.slane %v5967, 7
        %v6241 = vsel %vm1183, %v6239, %v6240
        %v6242 = vrot.slane %v5970, 7
        %v6243 = vrot.slane %v5972, 7
        %v6244 = vsel %vm1183, %v6242, %v6243
        %v6245 = vrot.slane %v5971, 7
        %v6246 = vrot.slane %v5973, 7
        %v6247 = vsel %vm1183, %v6245, %v6246
        %v6264 = vpack.c.bf16 %v6208, %v6202
        %v6265 = vpack.c.bf16 %v6211, %v6205
        %v6266 = vpack.c.bf16 %v6220, %v6214
        %v6267 = vpack.c.bf16 %v6223, %v6217
        %v6268 = vpack.c.bf16 %v6232, %v6226
        %v6269 = vpack.c.bf16 %v6235, %v6229
        %v6270 = vpack.c.bf16 %v6244, %v6238
        %v6271 = vpack.c.bf16 %v6247, %v6241
        %v6272 = vpack.c.bf16 %v5936, %v5930
        %v6273 = vpack.c.bf16 %v5937, %v5931
        %v6274 = vpack.c.bf16 %v5948, %v5942
        %v6275 = vpack.c.bf16 %v5949, %v5943
        %v6276 = vpack.c.bf16 %v5960, %v5954
        %v6277 = vpack.c.bf16 %v5961, %v5955
        %v6278 = vpack.c.bf16 %v5972, %v5966
        %v6279 = vpack.c.bf16 %v5973, %v5967
        %v6300 = vunpack.c.l.b16 %v6008
        %v6301 = vunpack.c.l.b16 %v6009
        %v6302 = vunpack.c.l.b16 %v6010
        %v6303 = vunpack.c.l.b16 %v6011
        %v6304 = vunpack.c.l.b16 %v6012
        %v6305 = vunpack.c.l.b16 %v6013
        %v6306 = vunpack.c.l.b16 %v6014
        %v6307 = vunpack.c.l.b16 %v6015
        %v6308 = vunpack.c.l.b16 %v6016
        %v6309 = vunpack.c.l.b16 %v6017
        %v6310 = vunpack.c.l.b16 %v6018
        %v6311 = vunpack.c.l.b16 %v6019
        %v6312 = vunpack.c.l.b16 %v6020
        %v6313 = vunpack.c.l.b16 %v6021
        %v6314 = vunpack.c.l.b16 %v6022
        %v6315 = vunpack.c.l.b16 %v6023
        %v6316 = vunpack.c.l.b16 %v6024
        %v6317 = vunpack.c.l.b16 %v6025
        %v6318 = vunpack.c.l.b16 %v6026
        %v6319 = vunpack.c.l.b16 %v6027
        %v6320 = vpack.c.b16 %v6301, %v6300
        %v6321 = vpack.c.b16 %v6303, %v6302
        %v6322 = vpack.c.b16 %v6305, %v6304
        %v6323 = vpack.c.b16 %v6307, %v6306
        %v6324 = vpack.c.b16 %v6309, %v6308
        %v6325 = vpack.c.b16 %v6311, %v6310
        %v6326 = vpack.c.b16 %v6313, %v6312
        %v6327 = vpack.c.b16 %v6315, %v6314
        %v6328 = vpack.c.b16 %v6317, %v6316
        %v6329 = vpack.c.b16 %v6319, %v6318
        %v6341 = vsel %vm5601, %v6273, 0
        %v6344 = vsel %vm5601, %v6275, 0
        %v6347 = vsel %vm5601, %v6277, 0
        %v6350 = vsel %vm5601, %v6279, 0
        %6352 = vmatprep.subr.bf16.mxu0 0
        %6353 = vmatpush1.bf16.msra.mxu0 %v6320
        %6354 = vmatprep.subr.bf16.mxu0 0
        %6355 = vmatpush1.bf16.msra.mxu0 %v6321
        %6356 = vmatprep.subr.bf16.mxu0 0
        %6357 = vmatpush1.bf16.msra.mxu0 %v6322
        %6358 = vmatprep.subr.bf16.mxu0 0
        %6359 = vmatpush1.bf16.msra.mxu0 %v6323
        %6360 = vmatprep.subr.bf16.mxu0 0
        %6361 = vmatpush1.bf16.msra.mxu0 %v6324
        %6362 = vmatprep.subr.bf16.mxu0 0
        %6363 = vmatpush1.bf16.msra.mxu0 %v6325
        %6364 = vmatprep.subr.bf16.mxu0 0
        %6365 = vmatpush1.bf16.msra.mxu0 %v6326
        %6366 = vmatprep.subr.bf16.mxu0 0
        %6367 = vmatpush1.bf16.msra.mxu0 %v6327
        %6368 = vmatprep.subr.bf16.mxu0 0
        %6369 = vmatpush1.bf16.msra.mxu0 %v6328
        %6370 = vmatprep.subr.bf16.mxu0 0
        %6371 = vmatpush1.bf16.msra.mxu0 %v6329
        %6372 = vmatprep.subr.bf16.mxu0 0
        %6373 = vmatpush1.bf16.msra.mxu0 0
        %6374 = vmatprep.subr.bf16.mxu0 0
        %6375 = vmatpush1.bf16.msra.mxu0 0
        %6376 = vmatprep.subr.bf16.mxu0 0
        %6377 = vmatpush1.bf16.msra.mxu0 0
        %6378 = vmatprep.subr.bf16.mxu0 0
        %6379 = vmatpush1.bf16.msra.mxu0 0
        %6380 = vmatprep.subr.bf16.mxu0 0
        %6381 = vmatpush1.bf16.msra.mxu0 0
        %6382 = vmatprep.subr.bf16.mxu0 0
        %6383 = vmatpush1.bf16.msra.mxu0 0
        %6384 = vmatprep.mubr.bf16.mxu0 %v6341
        %6385 = vmatmul.mubr.bf16.gmra.mrb[0].mxu0 %v6272
        %v6386 = vpop.f32.mrb[0].mxu0
        %v6387 = vadd.f32 0.0, %v6386
        %v6388 = vpop.f32.mrb[0].mxu0
        %v6389 = vpop.f32.mrb[0].mxu0
        %v6390 = vadd.f32 0.0, %v6389
        %v6391 = vpop.f32.mrb[0].mxu0
        %6392 = vmatprep.mubr.bf16.mxu0 %v6344
        %6393 = vmatmul.mubr.bf16.gmra.mrb[0].mxu0 %v6274
        %v6394 = vpop.f32.mrb[0].mxu0
        %v6395 = vadd.f32 0.0, %v6394
        %v6396 = vpop.f32.mrb[0].mxu0
        %v6397 = vpop.f32.mrb[0].mxu0
        %v6398 = vadd.f32 0.0, %v6397
        %v6399 = vpop.f32.mrb[0].mxu0
        %6400 = vmatprep.mubr.bf16.mxu0 %v6347
        %6401 = vmatmul.mubr.bf16.gmra.mrb[0].mxu0 %v6276
        %v6402 = vpop.f32.mrb[0].mxu0
        %v6403 = vadd.f32 0.0, %v6402
        %v6404 = vpop.f32.mrb[0].mxu0
        %v6405 = vpop.f32.mrb[0].mxu0
        %v6406 = vadd.f32 0.0, %v6405
        %v6407 = vpop.f32.mrb[0].mxu0
        %6408 = vmatprep.mubr.bf16.mxu0 %v6350
        %6409 = vmatmul.mubr.bf16.gmra.mrb[0].mxu0 %v6278
        %v6410 = vpop.f32.mrb[0].mxu0
        %v6411 = vadd.f32 0.0, %v6410
        %v6412 = vpop.f32.mrb[0].mxu0
        %v6413 = vpop.f32.mrb[0].mxu0
        %v6414 = vadd.f32 0.0, %v6413
        %v6415 = vpop.f32.mrb[0].mxu0
        %6416 = vdwg.mxu0
        %v6437 = vunpack.c.l.b16 %v5988
        %v6438 = vunpack.c.l.b16 %v5989
        %v6439 = vunpack.c.l.b16 %v5990
        %v6440 = vunpack.c.l.b16 %v5991
        %v6441 = vunpack.c.l.b16 %v5992
        %v6442 = vunpack.c.l.b16 %v5993
        %v6443 = vunpack.c.l.b16 %v5994
        %v6444 = vunpack.c.l.b16 %v5995
        %v6445 = vunpack.c.l.b16 %v5996
        %v6446 = vunpack.c.l.b16 %v5997
        %v6447 = vunpack.c.l.b16 %v5998
        %v6448 = vunpack.c.l.b16 %v5999
        %v6449 = vunpack.c.l.b16 %v6000
        %v6450 = vunpack.c.l.b16 %v6001
        %v6451 = vunpack.c.l.b16 %v6002
        %v6452 = vunpack.c.l.b16 %v6003
        %v6453 = vunpack.c.l.b16 %v6004
        %v6454 = vunpack.c.l.b16 %v6005
        %v6455 = vunpack.c.l.b16 %v6006
        %v6456 = vunpack.c.l.b16 %v6007
        %v6457 = vpack.c.b16 %v6438, %v6437
        %v6458 = vpack.c.b16 %v6440, %v6439
        %v6459 = vpack.c.b16 %v6442, %v6441
        %v6460 = vpack.c.b16 %v6444, %v6443
        %v6461 = vpack.c.b16 %v6446, %v6445
        %v6462 = vpack.c.b16 %v6448, %v6447
        %v6463 = vpack.c.b16 %v6450, %v6449
        %v6464 = vpack.c.b16 %v6452, %v6451
        %v6465 = vpack.c.b16 %v6454, %v6453
        %v6466 = vpack.c.b16 %v6456, %v6455
        %v6478 = vsel %vm5601, %v6265, 0
        %v6481 = vsel %vm5601, %v6267, 0
        %v6484 = vsel %vm5601, %v6269, 0
        %v6487 = vsel %vm5601, %v6271, 0
        %6489 = vmatprep.subr.bf16.mxu0 0
        %6490 = vmatpush1.bf16.msra.mxu0 %v6457
        %6491 = vmatprep.subr.bf16.mxu0 0
        %6492 = vmatpush1.bf16.msra.mxu0 %v6458
        %6493 = vmatprep.subr.bf16.mxu0 0
        %6494 = vmatpush1.bf16.msra.mxu0 %v6459
        %6495 = vmatprep.subr.bf16.mxu0 0
        %6496 = vmatpush1.bf16.msra.mxu0 %v6460
        %6497 = vmatprep.subr.bf16.mxu0 0
        %6498 = vmatpush1.bf16.msra.mxu0 %v6461
        %6499 = vmatprep.subr.bf16.mxu0 0
        %6500 = vmatpush1.bf16.msra.mxu0 %v6462
        %6501 = vmatprep.subr.bf16.mxu0 0
        %6502 = vmatpush1.bf16.msra.mxu0 %v6463
        %6503 = vmatprep.subr.bf16.mxu0 0
        %6504 = vmatpush1.bf16.msra.mxu0 %v6464
        %6505 = vmatprep.subr.bf16.mxu0 0
        %6506 = vmatpush1.bf16.msra.mxu0 %v6465
        %6507 = vmatprep.subr.bf16.mxu0 0
        %6508 = vmatpush1.bf16.msra.mxu0 %v6466
        %6509 = vmatprep.subr.bf16.mxu0 0
        %6510 = vmatpush1.bf16.msra.mxu0 0
        %6511 = vmatprep.subr.bf16.mxu0 0
        %6512 = vmatpush1.bf16.msra.mxu0 0
        %6513 = vmatprep.subr.bf16.mxu0 0
        %6514 = vmatpush1.bf16.msra.mxu0 0
        %6515 = vmatprep.subr.bf16.mxu0 0
        %6516 = vmatpush1.bf16.msra.mxu0 0
        %6517 = vmatprep.subr.bf16.mxu0 0
        %6518 = vmatpush1.bf16.msra.mxu0 0
        %6519 = vmatprep.subr.bf16.mxu0 0
        %6520 = vmatpush1.bf16.msra.mxu0 0
        %6521 = vmatprep.mubr.bf16.mxu0 %v6478
        %6522 = vmatmul.mubr.bf16.gmra.mrb[0].mxu0 %v6264
        %v6523 = vpop.f32.mrb[0].mxu0
        %v6524 = vadd.f32 %v6387, %v6523
        %v6525 = vpop.f32.mrb[0].mxu0
        %v6526 = vpop.f32.mrb[0].mxu0
        %v6527 = vadd.f32 %v6390, %v6526
        %v6528 = vpop.f32.mrb[0].mxu0
        %6529 = vmatprep.mubr.bf16.mxu0 %v6481
        %6530 = vmatmul.mubr.bf16.gmra.mrb[0].mxu0 %v6266
        %v6531 = vpop.f32.mrb[0].mxu0
        %v6532 = vadd.f32 %v6395, %v6531
        %v6533 = vpop.f32.mrb[0].mxu0
        %v6534 = vpop.f32.mrb[0].mxu0
        %v6535 = vadd.f32 %v6398, %v6534
        %v6536 = vpop.f32.mrb[0].mxu0
        %6537 = vmatprep.mubr.bf16.mxu0 %v6484
        %6538 = vmatmul.mubr.bf16.gmra.mrb[0].mxu0 %v6268
        %v6539 = vpop.f32.mrb[0].mxu0
        %v6540 = vadd.f32 %v6403, %v6539
        %v6541 = vpop.f32.mrb[0].mxu0
        %v6542 = vpop.f32.mrb[0].mxu0
        %v6543 = vadd.f32 %v6406, %v6542
        %v6544 = vpop.f32.mrb[0].mxu0
        %6545 = vmatprep.mubr.bf16.mxu0 %v6487
        %6546 = vmatmul.mubr.bf16.gmra.mrb[0].mxu0 %v6270
        %v6547 = vpop.f32.mrb[0].mxu0
        %v6548 = vadd.f32 %v6411, %v6547
        %v6549 = vpop.f32.mrb[0].mxu0
        %v6550 = vpop.f32.mrb[0].mxu0
        %v6551 = vadd.f32 %v6414, %v6550
        %v6552 = vpop.f32.mrb[0].mxu0
        %6553 = vdwg.mxu0
        %v6570 = vrot.slane %v5930, 1
        %v6571 = vrot.slane %v5932, 1
        %v6572 = vsel %vm1434, %v6570, %v6571
        %v6573 = vrot.slane %v5931, 1
        %v6574 = vrot.slane %v5933, 1
        %v6575 = vsel %vm1434, %v6573, %v6574
        %v6576 = vrot.slane %v5936, 1
        %v6577 = vrot.slane %v5938, 1
        %v6578 = vsel %vm1434, %v6576, %v6577
        %v6579 = vrot.slane %v5937, 1
        %v6580 = vrot.slane %v5939, 1
        %v6581 = vsel %vm1434, %v6579, %v6580
        %v6582 = vrot.slane %v5942, 1
        %v6583 = vrot.slane %v5944, 1
        %v6584 = vsel %vm1434, %v6582, %v6583
        %v6585 = vrot.slane %v5943, 1
        %v6586 = vrot.slane %v5945, 1
        %v6587 = vsel %vm1434, %v6585, %v6586
        %v6588 = vrot.slane %v5948, 1
        %v6589 = vrot.slane %v5950, 1
        %v6590 = vsel %vm1434, %v6588, %v6589
        %v6591 = vrot.slane %v5949, 1
        %v6592 = vrot.slane %v5951, 1
        %v6593 = vsel %vm1434, %v6591, %v6592
        %v6594 = vrot.slane %v5954, 1
        %v6595 = vrot.slane %v5956, 1
        %v6596 = vsel %vm1434, %v6594, %v6595
        %v6597 = vrot.slane %v5955, 1
        %v6598 = vrot.slane %v5957, 1
        %v6599 = vsel %vm1434, %v6597, %v6598
        %v6600 = vrot.slane %v5960, 1
        %v6601 = vrot.slane %v5962, 1
        %v6602 = vsel %vm1434, %v6600, %v6601
        %v6603 = vrot.slane %v5961, 1
        %v6604 = vrot.slane %v5963, 1
        %v6605 = vsel %vm1434, %v6603, %v6604
        %v6606 = vrot.slane %v5966, 1
        %v6607 = vrot.slane %v5968, 1
        %v6608 = vsel %vm1434, %v6606, %v6607
        %v6609 = vrot.slane %v5967, 1
        %v6610 = vrot.slane %v5969, 1
        %v6611 = vsel %vm1434, %v6609, %v6610
        %v6612 = vrot.slane %v5972, 1
        %v6613 = vrot.slane %v5974, 1
        %v6614 = vsel %vm1434, %v6612, %v6613
        %v6615 = vrot.slane %v5973, 1
        %v6616 = vrot.slane %v5975, 1
        %v6617 = vsel %vm1434, %v6615, %v6616
        %v6634 = vpack.c.bf16 %v6578, %v6572
        %v6635 = vpack.c.bf16 %v6581, %v6575
        %v6636 = vpack.c.bf16 %v6590, %v6584
        %v6637 = vpack.c.bf16 %v6593, %v6587
        %v6638 = vpack.c.bf16 %v6602, %v6596
        %v6639 = vpack.c.bf16 %v6605, %v6599
        %v6640 = vpack.c.bf16 %v6614, %v6608
        %v6641 = vpack.c.bf16 %v6617, %v6611
        %v6662 = vunpack.c.l.b16 %v6028
        %v6663 = vunpack.c.l.b16 %v6029
        %v6664 = vunpack.c.l.b16 %v6030
        %v6665 = vunpack.c.l.b16 %v6031
        %v6666 = vunpack.c.l.b16 %v6032
        %v6667 = vunpack.c.l.b16 %v6033
        %v6668 = vunpack.c.l.b16 %v6034
        %v6669 = vunpack.c.l.b16 %v6035
        %v6670 = vunpack.c.l.b16 %v6036
        %v6671 = vunpack.c.l.b16 %v6037
        %v6672 = vunpack.c.l.b16 %v6038
        %v6673 = vunpack.c.l.b16 %v6039
        %v6674 = vunpack.c.l.b16 %v6040
        %v6675 = vunpack.c.l.b16 %v6041
        %v6676 = vunpack.c.l.b16 %v6042
        %v6677 = vunpack.c.l.b16 %v6043
        %v6678 = vunpack.c.l.b16 %v6044
        %v6679 = vunpack.c.l.b16 %v6045
        %v6680 = vunpack.c.l.b16 %v6046
        %v6681 = vunpack.c.l.b16 %v6047
        %v6682 = vpack.c.b16 %v6663, %v6662
        %v6683 = vpack.c.b16 %v6665, %v6664
        %v6684 = vpack.c.b16 %v6667, %v6666
        %v6685 = vpack.c.b16 %v6669, %v6668
        %v6686 = vpack.c.b16 %v6671, %v6670
        %v6687 = vpack.c.b16 %v6673, %v6672
        %v6688 = vpack.c.b16 %v6675, %v6674
        %v6689 = vpack.c.b16 %v6677, %v6676
        %v6690 = vpack.c.b16 %v6679, %v6678
        %v6691 = vpack.c.b16 %v6681, %v6680
        %v6703 = vsel %vm5601, %v6635, 0
        %v6706 = vsel %vm5601, %v6637, 0
        %v6709 = vsel %vm5601, %v6639, 0
        %v6712 = vsel %vm5601, %v6641, 0
        %6714 = vmatprep.subr.bf16.mxu0 0
        %6715 = vmatpush1.bf16.msra.mxu0 %v6682
        %6716 = vmatprep.subr.bf16.mxu0 0
        %6717 = vmatpush1.bf16.msra.mxu0 %v6683
        %6718 = vmatprep.subr.bf16.mxu0 0
        %6719 = vmatpush1.bf16.msra.mxu0 %v6684
        %6720 = vmatprep.subr.bf16.mxu0 0
        %6721 = vmatpush1.bf16.msra.mxu0 %v6685
        %6722 = vmatprep.subr.bf16.mxu0 0
        %6723 = vmatpush1.bf16.msra.mxu0 %v6686
        %6724 = vmatprep.subr.bf16.mxu0 0
        %6725 = vmatpush1.bf16.msra.mxu0 %v6687
        %6726 = vmatprep.subr.bf16.mxu0 0
        %6727 = vmatpush1.bf16.msra.mxu0 %v6688
        %6728 = vmatprep.subr.bf16.mxu0 0
        %6729 = vmatpush1.bf16.msra.mxu0 %v6689
        %6730 = vmatprep.subr.bf16.mxu0 0
        %6731 = vmatpush1.bf16.msra.mxu0 %v6690
        %6732 = vmatprep.subr.bf16.mxu0 0
        %6733 = vmatpush1.bf16.msra.mxu0 %v6691
        %6734 = vmatprep.subr.bf16.mxu0 0
        %6735 = vmatpush1.bf16.msra.mxu0 0
        %6736 = vmatprep.subr.bf16.mxu0 0
        %6737 = vmatpush1.bf16.msra.mxu0 0
        %6738 = vmatprep.subr.bf16.mxu0 0
        %6739 = vmatpush1.bf16.msra.mxu0 0
        %6740 = vmatprep.subr.bf16.mxu0 0
        %6741 = vmatpush1.bf16.msra.mxu0 0
        %6742 = vmatprep.subr.bf16.mxu0 0
        %6743 = vmatpush1.bf16.msra.mxu0 0
        %6744 = vmatprep.subr.bf16.mxu0 0
        %6745 = vmatpush1.bf16.msra.mxu0 0
        %6746 = vmatprep.mubr.bf16.mxu0 %v6703
        %6747 = vmatmul.mubr.bf16.gmra.mrb[0].mxu0 %v6634
        %v6748 = vpop.f32.mrb[0].mxu0
        %v6749 = vadd.f32 0.0, %v6748
        %v6750 = vpop.f32.mrb[0].mxu0
        %v6751 = vpop.f32.mrb[0].mxu0
        %v6752 = vadd.f32 0.0, %v6751
        %v6753 = vpop.f32.mrb[0].mxu0
        %6754 = vmatprep.mubr.bf16.mxu0 %v6706
        %6755 = vmatmul.mubr.bf16.gmra.mrb[0].mxu0 %v6636
        %v6756 = vpop.f32.mrb[0].mxu0
        %v6757 = vadd.f32 0.0, %v6756
        %v6758 = vpop.f32.mrb[0].mxu0
        %v6759 = vpop.f32.mrb[0].mxu0
        %v6760 = vadd.f32 0.0, %v6759
        %v6761 = vpop.f32.mrb[0].mxu0
        %6762 = vmatprep.mubr.bf16.mxu0 %v6709
        %6763 = vmatmul.mubr.bf16.gmra.mrb[0].mxu0 %v6638
        %v6764 = vpop.f32.mrb[0].mxu0
        %v6765 = vadd.f32 0.0, %v6764
        %v6766 = vpop.f32.mrb[0].mxu0
        %v6767 = vpop.f32.mrb[0].mxu0
        %v6768 = vadd.f32 0.0, %v6767
        %v6769 = vpop.f32.mrb[0].mxu0
        %6770 = vmatprep.mubr.bf16.mxu0 %v6712
        %6771 = vmatmul.mubr.bf16.gmra.mrb[0].mxu0 %v6640
        %v6772 = vpop.f32.mrb[0].mxu0
        %v6773 = vadd.f32 0.0, %v6772
        %v6774 = vpop.f32.mrb[0].mxu0
        %v6775 = vpop.f32.mrb[0].mxu0
        %v6776 = vadd.f32 0.0, %v6775
        %v6777 = vpop.f32.mrb[0].mxu0
        %6778 = vdwg.mxu0
        %v6779 = vadd.f32 %v6524, %v6749
        %v6780 = vadd.f32 %v6527, %v6752
        %v6781 = vadd.f32 %v6532, %v6757
        %v6782 = vadd.f32 %v6535, %v6760
        %v6783 = vadd.f32 %v6540, %v6765
        %v6784 = vadd.f32 %v6543, %v6768
        %v6785 = vadd.f32 %v6548, %v6773
        %v6786 = vadd.f32 %v6551, %v6776
        %v6791 = vrot.slane %v5976, 7
        %v6792 = vrot.slane %v5978, 7
        %v6793 = vsel %vm1183, %v6791, %v6792
        %v6794 = vrot.slane %v5977, 7
        %v6795 = vrot.slane %v5979, 7
        %v6796 = vsel %vm1183, %v6794, %v6795
        %v6799 = vpack.c.bf16 %v6214, %v6208
        %v6800 = vpack.c.bf16 %v6217, %v6211
        %v6801 = vpack.c.bf16 %v6226, %v6220
        %v6802 = vpack.c.bf16 %v6229, %v6223
        %v6803 = vpack.c.bf16 %v6238, %v6232
        %v6804 = vpack.c.bf16 %v6241, %v6235
        %v6805 = vpack.c.bf16 %v6793, %v6244
        %v6806 = vpack.c.bf16 %v6796, %v6247
        %v6827 = vunpack.c.l.b16 %v6048
        %v6828 = vunpack.c.l.b16 %v6049
        %v6829 = vunpack.c.l.b16 %v6050
        %v6830 = vunpack.c.l.b16 %v6051
        %v6831 = vunpack.c.l.b16 %v6052
        %v6832 = vunpack.c.l.b16 %v6053
        %v6833 = vunpack.c.l.b16 %v6054
        %v6834 = vunpack.c.l.b16 %v6055
        %v6835 = vunpack.c.l.b16 %v6056
        %v6836 = vunpack.c.l.b16 %v6057
        %v6837 = vunpack.c.l.b16 %v6058
        %v6838 = vunpack.c.l.b16 %v6059
        %v6839 = vunpack.c.l.b16 %v6060
        %v6840 = vunpack.c.l.b16 %v6061
        %v6841 = vunpack.c.l.b16 %v6062
        %v6842 = vunpack.c.l.b16 %v6063
        %v6843 = vunpack.c.l.b16 %v6064
        %v6844 = vunpack.c.l.b16 %v6065
        %v6845 = vunpack.c.l.b16 %v6066
        %v6846 = vunpack.c.l.b16 %v6067
        %v6847 = vpack.c.b16 %v6828, %v6827
        %v6848 = vpack.c.b16 %v6830, %v6829
        %v6849 = vpack.c.b16 %v6832, %v6831
        %v6850 = vpack.c.b16 %v6834, %v6833
        %v6851 = vpack.c.b16 %v6836, %v6835
        %v6852 = vpack.c.b16 %v6838, %v6837
        %v6853 = vpack.c.b16 %v6840, %v6839
        %v6854 = vpack.c.b16 %v6842, %v6841
        %v6855 = vpack.c.b16 %v6844, %v6843
        %v6856 = vpack.c.b16 %v6846, %v6845
        %v6868 = vsel %vm5601, %v6800, 0
        %v6871 = vsel %vm5601, %v6802, 0
        %v6874 = vsel %vm5601, %v6804, 0
        %v6877 = vsel %vm5601, %v6806, 0
        %6879 = vmatprep.subr.bf16.mxu0 0
        %6880 = vmatpush1.bf16.msra.mxu0 %v6847
        %6881 = vmatprep.subr.bf16.mxu0 0
        %6882 = vmatpush1.bf16.msra.mxu0 %v6848
        %6883 = vmatprep.subr.bf16.mxu0 0
        %6884 = vmatpush1.bf16.msra.mxu0 %v6849
        %6885 = vmatprep.subr.bf16.mxu0 0
        %6886 = vmatpush1.bf16.msra.mxu0 %v6850
        %6887 = vmatprep.subr.bf16.mxu0 0
        %6888 = vmatpush1.bf16.msra.mxu0 %v6851
        %6889 = vmatprep.subr.bf16.mxu0 0
        %6890 = vmatpush1.bf16.msra.mxu0 %v6852
        %6891 = vmatprep.subr.bf16.mxu0 0
        %6892 = vmatpush1.bf16.msra.mxu0 %v6853
        %6893 = vmatprep.subr.bf16.mxu0 0
        %6894 = vmatpush1.bf16.msra.mxu0 %v6854
        %6895 = vmatprep.subr.bf16.mxu0 0
        %6896 = vmatpush1.bf16.msra.mxu0 %v6855
        %6897 = vmatprep.subr.bf16.mxu0 0
        %6898 = vmatpush1.bf16.msra.mxu0 %v6856
        %6899 = vmatprep.subr.bf16.mxu0 0
        %6900 = vmatpush1.bf16.msra.mxu0 0
        %6901 = vmatprep.subr.bf16.mxu0 0
        %6902 = vmatpush1.bf16.msra.mxu0 0
        %6903 = vmatprep.subr.bf16.mxu0 0
        %6904 = vmatpush1.bf16.msra.mxu0 0
        %6905 = vmatprep.subr.bf16.mxu0 0
        %6906 = vmatpush1.bf16.msra.mxu0 0
        %6907 = vmatprep.subr.bf16.mxu0 0
        %6908 = vmatpush1.bf16.msra.mxu0 0
        %6909 = vmatprep.subr.bf16.mxu0 0
        %6910 = vmatpush1.bf16.msra.mxu0 0
        %6911 = vmatprep.mubr.bf16.mxu0 %v6868
        %6912 = vmatmul.mubr.bf16.gmra.mrb[0].mxu0 %v6799
        %v6913 = vpop.f32.mrb[0].mxu0
        %v6914 = vadd.f32 0.0, %v6913
        %v6915 = vpop.f32.mrb[0].mxu0
        %v6916 = vpop.f32.mrb[0].mxu0
        %v6917 = vadd.f32 0.0, %v6916
        %v6918 = vpop.f32.mrb[0].mxu0
        %6919 = vmatprep.mubr.bf16.mxu0 %v6871
        %6920 = vmatmul.mubr.bf16.gmra.mrb[0].mxu0 %v6801
        %v6921 = vpop.f32.mrb[0].mxu0
        %v6922 = vadd.f32 0.0, %v6921
        %v6923 = vpop.f32.mrb[0].mxu0
        %v6924 = vpop.f32.mrb[0].mxu0
        %v6925 = vadd.f32 0.0, %v6924
        %v6926 = vpop.f32.mrb[0].mxu0
        %6927 = vmatprep.mubr.bf16.mxu0 %v6874
        %6928 = vmatmul.mubr.bf16.gmra.mrb[0].mxu0 %v6803
        %v6929 = vpop.f32.mrb[0].mxu0
        %v6930 = vadd.f32 0.0, %v6929
        %v6931 = vpop.f32.mrb[0].mxu0
        %v6932 = vpop.f32.mrb[0].mxu0
        %v6933 = vadd.f32 0.0, %v6932
        %v6934 = vpop.f32.mrb[0].mxu0
        %6935 = vmatprep.mubr.bf16.mxu0 %v6877
        %6936 = vmatmul.mubr.bf16.gmra.mrb[0].mxu0 %v6805
        %v6937 = vpop.f32.mrb[0].mxu0
        %v6938 = vadd.f32 0.0, %v6937
        %v6939 = vpop.f32.mrb[0].mxu0
        %v6940 = vpop.f32.mrb[0].mxu0
        %v6941 = vadd.f32 0.0, %v6940
        %v6942 = vpop.f32.mrb[0].mxu0
        %6943 = vdwg.mxu0
        %v6944 = vadd.f32 %v6779, %v6914
        %v6945 = vadd.f32 %v6780, %v6917
        %v6946 = vadd.f32 %v6781, %v6922
        %v6947 = vadd.f32 %v6782, %v6925
        %v6948 = vadd.f32 %v6783, %v6930
        %v6949 = vadd.f32 %v6784, %v6933
        %v6950 = vadd.f32 %v6785, %v6938
        %v6951 = vadd.f32 %v6786, %v6941
        %v6952 = vpack.c.bf16 %v5942, %v5936
        %v6953 = vpack.c.bf16 %v5943, %v5937
        %v6954 = vpack.c.bf16 %v5954, %v5948
        %v6955 = vpack.c.bf16 %v5955, %v5949
        %v6956 = vpack.c.bf16 %v5966, %v5960
        %v6957 = vpack.c.bf16 %v5967, %v5961
        %v6958 = vpack.c.bf16 %v5978, %v5972
        %v6959 = vpack.c.bf16 %v5979, %v5973
        %v6980 = vunpack.c.l.b16 %v6068
        %v6981 = vunpack.c.l.b16 %v6069
        %v6982 = vunpack.c.l.b16 %v6070
        %v6983 = vunpack.c.l.b16 %v6071
        %v6984 = vunpack.c.l.b16 %v6072
        %v6985 = vunpack.c.l.b16 %v6073
        %v6986 = vunpack.c.l.b16 %v6074
        %v6987 = vunpack.c.l.b16 %v6075
        %v6988 = vunpack.c.l.b16 %v6076
        %v6989 = vunpack.c.l.b16 %v6077
        %v6990 = vunpack.c.l.b16 %v6078
        %v6991 = vunpack.c.l.b16 %v6079
        %v6992 = vunpack.c.l.b16 %v6080
        %v6993 = vunpack.c.l.b16 %v6081
        %v6994 = vunpack.c.l.b16 %v6082
        %v6995 = vunpack.c.l.b16 %v6083
        %v6996 = vunpack.c.l.b16 %v6084
        %v6997 = vunpack.c.l.b16 %v6085
        %v6998 = vunpack.c.l.b16 %v6086
        %v6999 = vunpack.c.l.b16 %v6087
        %v7000 = vpack.c.b16 %v6981, %v6980
        %v7001 = vpack.c.b16 %v6983, %v6982
        %v7002 = vpack.c.b16 %v6985, %v6984
        %v7003 = vpack.c.b16 %v6987, %v6986
        %v7004 = vpack.c.b16 %v6989, %v6988
        %v7005 = vpack.c.b16 %v6991, %v6990
        %v7006 = vpack.c.b16 %v6993, %v6992
        %v7007 = vpack.c.b16 %v6995, %v6994
        %v7008 = vpack.c.b16 %v6997, %v6996
        %v7009 = vpack.c.b16 %v6999, %v6998
        %v7021 = vsel %vm5601, %v6953, 0
        %v7024 = vsel %vm5601, %v6955, 0
        %v7027 = vsel %vm5601, %v6957, 0
        %v7030 = vsel %vm5601, %v6959, 0
        %7032 = vmatprep.subr.bf16.mxu0 0
        %7033 = vmatpush1.bf16.msra.mxu0 %v7000
        %7034 = vmatprep.subr.bf16.mxu0 0
        %7035 = vmatpush1.bf16.msra.mxu0 %v7001
        %7036 = vmatprep.subr.bf16.mxu0 0
        %7037 = vmatpush1.bf16.msra.mxu0 %v7002
        %7038 = vmatprep.subr.bf16.mxu0 0
        %7039 = vmatpush1.bf16.msra.mxu0 %v7003
        %7040 = vmatprep.subr.bf16.mxu0 0
        %7041 = vmatpush1.bf16.msra.mxu0 %v7004
        %7042 = vmatprep.subr.bf16.mxu0 0
        %7043 = vmatpush1.bf16.msra.mxu0 %v7005
        %7044 = vmatprep.subr.bf16.mxu0 0
        %7045 = vmatpush1.bf16.msra.mxu0 %v7006
        %7046 = vmatprep.subr.bf16.mxu0 0
        %7047 = vmatpush1.bf16.msra.mxu0 %v7007
        %7048 = vmatprep.subr.bf16.mxu0 0
        %7049 = vmatpush1.bf16.msra.mxu0 %v7008
        %7050 = vmatprep.subr.bf16.mxu0 0
        %7051 = vmatpush1.bf16.msra.mxu0 %v7009
        %7052 = vmatprep.subr.bf16.mxu0 0
        %7053 = vmatpush1.bf16.msra.mxu0 0
        %7054 = vmatprep.subr.bf16.mxu0 0
        %7055 = vmatpush1.bf16.msra.mxu0 0
        %7056 = vmatprep.subr.bf16.mxu0 0
        %7057 = vmatpush1.bf16.msra.mxu0 0
        %7058 = vmatprep.subr.bf16.mxu0 0
        %7059 = vmatpush1.bf16.msra.mxu0 0
        %7060 = vmatprep.subr.bf16.mxu0 0
        %7061 = vmatpush1.bf16.msra.mxu0 0
        %7062 = vmatprep.subr.bf16.mxu0 0
        %7063 = vmatpush1.bf16.msra.mxu0 0
        %7064 = vmatprep.mubr.bf16.mxu0 %v7021
        %7065 = vmatmul.mubr.bf16.gmra.mrb[0].mxu0 %v6952
        %v7066 = vpop.f32.mrb[0].mxu0
        %v7067 = vadd.f32 0.0, %v7066
        %v7068 = vpop.f32.mrb[0].mxu0
        %v7069 = vpop.f32.mrb[0].mxu0
        %v7070 = vadd.f32 0.0, %v7069
        %v7071 = vpop.f32.mrb[0].mxu0
        %7072 = vmatprep.mubr.bf16.mxu0 %v7024
        %7073 = vmatmul.mubr.bf16.gmra.mrb[0].mxu0 %v6954
        %v7074 = vpop.f32.mrb[0].mxu0
        %v7075 = vadd.f32 0.0, %v7074
        %v7076 = vpop.f32.mrb[0].mxu0
        %v7077 = vpop.f32.mrb[0].mxu0
        %v7078 = vadd.f32 0.0, %v7077
        %v7079 = vpop.f32.mrb[0].mxu0
        %7080 = vmatprep.mubr.bf16.mxu0 %v7027
        %7081 = vmatmul.mubr.bf16.gmra.mrb[0].mxu0 %v6956
        %v7082 = vpop.f32.mrb[0].mxu0
        %v7083 = vadd.f32 0.0, %v7082
        %v7084 = vpop.f32.mrb[0].mxu0
        %v7085 = vpop.f32.mrb[0].mxu0
        %v7086 = vadd.f32 0.0, %v7085
        %v7087 = vpop.f32.mrb[0].mxu0
        %7088 = vmatprep.mubr.bf16.mxu0 %v7030
        %7089 = vmatmul.mubr.bf16.gmra.mrb[0].mxu0 %v6958
        %v7090 = vpop.f32.mrb[0].mxu0
        %v7091 = vadd.f32 0.0, %v7090
        %v7092 = vpop.f32.mrb[0].mxu0
        %v7093 = vpop.f32.mrb[0].mxu0
        %v7094 = vadd.f32 0.0, %v7093
        %v7095 = vpop.f32.mrb[0].mxu0
        %7096 = vdwg.mxu0
        %v7097 = vadd.f32 %v6944, %v7067
        %v7098 = vadd.f32 %v6945, %v7070
        %v7099 = vadd.f32 %v6946, %v7075
        %v7100 = vadd.f32 %v6947, %v7078
        %v7101 = vadd.f32 %v6948, %v7083
        %v7102 = vadd.f32 %v6949, %v7086
        %v7103 = vadd.f32 %v6950, %v7091
        %v7104 = vadd.f32 %v6951, %v7094
        %v7107 = vrot.slane %v5978, 1
        %v7108 = vrot.slane %v5980, 1
        %v7109 = vsel %vm1434, %v7107, %v7108
        %v7110 = vrot.slane %v5979, 1
        %v7111 = vrot.slane %v5981, 1
        %v7112 = vsel %vm1434, %v7110, %v7111
        %v7115 = vpack.c.bf16 %v6584, %v6578
        %v7116 = vpack.c.bf16 %v6587, %v6581
        %v7117 = vpack.c.bf16 %v6596, %v6590
        %v7118 = vpack.c.bf16 %v6599, %v6593
        %v7119 = vpack.c.bf16 %v6608, %v6602
        %v7120 = vpack.c.bf16 %v6611, %v6605
        %v7121 = vpack.c.bf16 %v7109, %v6614
        %v7122 = vpack.c.bf16 %v7112, %v6617
        %v7143 = vunpack.c.l.b16 %v6088
        %v7144 = vunpack.c.l.b16 %v6089
        %v7145 = vunpack.c.l.b16 %v6090
        %v7146 = vunpack.c.l.b16 %v6091
        %v7147 = vunpack.c.l.b16 %v6092
        %v7148 = vunpack.c.l.b16 %v6093
        %v7149 = vunpack.c.l.b16 %v6094
        %v7150 = vunpack.c.l.b16 %v6095
        %v7151 = vunpack.c.l.b16 %v6096
        %v7152 = vunpack.c.l.b16 %v6097
        %v7153 = vunpack.c.l.b16 %v6098
        %v7154 = vunpack.c.l.b16 %v6099
        %v7155 = vunpack.c.l.b16 %v6100
        %v7156 = vunpack.c.l.b16 %v6101
        %v7157 = vunpack.c.l.b16 %v6102
        %v7158 = vunpack.c.l.b16 %v6103
        %v7159 = vunpack.c.l.b16 %v6104
        %v7160 = vunpack.c.l.b16 %v6105
        %v7161 = vunpack.c.l.b16 %v6106
        %v7162 = vunpack.c.l.b16 %v6107
        %v7163 = vpack.c.b16 %v7144, %v7143
        %v7164 = vpack.c.b16 %v7146, %v7145
        %v7165 = vpack.c.b16 %v7148, %v7147
        %v7166 = vpack.c.b16 %v7150, %v7149
        %v7167 = vpack.c.b16 %v7152, %v7151
        %v7168 = vpack.c.b16 %v7154, %v7153
        %v7169 = vpack.c.b16 %v7156, %v7155
        %v7170 = vpack.c.b16 %v7158, %v7157
        %v7171 = vpack.c.b16 %v7160, %v7159
        %v7172 = vpack.c.b16 %v7162, %v7161
        %v7184 = vsel %vm5601, %v7116, 0
        %v7187 = vsel %vm5601, %v7118, 0
        %v7190 = vsel %vm5601, %v7120, 0
        %v7193 = vsel %vm5601, %v7122, 0
        %7195 = vmatprep.subr.bf16.mxu0 0
        %7196 = vmatpush1.bf16.msra.mxu0 %v7163
        %7197 = vmatprep.subr.bf16.mxu0 0
        %7198 = vmatpush1.bf16.msra.mxu0 %v7164
        %7199 = vmatprep.subr.bf16.mxu0 0
        %7200 = vmatpush1.bf16.msra.mxu0 %v7165
        %7201 = vmatprep.subr.bf16.mxu0 0
        %7202 = vmatpush1.bf16.msra.mxu0 %v7166
        %7203 = vmatprep.subr.bf16.mxu0 0
        %7204 = vmatpush1.bf16.msra.mxu0 %v7167
        %7205 = vmatprep.subr.bf16.mxu0 0
        %7206 = vmatpush1.bf16.msra.mxu0 %v7168
        %7207 = vmatprep.subr.bf16.mxu0 0
        %7208 = vmatpush1.bf16.msra.mxu0 %v7169
        %7209 = vmatprep.subr.bf16.mxu0 0
        %7210 = vmatpush1.bf16.msra.mxu0 %v7170
        %7211 = vmatprep.subr.bf16.mxu0 0
        %7212 = vmatpush1.bf16.msra.mxu0 %v7171
        %7213 = vmatprep.subr.bf16.mxu0 0
        %7214 = vmatpush1.bf16.msra.mxu0 %v7172
        %7215 = vmatprep.subr.bf16.mxu0 0
        %7216 = vmatpush1.bf16.msra.mxu0 0
        %7217 = vmatprep.subr.bf16.mxu0 0
        %7218 = vmatpush1.bf16.msra.mxu0 0
        %7219 = vmatprep.subr.bf16.mxu0 0
        %7220 = vmatpush1.bf16.msra.mxu0 0
        %7221 = vmatprep.subr.bf16.mxu0 0
        %7222 = vmatpush1.bf16.msra.mxu0 0
        %7223 = vmatprep.subr.bf16.mxu0 0
        %7224 = vmatpush1.bf16.msra.mxu0 0
        %7225 = vmatprep.subr.bf16.mxu0 0
        %7226 = vmatpush1.bf16.msra.mxu0 0
        %7227 = vmatprep.mubr.bf16.mxu0 %v7184
        %7228 = vmatmul.mubr.bf16.gmra.mrb[0].mxu0 %v7115
        %v7229 = vpop.f32.mrb[0].mxu0
        %v7230 = vadd.f32 0.0, %v7229
        %v7231 = vpop.f32.mrb[0].mxu0
        %v7232 = vpop.f32.mrb[0].mxu0
        %v7233 = vadd.f32 0.0, %v7232
        %v7234 = vpop.f32.mrb[0].mxu0
        %7235 = vmatprep.mubr.bf16.mxu0 %v7187
        %7236 = vmatmul.mubr.bf16.gmra.mrb[0].mxu0 %v7117
        %v7237 = vpop.f32.mrb[0].mxu0
        %v7238 = vadd.f32 0.0, %v7237
        %v7239 = vpop.f32.mrb[0].mxu0
        %v7240 = vpop.f32.mrb[0].mxu0
        %v7241 = vadd.f32 0.0, %v7240
        %v7242 = vpop.f32.mrb[0].mxu0
        %7243 = vmatprep.mubr.bf16.mxu0 %v7190
        %7244 = vmatmul.mubr.bf16.gmra.mrb[0].mxu0 %v7119
        %v7245 = vpop.f32.mrb[0].mxu0
        %v7246 = vadd.f32 0.0, %v7245
        %v7247 = vpop.f32.mrb[0].mxu0
        %v7248 = vpop.f32.mrb[0].mxu0
        %v7249 = vadd.f32 0.0, %v7248
        %v7250 = vpop.f32.mrb[0].mxu0
        %7251 = vmatprep.mubr.bf16.mxu0 %v7193
        %7252 = vmatmul.mubr.bf16.gmra.mrb[0].mxu0 %v7121
        %v7253 = vpop.f32.mrb[0].mxu0
        %v7254 = vadd.f32 0.0, %v7253
        %v7255 = vpop.f32.mrb[0].mxu0
        %v7256 = vpop.f32.mrb[0].mxu0
        %v7257 = vadd.f32 0.0, %v7256
        %v7258 = vpop.f32.mrb[0].mxu0
        %7259 = vdwg.mxu0
        %v7260 = vadd.f32 %v7097, %v7230
        %v7261 = vadd.f32 %v7098, %v7233
        %v7262 = vadd.f32 %v7099, %v7238
        %v7263 = vadd.f32 %v7100, %v7241
        %v7264 = vadd.f32 %v7101, %v7246
        %v7265 = vadd.f32 %v7102, %v7249
        %v7266 = vadd.f32 %v7103, %v7254
        %v7267 = vadd.f32 %v7104, %v7257
        %v7272 = vrot.slane %v5982, 7
        %v7273 = vrot.slane %v5984, 7
        %v7274 = vsel %vm1183, %v7272, %v7273
        %v7275 = vrot.slane %v5983, 7
        %v7276 = vrot.slane %v5985, 7
        %v7277 = vsel %vm1183, %v7275, %v7276
        %v7280 = vpack.c.bf16 %v7274, %v6793
        %v7281 = vpack.c.bf16 %v7277, %v6796
        %v7302 = vunpack.c.l.b16 %v6108
        %v7303 = vunpack.c.l.b16 %v6109
        %v7304 = vunpack.c.l.b16 %v6110
        %v7305 = vunpack.c.l.b16 %v6111
        %v7306 = vunpack.c.l.b16 %v6112
        %v7307 = vunpack.c.l.b16 %v6113
        %v7308 = vunpack.c.l.b16 %v6114
        %v7309 = vunpack.c.l.b16 %v6115
        %v7310 = vunpack.c.l.b16 %v6116
        %v7311 = vunpack.c.l.b16 %v6117
        %v7312 = vunpack.c.l.b16 %v6118
        %v7313 = vunpack.c.l.b16 %v6119
        %v7314 = vunpack.c.l.b16 %v6120
        %v7315 = vunpack.c.l.b16 %v6121
        %v7316 = vunpack.c.l.b16 %v6122
        %v7317 = vunpack.c.l.b16 %v6123
        %v7318 = vunpack.c.l.b16 %v6124
        %v7319 = vunpack.c.l.b16 %v6125
        %v7320 = vunpack.c.l.b16 %v6126
        %v7321 = vunpack.c.l.b16 %v6127
        %v7322 = vpack.c.b16 %v7303, %v7302
        %v7323 = vpack.c.b16 %v7305, %v7304
        %v7324 = vpack.c.b16 %v7307, %v7306
        %v7325 = vpack.c.b16 %v7309, %v7308
        %v7326 = vpack.c.b16 %v7311, %v7310
        %v7327 = vpack.c.b16 %v7313, %v7312
        %v7328 = vpack.c.b16 %v7315, %v7314
        %v7329 = vpack.c.b16 %v7317, %v7316
        %v7330 = vpack.c.b16 %v7319, %v7318
        %v7331 = vpack.c.b16 %v7321, %v7320
        %v7343 = vsel %vm5601, %v7281, 0
        %7345 = vmatprep.subr.bf16.mxu0 0
        %7346 = vmatpush1.bf16.msra.mxu0 %v7322
        %7347 = vmatprep.subr.bf16.mxu0 0
        %7348 = vmatpush1.bf16.msra.mxu0 %v7323
        %7349 = vmatprep.subr.bf16.mxu0 0
        %7350 = vmatpush1.bf16.msra.mxu0 %v7324
        %7351 = vmatprep.subr.bf16.mxu0 0
        %7352 = vmatpush1.bf16.msra.mxu0 %v7325
        %7353 = vmatprep.subr.bf16.mxu0 0
        %7354 = vmatpush1.bf16.msra.mxu0 %v7326
        %7355 = vmatprep.subr.bf16.mxu0 0
        %7356 = vmatpush1.bf16.msra.mxu0 %v7327
        %7357 = vmatprep.subr.bf16.mxu0 0
        %7358 = vmatpush1.bf16.msra.mxu0 %v7328
        %7359 = vmatprep.subr.bf16.mxu0 0
        %7360 = vmatpush1.bf16.msra.mxu0 %v7329
        %7361 = vmatprep.subr.bf16.mxu0 0
        %7362 = vmatpush1.bf16.msra.mxu0 %v7330
        %7363 = vmatprep.subr.bf16.mxu0 0
        %7364 = vmatpush1.bf16.msra.mxu0 %v7331
        %7365 = vmatprep.subr.bf16.mxu0 0
        %7366 = vmatpush1.bf16.msra.mxu0 0
        %7367 = vmatprep.subr.bf16.mxu0 0
        %7368 = vmatpush1.bf16.msra.mxu0 0
        %7369 = vmatprep.subr.bf16.mxu0 0
        %7370 = vmatpush1.bf16.msra.mxu0 0
        %7371 = vmatprep.subr.bf16.mxu0 0
        %7372 = vmatpush1.bf16.msra.mxu0 0
        %7373 = vmatprep.subr.bf16.mxu0 0
        %7374 = vmatpush1.bf16.msra.mxu0 0
        %7375 = vmatprep.subr.bf16.mxu0 0
        %7376 = vmatpush1.bf16.msra.mxu0 0
        %7377 = vmatprep.mubr.bf16.mxu0 %v6481
        %7378 = vmatmul.mubr.bf16.gmra.mrb[0].mxu0 %v6266
        %v7379 = vpop.f32.mrb[0].mxu0
        %v7380 = vadd.f32 0.0, %v7379
        %v7381 = vpop.f32.mrb[0].mxu0
        %v7382 = vpop.f32.mrb[0].mxu0
        %v7383 = vadd.f32 0.0, %v7382
        %v7384 = vpop.f32.mrb[0].mxu0
        %7385 = vmatprep.mubr.bf16.mxu0 %v6484
        %7386 = vmatmul.mubr.bf16.gmra.mrb[0].mxu0 %v6268
        %v7387 = vpop.f32.mrb[0].mxu0
        %v7388 = vadd.f32 0.0, %v7387
        %v7389 = vpop.f32.mrb[0].mxu0
        %v7390 = vpop.f32.mrb[0].mxu0
        %v7391 = vadd.f32 0.0, %v7390
        %v7392 = vpop.f32.mrb[0].mxu0
        %7393 = vmatprep.mubr.bf16.mxu0 %v6487
        %7394 = vmatmul.mubr.bf16.gmra.mrb[0].mxu0 %v6270
        %v7395 = vpop.f32.mrb[0].mxu0
        %v7396 = vadd.f32 0.0, %v7395
        %v7397 = vpop.f32.mrb[0].mxu0
        %v7398 = vpop.f32.mrb[0].mxu0
        %v7399 = vadd.f32 0.0, %v7398
        %v7400 = vpop.f32.mrb[0].mxu0
        %7401 = vmatprep.mubr.bf16.mxu0 %v7343
        %7402 = vmatmul.mubr.bf16.gmra.mrb[0].mxu0 %v7280
        %v7403 = vpop.f32.mrb[0].mxu0
        %v7404 = vadd.f32 0.0, %v7403
        %v7405 = vpop.f32.mrb[0].mxu0
        %v7406 = vpop.f32.mrb[0].mxu0
        %v7407 = vadd.f32 0.0, %v7406
        %v7408 = vpop.f32.mrb[0].mxu0
        %7409 = vdwg.mxu0
        %v7410 = vadd.f32 %v7260, %v7380
        %v7411 = vadd.f32 %v7261, %v7383
        %v7412 = vadd.f32 %v7262, %v7388
        %v7413 = vadd.f32 %v7263, %v7391
        %v7414 = vadd.f32 %v7264, %v7396
        %v7415 = vadd.f32 %v7265, %v7399
        %v7416 = vadd.f32 %v7266, %v7404
        %v7417 = vadd.f32 %v7267, %v7407
        %v7418 = vpack.c.bf16 %v5984, %v5978
        %v7419 = vpack.c.bf16 %v5985, %v5979
        %v7440 = vunpack.c.l.b16 %v6128
        %v7441 = vunpack.c.l.b16 %v6129
        %v7442 = vunpack.c.l.b16 %v6130
        %v7443 = vunpack.c.l.b16 %v6131
        %v7444 = vunpack.c.l.b16 %v6132
        %v7445 = vunpack.c.l.b16 %v6133
        %v7446 = vunpack.c.l.b16 %v6134
        %v7447 = vunpack.c.l.b16 %v6135
        %v7448 = vunpack.c.l.b16 %v6136
        %v7449 = vunpack.c.l.b16 %v6137
        %v7450 = vunpack.c.l.b16 %v6138
        %v7451 = vunpack.c.l.b16 %v6139
        %v7452 = vunpack.c.l.b16 %v6140
        %v7453 = vunpack.c.l.b16 %v6141
        %v7454 = vunpack.c.l.b16 %v6142
        %v7455 = vunpack.c.l.b16 %v6143
        %v7456 = vunpack.c.l.b16 %v6144
        %v7457 = vunpack.c.l.b16 %v6145
        %v7458 = vunpack.c.l.b16 %v6146
        %v7459 = vunpack.c.l.b16 %v6147
        %v7460 = vpack.c.b16 %v7441, %v7440
        %v7461 = vpack.c.b16 %v7443, %v7442
        %v7462 = vpack.c.b16 %v7445, %v7444
        %v7463 = vpack.c.b16 %v7447, %v7446
        %v7464 = vpack.c.b16 %v7449, %v7448
        %v7465 = vpack.c.b16 %v7451, %v7450
        %v7466 = vpack.c.b16 %v7453, %v7452
        %v7467 = vpack.c.b16 %v7455, %v7454
        %v7468 = vpack.c.b16 %v7457, %v7456
        %v7469 = vpack.c.b16 %v7459, %v7458
        %v7481 = vsel %vm5601, %v7419, 0
        %7483 = vmatprep.subr.bf16.mxu0 0
        %7484 = vmatpush1.bf16.msra.mxu0 %v7460
        %7485 = vmatprep.subr.bf16.mxu0 0
        %7486 = vmatpush1.bf16.msra.mxu0 %v7461
        %7487 = vmatprep.subr.bf16.mxu0 0
        %7488 = vmatpush1.bf16.msra.mxu0 %v7462
        %7489 = vmatprep.subr.bf16.mxu0 0
        %7490 = vmatpush1.bf16.msra.mxu0 %v7463
        %7491 = vmatprep.subr.bf16.mxu0 0
        %7492 = vmatpush1.bf16.msra.mxu0 %v7464
        %7493 = vmatprep.subr.bf16.mxu0 0
        %7494 = vmatpush1.bf16.msra.mxu0 %v7465
        %7495 = vmatprep.subr.bf16.mxu0 0
        %7496 = vmatpush1.bf16.msra.mxu0 %v7466
        %7497 = vmatprep.subr.bf16.mxu0 0
        %7498 = vmatpush1.bf16.msra.mxu0 %v7467
        %7499 = vmatprep.subr.bf16.mxu0 0
        %7500 = vmatpush1.bf16.msra.mxu0 %v7468
        %7501 = vmatprep.subr.bf16.mxu0 0
        %7502 = vmatpush1.bf16.msra.mxu0 %v7469
        %7503 = vmatprep.subr.bf16.mxu0 0
        %7504 = vmatpush1.bf16.msra.mxu0 0
        %7505 = vmatprep.subr.bf16.mxu0 0
        %7506 = vmatpush1.bf16.msra.mxu0 0
        %7507 = vmatprep.subr.bf16.mxu0 0
        %7508 = vmatpush1.bf16.msra.mxu0 0
        %7509 = vmatprep.subr.bf16.mxu0 0
        %7510 = vmatpush1.bf16.msra.mxu0 0
        %7511 = vmatprep.subr.bf16.mxu0 0
        %7512 = vmatpush1.bf16.msra.mxu0 0
        %7513 = vmatprep.subr.bf16.mxu0 0
        %7514 = vmatpush1.bf16.msra.mxu0 0
        %7515 = vmatprep.mubr.bf16.mxu0 %v6344
        %7516 = vmatmul.mubr.bf16.gmra.mrb[0].mxu0 %v6274
        %v7517 = vpop.f32.mrb[0].mxu0
        %v7518 = vadd.f32 0.0, %v7517
        %v7519 = vpop.f32.mrb[0].mxu0
        %v7520 = vpop.f32.mrb[0].mxu0
        %v7521 = vadd.f32 0.0, %v7520
        %v7522 = vpop.f32.mrb[0].mxu0
        %7523 = vmatprep.mubr.bf16.mxu0 %v6347
        %7524 = vmatmul.mubr.bf16.gmra.mrb[0].mxu0 %v6276
        %v7525 = vpop.f32.mrb[0].mxu0
        %v7526 = vadd.f32 0.0, %v7525
        %v7527 = vpop.f32.mrb[0].mxu0
        %v7528 = vpop.f32.mrb[0].mxu0
        %v7529 = vadd.f32 0.0, %v7528
        %v7530 = vpop.f32.mrb[0].mxu0
        %7531 = vmatprep.mubr.bf16.mxu0 %v6350
        %7532 = vmatmul.mubr.bf16.gmra.mrb[0].mxu0 %v6278
        %v7533 = vpop.f32.mrb[0].mxu0
        %v7534 = vadd.f32 0.0, %v7533
        %v7535 = vpop.f32.mrb[0].mxu0
        %v7536 = vpop.f32.mrb[0].mxu0
        %v7537 = vadd.f32 0.0, %v7536
        %v7538 = vpop.f32.mrb[0].mxu0
        %7539 = vmatprep.mubr.bf16.mxu0 %v7481
        %7540 = vmatmul.mubr.bf16.gmra.mrb[0].mxu0 %v7418
        %v7541 = vpop.f32.mrb[0].mxu0
        %v7542 = vadd.f32 0.0, %v7541
        %v7543 = vpop.f32.mrb[0].mxu0
        %v7544 = vpop.f32.mrb[0].mxu0
        %v7545 = vadd.f32 0.0, %v7544
        %v7546 = vpop.f32.mrb[0].mxu0
        %7547 = vdwg.mxu0
        %v7548 = vadd.f32 %v7410, %v7518
        %v7549 = vadd.f32 %v7411, %v7521
        %v7550 = vadd.f32 %v7412, %v7526
        %v7551 = vadd.f32 %v7413, %v7529
        %v7552 = vadd.f32 %v7414, %v7534
        %v7553 = vadd.f32 %v7415, %v7537
        %v7554 = vadd.f32 %v7416, %v7542
        %v7555 = vadd.f32 %v7417, %v7545
        %v7558 = vrot.slane %v5984, 1
        %v7559 = vrot.slane %v5986, 1
        %v7560 = vsel %vm1434, %v7558, %v7559
        %v7561 = vrot.slane %v5985, 1
        %v7562 = vrot.slane %v5987, 1
        %v7563 = vsel %vm1434, %v7561, %v7562
        %v7566 = vpack.c.bf16 %v7560, %v7109
        %v7567 = vpack.c.bf16 %v7563, %v7112
        %v7588 = vunpack.c.l.b16 %v6148
        %v7589 = vunpack.c.l.b16 %v6149
        %v7590 = vunpack.c.l.b16 %v6150
        %v7591 = vunpack.c.l.b16 %v6151
        %v7592 = vunpack.c.l.b16 %v6152
        %v7593 = vunpack.c.l.b16 %v6153
        %v7594 = vunpack.c.l.b16 %v6154
        %v7595 = vunpack.c.l.b16 %v6155
        %v7596 = vunpack.c.l.b16 %v6156
        %v7597 = vunpack.c.l.b16 %v6157
        %v7598 = vunpack.c.l.b16 %v6158
        %v7599 = vunpack.c.l.b16 %v6159
        %v7600 = vunpack.c.l.b16 %v6160
        %v7601 = vunpack.c.l.b16 %v6161
        %v7602 = vunpack.c.l.b16 %v6162
        %v7603 = vunpack.c.l.b16 %v6163
        %v7604 = vunpack.c.l.b16 %v6164
        %v7605 = vunpack.c.l.b16 %v6165
        %v7606 = vunpack.c.l.b16 %v6166
        %v7607 = vunpack.c.l.b16 %v6167
        %v7608 = vpack.c.b16 %v7589, %v7588
        %v7609 = vpack.c.b16 %v7591, %v7590
        %v7610 = vpack.c.b16 %v7593, %v7592
        %v7611 = vpack.c.b16 %v7595, %v7594
        %v7612 = vpack.c.b16 %v7597, %v7596
        %v7613 = vpack.c.b16 %v7599, %v7598
        %v7614 = vpack.c.b16 %v7601, %v7600
        %v7615 = vpack.c.b16 %v7603, %v7602
        %v7616 = vpack.c.b16 %v7605, %v7604
        %v7617 = vpack.c.b16 %v7607, %v7606
        %v7629 = vsel %vm5601, %v7567, 0
        %7631 = vmatprep.subr.bf16.mxu0 0
        %7632 = vmatpush1.bf16.msra.mxu0 %v7608
        %7633 = vmatprep.subr.bf16.mxu0 0
        %7634 = vmatpush1.bf16.msra.mxu0 %v7609
        %7635 = vmatprep.subr.bf16.mxu0 0
        %7636 = vmatpush1.bf16.msra.mxu0 %v7610
        %7637 = vmatprep.subr.bf16.mxu0 0
        %7638 = vmatpush1.bf16.msra.mxu0 %v7611
        %7639 = vmatprep.subr.bf16.mxu0 0
        %7640 = vmatpush1.bf16.msra.mxu0 %v7612
        %7641 = vmatprep.subr.bf16.mxu0 0
        %7642 = vmatpush1.bf16.msra.mxu0 %v7613
        %7643 = vmatprep.subr.bf16.mxu0 0
        %7644 = vmatpush1.bf16.msra.mxu0 %v7614
        %7645 = vmatprep.subr.bf16.mxu0 0
        %7646 = vmatpush1.bf16.msra.mxu0 %v7615
        %7647 = vmatprep.subr.bf16.mxu0 0
        %7648 = vmatpush1.bf16.msra.mxu0 %v7616
        %7649 = vmatprep.subr.bf16.mxu0 0
        %7650 = vmatpush1.bf16.msra.mxu0 %v7617
        %7651 = vmatprep.subr.bf16.mxu0 0
        %7652 = vmatpush1.bf16.msra.mxu0 0
        %7653 = vmatprep.subr.bf16.mxu0 0
        %7654 = vmatpush1.bf16.msra.mxu0 0
        %7655 = vmatprep.subr.bf16.mxu0 0
        %7656 = vmatpush1.bf16.msra.mxu0 0
        %7657 = vmatprep.subr.bf16.mxu0 0
        %7658 = vmatpush1.bf16.msra.mxu0 0
        %7659 = vmatprep.subr.bf16.mxu0 0
        %7660 = vmatpush1.bf16.msra.mxu0 0
        %7661 = vmatprep.subr.bf16.mxu0 0
        %7662 = vmatpush1.bf16.msra.mxu0 0
        %7663 = vmatprep.mubr.bf16.mxu0 %v6706
        %7664 = vmatmul.mubr.bf16.gmra.mrb[0].mxu0 %v6636
        %v7665 = vpop.f32.mrb[0].mxu0
        %v7666 = vadd.f32 0.0, %v7665
        %v7667 = vpop.f32.mrb[0].mxu0
        %v7668 = vpop.f32.mrb[0].mxu0
        %v7669 = vadd.f32 0.0, %v7668
        %v7670 = vpop.f32.mrb[0].mxu0
        %7671 = vmatprep.mubr.bf16.mxu0 %v6709
        %7672 = vmatmul.mubr.bf16.gmra.mrb[0].mxu0 %v6638
        %v7673 = vpop.f32.mrb[0].mxu0
        %v7674 = vadd.f32 0.0, %v7673
        %v7675 = vpop.f32.mrb[0].mxu0
        %v7676 = vpop.f32.mrb[0].mxu0
        %v7677 = vadd.f32 0.0, %v7676
        %v7678 = vpop.f32.mrb[0].mxu0
        %7679 = vmatprep.mubr.bf16.mxu0 %v6712
        %7680 = vmatmul.mubr.bf16.gmra.mrb[0].mxu0 %v6640
        %v7681 = vpop.f32.mrb[0].mxu0
        %v7682 = vadd.f32 0.0, %v7681
        %v7683 = vpop.f32.mrb[0].mxu0
        %v7684 = vpop.f32.mrb[0].mxu0
        %v7685 = vadd.f32 0.0, %v7684
        %v7686 = vpop.f32.mrb[0].mxu0
        %7687 = vmatprep.mubr.bf16.mxu0 %v7629
        %7688 = vmatmul.mubr.bf16.gmra.mrb[0].mxu0 %v7566
        %v7689 = vpop.f32.mrb[0].mxu0
        %v7690 = vadd.f32 0.0, %v7689
        %v7691 = vpop.f32.mrb[0].mxu0
        %v7692 = vpop.f32.mrb[0].mxu0
        %v7693 = vadd.f32 0.0, %v7692
        %v7694 = vpop.f32.mrb[0].mxu0
        %7695 = vdwg.mxu0
        %v7696 = vadd.f32 %v7548, %v7666
        %v7697 = vadd.f32 %v7549, %v7669
        %v7698 = vadd.f32 %v7550, %v7674
        %v7699 = vadd.f32 %v7551, %v7677
        %v7700 = vadd.f32 %v7552, %v7682
        %v7701 = vadd.f32 %v7553, %v7685
        %v7702 = vadd.f32 %v7554, %v7690
        %v7703 = vadd.f32 %v7555, %v7693
        %v7704 = vld [vmem:[%s23] sm:$0x1]
        %v7706 = vlaneseq
        %v7707 = vshrl.u32 %v7706, 7
        %v7708 = vsub.s32 0, %v7707
        %v7709 = vrot.slane %v7704, %v7708
        %v7711 = vmul.f32 %v7696, %v7709
        %v7712 = vmul.f32 %v7697, %v7709
        %v7713 = vmul.f32 %v7698, %v7709
        %v7714 = vmul.f32 %v7699, %v7709
        %v7715 = vmul.f32 %v7700, %v7709
        %v7716 = vmul.f32 %v7701, %v7709
        %v7717 = vmul.f32 %v7702, %v7709
        %v7718 = vmul.f32 %v7703, %v7709
        %v7719 = vld [vmem:[%s25] sm:$0x1]
        %v7721 = vlaneseq
        %v7722 = vshrl.u32 %v7721, 7
        %v7723 = vsub.s32 0, %v7722
        %v7724 = vrot.slane %v7719, %v7723
        %v7726 = vadd.f32 %v7711, %v7724
        %v7727 = vadd.f32 %v7712, %v7724
        %v7728 = vadd.f32 %v7713, %v7724
        %v7729 = vadd.f32 %v7714, %v7724
        %v7730 = vadd.f32 %v7715, %v7724
        %v7731 = vadd.f32 %v7716, %v7724
        %v7732 = vadd.f32 %v7717, %v7724
        %v7733 = vadd.f32 %v7718, %v7724
        %v7734 = vmax.f32 %v7726, 0.0
        %v7735 = vmax.f32 %v7727, 0.0
        %v7736 = vmax.f32 %v7728, 0.0
        %v7737 = vmax.f32 %v7729, 0.0
        %v7738 = vmax.f32 %v7730, 0.0
        %v7739 = vmax.f32 %v7731, 0.0
        %v7740 = vmax.f32 %v7732, 0.0
        %v7741 = vmax.f32 %v7733, 0.0
        %7750 = vrot.lane.b32.xlu0 %v7734, 32
        %v7751 = vpop.permute.xlu0 %7750
        %7752 = vrot.lane.b32.xlu0 %v7735, 32
        %v7753 = vpop.permute.xlu0 %7752
        %7754 = vrot.lane.b32.xlu0 %v7736, 32
        %v7755 = vpop.permute.xlu0 %7754
        %7756 = vrot.lane.b32.xlu0 %v7737, 32
        %v7757 = vpop.permute.xlu0 %7756
        %7758 = vrot.lane.b32.xlu0 %v7738, 32
        %v7759 = vpop.permute.xlu0 %7758
        %7760 = vrot.lane.b32.xlu0 %v7739, 32
        %v7761 = vpop.permute.xlu0 %7760
        %7762 = vrot.lane.b32.xlu0 %v7740, 32
        %v7763 = vpop.permute.xlu0 %7762
        %7764 = vrot.lane.b32.xlu0 %v7741, 32
        %v7765 = vpop.permute.xlu0 %7764
        %vm7774 = vcmask 523520
        %7775 = vst.msk [vmem:[%s1056 + $0x18] sm:$0xff] %vm7774, %v7751
        %7776 = vst.msk [vmem:[%s1056 + $0x48] sm:$0xff] %vm7774, %v7753
        %7777 = vst.msk [vmem:[%s1056 + $0x78] sm:$0xff] %vm7774, %v7755
        %7778 = vst.msk [vmem:[%s1056 + $0xa8] sm:$0xff] %vm7774, %v7757
        %7779 = vst.msk [vmem:[%s1056 + $0xd8] sm:$0xff] %vm7774, %v7759
        %7780 = vst.msk [vmem:[%s1056 + $0x108] sm:$0xff] %vm7774, %v7761
        %7781 = vst.msk [vmem:[%s1056 + $0x138] sm:$0xff] %vm7774, %v7763
        %7782 = vst.msk [vmem:[%s1056 + $0x168] sm:$0xff] %vm7774, %v7765
        %v7783 = vld [vmem:[#allocation2 + $0x40] sm:$0xff]
        %v7784 = vld [vmem:[#allocation2 + $0x48] sm:$0xff]
        %v7785 = vld [vmem:[#allocation2 + $0x70] sm:$0xff]
        %v7786 = vld [vmem:[#allocation2 + $0x78] sm:$0xff]
        %v7787 = vld [vmem:[#allocation2 + $0xa0] sm:$0xff]
        %v7788 = vld [vmem:[#allocation2 + $0xa8] sm:$0xff]
        %v7789 = vld [vmem:[#allocation2 + $0xd0] sm:$0xff]
        %v7790 = vld [vmem:[#allocation2 + $0xd8] sm:$0xff]
        %v7791 = vld [vmem:[#allocation2 + $0x100] sm:$0xff]
        %v7792 = vld [vmem:[#allocation2 + $0x108] sm:$0xff]
        %v7793 = vld [vmem:[#allocation2 + $0x130] sm:$0xff]
        %v7794 = vld [vmem:[#allocation2 + $0x138] sm:$0xff]
        %v7795 = vld [vmem:[#allocation2 + $0x160] sm:$0xff]
        %v7796 = vld [vmem:[#allocation2 + $0x168] sm:$0xff]
        %v7797 = vld [vmem:[#allocation2 + $0x190] sm:$0xff]
        %v7798 = vld [vmem:[#allocation2 + $0x198] sm:$0xff]
        %v7799 = vadd.f32 %v7783, %v7785
        %v7800 = vadd.f32 %v7799, %v7787
        %v7801 = vadd.f32 %v7800, %v7789
        %v7802 = vadd.f32 %v7801, %v7791
        %v7803 = vadd.f32 %v7802, %v7793
        %v7804 = vadd.f32 %v7803, %v7795
        %v7805 = vadd.f32 %v7804, %v7797
        %v7806 = vrot.slane %v7805, 4
        %v7807 = vadd.f32 %v7805, %v7806
        %v7808 = vrot.slane %v7807, 2
        %v7809 = vadd.f32 %v7807, %v7808
        %v7810 = vrot.slane %v7809, 1
        %v7811 = vadd.f32 %v7809, %v7810
        %v7812 = vsel %vm987, %v7784, 0.0
        %v7813 = vsel %vm987, %v7786, 0.0
        %v7814 = vadd.f32 %v7812, %v7813
        %v7815 = vsel %vm987, %v7788, 0.0
        %v7816 = vadd.f32 %v7814, %v7815
        %v7817 = vsel %vm987, %v7790, 0.0
        %v7818 = vadd.f32 %v7816, %v7817
        %v7819 = vsel %vm987, %v7792, 0.0
        %v7820 = vadd.f32 %v7818, %v7819
        %v7821 = vsel %vm987, %v7794, 0.0
        %v7822 = vadd.f32 %v7820, %v7821
        %v7823 = vsel %vm987, %v7796, 0.0
        %v7824 = vadd.f32 %v7822, %v7823
        %v7825 = vsel %vm987, %v7798, 0.0
        %v7826 = vadd.f32 %v7824, %v7825
        %v7827 = vrot.slane %v7826, 4
        %v7828 = vadd.f32 %v7826, %v7827
        %v7829 = vrot.slane %v7828, 2
        %v7830 = vadd.f32 %v7828, %v7829
        %v7831 = vrot.slane %v7830, 1
        %v7832 = vadd.f32 %v7830, %v7831
        %v7833 = vmul.f32 %v7811, %v2375
        %v7834 = vmul.f32 %v7832, %v2375
        %v7835 = vld [vmem:[%s57] sm:$0xff]
        %v7836 = vld [vmem:[%s57 + $0x8] sm:$0xff]
        %v7837 = vld [vmem:[%s57 + $0x10] sm:$0xff]
        %v7838 = vld [vmem:[%s57 + $0x18] sm:$0xff]
        %v7839 = vld [vmem:[%s57 + $0x20] sm:$0xff]
        %v7840 = vld [vmem:[%s57 + $0x28] sm:$0xff]
        %v7841 = vld [vmem:[%s57 + $0x30] sm:$0xff]
        %v7842 = vld [vmem:[%s57 + $0x38] sm:$0xff]
        %v7843 = vld [vmem:[%s57 + $0x40] sm:$0xff]
        %v7844 = vld [vmem:[%s57 + $0x48] sm:$0xff]
        %v7845 = vld [vmem:[%s57 + $0x50] sm:$0xff]
        %v7846 = vld [vmem:[%s57 + $0x58] sm:$0xff]
        %v7847 = vld [vmem:[%s57 + $0x60] sm:$0xff]
        %v7848 = vld [vmem:[%s57 + $0x68] sm:$0xff]
        %v7849 = vld [vmem:[%s57 + $0x70] sm:$0xff]
        %v7850 = vld [vmem:[%s57 + $0x78] sm:$0xff]
        %v7851 = vld [vmem:[%s57 + $0x80] sm:$0xff]
        %v7852 = vld [vmem:[%s57 + $0x88] sm:$0xff]
        %v7853 = vld [vmem:[%s57 + $0x90] sm:$0xff]
        %v7854 = vld [vmem:[%s57 + $0x98] sm:$0xff]
        %v7855 = vld [vmem:[%s57 + $0xa0] sm:$0xff]
        %v7856 = vld [vmem:[%s57 + $0xa8] sm:$0xff]
        %v7857 = vld [vmem:[%s57 + $0xb0] sm:$0xff]
        %v7858 = vld [vmem:[%s57 + $0xb8] sm:$0xff]
        %v7859 = vld [vmem:[%s59] sm:$0x1]
        %v7861 = vsel %vm987, %v7834, 0
        %7863 = vmatprep.subr.mxu0 0.0
        %7864 = vmatpush1.msra.mxu0 %v7835
        %7865 = vmatprep.subr.mxu0 0.0
        %7866 = vmatpush1.msra.mxu0 %v7836
        %7867 = vmatprep.subr.mxu0 0.0
        %7868 = vmatpush1.msra.mxu0 %v7837
        %7869 = vmatprep.subr.mxu0 0.0
        %7870 = vmatpush1.msra.mxu0 %v7838
        %7871 = vmatprep.subr.mxu0 0.0
        %7872 = vmatpush1.msra.mxu0 %v7839
        %7873 = vmatprep.subr.mxu0 0.0
        %7874 = vmatpush1.msra.mxu0 %v7840
        %7875 = vmatprep.subr.mxu0 0.0
        %7876 = vmatpush1.msra.mxu0 %v7841
        %7877 = vmatprep.subr.mxu0 0.0
        %7878 = vmatpush1.msra.mxu0 %v7842
        %7879 = vmatprep.subr.mxu0 0.0
        %7880 = vmatpush1.msra.mxu0 %v7843
        %7881 = vmatprep.subr.mxu0 0.0
        %7882 = vmatpush1.msra.mxu0 %v7844
        %7883 = vmatprep.subr.mxu0 0.0
        %7884 = vmatpush1.msra.mxu0 %v7845
        %7885 = vmatprep.subr.mxu0 0.0
        %7886 = vmatpush1.msra.mxu0 %v7846
        %7887 = vmatprep.subr.mxu0 0.0
        %7888 = vmatpush1.msra.mxu0 %v7847
        %7889 = vmatprep.subr.mxu0 0.0
        %7890 = vmatpush1.msra.mxu0 %v7848
        %7891 = vmatprep.subr.mxu0 0.0
        %7892 = vmatpush1.msra.mxu0 %v7849
        %7893 = vmatprep.subr.mxu0 0.0
        %7894 = vmatpush1.msra.mxu0 %v7850
        %7895 = vmatprep.subr.mxu0 0.0
        %7896 = vmatpush1.msra.mxu0 %v7851
        %7897 = vmatprep.subr.mxu0 0.0
        %7898 = vmatpush1.msra.mxu0 %v7852
        %7899 = vmatprep.subr.mxu0 0.0
        %7900 = vmatpush1.msra.mxu0 %v7853
        %7901 = vmatprep.subr.mxu0 0.0
        %7902 = vmatpush1.msra.mxu0 %v7854
        %7903 = vmatprep.subr.mxu0 0.0
        %7904 = vmatpush1.msra.mxu0 %v7855
        %7905 = vmatprep.subr.mxu0 0.0
        %7906 = vmatpush1.msra.mxu0 %v7856
        %7907 = vmatprep.subr.mxu0 0.0
        %7908 = vmatpush1.msra.mxu0 %v7857
        %7909 = vmatprep.subr.mxu0 0.0
        %7910 = vmatpush1.msra.mxu0 %v7858
        %7911 = vmatprep.subr.mxu0 0.0
        %7912 = vmatpush1.msra.mxu0 0.0
        %7913 = vmatprep.subr.mxu0 0.0
        %7914 = vmatpush1.msra.mxu0 0.0
        %7915 = vmatprep.subr.mxu0 0.0
        %7916 = vmatpush1.msra.mxu0 0.0
        %7917 = vmatprep.subr.mxu0 0.0
        %7918 = vmatpush1.msra.mxu0 0.0
        %7919 = vmatprep.subr.mxu0 0.0
        %7920 = vmatpush1.msra.mxu0 0.0
        %7921 = vmatprep.subr.mxu0 0.0
        %7922 = vmatpush1.msra.mxu0 0.0
        %7923 = vmatprep.subr.mxu0 0.0
        %7924 = vmatpush1.msra.mxu0 0.0
        %7925 = vmatprep.subr.mxu0 0.0
        %7926 = vmatpush1.msra.mxu0 0.0
        %7927 = vmatprep.mubr.f32.mxu0 %v7861
        %7928 = vmatmul.mubr.f32.gmra.mrb[0].mxu0 %v7833
        %v7929 = vpop.f32.mrb[0].mxu0
        %v7930 = vadd.f32 %v7859, %v7929
        %v7931 = vpop.f32.mrb[0].mxu0
        %7932 = vdwg.mxu0
        %v7933 = vmax.f32 %v7930, 0.0
        %v7934 = vld [vmem:[%s61] sm:$0xff]
        %v7935 = vld [vmem:[%s61 + $0x8] sm:$0xff]
        %v7936 = vld [vmem:[%s61 + $0x10] sm:$0xff]
        %v7937 = vld [vmem:[%s61 + $0x18] sm:$0xff]
        %v7938 = vld [vmem:[%s61 + $0x20] sm:$0xff]
        %v7939 = vld [vmem:[%s61 + $0x28] sm:$0xff]
        %v7940 = vld [vmem:[%s61 + $0x30] sm:$0xff]
        %v7941 = vld [vmem:[%s61 + $0x38] sm:$0xff]
        %v7942 = vld [vmem:[%s61 + $0x40] sm:$0xff]
        %v7943 = vld [vmem:[%s61 + $0x48] sm:$0xff]
        %v7944 = vld [vmem:[%s61 + $0x50] sm:$0xff]
        %v7945 = vld [vmem:[%s61 + $0x58] sm:$0xff]
        %v7946 = vld [vmem:[%s61 + $0x60] sm:$0xff]
        %v7947 = vld [vmem:[%s61 + $0x68] sm:$0xff]
        %v7948 = vld [vmem:[%s61 + $0x70] sm:$0xff]
        %v7949 = vld [vmem:[%s61 + $0x78] sm:$0xff]
        %v7950 = vld [vmem:[%s61 + $0x80] sm:$0xff]
        %v7951 = vld [vmem:[%s61 + $0x88] sm:$0xff]
        %v7952 = vld [vmem:[%s61 + $0x90] sm:$0xff]
        %v7953 = vld [vmem:[%s61 + $0x98] sm:$0xff]
        %v7954 = vld [vmem:[%s61 + $0xa0] sm:$0xff]
        %v7955 = vld [vmem:[%s61 + $0xa8] sm:$0xff]
        %v7956 = vld [vmem:[%s61 + $0xb0] sm:$0xff]
        %v7957 = vld [vmem:[%s61 + $0xb8] sm:$0xff]
        %v7958 = vld [vmem:[%s63] sm:$0x3]
        %v7960 = vlaneseq
        %v7961 = vshrl.u32 %v7960, 7
        %v7962 = vsub.s32 0, %v7961
        %v7963 = vrot.slane %v7958, %v7962
        %v7964 = vlaneseq
        %v7965 = vshrl.u32 %v7964, 7
        %v7966 = vsub.s32 1, %v7965
        %v7967 = vrot.slane %v7958, %v7966
        %v7971 = vsel %vm2353, %v7933, 0
        %7973 = vmatprep.subr.mxu0 %v7935
        %7974 = vmatpush1.msra.mxu0 %v7934
        %7975 = vmatprep.subr.mxu0 %v7937
        %7976 = vmatpush1.msra.mxu0 %v7936
        %7977 = vmatprep.subr.mxu0 %v7939
        %7978 = vmatpush1.msra.mxu0 %v7938
        %7979 = vmatprep.subr.mxu0 %v7941
        %7980 = vmatpush1.msra.mxu0 %v7940
        %7981 = vmatprep.subr.mxu0 %v7943
        %7982 = vmatpush1.msra.mxu0 %v7942
        %7983 = vmatprep.subr.mxu0 %v7945
        %7984 = vmatpush1.msra.mxu0 %v7944
        %7985 = vmatprep.subr.mxu0 %v7947
        %7986 = vmatpush1.msra.mxu0 %v7946
        %7987 = vmatprep.subr.mxu0 %v7949
        %7988 = vmatpush1.msra.mxu0 %v7948
        %7989 = vmatprep.subr.mxu0 %v7951
        %7990 = vmatpush1.msra.mxu0 %v7950
        %7991 = vmatprep.subr.mxu0 %v7953
        %7992 = vmatpush1.msra.mxu0 %v7952
        %7993 = vmatprep.subr.mxu0 %v7955
        %7994 = vmatpush1.msra.mxu0 %v7954
        %7995 = vmatprep.subr.mxu0 %v7957
        %7996 = vmatpush1.msra.mxu0 %v7956
        %7997 = vmatprep.subr.mxu0 0.0
        %7998 = vmatpush1.msra.mxu0 0.0
        %7999 = vmatprep.subr.mxu0 0.0
        %8000 = vmatpush1.msra.mxu0 0.0
        %8001 = vmatprep.subr.mxu0 0.0
        %8002 = vmatpush1.msra.mxu0 0.0
        %8003 = vmatprep.subr.mxu0 0.0
        %8004 = vmatpush1.msra.mxu0 0.0
        %8005 = vmatprep.subr.mxu0 0.0
        %8006 = vmatpush1.msra.mxu0 0.0
        %8007 = vmatprep.subr.mxu0 0.0
        %8008 = vmatpush1.msra.mxu0 0.0
        %8009 = vmatprep.subr.mxu0 0.0
        %8010 = vmatpush1.msra.mxu0 0.0
        %8011 = vmatprep.subr.mxu0 0.0
        %8012 = vmatpush1.msra.mxu0 0.0
        %8013 = vmatprep.subr.mxu0 0.0
        %8014 = vmatpush1.msra.mxu0 0.0
        %8015 = vmatprep.subr.mxu0 0.0
        %8016 = vmatpush1.msra.mxu0 0.0
        %8017 = vmatprep.subr.mxu0 0.0
        %8018 = vmatpush1.msra.mxu0 0.0
        %8019 = vmatprep.subr.mxu0 0.0
        %8020 = vmatpush1.msra.mxu0 0.0
        %8021 = vmatprep.subr.mxu0 0.0
        %8022 = vmatpush1.msra.mxu0 0.0
        %8023 = vmatprep.subr.mxu0 0.0
        %8024 = vmatpush1.msra.mxu0 0.0
        %8025 = vmatprep.subr.mxu0 0.0
        %8026 = vmatpush1.msra.mxu0 0.0
        %8027 = vmatprep.subr.mxu0 0.0
        %8028 = vmatpush1.msra.mxu0 0.0
        %8029 = vmatprep.subr.mxu0 0.0
        %8030 = vmatpush1.msra.mxu0 0.0
        %8031 = vmatprep.subr.mxu0 0.0
        %8032 = vmatpush1.msra.mxu0 0.0
        %8033 = vmatprep.subr.mxu0 0.0
        %8034 = vmatpush1.msra.mxu0 0.0
        %8035 = vmatprep.subr.mxu0 0.0
        %8036 = vmatpush1.msra.mxu0 0.0
        %8037 = vmatprep.mubr.f32.mxu0 0.0
        %8038 = vmatmul.mubr.f32.gmra.mrb[0].mxu0 %v7971
        %v8039 = vpop.f32.mrb[0].mxu0
        %v8040 = vadd.f32 %v7963, %v8039
        %v8041 = vpop.f32.mrb[0].mxu0
        %v8042 = vadd.f32 %v7967, %v8041
        %8043 = vdwg.mxu0
        %v8044 = vxor.u32 %v8040, 2147483648
        %v8045 = vxor.u32 %v8042, 2147483648
        %v8046 = vmul.f32 %v8044, 1.442695
        %v8047 = vpow.pop %v8046
        %v8048 = vmul.f32 %v8045, 1.442695
        %v8049 = vpow.pop %v8048
        %v8050 = vadd.f32 %v8047, 1.0
        %v8051 = vadd.f32 %v8049, 1.0
        %v8052 = vrcp.pop %v8050
        %v8053 = vmul.f32 1.0, %v8052
        %v8054 = vrcp.pop %v8051
        %v8055 = vmul.f32 1.0, %v8054
        %v8056 = vlaneseq
        %v8057 = vshrl.u32 %v8056, 7
        %v8058 = vsub.s32 0, %v8057
        %v8059 = vrot.slane %v8053, %v8058
        %v8060 = vlaneseq
        %v8061 = vshrl.u32 %v8060, 7
        %v8062 = vsub.s32 0, %v8061
        %v8063 = vrot.slane %v8055, %v8062
        %v8064 = vmul.f32 %v7783, %v8059
        %v8065 = vmul.f32 %v7784, %v8063
        %v8066 = vmul.f32 %v7785, %v8059
        %v8067 = vmul.f32 %v7786, %v8063
        %v8068 = vmul.f32 %v7787, %v8059
        %v8069 = vmul.f32 %v7788, %v8063
        %v8070 = vmul.f32 %v7789, %v8059
        %v8071 = vmul.f32 %v7790, %v8063
        %v8072 = vmul.f32 %v7791, %v8059
        %v8073 = vmul.f32 %v7792, %v8063
        %v8074 = vmul.f32 %v7793, %v8059
        %v8075 = vmul.f32 %v7794, %v8063
        %v8076 = vmul.f32 %v7795, %v8059
        %v8077 = vmul.f32 %v7796, %v8063
        %v8078 = vmul.f32 %v7797, %v8059
        %v8079 = vmul.f32 %v7798, %v8063
        %v8080 = vpack.c.bf16 %v8066, %v8064
        %v8081 = vpack.c.bf16 %v8067, %v8065
        %v8082 = vpack.c.bf16 %v8070, %v8068
        %v8083 = vpack.c.bf16 %v8071, %v8069
        %v8084 = vpack.c.bf16 %v8074, %v8072
        %v8085 = vpack.c.bf16 %v8075, %v8073
        %v8086 = vpack.c.bf16 %v8078, %v8076
        %v8087 = vpack.c.bf16 %v8079, %v8077
        %v8088 = vld [vmem:[%s27] sm:$0xf]
        %v8089 = vld [vmem:[%s27 + $0x4] sm:$0xf]
        %v8090 = vld [vmem:[%s27 + $0x8] sm:$0xf]
        %v8091 = vld [vmem:[%s27 + $0xc] sm:$0xf]
        %v8092 = vld [vmem:[%s27 + $0x10] sm:$0xf]
        %v8093 = vld [vmem:[%s27 + $0x14] sm:$0xf]
        %v8094 = vld [vmem:[%s27 + $0x18] sm:$0xf]
        %v8095 = vld [vmem:[%s27 + $0x1c] sm:$0xf]
        %v8096 = vld [vmem:[%s27 + $0x20] sm:$0xf]
        %v8097 = vld [vmem:[%s27 + $0x24] sm:$0xf]
        %v8098 = vld [vmem:[%s27 + $0x28] sm:$0xf]
        %v8099 = vld [vmem:[%s27 + $0x2c] sm:$0xf]
        %v8100 = vld [vmem:[%s27 + $0x30] sm:$0xf]
        %v8101 = vld [vmem:[%s27 + $0x34] sm:$0xf]
        %v8102 = vld [vmem:[%s27 + $0x38] sm:$0xf]
        %v8103 = vld [vmem:[%s27 + $0x3c] sm:$0xf]
        %v8104 = vld [vmem:[%s27 + $0x40] sm:$0xf]
        %v8105 = vld [vmem:[%s27 + $0x44] sm:$0xf]
        %v8106 = vld [vmem:[%s27 + $0x48] sm:$0xf]
        %v8107 = vld [vmem:[%s27 + $0x4c] sm:$0xf]
        %v8108 = vld [vmem:[%s27 + $0x50] sm:$0xf]
        %v8109 = vld [vmem:[%s27 + $0x54] sm:$0xf]
        %v8110 = vld [vmem:[%s27 + $0x58] sm:$0xf]
        %v8111 = vld [vmem:[%s27 + $0x5c] sm:$0xf]
        %v8136 = vunpack.c.l.b16 %v8088
        %v8137 = vunpack.c.l.b16 %v8089
        %v8138 = vunpack.c.l.b16 %v8090
        %v8139 = vunpack.c.l.b16 %v8091
        %v8140 = vunpack.c.l.b16 %v8092
        %v8141 = vunpack.c.l.b16 %v8093
        %v8142 = vunpack.c.l.b16 %v8094
        %v8143 = vunpack.c.l.b16 %v8095
        %v8144 = vunpack.c.l.b16 %v8096
        %v8145 = vunpack.c.l.b16 %v8097
        %v8146 = vunpack.c.l.b16 %v8098
        %v8147 = vunpack.c.l.b16 %v8099
        %v8148 = vunpack.c.l.b16 %v8100
        %v8149 = vunpack.c.l.b16 %v8101
        %v8150 = vunpack.c.l.b16 %v8102
        %v8151 = vunpack.c.l.b16 %v8103
        %v8152 = vunpack.c.l.b16 %v8104
        %v8153 = vunpack.c.l.b16 %v8105
        %v8154 = vunpack.c.l.b16 %v8106
        %v8155 = vunpack.c.l.b16 %v8107
        %v8156 = vunpack.c.l.b16 %v8108
        %v8157 = vunpack.c.l.b16 %v8109
        %v8158 = vunpack.c.l.b16 %v8110
        %v8159 = vunpack.c.l.b16 %v8111
        %v8160 = vpack.c.b16 %v8137, %v8136
        %v8161 = vpack.c.b16 %v8139, %v8138
        %v8162 = vpack.c.b16 %v8141, %v8140
        %v8163 = vpack.c.b16 %v8143, %v8142
        %v8164 = vpack.c.b16 %v8145, %v8144
        %v8165 = vpack.c.b16 %v8147, %v8146
        %v8166 = vpack.c.b16 %v8149, %v8148
        %v8167 = vpack.c.b16 %v8151, %v8150
        %v8168 = vpack.c.b16 %v8153, %v8152
        %v8169 = vpack.c.b16 %v8155, %v8154
        %v8170 = vpack.c.b16 %v8157, %v8156
        %v8171 = vpack.c.b16 %v8159, %v8158
        %v8185 = vsel %vm987, %v8081, 0
        %v8188 = vsel %vm987, %v8083, 0
        %v8191 = vsel %vm987, %v8085, 0
        %v8194 = vsel %vm987, %v8087, 0
        %8196 = vmatprep.subr.bf16.mxu0 0
        %8197 = vmatpush1.bf16.msra.mxu0 %v8160
        %8198 = vmatprep.subr.bf16.mxu0 0
        %8199 = vmatpush1.bf16.msra.mxu0 %v8161
        %8200 = vmatprep.subr.bf16.mxu0 0
        %8201 = vmatpush1.bf16.msra.mxu0 %v8162
        %8202 = vmatprep.subr.bf16.mxu0 0
        %8203 = vmatpush1.bf16.msra.mxu0 %v8163
        %8204 = vmatprep.subr.bf16.mxu0 0
        %8205 = vmatpush1.bf16.msra.mxu0 %v8164
        %8206 = vmatprep.subr.bf16.mxu0 0
        %8207 = vmatpush1.bf16.msra.mxu0 %v8165
        %8208 = vmatprep.subr.bf16.mxu0 0
        %8209 = vmatpush1.bf16.msra.mxu0 %v8166
        %8210 = vmatprep.subr.bf16.mxu0 0
        %8211 = vmatpush1.bf16.msra.mxu0 %v8167
        %8212 = vmatprep.subr.bf16.mxu0 0
        %8213 = vmatpush1.bf16.msra.mxu0 %v8168
        %8214 = vmatprep.subr.bf16.mxu0 0
        %8215 = vmatpush1.bf16.msra.mxu0 %v8169
        %8216 = vmatprep.subr.bf16.mxu0 0
        %8217 = vmatpush1.bf16.msra.mxu0 %v8170
        %8218 = vmatprep.subr.bf16.mxu0 0
        %8219 = vmatpush1.bf16.msra.mxu0 %v8171
        %8220 = vmatprep.subr.bf16.mxu0 0
        %8221 = vmatpush1.bf16.msra.mxu0 0
        %8222 = vmatprep.subr.bf16.mxu0 0
        %8223 = vmatpush1.bf16.msra.mxu0 0
        %8224 = vmatprep.subr.bf16.mxu0 0
        %8225 = vmatpush1.bf16.msra.mxu0 0
        %8226 = vmatprep.subr.bf16.mxu0 0
        %8227 = vmatpush1.bf16.msra.mxu0 0
        %8228 = vmatprep.mubr.bf16.mxu0 %v8185
        %8229 = vmatmul.mubr.bf16.gmra.mrb[0].mxu0 %v8080
        %v8230 = vpop.f32.mrb[0].mxu0
        %v8231 = vadd.f32 0.0, %v8230
        %v8232 = vpop.f32.mrb[0].mxu0
        %v8233 = vpop.f32.mrb[0].mxu0
        %v8234 = vadd.f32 0.0, %v8233
        %v8235 = vpop.f32.mrb[0].mxu0
        %8236 = vmatprep.mubr.bf16.mxu0 %v8188
        %8237 = vmatmul.mubr.bf16.gmra.mrb[0].mxu0 %v8082
        %v8238 = vpop.f32.mrb[0].mxu0
        %v8239 = vadd.f32 0.0, %v8238
        %v8240 = vpop.f32.mrb[0].mxu0
        %v8241 = vpop.f32.mrb[0].mxu0
        %v8242 = vadd.f32 0.0, %v8241
        %v8243 = vpop.f32.mrb[0].mxu0
        %8244 = vmatprep.mubr.bf16.mxu0 %v8191
        %8245 = vmatmul.mubr.bf16.gmra.mrb[0].mxu0 %v8084
        %v8246 = vpop.f32.mrb[0].mxu0
        %v8247 = vadd.f32 0.0, %v8246
        %v8248 = vpop.f32.mrb[0].mxu0
        %v8249 = vpop.f32.mrb[0].mxu0
        %v8250 = vadd.f32 0.0, %v8249
        %v8251 = vpop.f32.mrb[0].mxu0
        %8252 = vmatprep.mubr.bf16.mxu0 %v8194
        %8253 = vmatmul.mubr.bf16.gmra.mrb[0].mxu0 %v8086
        %v8254 = vpop.f32.mrb[0].mxu0
        %v8255 = vadd.f32 0.0, %v8254
        %v8256 = vpop.f32.mrb[0].mxu0
        %v8257 = vpop.f32.mrb[0].mxu0
        %v8258 = vadd.f32 0.0, %v8257
        %v8259 = vpop.f32.mrb[0].mxu0
        %8260 = vdwg.mxu0
        %v8261 = vld [vmem:[%s29] sm:$0x1]
        %v8263 = vlaneseq
        %v8264 = vshrl.u32 %v8263, 7
        %v8265 = vsub.s32 0, %v8264
        %v8266 = vrot.slane %v8261, %v8265
        %v8268 = vmul.f32 %v8231, %v8266
        %v8269 = vmul.f32 %v8234, %v8266
        %v8270 = vmul.f32 %v8239, %v8266
        %v8271 = vmul.f32 %v8242, %v8266
        %v8272 = vmul.f32 %v8247, %v8266
        %v8273 = vmul.f32 %v8250, %v8266
        %v8274 = vmul.f32 %v8255, %v8266
        %v8275 = vmul.f32 %v8258, %v8266
        %v8276 = vld [vmem:[%s31] sm:$0x1]
        %v8278 = vlaneseq
        %v8279 = vshrl.u32 %v8278, 7
        %v8280 = vsub.s32 0, %v8279
        %v8281 = vrot.slane %v8276, %v8280
        %v8283 = vadd.f32 %v8268, %v8281
        %v8284 = vadd.f32 %v8269, %v8281
        %v8285 = vadd.f32 %v8270, %v8281
        %v8286 = vadd.f32 %v8271, %v8281
        %v8287 = vadd.f32 %v8272, %v8281
        %v8288 = vadd.f32 %v8273, %v8281
        %v8289 = vadd.f32 %v8274, %v8281
        %v8290 = vadd.f32 %v8275, %v8281
        %v8291 = vmax.f32 %v8283, 0.0
        %v8292 = vmax.f32 %v8284, 0.0
        %v8293 = vmax.f32 %v8285, 0.0
        %v8294 = vmax.f32 %v8286, 0.0
        %v8295 = vmax.f32 %v8287, 0.0
        %v8296 = vmax.f32 %v8288, 0.0
        %v8297 = vmax.f32 %v8289, 0.0
        %v8298 = vmax.f32 %v8290, 0.0
        %v8299 = vadd.f32 %v8291, %v7783
        %v8300 = vadd.f32 %v8292, %v7785
        %v8301 = vadd.f32 %v8293, %v7787
        %v8302 = vadd.f32 %v8294, %v7789
        %v8303 = vadd.f32 %v8295, %v7791
        %v8304 = vadd.f32 %v8296, %v7793
        %v8305 = vadd.f32 %v8297, %v7795
        %v8306 = vadd.f32 %v8298, %v7797
        %8307 = vst.msk [vmem:[%s979] sm:$0xff] %vm987, %v8299
        %8308 = vst.msk [vmem:[%s979 + $0x8] sm:$0xff] %vm987, %v8300
        %8309 = vst.msk [vmem:[%s979 + $0x10] sm:$0xff] %vm987, %v8301
        %8310 = vst.msk [vmem:[%s979 + $0x18] sm:$0xff] %vm987, %v8302
        %8311 = vst.msk [vmem:[%s979 + $0x20] sm:$0xff] %vm987, %v8303
        %8312 = vst.msk [vmem:[%s979 + $0x28] sm:$0xff] %vm987, %v8304
        %8313 = vst.msk [vmem:[%s979 + $0x30] sm:$0xff] %vm987, %v8305
        %8314 = vst.msk [vmem:[%s979 + $0x38] sm:$0xff] %vm987, %v8306
        %s8315 = sand.u32 %s764, 1
        %s8316 = scalar_lea.sflag [#allocation4], %s8315
        %s8317 = sand.u32 %s764, 1
        %s8318 = smul.addr %s8317, 64
        %s8319 = scalar_lea.vmem [#allocation3], %s8318
        // Predicated region
        $region149: #{rdb_forward.1} parent=147 // pred_check
          %p8320 = pneg %p774
        $region150: #{rdb_forward.1} parent=147 // pred_check_branch
          %8322 = sbr.rel (%p8320) target = $region152
        $region151: #{rdb_forward.1} parent=147 // pred_region
          %s8324 = ssub.s32 1024, 1024
          %8325 = vsyncadd %s8316, %s8324
          %s8326 = smul.addr %s79, 8
          %s8327 = smul.addr %s8326, 128
          %s8328 = scalar_lea.hbm %s65, %s8327
          %s8329 = sshll.u32 %s8319, 4
          %s8330 = int_to_ptr.vmem [resolvable:$true] %s8329
          %8335 = dma.vmem_to_hbm [thread:$0]  %s8330, 1024, %s8328, %s8316, 128, 128, 8
        $region152: #{rdb_forward.1} parent=147 // pred_fallthru
          _
      $region148: #{rdb_forward.1} parent=5 // pred_fallthru
        _
      %p8336 = scmp.le.s32.totalorder 2, %s74
      // Predicated region
      $region153: #{rdb_forward.1} parent=5 // pred_check
        %p8337 = pneg %p8336
      $region154: #{rdb_forward.1} parent=5 // pred_check_branch
        %8339 = sbr.rel (%p8337) target = $region156
      $region155: #{rdb_forward.1} parent=5 // pred_region
        %s8340 = ssub.s32 %s74, 2
        // Predicated region
        $region157: #{rdb_forward.1} parent=155 // pred_check
          %p8341 = pneg %p780
        $region158: #{rdb_forward.1} parent=155 // pred_check_branch
          %8343 = sbr.rel (%p8341) target = $region160
        $region159: #{rdb_forward.1} parent=155 // pred_region
          %s8344 = sand.u32 %s765, 1
          %s8345 = scalar_lea.sflag [#allocation4], %s8344
          %s8346 = sand.u32 %s765, 1
          %s8347 = smul.addr %s8346, 64
          %s8348 = scalar_lea.vmem [#allocation3], %s8347
          %8349 = dma.done %s8345, 1024
        $region160: #{rdb_forward.1} parent=155 // pred_fallthru
          _
      $region156: #{rdb_forward.1} parent=5 // pred_fallthru
        _
    $region6: #{rdb_forward.1} parent=1 // loop_footer
      %s78 = sadd.s32 1, %s74
    $region7: #{rdb_forward.1} parent=1 // loop_footer_branch
      %73 = sbr.rel target = $region3
    $region8: #{rdb_forward.1} parent=1 // loop_exit
      _
    %8350 = vsyncpa [#allocation4], 1
    %s8351 = scalar_lea.sflag [#allocation4], 1
    %8352 = vsyncpa %s8351, 1

</llo_original>
